<compile_context>
chip_gen: v7x
topology: tpu7x:2x2x1
jax: 0.10.0
libtpu: 0.0.40
codegen_flags: <defaults>
</compile_context>

<pallas_src>
import functools

import jax
import jax.numpy as jnp
from jax.experimental import pallas as pl
from jax.experimental.pallas import tpu as pltpu

_BN_EPS = 1e-5


# ----------------------------------------------------------------------------
# Pallas kernels
# ----------------------------------------------------------------------------
def _phase_matmul_bn_relu_kernel(patch_ref, w_ref, g_ref, b_ref, o_ref,
                                 acc_ref, s1_ref, s2_ref, *, inv_n):
    """Grid axis = output phase. One MXU matmul per phase + one-pass BN + ReLU.

    patch_ref: (1, M, Kd)     bf16  im2col patches of the current phase
    w_ref:     (1, Kd, Cout)  bf16  weights of the current phase
    g_ref/b_ref: (1, Cout)    f32   BN affine parameters
    o_ref:     (P, M, Cout)   bf16  all phases (VMEM-resident across the grid)
    acc_ref:   (P, M, Cout)   f32   raw conv outputs (scratch)
    s1/s2_ref: (1, Cout)      f32   running sum / sum-of-squares (scratch)
    """
    p = pl.program_id(0)

    @pl.when(p == 0)
    def _init():
        s1_ref[...] = jnp.zeros_like(s1_ref)
        s2_ref[...] = jnp.zeros_like(s2_ref)

    # bf16 x bf16 -> f32 accumulate on the MXU.
    y = jnp.dot(patch_ref[0], w_ref[0], preferred_element_type=jnp.float32)
    acc_ref[p, :, :] = y
    # One-pass BN statistics (per output channel), accumulated across phases.
    s1_ref[...] += jnp.sum(y, axis=0, keepdims=True)
    s2_ref[...] += jnp.sum(y * y, axis=0, keepdims=True)

    @pl.when(p == pl.num_programs(0) - 1)
    def _finalize():
        mean = s1_ref[...] * inv_n                                   # (1, Cout)
        var = jnp.maximum(s2_ref[...] * inv_n - mean * mean, 0.0)    # clamp >= 0
        scale = g_ref[...] * jax.lax.rsqrt(var + _BN_EPS)
        shift = b_ref[...] - mean * scale
        yn = acc_ref[...] * scale[None, :, :] + shift[None, :, :]
        o_ref[...] = jnp.maximum(yn, 0.0).astype(o_ref.dtype)


def _phase_matmul_tanh_kernel(patch_ref, w_ref, o_ref):
    """Final layer: transposed matmul so the minor (lane) axis is N*H*W, not nc=3.

    patch_ref: (1, Kd, M) bf16, w_ref: (1, Cout, Kd) bf16, o_ref: (1, Cout, M) f32
    """
    o_ref[0, :, :] = jnp.tanh(
        jnp.dot(w_ref[0], patch_ref[0], preferred_element_type=jnp.float32))


# ----------------------------------------------------------------------------
# pallas_call wrappers
# ----------------------------------------------------------------------------
def _fused_phase_matmul_bn_relu(patches, wph, gamma, beta):
    """patches: (P, M, Kd) bf16, wph: (P, Kd, Cout) bf16 -> (P, M, Cout) bf16."""
    P, M, Kd = patches.shape
    Cout = wph.shape[-1]
    g2 = gamma.reshape(1, Cout).astype(jnp.float32)
    b2 = beta.reshape(1, Cout).astype(jnp.float32)
    kernel = functools.partial(_phase_matmul_bn_relu_kernel,
                               inv_n=1.0 / float(P * M))
    return pl.pallas_call(
        kernel,
        out_shape=jax.ShapeDtypeStruct((P, M, Cout), jnp.bfloat16),
        grid_spec=pltpu.PrefetchScalarGridSpec(
            num_scalar_prefetch=0,
            grid=(P,),
            in_specs=[
                pl.BlockSpec((1, M, Kd), lambda p: (p, 0, 0)),
                pl.BlockSpec((1, Kd, Cout), lambda p: (p, 0, 0)),
                pl.BlockSpec((1, Cout), lambda p: (0, 0)),
                pl.BlockSpec((1, Cout), lambda p: (0, 0)),
            ],
            out_specs=pl.BlockSpec((P, M, Cout), lambda p: (0, 0, 0)),
            scratch_shapes=[
                pltpu.VMEM((P, M, Cout), jnp.float32),  # raw conv outputs
                pltpu.VMEM((1, Cout), jnp.float32),     # sum
                pltpu.VMEM((1, Cout), jnp.float32),     # sum of squares
            ],
        ),
        compiler_params=pltpu.CompilerParams(
            dimension_semantics=("arbitrary",),   # BN statistics couple phases
            vmem_limit_bytes=32 * 1024 * 1024),
    )(patches, wph, g2, b2)


def _fused_phase_matmul_tanh(patches_t, wph_t):
    """patches_t: (P, Kd, M) bf16, wph_t: (P, Cout, Kd) bf16 -> (P, Cout, M) f32."""
    P, Kd, M = patches_t.shape
    Cout = wph_t.shape[1]
    return pl.pallas_call(
        _phase_matmul_tanh_kernel,
        out_shape=jax.ShapeDtypeStruct((P, Cout, M), jnp.float32),
        grid_spec=pltpu.PrefetchScalarGridSpec(
            num_scalar_prefetch=0,
            grid=(P,),
            in_specs=[
                pl.BlockSpec((1, Kd, M), lambda p: (p, 0, 0)),
                pl.BlockSpec((1, Cout, Kd), lambda p: (p, 0, 0)),
            ],
            out_specs=pl.BlockSpec((1, Cout, M), lambda p: (p, 0, 0)),
        ),
        compiler_params=pltpu.CompilerParams(
            dimension_semantics=("parallel",),    # phases independent -> megacore
            vmem_limit_bytes=32 * 1024 * 1024),
    )(patches_t, wph_t)


# ----------------------------------------------------------------------------
# Layout glue (XLA): phase decomposition, im2col, phase interleaving
# ----------------------------------------------------------------------------
def _stride2_phase_patches_and_weights(x_nhwc, w_t, *, transposed):
    """Phase decomposition of ConvTranspose2d(K=4, stride=2, padding=1).

    out[n, co, 2*qy+py, 2*qx+px] = sum over a 2x2 window of the 1-padded input:
      taps ky = (1-py)+2*ty (row offset dy = py+1-ty), same for columns.

    Returns:
      transposed=False: patches (4, N*H*W, 4*Cin) bf16, weights (4, 4*Cin, Cout) bf16
      transposed=True:  patches (4, 4*Cin, N*H*W) bf16, weights (4, Cout, 4*Cin) bf16
    """
    N, H, W, Cin = x_nhwc.shape
    xp = jnp.pad(x_nhwc, ((0, 0), (1, 1), (1, 1), (0, 0))).astype(jnp.bfloat16)
    w = w_t.astype(jnp.bfloat16)                  # (Cin, Cout, 4, 4)

    patch_list, weight_list = [], []
    for py in (0, 1):
        for px in (0, 1):
            slabs, taps = [], []
            for ty in (0, 1):
                ky = (1 - py) + 2 * ty            # kernel row feeding this phase
                dy = py + 1 - ty                  # matching row offset in xp
                for tx in (0, 1):
                    kx = (1 - px) + 2 * tx
                    dx = px + 1 - tx
                    s = xp[:, dy:dy + H, dx:dx + W, :]          # (N, H, W, Cin)
                    if transposed:
                        slabs.append(jnp.moveaxis(s, 3, 0).reshape(Cin, N * H * W))
                    else:
                        slabs.append(s)
                    taps.append(w[:, :, ky, kx])                # (Cin, Cout)
            if transposed:
                patch_list.append(jnp.concatenate(slabs, axis=0))      # (4Cin, M)
                weight_list.append(jnp.concatenate(taps, axis=0).T)    # (Cout, 4Cin)
            else:
                pcat = jnp.concatenate(slabs, axis=-1)                 # (N,H,W,4Cin)
                patch_list.append(pcat.reshape(N * H * W, 4 * Cin))
                weight_list.append(jnp.concatenate(taps, axis=0))      # (4Cin, Cout)
    return jnp.stack(patch_list, axis=0), jnp.stack(weight_list, axis=0)


def _first_layer_phases(x_nhwc, w_t):
    """ConvTranspose2d(nz, Cout, 4, stride=1, pad=0) on a 1x1 input: each of the
    16 output pixels is an independent (N, Cin) @ (Cin, Cout) matmul."""
    N, _, _, Cin = x_nhwc.shape
    Cout = w_t.shape[1]
    x2 = x_nhwc.reshape(N, Cin).astype(jnp.bfloat16)
    patches = jnp.broadcast_to(x2[None], (16, N, Cin))
    wph = jnp.transpose(w_t, (2, 3, 0, 1)).reshape(16, Cin, Cout).astype(jnp.bfloat16)
    return patches, wph


def _interleave_phases_nhwc(ph, N, H, W, C):
    """(4, N*H*W, C) phase outputs -> (N, 2H, 2W, C) NHWC."""
    t = ph.reshape(2, 2, N, H, W, C).transpose(2, 3, 0, 4, 1, 5)
    return t.reshape(N, 2 * H, 2 * W, C)


def _interleave_phases_nchw(ph, N, H, W, C):
    """(4, C, N*H*W) transposed phase outputs -> (N, C, 2H, 2W) NCHW."""
    t = ph.reshape(2, 2, C, N, H, W).transpose(3, 2, 4, 0, 5, 1)
    return t.reshape(N, C, 2 * H, 2 * W)


# ----------------------------------------------------------------------------
# Generator forward
# ----------------------------------------------------------------------------
def generator_forward(params, x_nchw):
    """Generator.forward: latent (N, nz, 1, 1) NCHW -> image (N, nc, 64, 64) NCHW."""
    N = x_nchw.shape[0]
    x = jnp.transpose(x_nchw, (0, 2, 3, 1))                       # (N, 1, 1, nz)

    # layer 1: ConvT(nz, ngf*8, 4, 1, 0) + BN + ReLU
    w, g, b = params[0]
    cout = w.shape[1]
    patches, wph = _first_layer_phases(x, w)
    ph = _fused_phase_matmul_bn_relu(patches, wph, g, b)          # (16, N, cout)
    x = ph.reshape(4, 4, N, cout).transpose(2, 0, 1, 3)           # (N, 4, 4, cout)

    # layers 2-4: ConvT(., ., 4, 2, 1) + BN + ReLU
    for (w, g, b) in params[1:-1]:
        _, H, W, _ = x.shape
        cout = w.shape[1]
        patches, wph = _stride2_phase_patches_and_weights(x, w, transposed=False)
        ph = _fused_phase_matmul_bn_relu(patches, wph, g, b)      # (4, N*H*W, cout)
        x = _interleave_phases_nhwc(ph, N, H, W, cout)            # (N, 2H, 2W, cout)

    # layer 5: ConvT(ngf, nc, 4, 2, 1) + Tanh -- lane-dense transposed output,
    # assembled directly to NCHW.
    w, _, _ = params[-1]
    _, H, W, _ = x.shape
    cout = w.shape[1]
    patches_t, wph_t = _stride2_phase_patches_and_weights(x, w, transposed=True)
    ph = _fused_phase_matmul_tanh(patches_t, wph_t)               # (4, nc, N*H*W)
    return _interleave_phases_nchw(ph, N, H, W, cout)             # (N, nc, 2H, 2W)


# ----------------------------------------------------------------------------
# Params + pure-XLA reference (same bf16-operand / f32-accumulate policy)
# ----------------------------------------------------------------------------
def init_generator_params(key, nz, ngf, nc):
    chans = [(nz, ngf * 8), (ngf * 8, ngf * 4), (ngf * 4, ngf * 2),
             (ngf * 2, ngf), (ngf, nc)]
    params = []
    for ci, co in chans:
        key, kw, kg, kb = jax.random.split(key, 4)
        w = jax.random.normal(kw, (ci, co, 4, 4), jnp.float32) * 0.02
        gamma = 1.0 + 0.1 * jax.random.normal(kg, (co,), jnp.float32)
        beta = 0.1 * jax.random.normal(kb, (co,), jnp.float32)
        params.append((w, gamma, beta))
    return params


def _reference_forward(params, x_nchw):
    """XLA reference: ConvTranspose2d as lhs-dilated conv with flipped weights."""
    x = jnp.transpose(x_nchw, (0, 2, 3, 1)).astype(jnp.bfloat16)
    strides = [1, 2, 2, 2, 2]
    pads = [0, 1, 1, 1, 1]
    for i, (w, g, b) in enumerate(params):
        K = w.shape[-1]
        w_conv = jnp.transpose(w[:, :, ::-1, ::-1], (2, 3, 0, 1)).astype(jnp.bfloat16)
        pp = K - 1 - pads[i]
        y = jax.lax.conv_general_dilated(
            x, w_conv, window_strides=(1, 1), padding=[(pp, pp), (pp, pp)],
            lhs_dilation=(strides[i], strides[i]),
            dimension_numbers=("NHWC", "HWIO", "NHWC"),
            preferred_element_type=jnp.float32)
        if i == len(params) - 1:
            x = jnp.tanh(y)
        else:
            mean = jnp.mean(y, axis=(0, 1, 2), keepdims=True)
            var = jnp.mean((y - mean) ** 2, axis=(0, 1, 2), keepdims=True)
            yn = (y - mean) * jax.lax.rsqrt(var + _BN_EPS) * g + b
            x = jnp.maximum(yn, 0.0).astype(jnp.bfloat16)
    return jnp.transpose(x, (0, 3, 1, 2))


if __name__ == "__main__":
    # Small shapes consistent with the module: batch=2, nz=8, ngf=8, nc=3.
    N, nz, ngf, nc = 2, 8, 8, 3
    key = jax.random.PRNGKey(0)
    key, kx = jax.random.split(key)
    x = jax.random.normal(kx, (N, nz, 1, 1), jnp.float32)         # latent, NCHW
    params = init_generator_params(key, nz, ngf, nc)

    out = jax.block_until_ready(jax.jit(generator_forward)(params, x))

    assert out.shape == (N, nc, 64, 64), out.shape
    assert out.dtype == jnp.float32
    assert bool(jnp.all(jnp.isfinite(out)))
    assert bool(jnp.all(jnp.abs(out) <= 1.0 + 1e-6))              # tanh range

    ref = jax.block_until_ready(jax.jit(_reference_forward)(params, x))
    max_err = float(jnp.max(jnp.abs(out - ref.astype(jnp.float32))))
    assert max_err < 2e-2, f"mismatch vs XLA reference: {max_err}"
    print("KERNEL_OK")
</pallas_src>

<mosaic_0001>
module attributes {stable_mosaic.version = 11 : i64} {
  func.func @_phase_matmul_bn_relu_kernel(%arg0: i32, %arg1: memref<1x2x8xbf16, #tpu.memory_space<vmem>>, %arg2: memref<1x8x64xbf16, #tpu.memory_space<vmem>>, %arg3: memref<1x64xf32, #tpu.memory_space<vmem>>, %arg4: memref<1x64xf32, #tpu.memory_space<vmem>>, %arg5: memref<16x2x64xbf16, #tpu.memory_space<vmem>>, %arg6: memref<16x2x64xf32, #tpu.memory_space<vmem>>, %arg7: memref<1x64xf32, #tpu.memory_space<vmem>>, %arg8: memref<1x64xf32, #tpu.memory_space<vmem>>) attributes {dimension_semantics = [#tpu.dimension_semantics<arbitrary>], iteration_bounds = array<i64: 16>, scalar_prefetch = 0 : i64, scratch_operands = 3 : i64, tpu.core_type = #tpu.core_type<tc>, window_params = [{transform_indices = @transform_0, window_bounds = array<i64: 1, 2, 8>}, {transform_indices = @transform_1, window_bounds = array<i64: 1, 8, 64>}, {pipeline_mode = #tpu.pipeline_mode<synchronous>, transform_indices = @transform_2, window_bounds = array<i64: 1, 64>}, {pipeline_mode = #tpu.pipeline_mode<synchronous>, transform_indices = @transform_3, window_bounds = array<i64: 1, 64>}, {pipeline_mode = #tpu.pipeline_mode<synchronous>, transform_indices = @transform_4, window_bounds = array<i64: 16, 2, 64>}]} {
    %c0_i32 = arith.constant 0 : i32
    %0 = arith.cmpi eq, %arg0, %c0_i32 : i32
    %1 = arith.extui %0 : i1 to i32
    %c0_i32_0 = arith.constant 0 : i32
    %2 = arith.cmpi ne, %1, %c0_i32_0 : i32
    scf.if %2 {
      %cst_19 = arith.constant 0.000000e+00 : f32
      %26 = vector.broadcast %cst_19 : f32 to vector<1x64xf32>
      %c0_20 = arith.constant 0 : index
      %c0_21 = arith.constant 0 : index
      %27 = vector.load %arg7[%c0_20, %c0_21] : memref<1x64xf32, #tpu.memory_space<vmem>>, vector<1x64xf32>
      tpu.vector_store %arg7[%c0_20, %c0_21], %26 {strides = array<i32>} : memref<1x64xf32, #tpu.memory_space<vmem>>, vector<1x64xf32>,
      %cst_22 = arith.constant 0.000000e+00 : f32
      %28 = vector.broadcast %cst_22 : f32 to vector<1x64xf32>
      %c0_23 = arith.constant 0 : index
      %c0_24 = arith.constant 0 : index
      %29 = vector.load %arg8[%c0_23, %c0_24] : memref<1x64xf32, #tpu.memory_space<vmem>>, vector<1x64xf32>
      tpu.vector_store %arg8[%c0_23, %c0_24], %28 {strides = array<i32>} : memref<1x64xf32, #tpu.memory_space<vmem>>, vector<1x64xf32>,
    } else {
    }
    %c0 = arith.constant 0 : index
    %c0_1 = arith.constant 0 : index
    %c0_2 = arith.constant 0 : index
    %3 = vector.load %arg1[%c0, %c0_1, %c0_2] : memref<1x2x8xbf16, #tpu.memory_space<vmem>>, vector<1x2x8xbf16>
    %4 = vector.shape_cast %3 : vector<1x2x8xbf16> to vector<2x8xbf16>
    %c0_3 = arith.constant 0 : index
    %c0_4 = arith.constant 0 : index
    %c0_5 = arith.constant 0 : index
    %5 = vector.load %arg2[%c0_3, %c0_4, %c0_5] : memref<1x8x64xbf16, #tpu.memory_space<vmem>>, vector<1x8x64xbf16>
    %6 = vector.shape_cast %5 : vector<1x8x64xbf16> to vector<8x64xbf16>
    %cst = arith.constant dense<0.000000e+00> : vector<2x64xf32>
    %7 = tpu.matmul %4, %6, %cst {dimension_numbers = #tpu.dot_dimension_numbers<[1], [0], [0], [1], [0, 0, 1, 1], [], []>} : vector<2x8xbf16>, vector<8x64xbf16>, vector<2x64xf32> -> vector<2x64xf32>
    %8 = arith.index_cast %arg0 : i32 to index
    %c0_6 = arith.constant 0 : index
    %c0_7 = arith.constant 0 : index
    %9 = vector.load %arg6[%8, %c0_6, %c0_7] : memref<16x2x64xf32, #tpu.memory_space<vmem>>, vector<1x2x64xf32>
    %10 = vector.shape_cast %9 : vector<1x2x64xf32> to vector<2x64xf32>
    %11 = vector.shape_cast %7 : vector<2x64xf32> to vector<1x2x64xf32>
    tpu.vector_store %arg6[%8, %c0_6, %c0_7], %11 {strides = array<i32>} : memref<16x2x64xf32, #tpu.memory_space<vmem>>, vector<1x2x64xf32>,
    %c0_8 = arith.constant 0 : index
    %c0_9 = arith.constant 0 : index
    %12 = vector.load %arg7[%c0_8, %c0_9] : memref<1x64xf32, #tpu.memory_space<vmem>>, vector<1x64xf32>
    %cst_10 = arith.constant dense<0.000000e+00> : vector<64xf32>
    %13 = vector.multi_reduction <add>, %7, %cst_10 [0] : vector<2x64xf32> to vector<64xf32>
    %14 = vector.shape_cast %13 : vector<64xf32> to vector<1x64xf32>
    %15 = arith.addf %12, %14 : vector<1x64xf32>
    %c0_11 = arith.constant 0 : index
    %c0_12 = arith.constant 0 : index
    %16 = vector.load %arg7[%c0_11, %c0_12] : memref<1x64xf32, #tpu.memory_space<vmem>>, vector<1x64xf32>
    tpu.vector_store %arg7[%c0_11, %c0_12], %15 {strides = array<i32>} : memref<1x64xf32, #tpu.memory_space<vmem>>, vector<1x64xf32>,
    %c0_13 = arith.constant 0 : index
    %c0_14 = arith.constant 0 : index
    %17 = vector.load %arg8[%c0_13, %c0_14] : memref<1x64xf32, #tpu.memory_space<vmem>>, vector<1x64xf32>
    %18 = arith.mulf %7, %7 : vector<2x64xf32>
    %cst_15 = arith.constant dense<0.000000e+00> : vector<64xf32>
    %19 = vector.multi_reduction <add>, %18, %cst_15 [0] : vector<2x64xf32> to vector<64xf32>
    %20 = vector.shape_cast %19 : vector<64xf32> to vector<1x64xf32>
    %21 = arith.addf %17, %20 : vector<1x64xf32>
    %c0_16 = arith.constant 0 : index
    %c0_17 = arith.constant 0 : index
    %22 = vector.load %arg8[%c0_16, %c0_17] : memref<1x64xf32, #tpu.memory_space<vmem>>, vector<1x64xf32>
    tpu.vector_store %arg8[%c0_16, %c0_17], %21 {strides = array<i32>} : memref<1x64xf32, #tpu.memory_space<vmem>>, vector<1x64xf32>,
    %c15_i32 = arith.constant 15 : i32
    %23 = arith.cmpi eq, %arg0, %c15_i32 : i32
    %24 = arith.extui %23 : i1 to i32
    %c0_i32_18 = arith.constant 0 : i32
    %25 = arith.cmpi ne, %24, %c0_i32_18 : i32
    scf.if %25 {
      %c0_19 = arith.constant 0 : index
      %c0_20 = arith.constant 0 : index
      %26 = vector.load %arg7[%c0_19, %c0_20] : memref<1x64xf32, #tpu.memory_space<vmem>>, vector<1x64xf32>
      %cst_21 = arith.constant 3.125000e-02 : f32
      %27 = vector.broadcast %cst_21 : f32 to vector<1x64xf32>
      %28 = arith.mulf %26, %27 : vector<1x64xf32>
      %c0_22 = arith.constant 0 : index
      %c0_23 = arith.constant 0 : index
      %29 = vector.load %arg8[%c0_22, %c0_23] : memref<1x64xf32, #tpu.memory_space<vmem>>, vector<1x64xf32>
      %cst_24 = arith.constant 3.125000e-02 : f32
      %30 = vector.broadcast %cst_24 : f32 to vector<1x64xf32>
      %31 = arith.mulf %29, %30 : vector<1x64xf32>
      %32 = arith.mulf %28, %28 : vector<1x64xf32>
      %33 = arith.subf %31, %32 : vector<1x64xf32>
      %cst_25 = arith.constant 0.000000e+00 : f32
      %34 = vector.broadcast %cst_25 : f32 to vector<1x64xf32>
      %35 = arith.maximumf %33, %34 : vector<1x64xf32>
      %c0_26 = arith.constant 0 : index
      %c0_27 = arith.constant 0 : index
      %36 = vector.load %arg3[%c0_26, %c0_27] : memref<1x64xf32, #tpu.memory_space<vmem>>, vector<1x64xf32>
      %cst_28 = arith.constant 9.99999974E-6 : f32
      %37 = vector.broadcast %cst_28 : f32 to vector<1x64xf32>
      %38 = arith.addf %35, %37 : vector<1x64xf32>
      %39 = math.rsqrt %38 : vector<1x64xf32>
      %40 = arith.mulf %36, %39 : vector<1x64xf32>
      %c0_29 = arith.constant 0 : index
      %c0_30 = arith.constant 0 : index
      %41 = vector.load %arg4[%c0_29, %c0_30] : memref<1x64xf32, #tpu.memory_space<vmem>>, vector<1x64xf32>
      %42 = arith.mulf %28, %40 : vector<1x64xf32>
      %43 = arith.subf %41, %42 : vector<1x64xf32>
      %c0_31 = arith.constant 0 : index
      %c0_32 = arith.constant 0 : index
      %c0_33 = arith.constant 0 : index
      %44 = vector.load %arg6[%c0_31, %c0_32, %c0_33] : memref<16x2x64xf32, #tpu.memory_space<vmem>>, vector<16x2x64xf32>
      %45 = vector.shape_cast %40 : vector<1x64xf32> to vector<1x1x64xf32>
      %46 = vector.broadcast %45 : vector<1x1x64xf32> to vector<16x2x64xf32>
      %47 = arith.mulf %44, %46 : vector<16x2x64xf32>
      %48 = vector.shape_cast %43 : vector<1x64xf32> to vector<1x1x64xf32>
      %49 = vector.broadcast %48 : vector<1x1x64xf32> to vector<16x2x64xf32>
      %50 = arith.addf %47, %49 : vector<16x2x64xf32>
      %cst_34 = arith.constant 0.000000e+00 : f32
      %51 = vector.broadcast %cst_34 : f32 to vector<16x2x64xf32>
      %52 = arith.maximumf %50, %51 : vector<16x2x64xf32>
      %53 = arith.truncf %52 : vector<16x2x64xf32> to vector<16x2x64xbf16>
      %c0_35 = arith.constant 0 : index
      %c0_36 = arith.constant 0 : index
      %c0_37 = arith.constant 0 : index
      %54 = vector.load %arg5[%c0_35, %c0_36, %c0_37] : memref<16x2x64xbf16, #tpu.memory_space<vmem>>, vector<16x2x64xbf16>
      tpu.vector_store %arg5[%c0_35, %c0_36, %c0_37], %53 {strides = array<i32>} : memref<16x2x64xbf16, #tpu.memory_space<vmem>>, vector<16x2x64xbf16>,
    } else {
    }
    return
  }
  func.func @transform_0(%arg0: i32) -> (i32, i32, i32) {
    %c0_i32 = arith.constant 0 : i32
    %c0_i32_0 = arith.constant 0 : i32
    %c0_i32_1 = arith.constant 0 : i32
    return %arg0, %c0_i32, %c0_i32_0 : i32, i32, i32
  }
  func.func @transform_1(%arg0: i32) -> (i32, i32, i32) {
    %c0_i32 = arith.constant 0 : i32
    %c0_i32_0 = arith.constant 0 : i32
    %c0_i32_1 = arith.constant 0 : i32
    return %arg0, %c0_i32, %c0_i32_0 : i32, i32, i32
  }
  func.func @transform_2(%arg0: i32) -> (i32, i32) {
    %c0_i32 = arith.constant 0 : i32
    %c0_i32_0 = arith.constant 0 : i32
    %c0_i32_1 = arith.constant 0 : i32
    return %c0_i32, %c0_i32_0 : i32, i32
  }
  func.func @transform_3(%arg0: i32) -> (i32, i32) {
    %c0_i32 = arith.constant 0 : i32
    %c0_i32_0 = arith.constant 0 : i32
    %c0_i32_1 = arith.constant 0 : i32
    return %c0_i32, %c0_i32_0 : i32, i32
  }
  func.func @transform_4(%arg0: i32) -> (i32, i32, i32) {
    %c0_i32 = arith.constant 0 : i32
    %c0_i32_0 = arith.constant 0 : i32
    %c0_i32_1 = arith.constant 0 : i32
    %c0_i32_2 = arith.constant 0 : i32
    return %c0_i32, %c0_i32_0, %c0_i32_1 : i32, i32, i32
  }
}

module attributes {stable_mosaic.version = 11 : i64} {
  func.func @_phase_matmul_bn_relu_kernel(%arg0: i32, %arg1: memref<1x32x256xbf16, #tpu.memory_space<vmem>>, %arg2: memref<1x256x32xbf16, #tpu.memory_space<vmem>>, %arg3: memref<1x32xf32, #tpu.memory_space<vmem>>, %arg4: memref<1x32xf32, #tpu.memory_space<vmem>>, %arg5: memref<4x32x32xbf16, #tpu.memory_space<vmem>>, %arg6: memref<4x32x32xf32, #tpu.memory_space<vmem>>, %arg7: memref<1x32xf32, #tpu.memory_space<vmem>>, %arg8: memref<1x32xf32, #tpu.memory_space<vmem>>) attributes {dimension_semantics = [#tpu.dimension_semantics<arbitrary>], iteration_bounds = array<i64: 4>, scalar_prefetch = 0 : i64, scratch_operands = 3 : i64, tpu.core_type = #tpu.core_type<tc>, window_params = [{transform_indices = @transform_0, window_bounds = array<i64: 1, 32, 256>}, {transform_indices = @transform_1, window_bounds = array<i64: 1, 256, 32>}, {pipeline_mode = #tpu.pipeline_mode<synchronous>, transform_indices = @transform_2, window_bounds = array<i64: 1, 32>}, {pipeline_mode = #tpu.pipeline_mode<synchronous>, transform_indices = @transform_3, window_bounds = array<i64: 1, 32>}, {pipeline_mode = #tpu.pipeline_mode<synchronous>, transform_indices = @transform_4, window_bounds = array<i64: 4, 32, 32>}]} {
    %c0_i32 = arith.constant 0 : i32
    %0 = arith.cmpi eq, %arg0, %c0_i32 : i32
    %1 = arith.extui %0 : i1 to i32
    %c0_i32_0 = arith.constant 0 : i32
    %2 = arith.cmpi ne, %1, %c0_i32_0 : i32
    scf.if %2 {
      %cst_19 = arith.constant 0.000000e+00 : f32
      %26 = vector.broadcast %cst_19 : f32 to vector<1x32xf32>
      %c0_20 = arith.constant 0 : index
      %c0_21 = arith.constant 0 : index
      %27 = vector.load %arg7[%c0_20, %c0_21] : memref<1x32xf32, #tpu.memory_space<vmem>>, vector<1x32xf32>
      tpu.vector_store %arg7[%c0_20, %c0_21], %26 {strides = array<i32>} : memref<1x32xf32, #tpu.memory_space<vmem>>, vector<1x32xf32>,
      %cst_22 = arith.constant 0.000000e+00 : f32
      %28 = vector.broadcast %cst_22 : f32 to vector<1x32xf32>
      %c0_23 = arith.constant 0 : index
      %c0_24 = arith.constant 0 : index
      %29 = vector.load %arg8[%c0_23, %c0_24] : memref<1x32xf32, #tpu.memory_space<vmem>>, vector<1x32xf32>
      tpu.vector_store %arg8[%c0_23, %c0_24], %28 {strides = array<i32>} : memref<1x32xf32, #tpu.memory_space<vmem>>, vector<1x32xf32>,
    } else {
    }
    %c0 = arith.constant 0 : index
    %c0_1 = arith.constant 0 : index
    %c0_2 = arith.constant 0 : index
    %3 = vector.load %arg1[%c0, %c0_1, %c0_2] : memref<1x32x256xbf16, #tpu.memory_space<vmem>>, vector<1x32x256xbf16>
    %4 = vector.shape_cast %3 : vector<1x32x256xbf16> to vector<32x256xbf16>
    %c0_3 = arith.constant 0 : index
    %c0_4 = arith.constant 0 : index
    %c0_5 = arith.constant 0 : index
    %5 = vector.load %arg2[%c0_3, %c0_4, %c0_5] : memref<1x256x32xbf16, #tpu.memory_space<vmem>>, vector<1x256x32xbf16>
    %6 = vector.shape_cast %5 : vector<1x256x32xbf16> to vector<256x32xbf16>
    %cst = arith.constant dense<0.000000e+00> : vector<32x32xf32>
    %7 = tpu.matmul %4, %6, %cst {dimension_numbers = #tpu.dot_dimension_numbers<[1], [0], [0], [1], [0, 0, 1, 1], [], []>} : vector<32x256xbf16>, vector<256x32xbf16>, vector<32x32xf32> -> vector<32x32xf32>
    %8 = arith.index_cast %arg0 : i32 to index
    %c0_6 = arith.constant 0 : index
    %c0_7 = arith.constant 0 : index
    %9 = vector.load %arg6[%8, %c0_6, %c0_7] : memref<4x32x32xf32, #tpu.memory_space<vmem>>, vector<1x32x32xf32>
    %10 = vector.shape_cast %9 : vector<1x32x32xf32> to vector<32x32xf32>
    %11 = vector.shape_cast %7 : vector<32x32xf32> to vector<1x32x32xf32>
    tpu.vector_store %arg6[%8, %c0_6, %c0_7], %11 {strides = array<i32>} : memref<4x32x32xf32, #tpu.memory_space<vmem>>, vector<1x32x32xf32>,
    %c0_8 = arith.constant 0 : index
    %c0_9 = arith.constant 0 : index
    %12 = vector.load %arg7[%c0_8, %c0_9] : memref<1x32xf32, #tpu.memory_space<vmem>>, vector<1x32xf32>
    %cst_10 = arith.constant dense<0.000000e+00> : vector<32xf32>
    %13 = vector.multi_reduction <add>, %7, %cst_10 [0] : vector<32x32xf32> to vector<32xf32>
    %14 = vector.shape_cast %13 : vector<32xf32> to vector<1x32xf32>
    %15 = arith.addf %12, %14 : vector<1x32xf32>
    %c0_11 = arith.constant 0 : index
    %c0_12 = arith.constant 0 : index
    %16 = vector.load %arg7[%c0_11, %c0_12] : memref<1x32xf32, #tpu.memory_space<vmem>>, vector<1x32xf32>
    tpu.vector_store %arg7[%c0_11, %c0_12], %15 {strides = array<i32>} : memref<1x32xf32, #tpu.memory_space<vmem>>, vector<1x32xf32>,
    %c0_13 = arith.constant 0 : index
    %c0_14 = arith.constant 0 : index
    %17 = vector.load %arg8[%c0_13, %c0_14] : memref<1x32xf32, #tpu.memory_space<vmem>>, vector<1x32xf32>
    %18 = arith.mulf %7, %7 : vector<32x32xf32>
    %cst_15 = arith.constant dense<0.000000e+00> : vector<32xf32>
    %19 = vector.multi_reduction <add>, %18, %cst_15 [0] : vector<32x32xf32> to vector<32xf32>
    %20 = vector.shape_cast %19 : vector<32xf32> to vector<1x32xf32>
    %21 = arith.addf %17, %20 : vector<1x32xf32>
    %c0_16 = arith.constant 0 : index
    %c0_17 = arith.constant 0 : index
    %22 = vector.load %arg8[%c0_16, %c0_17] : memref<1x32xf32, #tpu.memory_space<vmem>>, vector<1x32xf32>
    tpu.vector_store %arg8[%c0_16, %c0_17], %21 {strides = array<i32>} : memref<1x32xf32, #tpu.memory_space<vmem>>, vector<1x32xf32>,
    %c3_i32 = arith.constant 3 : i32
    %23 = arith.cmpi eq, %arg0, %c3_i32 : i32
    %24 = arith.extui %23 : i1 to i32
    %c0_i32_18 = arith.constant 0 : i32
    %25 = arith.cmpi ne, %24, %c0_i32_18 : i32
    scf.if %25 {
      %c0_19 = arith.constant 0 : index
      %c0_20 = arith.constant 0 : index
      %26 = vector.load %arg7[%c0_19, %c0_20] : memref<1x32xf32, #tpu.memory_space<vmem>>, vector<1x32xf32>
      %cst_21 = arith.constant 7.812500e-03 : f32
      %27 = vector.broadcast %cst_21 : f32 to vector<1x32xf32>
      %28 = arith.mulf %26, %27 : vector<1x32xf32>
      %c0_22 = arith.constant 0 : index
      %c0_23 = arith.constant 0 : index
      %29 = vector.load %arg8[%c0_22, %c0_23] : memref<1x32xf32, #tpu.memory_space<vmem>>, vector<1x32xf32>
      %cst_24 = arith.constant 7.812500e-03 : f32
      %30 = vector.broadcast %cst_24 : f32 to vector<1x32xf32>
      %31 = arith.mulf %29, %30 : vector<1x32xf32>
      %32 = arith.mulf %28, %28 : vector<1x32xf32>
      %33 = arith.subf %31, %32 : vector<1x32xf32>
      %cst_25 = arith.constant 0.000000e+00 : f32
      %34 = vector.broadcast %cst_25 : f32 to vector<1x32xf32>
      %35 = arith.maximumf %33, %34 : vector<1x32xf32>
      %c0_26 = arith.constant 0 : index
      %c0_27 = arith.constant 0 : index
      %36 = vector.load %arg3[%c0_26, %c0_27] : memref<1x32xf32, #tpu.memory_space<vmem>>, vector<1x32xf32>
      %cst_28 = arith.constant 9.99999974E-6 : f32
      %37 = vector.broadcast %cst_28 : f32 to vector<1x32xf32>
      %38 = arith.addf %35, %37 : vector<1x32xf32>
      %39 = math.rsqrt %38 : vector<1x32xf32>
      %40 = arith.mulf %36, %39 : vector<1x32xf32>
      %c0_29 = arith.constant 0 : index
      %c0_30 = arith.constant 0 : index
      %41 = vector.load %arg4[%c0_29, %c0_30] : memref<1x32xf32, #tpu.memory_space<vmem>>, vector<1x32xf32>
      %42 = arith.mulf %28, %40 : vector<1x32xf32>
      %43 = arith.subf %41, %42 : vector<1x32xf32>
      %c0_31 = arith.constant 0 : index
      %c0_32 = arith.constant 0 : index
      %c0_33 = arith.constant 0 : index
      %44 = vector.load %arg6[%c0_31, %c0_32, %c0_33] : memref<4x32x32xf32, #tpu.memory_space<vmem>>, vector<4x32x32xf32>
      %45 = vector.shape_cast %40 : vector<1x32xf32> to vector<1x1x32xf32>
      %46 = vector.broadcast %45 : vector<1x1x32xf32> to vector<4x32x32xf32>
      %47 = arith.mulf %44, %46 : vector<4x32x32xf32>
      %48 = vector.shape_cast %43 : vector<1x32xf32> to vector<1x1x32xf32>
      %49 = vector.broadcast %48 : vector<1x1x32xf32> to vector<4x32x32xf32>
      %50 = arith.addf %47, %49 : vector<4x32x32xf32>
      %cst_34 = arith.constant 0.000000e+00 : f32
      %51 = vector.broadcast %cst_34 : f32 to vector<4x32x32xf32>
      %52 = arith.maximumf %50, %51 : vector<4x32x32xf32>
      %53 = arith.truncf %52 : vector<4x32x32xf32> to vector<4x32x32xbf16>
      %c0_35 = arith.constant 0 : index
      %c0_36 = arith.constant 0 : index
      %c0_37 = arith.constant 0 : index
      %54 = vector.load %arg5[%c0_35, %c0_36, %c0_37] : memref<4x32x32xbf16, #tpu.memory_space<vmem>>, vector<4x32x32xbf16>
      tpu.vector_store %arg5[%c0_35, %c0_36, %c0_37], %53 {strides = array<i32>} : memref<4x32x32xbf16, #tpu.memory_space<vmem>>, vector<4x32x32xbf16>,
    } else {
    }
    return
  }
  func.func @transform_0(%arg0: i32) -> (i32, i32, i32) {
    %c0_i32 = arith.constant 0 : i32
    %c0_i32_0 = arith.constant 0 : i32
    %c0_i32_1 = arith.constant 0 : i32
    return %arg0, %c0_i32, %c0_i32_0 : i32, i32, i32
  }
  func.func @transform_1(%arg0: i32) -> (i32, i32, i32) {
    %c0_i32 = arith.constant 0 : i32
    %c0_i32_0 = arith.constant 0 : i32
    %c0_i32_1 = arith.constant 0 : i32
    return %arg0, %c0_i32, %c0_i32_0 : i32, i32, i32
  }
  func.func @transform_2(%arg0: i32) -> (i32, i32) {
    %c0_i32 = arith.constant 0 : i32
    %c0_i32_0 = arith.constant 0 : i32
    %c0_i32_1 = arith.constant 0 : i32
    return %c0_i32, %c0_i32_0 : i32, i32
  }
  func.func @transform_3(%arg0: i32) -> (i32, i32) {
    %c0_i32 = arith.constant 0 : i32
    %c0_i32_0 = arith.constant 0 : i32
    %c0_i32_1 = arith.constant 0 : i32
    return %c0_i32, %c0_i32_0 : i32, i32
  }
  func.func @transform_4(%arg0: i32) -> (i32, i32, i32) {
    %c0_i32 = arith.constant 0 : i32
    %c0_i32_0 = arith.constant 0 : i32
    %c0_i32_1 = arith.constant 0 : i32
    %c0_i32_2 = arith.constant 0 : i32
    return %c0_i32, %c0_i32_0, %c0_i32_1 : i32, i32, i32
  }
}

module attributes {stable_mosaic.version = 11 : i64} {
  func.func @_phase_matmul_bn_relu_kernel(%arg0: i32, %arg1: memref<1x128x128xbf16, #tpu.memory_space<vmem>>, %arg2: memref<1x128x16xbf16, #tpu.memory_space<vmem>>, %arg3: memref<1x16xf32, #tpu.memory_space<vmem>>, %arg4: memref<1x16xf32, #tpu.memory_space<vmem>>, %arg5: memref<4x128x16xbf16, #tpu.memory_space<vmem>>, %arg6: memref<4x128x16xf32, #tpu.memory_space<vmem>>, %arg7: memref<1x16xf32, #tpu.memory_space<vmem>>, %arg8: memref<1x16xf32, #tpu.memory_space<vmem>>) attributes {dimension_semantics = [#tpu.dimension_semantics<arbitrary>], iteration_bounds = array<i64: 4>, scalar_prefetch = 0 : i64, scratch_operands = 3 : i64, tpu.core_type = #tpu.core_type<tc>, window_params = [{transform_indices = @transform_0, window_bounds = array<i64: 1, 128, 128>}, {transform_indices = @transform_1, window_bounds = array<i64: 1, 128, 16>}, {pipeline_mode = #tpu.pipeline_mode<synchronous>, transform_indices = @transform_2, window_bounds = array<i64: 1, 16>}, {pipeline_mode = #tpu.pipeline_mode<synchronous>, transform_indices = @transform_3, window_bounds = array<i64: 1, 16>}, {pipeline_mode = #tpu.pipeline_mode<synchronous>, transform_indices = @transform_4, window_bounds = array<i64: 4, 128, 16>}]} {
    %c0_i32 = arith.constant 0 : i32
    %0 = arith.cmpi eq, %arg0, %c0_i32 : i32
    %1 = arith.extui %0 : i1 to i32
    %c0_i32_0 = arith.constant 0 : i32
    %2 = arith.cmpi ne, %1, %c0_i32_0 : i32
    scf.if %2 {
      %cst_19 = arith.constant 0.000000e+00 : f32
      %26 = vector.broadcast %cst_19 : f32 to vector<1x16xf32>
      %c0_20 = arith.constant 0 : index
      %c0_21 = arith.constant 0 : index
      %27 = vector.load %arg7[%c0_20, %c0_21] : memref<1x16xf32, #tpu.memory_space<vmem>>, vector<1x16xf32>
      tpu.vector_store %arg7[%c0_20, %c0_21], %26 {strides = array<i32>} : memref<1x16xf32, #tpu.memory_space<vmem>>, vector<1x16xf32>,
      %cst_22 = arith.constant 0.000000e+00 : f32
      %28 = vector.broadcast %cst_22 : f32 to vector<1x16xf32>
      %c0_23 = arith.constant 0 : index
      %c0_24 = arith.constant 0 : index
      %29 = vector.load %arg8[%c0_23, %c0_24] : memref<1x16xf32, #tpu.memory_space<vmem>>, vector<1x16xf32>
      tpu.vector_store %arg8[%c0_23, %c0_24], %28 {strides = array<i32>} : memref<1x16xf32, #tpu.memory_space<vmem>>, vector<1x16xf32>,
    } else {
    }
    %c0 = arith.constant 0 : index
    %c0_1 = arith.constant 0 : index
    %c0_2 = arith.constant 0 : index
    %3 = vector.load %arg1[%c0, %c0_1, %c0_2] : memref<1x128x128xbf16, #tpu.memory_space<vmem>>, vector<1x128x128xbf16>
    %4 = vector.shape_cast %3 : vector<1x128x128xbf16> to vector<128x128xbf16>
    %c0_3 = arith.constant 0 : index
    %c0_4 = arith.constant 0 : index
    %c0_5 = arith.constant 0 : index
    %5 = vector.load %arg2[%c0_3, %c0_4, %c0_5] : memref<1x128x16xbf16, #tpu.memory_space<vmem>>, vector<1x128x16xbf16>
    %6 = vector.shape_cast %5 : vector<1x128x16xbf16> to vector<128x16xbf16>
    %cst = arith.constant dense<0.000000e+00> : vector<128x16xf32>
    %7 = tpu.matmul %4, %6, %cst {dimension_numbers = #tpu.dot_dimension_numbers<[1], [0], [0], [1], [0, 0, 1, 1], [], []>} : vector<128x128xbf16>, vector<128x16xbf16>, vector<128x16xf32> -> vector<128x16xf32>
    %8 = arith.index_cast %arg0 : i32 to index
    %c0_6 = arith.constant 0 : index
    %c0_7 = arith.constant 0 : index
    %9 = vector.load %arg6[%8, %c0_6, %c0_7] : memref<4x128x16xf32, #tpu.memory_space<vmem>>, vector<1x128x16xf32>
    %10 = vector.shape_cast %9 : vector<1x128x16xf32> to vector<128x16xf32>
    %11 = vector.shape_cast %7 : vector<128x16xf32> to vector<1x128x16xf32>
    tpu.vector_store %arg6[%8, %c0_6, %c0_7], %11 {strides = array<i32>} : memref<4x128x16xf32, #tpu.memory_space<vmem>>, vector<1x128x16xf32>,
    %c0_8 = arith.constant 0 : index
    %c0_9 = arith.constant 0 : index
    %12 = vector.load %arg7[%c0_8, %c0_9] : memref<1x16xf32, #tpu.memory_space<vmem>>, vector<1x16xf32>
    %cst_10 = arith.constant dense<0.000000e+00> : vector<16xf32>
    %13 = vector.multi_reduction <add>, %7, %cst_10 [0] : vector<128x16xf32> to vector<16xf32>
    %14 = vector.shape_cast %13 : vector<16xf32> to vector<1x16xf32>
    %15 = arith.addf %12, %14 : vector<1x16xf32>
    %c0_11 = arith.constant 0 : index
    %c0_12 = arith.constant 0 : index
    %16 = vector.load %arg7[%c0_11, %c0_12] : memref<1x16xf32, #tpu.memory_space<vmem>>, vector<1x16xf32>
    tpu.vector_store %arg7[%c0_11, %c0_12], %15 {strides = array<i32>} : memref<1x16xf32, #tpu.memory_space<vmem>>, vector<1x16xf32>,
    %c0_13 = arith.constant 0 : index
    %c0_14 = arith.constant 0 : index
    %17 = vector.load %arg8[%c0_13, %c0_14] : memref<1x16xf32, #tpu.memory_space<vmem>>, vector<1x16xf32>
    %18 = arith.mulf %7, %7 : vector<128x16xf32>
    %cst_15 = arith.constant dense<0.000000e+00> : vector<16xf32>
    %19 = vector.multi_reduction <add>, %18, %cst_15 [0] : vector<128x16xf32> to vector<16xf32>
    %20 = vector.shape_cast %19 : vector<16xf32> to vector<1x16xf32>
    %21 = arith.addf %17, %20 : vector<1x16xf32>
    %c0_16 = arith.constant 0 : index
    %c0_17 = arith.constant 0 : index
    %22 = vector.load %arg8[%c0_16, %c0_17] : memref<1x16xf32, #tpu.memory_space<vmem>>, vector<1x16xf32>
    tpu.vector_store %arg8[%c0_16, %c0_17], %21 {strides = array<i32>} : memref<1x16xf32, #tpu.memory_space<vmem>>, vector<1x16xf32>,
    %c3_i32 = arith.constant 3 : i32
    %23 = arith.cmpi eq, %arg0, %c3_i32 : i32
    %24 = arith.extui %23 : i1 to i32
    %c0_i32_18 = arith.constant 0 : i32
    %25 = arith.cmpi ne, %24, %c0_i32_18 : i32
    scf.if %25 {
      %c0_19 = arith.constant 0 : index
      %c0_20 = arith.constant 0 : index
      %26 = vector.load %arg7[%c0_19, %c0_20] : memref<1x16xf32, #tpu.memory_space<vmem>>, vector<1x16xf32>
      %cst_21 = arith.constant 0.001953125 : f32
      %27 = vector.broadcast %cst_21 : f32 to vector<1x16xf32>
      %28 = arith.mulf %26, %27 : vector<1x16xf32>
      %c0_22 = arith.constant 0 : index
      %c0_23 = arith.constant 0 : index
      %29 = vector.load %arg8[%c0_22, %c0_23] : memref<1x16xf32, #tpu.memory_space<vmem>>, vector<1x16xf32>
      %cst_24 = arith.constant 0.001953125 : f32
      %30 = vector.broadcast %cst_24 : f32 to vector<1x16xf32>
      %31 = arith.mulf %29, %30 : vector<1x16xf32>
      %32 = arith.mulf %28, %28 : vector<1x16xf32>
      %33 = arith.subf %31, %32 : vector<1x16xf32>
      %cst_25 = arith.constant 0.000000e+00 : f32
      %34 = vector.broadcast %cst_25 : f32 to vector<1x16xf32>
      %35 = arith.maximumf %33, %34 : vector<1x16xf32>
      %c0_26 = arith.constant 0 : index
      %c0_27 = arith.constant 0 : index
      %36 = vector.load %arg3[%c0_26, %c0_27] : memref<1x16xf32, #tpu.memory_space<vmem>>, vector<1x16xf32>
      %cst_28 = arith.constant 9.99999974E-6 : f32
      %37 = vector.broadcast %cst_28 : f32 to vector<1x16xf32>
      %38 = arith.addf %35, %37 : vector<1x16xf32>
      %39 = math.rsqrt %38 : vector<1x16xf32>
      %40 = arith.mulf %36, %39 : vector<1x16xf32>
      %c0_29 = arith.constant 0 : index
      %c0_30 = arith.constant 0 : index
      %41 = vector.load %arg4[%c0_29, %c0_30] : memref<1x16xf32, #tpu.memory_space<vmem>>, vector<1x16xf32>
      %42 = arith.mulf %28, %40 : vector<1x16xf32>
      %43 = arith.subf %41, %42 : vector<1x16xf32>
      %c0_31 = arith.constant 0 : index
      %c0_32 = arith.constant 0 : index
      %c0_33 = arith.constant 0 : index
      %44 = vector.load %arg6[%c0_31, %c0_32, %c0_33] : memref<4x128x16xf32, #tpu.memory_space<vmem>>, vector<4x128x16xf32>
      %45 = vector.shape_cast %40 : vector<1x16xf32> to vector<1x1x16xf32>
      %46 = vector.broadcast %45 : vector<1x1x16xf32> to vector<4x128x16xf32>
      %47 = arith.mulf %44, %46 : vector<4x128x16xf32>
      %48 = vector.shape_cast %43 : vector<1x16xf32> to vector<1x1x16xf32>
      %49 = vector.broadcast %48 : vector<1x1x16xf32> to vector<4x128x16xf32>
      %50 = arith.addf %47, %49 : vector<4x128x16xf32>
      %cst_34 = arith.constant 0.000000e+00 : f32
      %51 = vector.broadcast %cst_34 : f32 to vector<4x128x16xf32>
      %52 = arith.maximumf %50, %51 : vector<4x128x16xf32>
      %53 = arith.truncf %52 : vector<4x128x16xf32> to vector<4x128x16xbf16>
      %c0_35 = arith.constant 0 : index
      %c0_36 = arith.constant 0 : index
      %c0_37 = arith.constant 0 : index
      %54 = vector.load %arg5[%c0_35, %c0_36, %c0_37] : memref<4x128x16xbf16, #tpu.memory_space<vmem>>, vector<4x128x16xbf16>
      tpu.vector_store %arg5[%c0_35, %c0_36, %c0_37], %53 {strides = array<i32>} : memref<4x128x16xbf16, #tpu.memory_space<vmem>>, vector<4x128x16xbf16>,
    } else {
    }
    return
  }
  func.func @transform_0(%arg0: i32) -> (i32, i32, i32) {
    %c0_i32 = arith.constant 0 : i32
    %c0_i32_0 = arith.constant 0 : i32
    %c0_i32_1 = arith.constant 0 : i32
    return %arg0, %c0_i32, %c0_i32_0 : i32, i32, i32
  }
  func.func @transform_1(%arg0: i32) -> (i32, i32, i32) {
    %c0_i32 = arith.constant 0 : i32
    %c0_i32_0 = arith.constant 0 : i32
    %c0_i32_1 = arith.constant 0 : i32
    return %arg0, %c0_i32, %c0_i32_0 : i32, i32, i32
  }
  func.func @transform_2(%arg0: i32) -> (i32, i32) {
    %c0_i32 = arith.constant 0 : i32
    %c0_i32_0 = arith.constant 0 : i32
    %c0_i32_1 = arith.constant 0 : i32
    return %c0_i32, %c0_i32_0 : i32, i32
  }
  func.func @transform_3(%arg0: i32) -> (i32, i32) {
    %c0_i32 = arith.constant 0 : i32
    %c0_i32_0 = arith.constant 0 : i32
    %c0_i32_1 = arith.constant 0 : i32
    return %c0_i32, %c0_i32_0 : i32, i32
  }
  func.func @transform_4(%arg0: i32) -> (i32, i32, i32) {
    %c0_i32 = arith.constant 0 : i32
    %c0_i32_0 = arith.constant 0 : i32
    %c0_i32_1 = arith.constant 0 : i32
    %c0_i32_2 = arith.constant 0 : i32
    return %c0_i32, %c0_i32_0, %c0_i32_1 : i32, i32, i32
  }
}

module attributes {stable_mosaic.version = 11 : i64} {
  func.func @_phase_matmul_bn_relu_kernel(%arg0: i32, %arg1: memref<1x512x64xbf16, #tpu.memory_space<vmem>>, %arg2: memref<1x64x8xbf16, #tpu.memory_space<vmem>>, %arg3: memref<1x8xf32, #tpu.memory_space<vmem>>, %arg4: memref<1x8xf32, #tpu.memory_space<vmem>>, %arg5: memref<4x512x8xbf16, #tpu.memory_space<vmem>>, %arg6: memref<4x512x8xf32, #tpu.memory_space<vmem>>, %arg7: memref<1x8xf32, #tpu.memory_space<vmem>>, %arg8: memref<1x8xf32, #tpu.memory_space<vmem>>) attributes {dimension_semantics = [#tpu.dimension_semantics<arbitrary>], iteration_bounds = array<i64: 4>, scalar_prefetch = 0 : i64, scratch_operands = 3 : i64, tpu.core_type = #tpu.core_type<tc>, window_params = [{transform_indices = @transform_0, window_bounds = array<i64: 1, 512, 64>}, {transform_indices = @transform_1, window_bounds = array<i64: 1, 64, 8>}, {pipeline_mode = #tpu.pipeline_mode<synchronous>, transform_indices = @transform_2, window_bounds = array<i64: 1, 8>}, {pipeline_mode = #tpu.pipeline_mode<synchronous>, transform_indices = @transform_3, window_bounds = array<i64: 1, 8>}, {pipeline_mode = #tpu.pipeline_mode<synchronous>, transform_indices = @transform_4, window_bounds = array<i64: 4, 512, 8>}]} {
    %c0_i32 = arith.constant 0 : i32
    %0 = arith.cmpi eq, %arg0, %c0_i32 : i32
    %1 = arith.extui %0 : i1 to i32
    %c0_i32_0 = arith.constant 0 : i32
    %2 = arith.cmpi ne, %1, %c0_i32_0 : i32
    scf.if %2 {
      %cst_19 = arith.constant 0.000000e+00 : f32
      %26 = vector.broadcast %cst_19 : f32 to vector<1x8xf32>
      %c0_20 = arith.constant 0 : index
      %c0_21 = arith.constant 0 : index
      %27 = vector.load %arg7[%c0_20, %c0_21] : memref<1x8xf32, #tpu.memory_space<vmem>>, vector<1x8xf32>
      tpu.vector_store %arg7[%c0_20, %c0_21], %26 {strides = array<i32>} : memref<1x8xf32, #tpu.memory_space<vmem>>, vector<1x8xf32>,
      %cst_22 = arith.constant 0.000000e+00 : f32
      %28 = vector.broadcast %cst_22 : f32 to vector<1x8xf32>
      %c0_23 = arith.constant 0 : index
      %c0_24 = arith.constant 0 : index
      %29 = vector.load %arg8[%c0_23, %c0_24] : memref<1x8xf32, #tpu.memory_space<vmem>>, vector<1x8xf32>
      tpu.vector_store %arg8[%c0_23, %c0_24], %28 {strides = array<i32>} : memref<1x8xf32, #tpu.memory_space<vmem>>, vector<1x8xf32>,
    } else {
    }
    %c0 = arith.constant 0 : index
    %c0_1 = arith.constant 0 : index
    %c0_2 = arith.constant 0 : index
    %3 = vector.load %arg1[%c0, %c0_1, %c0_2] : memref<1x512x64xbf16, #tpu.memory_space<vmem>>, vector<1x512x64xbf16>
    %4 = vector.shape_cast %3 : vector<1x512x64xbf16> to vector<512x64xbf16>
    %c0_3 = arith.constant 0 : index
    %c0_4 = arith.constant 0 : index
    %c0_5 = arith.constant 0 : index
    %5 = vector.load %arg2[%c0_3, %c0_4, %c0_5] : memref<1x64x8xbf16, #tpu.memory_space<vmem>>, vector<1x64x8xbf16>
    %6 = vector.shape_cast %5 : vector<1x64x8xbf16> to vector<64x8xbf16>
    %cst = arith.constant dense<0.000000e+00> : vector<512x8xf32>
    %7 = tpu.matmul %4, %6, %cst {dimension_numbers = #tpu.dot_dimension_numbers<[1], [0], [0], [1], [0, 0, 1, 1], [], []>} : vector<512x64xbf16>, vector<64x8xbf16>, vector<512x8xf32> -> vector<512x8xf32>
    %8 = arith.index_cast %arg0 : i32 to index
    %c0_6 = arith.constant 0 : index
    %c0_7 = arith.constant 0 : index
    %9 = vector.load %arg6[%8, %c0_6, %c0_7] : memref<4x512x8xf32, #tpu.memory_space<vmem>>, vector<1x512x8xf32>
    %10 = vector.shape_cast %9 : vector<1x512x8xf32> to vector<512x8xf32>
    %11 = vector.shape_cast %7 : vector<512x8xf32> to vector<1x512x8xf32>
    tpu.vector_store %arg6[%8, %c0_6, %c0_7], %11 {strides = array<i32>} : memref<4x512x8xf32, #tpu.memory_space<vmem>>, vector<1x512x8xf32>,
    %c0_8 = arith.constant 0 : index
    %c0_9 = arith.constant 0 : index
    %12 = vector.load %arg7[%c0_8, %c0_9] : memref<1x8xf32, #tpu.memory_space<vmem>>, vector<1x8xf32>
    %cst_10 = arith.constant dense<0.000000e+00> : vector<8xf32>
    %13 = vector.multi_reduction <add>, %7, %cst_10 [0] : vector<512x8xf32> to vector<8xf32>
    %14 = vector.shape_cast %13 : vector<8xf32> to vector<1x8xf32>
    %15 = arith.addf %12, %14 : vector<1x8xf32>
    %c0_11 = arith.constant 0 : index
    %c0_12 = arith.constant 0 : index
    %16 = vector.load %arg7[%c0_11, %c0_12] : memref<1x8xf32, #tpu.memory_space<vmem>>, vector<1x8xf32>
    tpu.vector_store %arg7[%c0_11, %c0_12], %15 {strides = array<i32>} : memref<1x8xf32, #tpu.memory_space<vmem>>, vector<1x8xf32>,
    %c0_13 = arith.constant 0 : index
    %c0_14 = arith.constant 0 : index
    %17 = vector.load %arg8[%c0_13, %c0_14] : memref<1x8xf32, #tpu.memory_space<vmem>>, vector<1x8xf32>
    %18 = arith.mulf %7, %7 : vector<512x8xf32>
    %cst_15 = arith.constant dense<0.000000e+00> : vector<8xf32>
    %19 = vector.multi_reduction <add>, %18, %cst_15 [0] : vector<512x8xf32> to vector<8xf32>
    %20 = vector.shape_cast %19 : vector<8xf32> to vector<1x8xf32>
    %21 = arith.addf %17, %20 : vector<1x8xf32>
    %c0_16 = arith.constant 0 : index
    %c0_17 = arith.constant 0 : index
    %22 = vector.load %arg8[%c0_16, %c0_17] : memref<1x8xf32, #tpu.memory_space<vmem>>, vector<1x8xf32>
    tpu.vector_store %arg8[%c0_16, %c0_17], %21 {strides = array<i32>} : memref<1x8xf32, #tpu.memory_space<vmem>>, vector<1x8xf32>,
    %c3_i32 = arith.constant 3 : i32
    %23 = arith.cmpi eq, %arg0, %c3_i32 : i32
    %24 = arith.extui %23 : i1 to i32
    %c0_i32_18 = arith.constant 0 : i32
    %25 = arith.cmpi ne, %24, %c0_i32_18 : i32
    scf.if %25 {
      %c0_19 = arith.constant 0 : index
      %c0_20 = arith.constant 0 : index
      %26 = vector.load %arg7[%c0_19, %c0_20] : memref<1x8xf32, #tpu.memory_space<vmem>>, vector<1x8xf32>
      %cst_21 = arith.constant 4.8828125E-4 : f32
      %27 = vector.broadcast %cst_21 : f32 to vector<1x8xf32>
      %28 = arith.mulf %26, %27 : vector<1x8xf32>
      %c0_22 = arith.constant 0 : index
      %c0_23 = arith.constant 0 : index
      %29 = vector.load %arg8[%c0_22, %c0_23] : memref<1x8xf32, #tpu.memory_space<vmem>>, vector<1x8xf32>
      %cst_24 = arith.constant 4.8828125E-4 : f32
      %30 = vector.broadcast %cst_24 : f32 to vector<1x8xf32>
      %31 = arith.mulf %29, %30 : vector<1x8xf32>
      %32 = arith.mulf %28, %28 : vector<1x8xf32>
      %33 = arith.subf %31, %32 : vector<1x8xf32>
      %cst_25 = arith.constant 0.000000e+00 : f32
      %34 = vector.broadcast %cst_25 : f32 to vector<1x8xf32>
      %35 = arith.maximumf %33, %34 : vector<1x8xf32>
      %c0_26 = arith.constant 0 : index
      %c0_27 = arith.constant 0 : index
      %36 = vector.load %arg3[%c0_26, %c0_27] : memref<1x8xf32, #tpu.memory_space<vmem>>, vector<1x8xf32>
      %cst_28 = arith.constant 9.99999974E-6 : f32
      %37 = vector.broadcast %cst_28 : f32 to vector<1x8xf32>
      %38 = arith.addf %35, %37 : vector<1x8xf32>
      %39 = math.rsqrt %38 : vector<1x8xf32>
      %40 = arith.mulf %36, %39 : vector<1x8xf32>
      %c0_29 = arith.constant 0 : index
      %c0_30 = arith.constant 0 : index
      %41 = vector.load %arg4[%c0_29, %c0_30] : memref<1x8xf32, #tpu.memory_space<vmem>>, vector<1x8xf32>
      %42 = arith.mulf %28, %40 : vector<1x8xf32>
      %43 = arith.subf %41, %42 : vector<1x8xf32>
      %c0_31 = arith.constant 0 : index
      %c0_32 = arith.constant 0 : index
      %c0_33 = arith.constant 0 : index
      %44 = vector.load %arg6[%c0_31, %c0_32, %c0_33] : memref<4x512x8xf32, #tpu.memory_space<vmem>>, vector<4x512x8xf32>
      %45 = vector.shape_cast %40 : vector<1x8xf32> to vector<1x1x8xf32>
      %46 = vector.broadcast %45 : vector<1x1x8xf32> to vector<4x512x8xf32>
      %47 = arith.mulf %44, %46 : vector<4x512x8xf32>
      %48 = vector.shape_cast %43 : vector<1x8xf32> to vector<1x1x8xf32>
      %49 = vector.broadcast %48 : vector<1x1x8xf32> to vector<4x512x8xf32>
      %50 = arith.addf %47, %49 : vector<4x512x8xf32>
      %cst_34 = arith.constant 0.000000e+00 : f32
      %51 = vector.broadcast %cst_34 : f32 to vector<4x512x8xf32>
      %52 = arith.maximumf %50, %51 : vector<4x512x8xf32>
      %53 = arith.truncf %52 : vector<4x512x8xf32> to vector<4x512x8xbf16>
      %c0_35 = arith.constant 0 : index
      %c0_36 = arith.constant 0 : index
      %c0_37 = arith.constant 0 : index
      %54 = vector.load %arg5[%c0_35, %c0_36, %c0_37] : memref<4x512x8xbf16, #tpu.memory_space<vmem>>, vector<4x512x8xbf16>
      tpu.vector_store %arg5[%c0_35, %c0_36, %c0_37], %53 {strides = array<i32>} : memref<4x512x8xbf16, #tpu.memory_space<vmem>>, vector<4x512x8xbf16>,
    } else {
    }
    return
  }
  func.func @transform_0(%arg0: i32) -> (i32, i32, i32) {
    %c0_i32 = arith.constant 0 : i32
    %c0_i32_0 = arith.constant 0 : i32
    %c0_i32_1 = arith.constant 0 : i32
    return %arg0, %c0_i32, %c0_i32_0 : i32, i32, i32
  }
  func.func @transform_1(%arg0: i32) -> (i32, i32, i32) {
    %c0_i32 = arith.constant 0 : i32
    %c0_i32_0 = arith.constant 0 : i32
    %c0_i32_1 = arith.constant 0 : i32
    return %arg0, %c0_i32, %c0_i32_0 : i32, i32, i32
  }
  func.func @transform_2(%arg0: i32) -> (i32, i32) {
    %c0_i32 = arith.constant 0 : i32
    %c0_i32_0 = arith.constant 0 : i32
    %c0_i32_1 = arith.constant 0 : i32
    return %c0_i32, %c0_i32_0 : i32, i32
  }
  func.func @transform_3(%arg0: i32) -> (i32, i32) {
    %c0_i32 = arith.constant 0 : i32
    %c0_i32_0 = arith.constant 0 : i32
    %c0_i32_1 = arith.constant 0 : i32
    return %c0_i32, %c0_i32_0 : i32, i32
  }
  func.func @transform_4(%arg0: i32) -> (i32, i32, i32) {
    %c0_i32 = arith.constant 0 : i32
    %c0_i32_0 = arith.constant 0 : i32
    %c0_i32_1 = arith.constant 0 : i32
    %c0_i32_2 = arith.constant 0 : i32
    return %c0_i32, %c0_i32_0, %c0_i32_1 : i32, i32, i32
  }
}

module attributes {stable_mosaic.version = 11 : i64} {
  func.func @_phase_matmul_tanh_kernel(%arg0: i32, %arg1: memref<1x32x2048xbf16, #tpu.memory_space<vmem>>, %arg2: memref<1x3x32xbf16, #tpu.memory_space<vmem>>, %arg3: memref<1x3x2048xf32, #tpu.memory_space<vmem>>) attributes {dimension_semantics = [#tpu.dimension_semantics<parallel>], iteration_bounds = array<i64: 4>, scalar_prefetch = 0 : i64, scratch_operands = 0 : i64, tpu.core_type = #tpu.core_type<tc>, window_params = [{transform_indices = @transform_0, window_bounds = array<i64: 1, 32, 2048>}, {transform_indices = @transform_1, window_bounds = array<i64: 1, 3, 32>}, {transform_indices = @transform_2, window_bounds = array<i64: 1, 3, 2048>}]} {
    %c0 = arith.constant 0 : index
    %c0_0 = arith.constant 0 : index
    %c0_1 = arith.constant 0 : index
    %0 = vector.load %arg2[%c0, %c0_0, %c0_1] : memref<1x3x32xbf16, #tpu.memory_space<vmem>>, vector<1x3x32xbf16>
    %1 = vector.shape_cast %0 : vector<1x3x32xbf16> to vector<3x32xbf16>
    %c0_2 = arith.constant 0 : index
    %c0_3 = arith.constant 0 : index
    %c0_4 = arith.constant 0 : index
    %2 = vector.load %arg1[%c0_2, %c0_3, %c0_4] : memref<1x32x2048xbf16, #tpu.memory_space<vmem>>, vector<1x32x2048xbf16>
    %3 = vector.shape_cast %2 : vector<1x32x2048xbf16> to vector<32x2048xbf16>
    %cst = arith.constant dense<0.000000e+00> : vector<3x2048xf32>
    %4 = tpu.matmul %1, %3, %cst {dimension_numbers = #tpu.dot_dimension_numbers<[1], [0], [0], [1], [0, 0, 1, 1], [], []>} : vector<3x32xbf16>, vector<32x2048xbf16>, vector<3x2048xf32> -> vector<3x2048xf32>
    %5 = math.tanh %4 : vector<3x2048xf32>
    %c0_5 = arith.constant 0 : index
    %c0_6 = arith.constant 0 : index
    %c0_7 = arith.constant 0 : index
    %6 = vector.load %arg3[%c0_5, %c0_6, %c0_7] : memref<1x3x2048xf32, #tpu.memory_space<vmem>>, vector<1x3x2048xf32>
    %7 = vector.shape_cast %6 : vector<1x3x2048xf32> to vector<3x2048xf32>
    %8 = vector.shape_cast %5 : vector<3x2048xf32> to vector<1x3x2048xf32>
    tpu.vector_store %arg3[%c0_5, %c0_6, %c0_7], %8 {strides = array<i32>} : memref<1x3x2048xf32, #tpu.memory_space<vmem>>, vector<1x3x2048xf32>,
    return
  }
  func.func @transform_0(%arg0: i32) -> (i32, i32, i32) {
    %c0_i32 = arith.constant 0 : i32
    %c0_i32_0 = arith.constant 0 : i32
    %c0_i32_1 = arith.constant 0 : i32
    return %arg0, %c0_i32, %c0_i32_0 : i32, i32, i32
  }
  func.func @transform_1(%arg0: i32) -> (i32, i32, i32) {
    %c0_i32 = arith.constant 0 : i32
    %c0_i32_0 = arith.constant 0 : i32
    %c0_i32_1 = arith.constant 0 : i32
    return %arg0, %c0_i32, %c0_i32_0 : i32, i32, i32
  }
  func.func @transform_2(%arg0: i32) -> (i32, i32, i32) {
    %c0_i32 = arith.constant 0 : i32
    %c0_i32_0 = arith.constant 0 : i32
    %c0_i32_1 = arith.constant 0 : i32
    return %arg0, %c0_i32, %c0_i32_0 : i32, i32, i32
  }
}

</mosaic_0001>

<llo_original>
// kernel: generator_forward.5
$region0: #{generator_forward.5}
  #allocation0 [shape = 'u32[]', space=smem, size = 0x4, offset = 0x4, fixed_abs, tag = 'smem constant byte address 0x4 - core index']
  #allocation1 [shape = 'u32[144,128]{1,0:T(1,128)}', space=vmem, size = 0x12000, scoped, tag = 'internal scratch']
  #allocation2 [shape = 'f32[16,2,64]{2,1,0:T(2,128)}', space=vmem, size = 0x4000, scoped, tag = 'scratch operand']
  #allocation3 [shape = 'f32[1,64]{1,0:T(1,128)}', space=vmem, size = 0x200, scoped, tag = 'scratch operand']
  #allocation4 [shape = 'f32[1,64]{1,0:T(1,128)}', space=vmem, size = 0x200, scoped, tag = 'scratch operand']
  %s0 = inlined_call_operand.vmem [shape: bf16[16,2,8], index: 0, kind: input, shape index: {}]
  %s1 = inlined_call_operand.vmem [shape: bf16[16,8,64], index: 1, kind: input, shape index: {}]
  %s2 = inlined_call_operand.hbm [shape: f32[1,64], index: 2, kind: input, shape index: {}]
  %s3 = inlined_call_operand.hbm [shape: f32[1,64], index: 3, kind: input, shape index: {}]
  %s4 = inlined_call_operand.vmem [shape: bf16[16,2,64], index: 4, kind: output, shape index: {}]
  %s5 = sld [smem:[#allocation0]]
  $region65: #{generator_forward.5} parent=0
    _
  %s7 = ssub.s32 1, %s5
  %s8 = scalar_select 0, %s7, %s5
  $region1: #{generator_forward.5} parent=0
    #allocation5 [shape = 'u8[512]{0}', space=vmem, size = 0x400, scoped, tag = 'input window, operand 2, single buffered']
    #allocation6 [shape = 's32[2]{0}', space=sflag, size = 0x8, scoped, tag = 'scoped memory for generator_forward.5']
    #allocation7 [shape = 'u8[512]{0}', space=vmem, size = 0x400, scoped, tag = 'input window, operand 3, single buffered']
    #allocation8 [shape = 's32[1]{0}', space=sflag, size = 0x4, scoped, tag = 'scoped memory for generator_forward.5']
    %9 = vsyncpa [#allocation6], 0
    %10 = vsyncpa [#allocation8], 0
    loop: start=0, step=1, limit=18
    $region2: #{generator_forward.5} parent=1 // loop_pre_header
      _
    $region3: #{generator_forward.5} parent=1 // loop_header
      %s12 = sphi 0, %s16
      %p13 = scmp.ge.s32.totalorder %s12, 18
      %s22 = sphi 0, %s24
      %s25 = sphi 0, %s22
      %s26 = sphi 0, %s25
      %s42 = sphi 0, %s26
      %s48 = sphi 0, %s50
      %s51 = sphi 0, %s48
      %s52 = sphi 0, %s51
      %s68 = sphi 0, %s52
      %s72 = sphi 0, %s72
      %s74 = sphi 0, %s72
      %s75 = sphi 0, %s74
      %s89 = sphi 0, %s75
      %s93 = sphi 0, %s93
      %s95 = sphi 0, %s93
      %s96 = sphi 0, %s95
      %s110 = sphi 0, %s96
      %s114 = sphi 0, %s114
      %s116 = sphi 0, %s114
      %s117 = sphi 0, %s116
      %s131 = sphi 0, %s117
    $region4: #{generator_forward.5} parent=1 // loop_header_branch
      %15 = sbr.rel (%p13) target = $region8
    $region5: #{generator_forward.5} parent=1 // loop_body
      %s17 = ssub.s32 %s12, 1
      %s18 = ssub.s32 %s12, 2
      %s19 = sadd.s32 %s12, 1
      %s20 = ssub.s32 %s12, %s19
      %p21 = scmp.eq.s32.totalorder %s20, 0
      %s23 = sadd.s32 %s22, 1
      %s24 = scalar_select %p21, %s22, %s23
      %p27 = pneg %p21
      %p28 = scmp.eq.s32.totalorder %s12, 15
      %p29 = por %p27, %p28
      %p30 = scmp.ne.s32.totalorder %s22, %s25
      %p31 = scmp.eq.s32.totalorder %s12, 0
      %p32 = por %p30, %p31
      %p33 = scmp.ne.s32.totalorder %s22, %s25
      %p34 = scmp.eq.s32.totalorder %s17, 15
      %p35 = por %p33, %p34
      %p36 = scmp.ne.s32.totalorder %s25, %s26
      %p37 = scmp.eq.s32.totalorder %s17, 0
      %p38 = por %p36, %p37
      %p39 = scmp.ne.s32.totalorder %s25, %s26
      %p40 = scmp.eq.s32.totalorder %s18, 15
      %p41 = por %p39, %p40
      %p43 = scmp.ne.s32.totalorder %s26, %s42
      %p44 = scmp.eq.s32.totalorder %s18, 0
      %p45 = por %p43, %p44
      %s46 = ssub.s32 %s12, %s19
      %p47 = scmp.eq.s32.totalorder %s46, 0
      %s49 = sadd.s32 %s48, 1
      %s50 = scalar_select %p47, %s48, %s49
      %p53 = pneg %p47
      %p54 = scmp.eq.s32.totalorder %s12, 15
      %p55 = por %p53, %p54
      %p56 = scmp.ne.s32.totalorder %s48, %s51
      %p57 = scmp.eq.s32.totalorder %s12, 0
      %p58 = por %p56, %p57
      %p59 = scmp.ne.s32.totalorder %s48, %s51
      %p60 = scmp.eq.s32.totalorder %s17, 15
      %p61 = por %p59, %p60
      %p62 = scmp.ne.s32.totalorder %s51, %s52
      %p63 = scmp.eq.s32.totalorder %s17, 0
      %p64 = por %p62, %p63
      %p65 = scmp.ne.s32.totalorder %s51, %s52
      %p66 = scmp.eq.s32.totalorder %s18, 15
      %p67 = por %p65, %p66
      %p69 = scmp.ne.s32.totalorder %s52, %s68
      %p70 = scmp.eq.s32.totalorder %s18, 0
      %p71 = por %p69, %p70
      %s73 = sadd.s32 %s72, 1
      %p76 = scmp.eq.s32.totalorder %s12, 15
      %p77 = scmp.ne.s32.totalorder %s72, %s74
      %p78 = scmp.eq.s32.totalorder %s12, 0
      %p79 = por %p77, %p78
      %p80 = scmp.ne.s32.totalorder %s72, %s74
      %p81 = scmp.eq.s32.totalorder %s17, 15
      %p82 = por %p80, %p81
      %p83 = scmp.ne.s32.totalorder %s74, %s75
      %p84 = scmp.eq.s32.totalorder %s17, 0
      %p85 = por %p83, %p84
      %p86 = scmp.ne.s32.totalorder %s74, %s75
      %p87 = scmp.eq.s32.totalorder %s18, 15
      %p88 = por %p86, %p87
      %p90 = scmp.ne.s32.totalorder %s75, %s89
      %p91 = scmp.eq.s32.totalorder %s18, 0
      %p92 = por %p90, %p91
      %s94 = sadd.s32 %s93, 1
      %p97 = scmp.eq.s32.totalorder %s12, 15
      %p98 = scmp.ne.s32.totalorder %s93, %s95
      %p99 = scmp.eq.s32.totalorder %s12, 0
      %p100 = por %p98, %p99
      %p101 = scmp.ne.s32.totalorder %s93, %s95
      %p102 = scmp.eq.s32.totalorder %s17, 15
      %p103 = por %p101, %p102
      %p104 = scmp.ne.s32.totalorder %s95, %s96
      %p105 = scmp.eq.s32.totalorder %s17, 0
      %p106 = por %p104, %p105
      %p107 = scmp.ne.s32.totalorder %s95, %s96
      %p108 = scmp.eq.s32.totalorder %s18, 15
      %p109 = por %p107, %p108
      %p111 = scmp.ne.s32.totalorder %s96, %s110
      %p112 = scmp.eq.s32.totalorder %s18, 0
      %p113 = por %p111, %p112
      %s115 = sadd.s32 %s114, 1
      %p118 = scmp.eq.s32.totalorder %s12, 15
      %p119 = scmp.ne.s32.totalorder %s114, %s116
      %p120 = scmp.eq.s32.totalorder %s12, 0
      %p121 = por %p119, %p120
      %p122 = scmp.ne.s32.totalorder %s114, %s116
      %p123 = scmp.eq.s32.totalorder %s17, 15
      %p124 = por %p122, %p123
      %p125 = scmp.ne.s32.totalorder %s116, %s117
      %p126 = scmp.eq.s32.totalorder %s17, 0
      %p127 = por %p125, %p126
      %p128 = scmp.ne.s32.totalorder %s116, %s117
      %p129 = scmp.eq.s32.totalorder %s18, 15
      %p130 = por %p128, %p129
      %p132 = scmp.ne.s32.totalorder %s117, %s131
      %p133 = scmp.eq.s32.totalorder %s18, 0
      %p134 = por %p132, %p133
      %p135 = scmp.le.s32.totalorder 1, %s12
      %p136 = scmp.lt.s32.totalorder %s12, 17
      %p137 = pnand %p135, %p136
      %p138 = pneg %p137
      // Predicated region
      $region9: #{generator_forward.5} parent=5 // pred_check
        _
      $region10: #{generator_forward.5} parent=5 // pred_check_branch
        %140 = sbr.rel (%p137) target = $region12
      $region11: #{generator_forward.5} parent=5 // pred_region
        %s141 = ssub.s32 %s12, 1
        // Predicated region
        $region13: #{generator_forward.5} parent=11 // pred_check
          %p142 = pneg %p85
        $region14: #{generator_forward.5} parent=11 // pred_check_branch
          %144 = sbr.rel (%p142) target = $region16
        $region15: #{generator_forward.5} parent=11 // pred_region
          %s146 = ssub.s32 16, 16
          %147 = vsyncadd [#allocation6], %s146
          %s149 = sshll.u32 [#allocation5], 4
          %s150 = int_to_ptr.vmem [resolvable:$true] %s149
          %152 = dma.hbm_to_vmem [thread:$0]  %s2, 16, %s150, [#allocation6]
        $region16: #{generator_forward.5} parent=11 // pred_fallthru
          _
        // Predicated region
        $region17: #{generator_forward.5} parent=11 // pred_check
          %p153 = pneg %p106
        $region18: #{generator_forward.5} parent=11 // pred_check_branch
          %155 = sbr.rel (%p153) target = $region20
        $region19: #{generator_forward.5} parent=11 // pred_region
          %s157 = ssub.s32 16, 16
          %158 = vsyncadd [#allocation8], %s157
          %s160 = sshll.u32 [#allocation7], 4
          %s161 = int_to_ptr.vmem [resolvable:$true] %s160
          %163 = dma.hbm_to_vmem [thread:$0]  %s3, 16, %s161, [#allocation8]
        $region20: #{generator_forward.5} parent=11 // pred_fallthru
          _
      $region12: #{generator_forward.5} parent=5 // pred_fallthru
        _
      %p164 = scmp.lt.s32.totalorder %s12, 16
      // Predicated region
      $region21: #{generator_forward.5} parent=5 // pred_check
        %p165 = pneg %p164
      $region22: #{generator_forward.5} parent=5 // pred_check_branch
        %167 = sbr.rel (%p165) target = $region24
      $region23: #{generator_forward.5} parent=5 // pred_region
        // Predicated region
        $region25: #{generator_forward.5} parent=23 // pred_check
          %p168 = pneg %p32
        $region26: #{generator_forward.5} parent=23 // pred_check_branch
          %170 = sbr.rel (%p168) target = $region28
        $region27: #{generator_forward.5} parent=23 // pred_region
          %p171 = scmp.lt.s32.totalorder %s12, 15
          %s172 = scalar_select %p171, %s12, 15
          %s173 = scalar_lea.vmem %s0, %s172
        $region28: #{generator_forward.5} parent=23 // pred_fallthru
          _
        // Predicated region
        $region29: #{generator_forward.5} parent=23 // pred_check
          %p174 = pneg %p58
        $region30: #{generator_forward.5} parent=23 // pred_check_branch
          %176 = sbr.rel (%p174) target = $region32
        $region31: #{generator_forward.5} parent=23 // pred_region
          %p177 = scmp.lt.s32.totalorder %s12, 15
          %s178 = scalar_select %p177, %s12, 15
          %s179 = smul.addr %s178, 4
          %s180 = scalar_lea.vmem %s1, %s179
        $region32: #{generator_forward.5} parent=23 // pred_fallthru
          _
      $region24: #{generator_forward.5} parent=5 // pred_fallthru
        _
      %p181 = scmp.le.s32.totalorder 1, %s12
      %p182 = scmp.lt.s32.totalorder %s12, 17
      %p183 = pnand %p181, %p182
      %p184 = pneg %p183
      // Predicated region
      $region33: #{generator_forward.5} parent=5 // pred_check
        _
      $region34: #{generator_forward.5} parent=5 // pred_check_branch
        %186 = sbr.rel (%p183) target = $region36
      $region35: #{generator_forward.5} parent=5 // pred_region
        %s187 = ssub.s32 %s12, 1
        // Predicated region
        $region37: #{generator_forward.5} parent=35 // pred_check
          %p188 = pneg %p85
        $region38: #{generator_forward.5} parent=35 // pred_check_branch
          %190 = sbr.rel (%p188) target = $region40
        $region39: #{generator_forward.5} parent=35 // pred_region
          %191 = dma.done [#allocation6], 16
        $region40: #{generator_forward.5} parent=35 // pred_fallthru
          _
        // Predicated region
        $region41: #{generator_forward.5} parent=35 // pred_check
          %p192 = pneg %p106
        $region42: #{generator_forward.5} parent=35 // pred_check_branch
          %194 = sbr.rel (%p192) target = $region44
        $region43: #{generator_forward.5} parent=35 // pred_region
          %195 = dma.done [#allocation8], 16
        $region44: #{generator_forward.5} parent=35 // pred_fallthru
          _
        %p196 = scmp.lt.s32.totalorder %s17, 15
        %s197 = scalar_select %p196, %s17, 15
        %s198 = scalar_lea.vmem %s0, %s197
        %p199 = pneg %p38
        %p200 = pneg %p35
        %p201 = scmp.lt.s32.totalorder %s17, 15
        %s202 = scalar_select %p201, %s17, 15
        %s203 = smul.addr %s202, 4
        %s204 = scalar_lea.vmem %s1, %s203
        %p205 = pneg %p64
        %p206 = pneg %p61
        %p207 = pneg %p85
        %p208 = pneg %p82
        %p209 = pneg %p106
        %p210 = pneg %p103
        %p211 = pneg %p127
        %p212 = pneg %p124
        %p213 = scmp.lt.s32.totalorder %s17, 15
        %s214 = scalar_select %p213, %s17, 15
        %s215 = scalar_lea.vmem %s0, %s214
        %p216 = scmp.lt.s32.totalorder %s17, 15
        %s217 = scalar_select %p216, %s17, 15
        %s218 = smul.addr %s217, 4
        %s219 = scalar_lea.vmem %s1, %s218
        %p221 = scmp.eq.s32.totalorder %s17, 0
        // Predicated region
        $region45: #{generator_forward.5} parent=35 // pred_check
          %p222 = pneg %p221
        $region46: #{generator_forward.5} parent=35 // pred_check_branch
          %224 = sbr.rel (%p222) target = $region48
        $region47: #{generator_forward.5} parent=35 // pred_region
          %vm225 = vcmask 516096
          %226 = vst.msk [vmem:[#allocation3] sm:$0x1] %vm225, 0.0
          %227 = vst.msk [vmem:[#allocation4] sm:$0x1] %vm225, 0.0
        $region48: #{generator_forward.5} parent=35 // pred_fallthru
          _
        %v228 = vld [vmem:[%s215] sm:$0x1]
        %v229 = vld [vmem:[%s219] sm:$0xf]
        %vm230 = vcmask 64512
        %v232 = vsel %vm230, %v228, 0
        %vm234 = vcmask 1043456
        %v236 = vsel %vm234, %v229, 0
        %238 = vmatprep.subr.bf16.mxu0 0
        %239 = vmatpush1.bf16.msra.mxu0 %v236
        %240 = vmatprep.subr.bf16.mxu0 0
        %241 = vmatpush1.bf16.msra.mxu0 0
        %242 = vmatprep.subr.bf16.mxu0 0
        %243 = vmatpush1.bf16.msra.mxu0 0
        %244 = vmatprep.subr.bf16.mxu0 0
        %245 = vmatpush1.bf16.msra.mxu0 0
        %246 = vmatprep.subr.bf16.mxu0 0
        %247 = vmatpush1.bf16.msra.mxu0 0
        %248 = vmatprep.subr.bf16.mxu0 0
        %249 = vmatpush1.bf16.msra.mxu0 0
        %250 = vmatprep.subr.bf16.mxu0 0
        %251 = vmatpush1.bf16.msra.mxu0 0
        %252 = vmatprep.subr.bf16.mxu0 0
        %253 = vmatpush1.bf16.msra.mxu0 0
        %254 = vmatprep.subr.bf16.mxu0 0
        %255 = vmatpush1.bf16.msra.mxu0 0
        %256 = vmatprep.subr.bf16.mxu0 0
        %257 = vmatpush1.bf16.msra.mxu0 0
        %258 = vmatprep.subr.bf16.mxu0 0
        %259 = vmatpush1.bf16.msra.mxu0 0
        %260 = vmatprep.subr.bf16.mxu0 0
        %261 = vmatpush1.bf16.msra.mxu0 0
        %262 = vmatprep.subr.bf16.mxu0 0
        %263 = vmatpush1.bf16.msra.mxu0 0
        %264 = vmatprep.subr.bf16.mxu0 0
        %265 = vmatpush1.bf16.msra.mxu0 0
        %266 = vmatprep.subr.bf16.mxu0 0
        %267 = vmatpush1.bf16.msra.mxu0 0
        %268 = vmatprep.subr.bf16.mxu0 0
        %269 = vmatpush1.bf16.msra.mxu0 0
        %270 = vmatprep.mubr.bf16.mxu0 0
        %271 = vmatmul.mubr.bf16.gmra.mrb[0].mxu0 %v232
        %v272 = vpop.f32.mrb[0].mxu0
        %v273 = vadd.f32 0.0, %v272
        %v274 = vpop.f32.mrb[0].mxu0
        %v275 = vpop.f32.mrb[0].mxu0
        %v276 = vpop.f32.mrb[0].mxu0
        %277 = vdwg.mxu0
        %s278 = smul.u32 %s17, 2
        %s279 = scalar_lea.vmem [#allocation2], %s278
        %vm280 = vcmask 517120
        %281 = vst.msk [vmem:[%s279] sm:$0x3] %vm280, %v273
        %v282 = vld [vmem:[#allocation3] sm:$0x1]
        %v283 = vsel %vm280, %v273, 0.0
        %v284 = vrot.slane %v283, 4
        %v285 = vadd.f32 %v283, %v284
        %v286 = vrot.slane %v285, 2
        %v287 = vadd.f32 %v285, %v286
        %v288 = vrot.slane %v287, 1
        %v289 = vadd.f32 %v287, %v288
        %v290 = vadd.f32 %v282, %v289
        %vm291 = vcmask 516096
        %292 = vst.msk [vmem:[#allocation3] sm:$0x1] %vm291, %v290
        %v293 = vld [vmem:[#allocation4] sm:$0x1]
        %v294 = vmul.f32 %v273, %v273
        %v295 = vsel %vm280, %v294, 0.0
        %v296 = vrot.slane %v295, 4
        %v297 = vadd.f32 %v295, %v296
        %v298 = vrot.slane %v297, 2
        %v299 = vadd.f32 %v297, %v298
        %v300 = vrot.slane %v299, 1
        %v301 = vadd.f32 %v299, %v300
        %v302 = vadd.f32 %v293, %v301
        %303 = vst.msk [vmem:[#allocation4] sm:$0x1] %vm291, %v302
        %p304 = scmp.eq.s32.totalorder %s17, 15
        // Predicated region
        $region49: #{generator_forward.5} parent=35 // pred_check
          %p305 = pneg %p304
        $region50: #{generator_forward.5} parent=35 // pred_check_branch
          %307 = sbr.rel (%p305) target = $region52
        $region51: #{generator_forward.5} parent=35 // pred_region
          %v308 = vld [vmem:[#allocation3] sm:$0x1]
          %v309 = vmul.f32 %v308, 0.03125
          %v310 = vld [vmem:[#allocation4] sm:$0x1]
          %v311 = vmul.f32 %v310, 0.03125
          %v312 = vmul.f32 %v309, %v309
          %v313 = vsub.f32 %v311, %v312
          %v314 = vmax.f32 %v313, 0.0
          %v315 = vld [vmem:[#allocation5] sm:$0x1]
          %v316 = vadd.f32 %v314, 1e-05
          %v317 = vrsqrt.pop %v316
          %v318 = vmul.f32 %v315, %v317
          %v319 = vld [vmem:[#allocation7] sm:$0x1]
          %v320 = vmul.f32 %v309, %v318
          %v321 = vsub.f32 %v319, %v320
          %v322 = vld [vmem:[#allocation2] sm:$0x3]
          %v323 = vld [vmem:[#allocation2 + $0x2] sm:$0x3]
          %v324 = vld [vmem:[#allocation2 + $0x4] sm:$0x3]
          %v325 = vld [vmem:[#allocation2 + $0x6] sm:$0x3]
          %v326 = vld [vmem:[#allocation2 + $0x8] sm:$0x3]
          %v327 = vld [vmem:[#allocation2 + $0xa] sm:$0x3]
          %v328 = vld [vmem:[#allocation2 + $0xc] sm:$0x3]
          %v329 = vld [vmem:[#allocation2 + $0xe] sm:$0x3]
          %v330 = vld [vmem:[#allocation2 + $0x10] sm:$0x3]
          %v331 = vld [vmem:[#allocation2 + $0x12] sm:$0x3]
          %v332 = vld [vmem:[#allocation2 + $0x14] sm:$0x3]
          %v333 = vld [vmem:[#allocation2 + $0x16] sm:$0x3]
          %v334 = vld [vmem:[#allocation2 + $0x18] sm:$0x3]
          %v335 = vld [vmem:[#allocation2 + $0x1a] sm:$0x3]
          %v336 = vld [vmem:[#allocation2 + $0x1c] sm:$0x3]
          %v337 = vld [vmem:[#allocation2 + $0x1e] sm:$0x3]
          %v339 = vlaneseq
          %v340 = vshrl.u32 %v339, 7
          %v341 = vsub.s32 0, %v340
          %v342 = vrot.slane %v318, %v341
          %v344 = vmul.f32 %v322, %v342
          %v345 = vmul.f32 %v323, %v342
          %v346 = vmul.f32 %v324, %v342
          %v347 = vmul.f32 %v325, %v342
          %v348 = vmul.f32 %v326, %v342
          %v349 = vmul.f32 %v327, %v342
          %v350 = vmul.f32 %v328, %v342
          %v351 = vmul.f32 %v329, %v342
          %v352 = vmul.f32 %v330, %v342
          %v353 = vmul.f32 %v331, %v342
          %v354 = vmul.f32 %v332, %v342
          %v355 = vmul.f32 %v333, %v342
          %v356 = vmul.f32 %v334, %v342
          %v357 = vmul.f32 %v335, %v342
          %v358 = vmul.f32 %v336, %v342
          %v359 = vmul.f32 %v337, %v342
          %v361 = vlaneseq
          %v362 = vshrl.u32 %v361, 7
          %v363 = vsub.s32 0, %v362
          %v364 = vrot.slane %v321, %v363
          %v366 = vadd.f32 %v344, %v364
          %v367 = vadd.f32 %v345, %v364
          %v368 = vadd.f32 %v346, %v364
          %v369 = vadd.f32 %v347, %v364
          %v370 = vadd.f32 %v348, %v364
          %v371 = vadd.f32 %v349, %v364
          %v372 = vadd.f32 %v350, %v364
          %v373 = vadd.f32 %v351, %v364
          %v374 = vadd.f32 %v352, %v364
          %v375 = vadd.f32 %v353, %v364
          %v376 = vadd.f32 %v354, %v364
          %v377 = vadd.f32 %v355, %v364
          %v378 = vadd.f32 %v356, %v364
          %v379 = vadd.f32 %v357, %v364
          %v380 = vadd.f32 %v358, %v364
          %v381 = vadd.f32 %v359, %v364
          %v382 = vmax.f32 %v366, 0.0
          %v383 = vmax.f32 %v367, 0.0
          %v384 = vmax.f32 %v368, 0.0
          %v385 = vmax.f32 %v369, 0.0
          %v386 = vmax.f32 %v370, 0.0
          %v387 = vmax.f32 %v371, 0.0
          %v388 = vmax.f32 %v372, 0.0
          %v389 = vmax.f32 %v373, 0.0
          %v390 = vmax.f32 %v374, 0.0
          %v391 = vmax.f32 %v375, 0.0
          %v392 = vmax.f32 %v376, 0.0
          %v393 = vmax.f32 %v377, 0.0
          %v394 = vmax.f32 %v378, 0.0
          %v395 = vmax.f32 %v379, 0.0
          %v396 = vmax.f32 %v380, 0.0
          %v397 = vmax.f32 %v381, 0.0
          %v398 = vpack.c.bf16 %v382, %v382
          %v399 = vpack.c.bf16 %v383, %v383
          %v400 = vpack.c.bf16 %v384, %v384
          %v401 = vpack.c.bf16 %v385, %v385
          %v402 = vpack.c.bf16 %v386, %v386
          %v403 = vpack.c.bf16 %v387, %v387
          %v404 = vpack.c.bf16 %v388, %v388
          %v405 = vpack.c.bf16 %v389, %v389
          %v406 = vpack.c.bf16 %v390, %v390
          %v407 = vpack.c.bf16 %v391, %v391
          %v408 = vpack.c.bf16 %v392, %v392
          %v409 = vpack.c.bf16 %v393, %v393
          %v410 = vpack.c.bf16 %v394, %v394
          %v411 = vpack.c.bf16 %v395, %v395
          %v412 = vpack.c.bf16 %v396, %v396
          %v413 = vpack.c.bf16 %v397, %v397
          %414 = vst.msk [vmem:[%s4] sm:$0x1] %vm291, %v398
          %415 = vst.msk [vmem:[%s4 + $0x1] sm:$0x1] %vm291, %v399
          %416 = vst.msk [vmem:[%s4 + $0x2] sm:$0x1] %vm291, %v400
          %417 = vst.msk [vmem:[%s4 + $0x3] sm:$0x1] %vm291, %v401
          %418 = vst.msk [vmem:[%s4 + $0x4] sm:$0x1] %vm291, %v402
          %419 = vst.msk [vmem:[%s4 + $0x5] sm:$0x1] %vm291, %v403
          %420 = vst.msk [vmem:[%s4 + $0x6] sm:$0x1] %vm291, %v404
          %421 = vst.msk [vmem:[%s4 + $0x7] sm:$0x1] %vm291, %v405
          %422 = vst.msk [vmem:[%s4 + $0x8] sm:$0x1] %vm291, %v406
          %423 = vst.msk [vmem:[%s4 + $0x9] sm:$0x1] %vm291, %v407
          %424 = vst.msk [vmem:[%s4 + $0xa] sm:$0x1] %vm291, %v408
          %425 = vst.msk [vmem:[%s4 + $0xb] sm:$0x1] %vm291, %v409
          %426 = vst.msk [vmem:[%s4 + $0xc] sm:$0x1] %vm291, %v410
          %427 = vst.msk [vmem:[%s4 + $0xd] sm:$0x1] %vm291, %v411
          %428 = vst.msk [vmem:[%s4 + $0xe] sm:$0x1] %vm291, %v412
          %429 = vst.msk [vmem:[%s4 + $0xf] sm:$0x1] %vm291, %v413
        $region52: #{generator_forward.5} parent=35 // pred_fallthru
          _
        // Predicated region
        $region53: #{generator_forward.5} parent=35 // pred_check
          %p430 = pneg %p124
        $region54: #{generator_forward.5} parent=35 // pred_check_branch
          %432 = sbr.rel (%p430) target = $region56
        $region55: #{generator_forward.5} parent=35 // pred_region
          _
        $region56: #{generator_forward.5} parent=35 // pred_fallthru
          _
        // Predicated region
        $region57: #{generator_forward.5} parent=35 // pred_check
          %p433 = pneg %p124
        $region58: #{generator_forward.5} parent=35 // pred_check_branch
          %435 = sbr.rel (%p433) target = $region60
        $region59: #{generator_forward.5} parent=35 // pred_region
          _
        $region60: #{generator_forward.5} parent=35 // pred_fallthru
          _
      $region36: #{generator_forward.5} parent=5 // pred_fallthru
        _
      %p436 = scmp.le.s32.totalorder 2, %s12
      // Predicated region
      $region61: #{generator_forward.5} parent=5 // pred_check
        %p437 = pneg %p436
      $region62: #{generator_forward.5} parent=5 // pred_check_branch
        %439 = sbr.rel (%p437) target = $region64
      $region63: #{generator_forward.5} parent=5 // pred_region
        %s440 = ssub.s32 %s12, 2
      $region64: #{generator_forward.5} parent=5 // pred_fallthru
        _
    $region6: #{generator_forward.5} parent=1 // loop_footer
      %s16 = sadd.s32 1, %s12
    $region7: #{generator_forward.5} parent=1 // loop_footer_branch
      %11 = sbr.rel target = $region3
    $region8: #{generator_forward.5} parent=1 // loop_exit
      _
    %441 = vsyncpa [#allocation6], 1
    %s442 = scalar_lea.sflag [#allocation6], 1
    %443 = vsyncpa %s442, 1
    %444 = vsyncpa [#allocation8], 1

// kernel: generator_forward.6
$region0: #{generator_forward.6}
  #allocation0 [shape = 'u32[]', space=smem, size = 0x4, offset = 0x4, fixed_abs, tag = 'smem constant byte address 0x4 - core index']
  #allocation1 [shape = 'u32[144,128]{1,0:T(1,128)}', space=vmem, size = 0x12000, scoped, tag = 'internal scratch']
  #allocation2 [shape = 'f32[4,32,32]{2,1,0:T(8,128)}', space=vmem, size = 0x10000, scoped, tag = 'scratch operand']
  #allocation3 [shape = 'f32[1,32]{1,0:T(1,128)}', space=vmem, size = 0x200, scoped, tag = 'scratch operand']
  #allocation4 [shape = 'f32[1,32]{1,0:T(1,128)}', space=vmem, size = 0x200, scoped, tag = 'scratch operand']
  %s0 = inlined_call_operand.vmem [shape: bf16[4,32,256], index: 0, kind: input, shape index: {}]
  %s1 = inlined_call_operand.vmem [shape: bf16[4,256,32], index: 1, kind: input, shape index: {}]
  %s2 = inlined_call_operand.hbm [shape: f32[1,32], index: 2, kind: input, shape index: {}]
  %s3 = inlined_call_operand.hbm [shape: f32[1,32], index: 3, kind: input, shape index: {}]
  %s4 = inlined_call_operand.vmem [shape: bf16[4,32,32], index: 4, kind: output, shape index: {}]
  %s5 = sld [smem:[#allocation0]]
  $region65: #{generator_forward.6} parent=0
    _
  %s7 = ssub.s32 1, %s5
  %s8 = scalar_select 0, %s7, %s5
  $region1: #{generator_forward.6} parent=0
    #allocation5 [shape = 'u8[512]{0}', space=vmem, size = 0x400, scoped, tag = 'input window, operand 2, single buffered']
    #allocation6 [shape = 's32[2]{0}', space=sflag, size = 0x8, scoped, tag = 'scoped memory for generator_forward.6']
    #allocation7 [shape = 'u8[512]{0}', space=vmem, size = 0x400, scoped, tag = 'input window, operand 3, single buffered']
    #allocation8 [shape = 's32[1]{0}', space=sflag, size = 0x4, scoped, tag = 'scoped memory for generator_forward.6']
    %9 = vsyncpa [#allocation6], 0
    %10 = vsyncpa [#allocation8], 0
    loop: start=0, step=1, limit=6
    $region2: #{generator_forward.6} parent=1 // loop_pre_header
      _
    $region3: #{generator_forward.6} parent=1 // loop_header
      %s12 = sphi 0, %s16
      %p13 = scmp.ge.s32.totalorder %s12, 6
      %s22 = sphi 0, %s24
      %s25 = sphi 0, %s22
      %s26 = sphi 0, %s25
      %s42 = sphi 0, %s26
      %s48 = sphi 0, %s50
      %s51 = sphi 0, %s48
      %s52 = sphi 0, %s51
      %s68 = sphi 0, %s52
      %s72 = sphi 0, %s72
      %s74 = sphi 0, %s72
      %s75 = sphi 0, %s74
      %s89 = sphi 0, %s75
      %s93 = sphi 0, %s93
      %s95 = sphi 0, %s93
      %s96 = sphi 0, %s95
      %s110 = sphi 0, %s96
      %s114 = sphi 0, %s114
      %s116 = sphi 0, %s114
      %s117 = sphi 0, %s116
      %s131 = sphi 0, %s117
    $region4: #{generator_forward.6} parent=1 // loop_header_branch
      %15 = sbr.rel (%p13) target = $region8
    $region5: #{generator_forward.6} parent=1 // loop_body
      %s17 = ssub.s32 %s12, 1
      %s18 = ssub.s32 %s12, 2
      %s19 = sadd.s32 %s12, 1
      %s20 = ssub.s32 %s12, %s19
      %p21 = scmp.eq.s32.totalorder %s20, 0
      %s23 = sadd.s32 %s22, 1
      %s24 = scalar_select %p21, %s22, %s23
      %p27 = pneg %p21
      %p28 = scmp.eq.s32.totalorder %s12, 3
      %p29 = por %p27, %p28
      %p30 = scmp.ne.s32.totalorder %s22, %s25
      %p31 = scmp.eq.s32.totalorder %s12, 0
      %p32 = por %p30, %p31
      %p33 = scmp.ne.s32.totalorder %s22, %s25
      %p34 = scmp.eq.s32.totalorder %s17, 3
      %p35 = por %p33, %p34
      %p36 = scmp.ne.s32.totalorder %s25, %s26
      %p37 = scmp.eq.s32.totalorder %s17, 0
      %p38 = por %p36, %p37
      %p39 = scmp.ne.s32.totalorder %s25, %s26
      %p40 = scmp.eq.s32.totalorder %s18, 3
      %p41 = por %p39, %p40
      %p43 = scmp.ne.s32.totalorder %s26, %s42
      %p44 = scmp.eq.s32.totalorder %s18, 0
      %p45 = por %p43, %p44
      %s46 = ssub.s32 %s12, %s19
      %p47 = scmp.eq.s32.totalorder %s46, 0
      %s49 = sadd.s32 %s48, 1
      %s50 = scalar_select %p47, %s48, %s49
      %p53 = pneg %p47
      %p54 = scmp.eq.s32.totalorder %s12, 3
      %p55 = por %p53, %p54
      %p56 = scmp.ne.s32.totalorder %s48, %s51
      %p57 = scmp.eq.s32.totalorder %s12, 0
      %p58 = por %p56, %p57
      %p59 = scmp.ne.s32.totalorder %s48, %s51
      %p60 = scmp.eq.s32.totalorder %s17, 3
      %p61 = por %p59, %p60
      %p62 = scmp.ne.s32.totalorder %s51, %s52
      %p63 = scmp.eq.s32.totalorder %s17, 0
      %p64 = por %p62, %p63
      %p65 = scmp.ne.s32.totalorder %s51, %s52
      %p66 = scmp.eq.s32.totalorder %s18, 3
      %p67 = por %p65, %p66
      %p69 = scmp.ne.s32.totalorder %s52, %s68
      %p70 = scmp.eq.s32.totalorder %s18, 0
      %p71 = por %p69, %p70
      %s73 = sadd.s32 %s72, 1
      %p76 = scmp.eq.s32.totalorder %s12, 3
      %p77 = scmp.ne.s32.totalorder %s72, %s74
      %p78 = scmp.eq.s32.totalorder %s12, 0
      %p79 = por %p77, %p78
      %p80 = scmp.ne.s32.totalorder %s72, %s74
      %p81 = scmp.eq.s32.totalorder %s17, 3
      %p82 = por %p80, %p81
      %p83 = scmp.ne.s32.totalorder %s74, %s75
      %p84 = scmp.eq.s32.totalorder %s17, 0
      %p85 = por %p83, %p84
      %p86 = scmp.ne.s32.totalorder %s74, %s75
      %p87 = scmp.eq.s32.totalorder %s18, 3
      %p88 = por %p86, %p87
      %p90 = scmp.ne.s32.totalorder %s75, %s89
      %p91 = scmp.eq.s32.totalorder %s18, 0
      %p92 = por %p90, %p91
      %s94 = sadd.s32 %s93, 1
      %p97 = scmp.eq.s32.totalorder %s12, 3
      %p98 = scmp.ne.s32.totalorder %s93, %s95
      %p99 = scmp.eq.s32.totalorder %s12, 0
      %p100 = por %p98, %p99
      %p101 = scmp.ne.s32.totalorder %s93, %s95
      %p102 = scmp.eq.s32.totalorder %s17, 3
      %p103 = por %p101, %p102
      %p104 = scmp.ne.s32.totalorder %s95, %s96
      %p105 = scmp.eq.s32.totalorder %s17, 0
      %p106 = por %p104, %p105
      %p107 = scmp.ne.s32.totalorder %s95, %s96
      %p108 = scmp.eq.s32.totalorder %s18, 3
      %p109 = por %p107, %p108
      %p111 = scmp.ne.s32.totalorder %s96, %s110
      %p112 = scmp.eq.s32.totalorder %s18, 0
      %p113 = por %p111, %p112
      %s115 = sadd.s32 %s114, 1
      %p118 = scmp.eq.s32.totalorder %s12, 3
      %p119 = scmp.ne.s32.totalorder %s114, %s116
      %p120 = scmp.eq.s32.totalorder %s12, 0
      %p121 = por %p119, %p120
      %p122 = scmp.ne.s32.totalorder %s114, %s116
      %p123 = scmp.eq.s32.totalorder %s17, 3
      %p124 = por %p122, %p123
      %p125 = scmp.ne.s32.totalorder %s116, %s117
      %p126 = scmp.eq.s32.totalorder %s17, 0
      %p127 = por %p125, %p126
      %p128 = scmp.ne.s32.totalorder %s116, %s117
      %p129 = scmp.eq.s32.totalorder %s18, 3
      %p130 = por %p128, %p129
      %p132 = scmp.ne.s32.totalorder %s117, %s131
      %p133 = scmp.eq.s32.totalorder %s18, 0
      %p134 = por %p132, %p133
      %p135 = scmp.le.s32.totalorder 1, %s12
      %p136 = scmp.lt.s32.totalorder %s12, 5
      %p137 = pnand %p135, %p136
      %p138 = pneg %p137
      // Predicated region
      $region9: #{generator_forward.6} parent=5 // pred_check
        _
      $region10: #{generator_forward.6} parent=5 // pred_check_branch
        %140 = sbr.rel (%p137) target = $region12
      $region11: #{generator_forward.6} parent=5 // pred_region
        %s141 = ssub.s32 %s12, 1
        // Predicated region
        $region13: #{generator_forward.6} parent=11 // pred_check
          %p142 = pneg %p85
        $region14: #{generator_forward.6} parent=11 // pred_check_branch
          %144 = sbr.rel (%p142) target = $region16
        $region15: #{generator_forward.6} parent=11 // pred_region
          %s146 = ssub.s32 16, 16
          %147 = vsyncadd [#allocation6], %s146
          %s149 = sshll.u32 [#allocation5], 4
          %s150 = int_to_ptr.vmem [resolvable:$true] %s149
          %152 = dma.hbm_to_vmem [thread:$0]  %s2, 16, %s150, [#allocation6]
        $region16: #{generator_forward.6} parent=11 // pred_fallthru
          _
        // Predicated region
        $region17: #{generator_forward.6} parent=11 // pred_check
          %p153 = pneg %p106
        $region18: #{generator_forward.6} parent=11 // pred_check_branch
          %155 = sbr.rel (%p153) target = $region20
        $region19: #{generator_forward.6} parent=11 // pred_region
          %s157 = ssub.s32 16, 16
          %158 = vsyncadd [#allocation8], %s157
          %s160 = sshll.u32 [#allocation7], 4
          %s161 = int_to_ptr.vmem [resolvable:$true] %s160
          %163 = dma.hbm_to_vmem [thread:$0]  %s3, 16, %s161, [#allocation8]
        $region20: #{generator_forward.6} parent=11 // pred_fallthru
          _
      $region12: #{generator_forward.6} parent=5 // pred_fallthru
        _
      %p164 = scmp.lt.s32.totalorder %s12, 4
      // Predicated region
      $region21: #{generator_forward.6} parent=5 // pred_check
        %p165 = pneg %p164
      $region22: #{generator_forward.6} parent=5 // pred_check_branch
        %167 = sbr.rel (%p165) target = $region24
      $region23: #{generator_forward.6} parent=5 // pred_region
        // Predicated region
        $region25: #{generator_forward.6} parent=23 // pred_check
          %p168 = pneg %p32
        $region26: #{generator_forward.6} parent=23 // pred_check_branch
          %170 = sbr.rel (%p168) target = $region28
        $region27: #{generator_forward.6} parent=23 // pred_region
          %p171 = scmp.lt.s32.totalorder %s12, 3
          %s172 = scalar_select %p171, %s12, 3
          %s173 = smul.addr %s172, 8
          %s174 = smul.addr %s173, 4
          %s175 = scalar_lea.vmem %s0, %s174
        $region28: #{generator_forward.6} parent=23 // pred_fallthru
          _
        // Predicated region
        $region29: #{generator_forward.6} parent=23 // pred_check
          %p176 = pneg %p58
        $region30: #{generator_forward.6} parent=23 // pred_check_branch
          %178 = sbr.rel (%p176) target = $region32
        $region31: #{generator_forward.6} parent=23 // pred_region
          %p179 = scmp.lt.s32.totalorder %s12, 3
          %s180 = scalar_select %p179, %s12, 3
          %s181 = smul.addr %s180, 32
          %s182 = smul.addr %s181, 4
          %s183 = scalar_lea.vmem %s1, %s182
        $region32: #{generator_forward.6} parent=23 // pred_fallthru
          _
      $region24: #{generator_forward.6} parent=5 // pred_fallthru
        _
      %p184 = scmp.le.s32.totalorder 1, %s12
      %p185 = scmp.lt.s32.totalorder %s12, 5
      %p186 = pnand %p184, %p185
      %p187 = pneg %p186
      // Predicated region
      $region33: #{generator_forward.6} parent=5 // pred_check
        _
      $region34: #{generator_forward.6} parent=5 // pred_check_branch
        %189 = sbr.rel (%p186) target = $region36
      $region35: #{generator_forward.6} parent=5 // pred_region
        %s190 = ssub.s32 %s12, 1
        // Predicated region
        $region37: #{generator_forward.6} parent=35 // pred_check
          %p191 = pneg %p85
        $region38: #{generator_forward.6} parent=35 // pred_check_branch
          %193 = sbr.rel (%p191) target = $region40
        $region39: #{generator_forward.6} parent=35 // pred_region
          %194 = dma.done [#allocation6], 16
        $region40: #{generator_forward.6} parent=35 // pred_fallthru
          _
        // Predicated region
        $region41: #{generator_forward.6} parent=35 // pred_check
          %p195 = pneg %p106
        $region42: #{generator_forward.6} parent=35 // pred_check_branch
          %197 = sbr.rel (%p195) target = $region44
        $region43: #{generator_forward.6} parent=35 // pred_region
          %198 = dma.done [#allocation8], 16
        $region44: #{generator_forward.6} parent=35 // pred_fallthru
          _
        %p199 = scmp.lt.s32.totalorder %s17, 3
        %s200 = scalar_select %p199, %s17, 3
        %s201 = smul.addr %s200, 8
        %s202 = smul.addr %s201, 4
        %s203 = scalar_lea.vmem %s0, %s202
        %p204 = pneg %p38
        %p205 = pneg %p35
        %p206 = scmp.lt.s32.totalorder %s17, 3
        %s207 = scalar_select %p206, %s17, 3
        %s208 = smul.addr %s207, 32
        %s209 = smul.addr %s208, 4
        %s210 = scalar_lea.vmem %s1, %s209
        %p211 = pneg %p64
        %p212 = pneg %p61
        %p213 = pneg %p85
        %p214 = pneg %p82
        %p215 = pneg %p106
        %p216 = pneg %p103
        %p217 = pneg %p127
        %p218 = pneg %p124
        %p219 = scmp.lt.s32.totalorder %s17, 3
        %s220 = scalar_select %p219, %s17, 3
        %s221 = smul.addr %s220, 8
        %s222 = smul.addr %s221, 4
        %s223 = scalar_lea.vmem %s0, %s222
        %p224 = scmp.lt.s32.totalorder %s17, 3
        %s225 = scalar_select %p224, %s17, 3
        %s226 = smul.addr %s225, 32
        %s227 = smul.addr %s226, 4
        %s228 = scalar_lea.vmem %s1, %s227
        %p230 = scmp.eq.s32.totalorder %s17, 0
        // Predicated region
        $region45: #{generator_forward.6} parent=35 // pred_check
          %p231 = pneg %p230
        $region46: #{generator_forward.6} parent=35 // pred_check_branch
          %233 = sbr.rel (%p231) target = $region48
        $region47: #{generator_forward.6} parent=35 // pred_region
          %vm234 = vcmask 253952
          %235 = vst.msk [vmem:[#allocation3] sm:$0x1] %vm234, 0.0
          %236 = vst.msk [vmem:[#allocation4] sm:$0x1] %vm234, 0.0
        $region48: #{generator_forward.6} parent=35 // pred_fallthru
          _
        %v237 = vld [vmem:[%s223] sm:$0xff]
        %v238 = vld [vmem:[%s223 + $0x8] sm:$0xff]
        %v239 = vld [vmem:[%s223 + $0x10] sm:$0xff]
        %v240 = vld [vmem:[%s223 + $0x18] sm:$0xff]
        %v241 = vld [vmem:[%s228] sm:$0xf]
        %v242 = vld [vmem:[%s228 + $0x4] sm:$0xf]
        %v243 = vld [vmem:[%s228 + $0x8] sm:$0xf]
        %v244 = vld [vmem:[%s228 + $0xc] sm:$0xf]
        %v245 = vld [vmem:[%s228 + $0x10] sm:$0xf]
        %v246 = vld [vmem:[%s228 + $0x14] sm:$0xf]
        %v247 = vld [vmem:[%s228 + $0x18] sm:$0xf]
        %v248 = vld [vmem:[%s228 + $0x1c] sm:$0xf]
        %v249 = vld [vmem:[%s228 + $0x20] sm:$0xf]
        %v250 = vld [vmem:[%s228 + $0x24] sm:$0xf]
        %v251 = vld [vmem:[%s228 + $0x28] sm:$0xf]
        %v252 = vld [vmem:[%s228 + $0x2c] sm:$0xf]
        %v253 = vld [vmem:[%s228 + $0x30] sm:$0xf]
        %v254 = vld [vmem:[%s228 + $0x34] sm:$0xf]
        %v255 = vld [vmem:[%s228 + $0x38] sm:$0xf]
        %v256 = vld [vmem:[%s228 + $0x3c] sm:$0xf]
        %v257 = vld [vmem:[%s228 + $0x40] sm:$0xf]
        %v258 = vld [vmem:[%s228 + $0x44] sm:$0xf]
        %v259 = vld [vmem:[%s228 + $0x48] sm:$0xf]
        %v260 = vld [vmem:[%s228 + $0x4c] sm:$0xf]
        %v261 = vld [vmem:[%s228 + $0x50] sm:$0xf]
        %v262 = vld [vmem:[%s228 + $0x54] sm:$0xf]
        %v263 = vld [vmem:[%s228 + $0x58] sm:$0xf]
        %v264 = vld [vmem:[%s228 + $0x5c] sm:$0xf]
        %v265 = vld [vmem:[%s228 + $0x60] sm:$0xf]
        %v266 = vld [vmem:[%s228 + $0x64] sm:$0xf]
        %v267 = vld [vmem:[%s228 + $0x68] sm:$0xf]
        %v268 = vld [vmem:[%s228 + $0x6c] sm:$0xf]
        %v269 = vld [vmem:[%s228 + $0x70] sm:$0xf]
        %v270 = vld [vmem:[%s228 + $0x74] sm:$0xf]
        %v271 = vld [vmem:[%s228 + $0x78] sm:$0xf]
        %v272 = vld [vmem:[%s228 + $0x7c] sm:$0xf]
        %v277 = vunpack.c.l.b16 %v237
        %v278 = vunpack.c.h.b16 %v237
        %v279 = vunpack.c.l.b16 %v238
        %v280 = vunpack.c.h.b16 %v238
        %v281 = vunpack.c.l.b16 %v239
        %v282 = vunpack.c.h.b16 %v239
        %v283 = vunpack.c.l.b16 %v240
        %v284 = vunpack.c.h.b16 %v240
        %v285 = vpack.c.b16 %v279, %v277
        %v286 = vpack.c.b16 %v280, %v278
        %v287 = vpack.c.b16 %v283, %v281
        %v288 = vpack.c.b16 %v284, %v282
        %v325 = vunpack.c.l.b16 %v241
        %v326 = vunpack.c.l.b16 %v242
        %v327 = vunpack.c.l.b16 %v243
        %v328 = vunpack.c.l.b16 %v244
        %v329 = vunpack.c.l.b16 %v245
        %v330 = vunpack.c.l.b16 %v246
        %v331 = vunpack.c.l.b16 %v247
        %v332 = vunpack.c.l.b16 %v248
        %v333 = vunpack.c.l.b16 %v249
        %v334 = vunpack.c.l.b16 %v250
        %v335 = vunpack.c.l.b16 %v251
        %v336 = vunpack.c.l.b16 %v252
        %v337 = vunpack.c.l.b16 %v253
        %v338 = vunpack.c.l.b16 %v254
        %v339 = vunpack.c.l.b16 %v255
        %v340 = vunpack.c.l.b16 %v256
        %v341 = vunpack.c.l.b16 %v257
        %v342 = vunpack.c.l.b16 %v258
        %v343 = vunpack.c.l.b16 %v259
        %v344 = vunpack.c.l.b16 %v260
        %v345 = vunpack.c.l.b16 %v261
        %v346 = vunpack.c.l.b16 %v262
        %v347 = vunpack.c.l.b16 %v263
        %v348 = vunpack.c.l.b16 %v264
        %v349 = vunpack.c.l.b16 %v265
        %v350 = vunpack.c.l.b16 %v266
        %v351 = vunpack.c.l.b16 %v267
        %v352 = vunpack.c.l.b16 %v268
        %v353 = vunpack.c.l.b16 %v269
        %v354 = vunpack.c.l.b16 %v270
        %v355 = vunpack.c.l.b16 %v271
        %v356 = vunpack.c.l.b16 %v272
        %v357 = vpack.c.b16 %v326, %v325
        %v358 = vpack.c.b16 %v328, %v327
        %v359 = vpack.c.b16 %v330, %v329
        %v360 = vpack.c.b16 %v332, %v331
        %v361 = vpack.c.b16 %v334, %v333
        %v362 = vpack.c.b16 %v336, %v335
        %v363 = vpack.c.b16 %v338, %v337
        %v364 = vpack.c.b16 %v340, %v339
        %v365 = vpack.c.b16 %v342, %v341
        %v366 = vpack.c.b16 %v344, %v343
        %v367 = vpack.c.b16 %v346, %v345
        %v368 = vpack.c.b16 %v348, %v347
        %v369 = vpack.c.b16 %v350, %v349
        %v370 = vpack.c.b16 %v352, %v351
        %v371 = vpack.c.b16 %v354, %v353
        %v372 = vpack.c.b16 %v356, %v355
        %389 = vmatprep.subr.bf16.mxu0 0
        %390 = vmatpush1.bf16.msra.mxu0 %v357
        %391 = vmatprep.subr.bf16.mxu0 0
        %392 = vmatpush1.bf16.msra.mxu0 %v358
        %393 = vmatprep.subr.bf16.mxu0 0
        %394 = vmatpush1.bf16.msra.mxu0 %v359
        %395 = vmatprep.subr.bf16.mxu0 0
        %396 = vmatpush1.bf16.msra.mxu0 %v360
        %397 = vmatprep.subr.bf16.mxu0 0
        %398 = vmatpush1.bf16.msra.mxu0 %v361
        %399 = vmatprep.subr.bf16.mxu0 0
        %400 = vmatpush1.bf16.msra.mxu0 %v362
        %401 = vmatprep.subr.bf16.mxu0 0
        %402 = vmatpush1.bf16.msra.mxu0 %v363
        %403 = vmatprep.subr.bf16.mxu0 0
        %404 = vmatpush1.bf16.msra.mxu0 %v364
        %405 = vmatprep.subr.bf16.mxu0 0
        %406 = vmatpush1.bf16.msra.mxu0 %v365
        %407 = vmatprep.subr.bf16.mxu0 0
        %408 = vmatpush1.bf16.msra.mxu0 %v366
        %409 = vmatprep.subr.bf16.mxu0 0
        %410 = vmatpush1.bf16.msra.mxu0 %v367
        %411 = vmatprep.subr.bf16.mxu0 0
        %412 = vmatpush1.bf16.msra.mxu0 %v368
        %413 = vmatprep.subr.bf16.mxu0 0
        %414 = vmatpush1.bf16.msra.mxu0 %v369
        %415 = vmatprep.subr.bf16.mxu0 0
        %416 = vmatpush1.bf16.msra.mxu0 %v370
        %417 = vmatprep.subr.bf16.mxu0 0
        %418 = vmatpush1.bf16.msra.mxu0 %v371
        %419 = vmatprep.subr.bf16.mxu0 0
        %420 = vmatpush1.bf16.msra.mxu0 %v372
        %421 = vmatprep.mubr.bf16.mxu0 %v286
        %422 = vmatmul.mubr.bf16.gmra.mrb[0].mxu0 %v285
        %v423 = vpop.f32.mrb[0].mxu0
        %v424 = vadd.f32 0.0, %v423
        %v425 = vpop.f32.mrb[0].mxu0
        %v426 = vpop.f32.mrb[0].mxu0
        %v427 = vadd.f32 0.0, %v426
        %v428 = vpop.f32.mrb[0].mxu0
        %429 = vmatprep.mubr.bf16.mxu0 %v288
        %430 = vmatmul.mubr.bf16.gmra.mrb[0].mxu0 %v287
        %v431 = vpop.f32.mrb[0].mxu0
        %v432 = vadd.f32 0.0, %v431
        %v433 = vpop.f32.mrb[0].mxu0
        %v434 = vpop.f32.mrb[0].mxu0
        %v435 = vadd.f32 0.0, %v434
        %v436 = vpop.f32.mrb[0].mxu0
        %437 = vdwg.mxu0
        %s438 = smul.u32 %s17, 32
        %s439 = scalar_lea.vmem [#allocation2], %s438
        %vm440 = vcmask 261120
        %441 = vst.msk [vmem:[%s439] sm:$0xff] %vm440, %v424
        %442 = vst.msk [vmem:[%s439 + $0x8] sm:$0xff] %vm440, %v427
        %443 = vst.msk [vmem:[%s439 + $0x10] sm:$0xff] %vm440, %v432
        %444 = vst.msk [vmem:[%s439 + $0x18] sm:$0xff] %vm440, %v435
        %v445 = vld [vmem:[#allocation3] sm:$0x1]
        %v446 = vsel %vm440, %v424, 0.0
        %v447 = vsel %vm440, %v427, 0.0
        %v448 = vadd.f32 %v446, %v447
        %v449 = vsel %vm440, %v432, 0.0
        %v450 = vadd.f32 %v448, %v449
        %v451 = vsel %vm440, %v435, 0.0
        %v452 = vadd.f32 %v450, %v451
        %v453 = vrot.slane %v452, 4
        %v454 = vadd.f32 %v452, %v453
        %v455 = vrot.slane %v454, 2
        %v456 = vadd.f32 %v454, %v455
        %v457 = vrot.slane %v456, 1
        %v458 = vadd.f32 %v456, %v457
        %v459 = vadd.f32 %v445, %v458
        %vm460 = vcmask 253952
        %461 = vst.msk [vmem:[#allocation3] sm:$0x1] %vm460, %v459
        %v462 = vld [vmem:[#allocation4] sm:$0x1]
        %v463 = vmul.f32 %v424, %v424
        %v464 = vmul.f32 %v427, %v427
        %v465 = vmul.f32 %v432, %v432
        %v466 = vmul.f32 %v435, %v435
        %v467 = vsel %vm440, %v463, 0.0
        %v468 = vsel %vm440, %v464, 0.0
        %v469 = vadd.f32 %v467, %v468
        %v470 = vsel %vm440, %v465, 0.0
        %v471 = vadd.f32 %v469, %v470
        %v472 = vsel %vm440, %v466, 0.0
        %v473 = vadd.f32 %v471, %v472
        %v474 = vrot.slane %v473, 4
        %v475 = vadd.f32 %v473, %v474
        %v476 = vrot.slane %v475, 2
        %v477 = vadd.f32 %v475, %v476
        %v478 = vrot.slane %v477, 1
        %v479 = vadd.f32 %v477, %v478
        %v480 = vadd.f32 %v462, %v479
        %481 = vst.msk [vmem:[#allocation4] sm:$0x1] %vm460, %v480
        %p482 = scmp.eq.s32.totalorder %s17, 3
        // Predicated region
        $region49: #{generator_forward.6} parent=35 // pred_check
          %p483 = pneg %p482
        $region50: #{generator_forward.6} parent=35 // pred_check_branch
          %485 = sbr.rel (%p483) target = $region52
        $region51: #{generator_forward.6} parent=35 // pred_region
          %v486 = vld [vmem:[#allocation3] sm:$0x1]
          %v487 = vmul.f32 %v486, 0.0078125
          %v488 = vld [vmem:[#allocation4] sm:$0x1]
          %v489 = vmul.f32 %v488, 0.0078125
          %v490 = vmul.f32 %v487, %v487
          %v491 = vsub.f32 %v489, %v490
          %v492 = vmax.f32 %v491, 0.0
          %v493 = vld [vmem:[#allocation5] sm:$0x1]
          %v494 = vadd.f32 %v492, 1e-05
          %v495 = vrsqrt.pop %v494
          %v496 = vmul.f32 %v493, %v495
          %v497 = vld [vmem:[#allocation7] sm:$0x1]
          %v498 = vmul.f32 %v487, %v496
          %v499 = vsub.f32 %v497, %v498
          %v500 = vld [vmem:[#allocation2] sm:$0xff]
          %v501 = vld [vmem:[#allocation2 + $0x8] sm:$0xff]
          %v502 = vld [vmem:[#allocation2 + $0x10] sm:$0xff]
          %v503 = vld [vmem:[#allocation2 + $0x18] sm:$0xff]
          %v504 = vld [vmem:[#allocation2 + $0x20] sm:$0xff]
          %v505 = vld [vmem:[#allocation2 + $0x28] sm:$0xff]
          %v506 = vld [vmem:[#allocation2 + $0x30] sm:$0xff]
          %v507 = vld [vmem:[#allocation2 + $0x38] sm:$0xff]
          %v508 = vld [vmem:[#allocation2 + $0x40] sm:$0xff]
          %v509 = vld [vmem:[#allocation2 + $0x48] sm:$0xff]
          %v510 = vld [vmem:[#allocation2 + $0x50] sm:$0xff]
          %v511 = vld [vmem:[#allocation2 + $0x58] sm:$0xff]
          %v512 = vld [vmem:[#allocation2 + $0x60] sm:$0xff]
          %v513 = vld [vmem:[#allocation2 + $0x68] sm:$0xff]
          %v514 = vld [vmem:[#allocation2 + $0x70] sm:$0xff]
          %v515 = vld [vmem:[#allocation2 + $0x78] sm:$0xff]
          %v517 = vlaneseq
          %v518 = vshrl.u32 %v517, 7
          %v519 = vsub.s32 0, %v518
          %v520 = vrot.slane %v496, %v519
          %v522 = vmul.f32 %v500, %v520
          %v523 = vmul.f32 %v501, %v520
          %v524 = vmul.f32 %v502, %v520
          %v525 = vmul.f32 %v503, %v520
          %v526 = vmul.f32 %v504, %v520
          %v527 = vmul.f32 %v505, %v520
          %v528 = vmul.f32 %v506, %v520
          %v529 = vmul.f32 %v507, %v520
          %v530 = vmul.f32 %v508, %v520
          %v531 = vmul.f32 %v509, %v520
          %v532 = vmul.f32 %v510, %v520
          %v533 = vmul.f32 %v511, %v520
          %v534 = vmul.f32 %v512, %v520
          %v535 = vmul.f32 %v513, %v520
          %v536 = vmul.f32 %v514, %v520
          %v537 = vmul.f32 %v515, %v520
          %v539 = vlaneseq
          %v540 = vshrl.u32 %v539, 7
          %v541 = vsub.s32 0, %v540
          %v542 = vrot.slane %v499, %v541
          %v544 = vadd.f32 %v522, %v542
          %v545 = vadd.f32 %v523, %v542
          %v546 = vadd.f32 %v524, %v542
          %v547 = vadd.f32 %v525, %v542
          %v548 = vadd.f32 %v526, %v542
          %v549 = vadd.f32 %v527, %v542
          %v550 = vadd.f32 %v528, %v542
          %v551 = vadd.f32 %v529, %v542
          %v552 = vadd.f32 %v530, %v542
          %v553 = vadd.f32 %v531, %v542
          %v554 = vadd.f32 %v532, %v542
          %v555 = vadd.f32 %v533, %v542
          %v556 = vadd.f32 %v534, %v542
          %v557 = vadd.f32 %v535, %v542
          %v558 = vadd.f32 %v536, %v542
          %v559 = vadd.f32 %v537, %v542
          %v560 = vmax.f32 %v544, 0.0
          %v561 = vmax.f32 %v545, 0.0
          %v562 = vmax.f32 %v546, 0.0
          %v563 = vmax.f32 %v547, 0.0
          %v564 = vmax.f32 %v548, 0.0
          %v565 = vmax.f32 %v549, 0.0
          %v566 = vmax.f32 %v550, 0.0
          %v567 = vmax.f32 %v551, 0.0
          %v568 = vmax.f32 %v552, 0.0
          %v569 = vmax.f32 %v553, 0.0
          %v570 = vmax.f32 %v554, 0.0
          %v571 = vmax.f32 %v555, 0.0
          %v572 = vmax.f32 %v556, 0.0
          %v573 = vmax.f32 %v557, 0.0
          %v574 = vmax.f32 %v558, 0.0
          %v575 = vmax.f32 %v559, 0.0
          %v576 = vpack.c.bf16 %v561, %v560
          %v577 = vpack.c.bf16 %v563, %v562
          %v578 = vpack.c.bf16 %v565, %v564
          %v579 = vpack.c.bf16 %v567, %v566
          %v580 = vpack.c.bf16 %v569, %v568
          %v581 = vpack.c.bf16 %v571, %v570
          %v582 = vpack.c.bf16 %v573, %v572
          %v583 = vpack.c.bf16 %v575, %v574
          %v592 = vunpack.c.l.b16 %v576
          %v593 = vunpack.c.h.b16 %v576
          %v594 = vunpack.c.l.b16 %v577
          %v595 = vunpack.c.h.b16 %v577
          %v596 = vunpack.c.l.b16 %v578
          %v597 = vunpack.c.h.b16 %v578
          %v598 = vunpack.c.l.b16 %v579
          %v599 = vunpack.c.h.b16 %v579
          %v600 = vunpack.c.l.b16 %v580
          %v601 = vunpack.c.h.b16 %v580
          %v602 = vunpack.c.l.b16 %v581
          %v603 = vunpack.c.h.b16 %v581
          %v604 = vunpack.c.l.b16 %v582
          %v605 = vunpack.c.h.b16 %v582
          %v606 = vunpack.c.l.b16 %v583
          %v607 = vunpack.c.h.b16 %v583
          %v608 = vpack.c.b16 %v592, %v592
          %v609 = vpack.c.b16 %v593, %v593
          %v610 = vpack.c.b16 %v594, %v594
          %v611 = vpack.c.b16 %v595, %v595
          %v612 = vpack.c.b16 %v596, %v596
          %v613 = vpack.c.b16 %v597, %v597
          %v614 = vpack.c.b16 %v598, %v598
          %v615 = vpack.c.b16 %v599, %v599
          %v616 = vpack.c.b16 %v600, %v600
          %v617 = vpack.c.b16 %v601, %v601
          %v618 = vpack.c.b16 %v602, %v602
          %v619 = vpack.c.b16 %v603, %v603
          %v620 = vpack.c.b16 %v604, %v604
          %v621 = vpack.c.b16 %v605, %v605
          %v622 = vpack.c.b16 %v606, %v606
          %v623 = vpack.c.b16 %v607, %v607
          %vm640 = vcmask 257024
          %641 = vst.msk [vmem:[%s4] sm:$0xf] %vm640, %v608
          %642 = vst.msk [vmem:[%s4 + $0x4] sm:$0xf] %vm640, %v609
          %643 = vst.msk [vmem:[%s4 + $0x8] sm:$0xf] %vm640, %v610
          %644 = vst.msk [vmem:[%s4 + $0xc] sm:$0xf] %vm640, %v611
          %645 = vst.msk [vmem:[%s4 + $0x10] sm:$0xf] %vm640, %v612
          %646 = vst.msk [vmem:[%s4 + $0x14] sm:$0xf] %vm640, %v613
          %647 = vst.msk [vmem:[%s4 + $0x18] sm:$0xf] %vm640, %v614
          %648 = vst.msk [vmem:[%s4 + $0x1c] sm:$0xf] %vm640, %v615
          %649 = vst.msk [vmem:[%s4 + $0x20] sm:$0xf] %vm640, %v616
          %650 = vst.msk [vmem:[%s4 + $0x24] sm:$0xf] %vm640, %v617
          %651 = vst.msk [vmem:[%s4 + $0x28] sm:$0xf] %vm640, %v618
          %652 = vst.msk [vmem:[%s4 + $0x2c] sm:$0xf] %vm640, %v619
          %653 = vst.msk [vmem:[%s4 + $0x30] sm:$0xf] %vm640, %v620
          %654 = vst.msk [vmem:[%s4 + $0x34] sm:$0xf] %vm640, %v621
          %655 = vst.msk [vmem:[%s4 + $0x38] sm:$0xf] %vm640, %v622
          %656 = vst.msk [vmem:[%s4 + $0x3c] sm:$0xf] %vm640, %v623
        $region52: #{generator_forward.6} parent=35 // pred_fallthru
          _
        // Predicated region
        $region53: #{generator_forward.6} parent=35 // pred_check
          %p657 = pneg %p124
        $region54: #{generator_forward.6} parent=35 // pred_check_branch
          %659 = sbr.rel (%p657) target = $region56
        $region55: #{generator_forward.6} parent=35 // pred_region
          _
        $region56: #{generator_forward.6} parent=35 // pred_fallthru
          _
        // Predicated region
        $region57: #{generator_forward.6} parent=35 // pred_check
          %p660 = pneg %p124
        $region58: #{generator_forward.6} parent=35 // pred_check_branch
          %662 = sbr.rel (%p660) target = $region60
        $region59: #{generator_forward.6} parent=35 // pred_region
          _
        $region60: #{generator_forward.6} parent=35 // pred_fallthru
          _
      $region36: #{generator_forward.6} parent=5 // pred_fallthru
        _
      %p663 = scmp.le.s32.totalorder 2, %s12
      // Predicated region
      $region61: #{generator_forward.6} parent=5 // pred_check
        %p664 = pneg %p663
      $region62: #{generator_forward.6} parent=5 // pred_check_branch
        %666 = sbr.rel (%p664) target = $region64
      $region63: #{generator_forward.6} parent=5 // pred_region
        %s667 = ssub.s32 %s12, 2
      $region64: #{generator_forward.6} parent=5 // pred_fallthru
        _
    $region6: #{generator_forward.6} parent=1 // loop_footer
      %s16 = sadd.s32 1, %s12
    $region7: #{generator_forward.6} parent=1 // loop_footer_branch
      %11 = sbr.rel target = $region3
    $region8: #{generator_forward.6} parent=1 // loop_exit
      _
    %668 = vsyncpa [#allocation6], 1
    %s669 = scalar_lea.sflag [#allocation6], 1
    %670 = vsyncpa %s669, 1
    %671 = vsyncpa [#allocation8], 1

// kernel: generator_forward.7
$region0: #{generator_forward.7}
  #allocation0 [shape = 'u32[]', space=smem, size = 0x4, offset = 0x4, fixed_abs, tag = 'smem constant byte address 0x4 - core index']
  #allocation1 [shape = 'u32[144,128]{1,0:T(1,128)}', space=vmem, size = 0x12000, scoped, tag = 'internal scratch']
  #allocation2 [shape = 'f32[4,128,16]{2,1,0:T(8,128)}', space=vmem, size = 0x40000, scoped, tag = 'scratch operand']
  #allocation3 [shape = 'f32[1,16]{1,0:T(1,128)}', space=vmem, size = 0x200, scoped, tag = 'scratch operand']
  #allocation4 [shape = 'f32[1,16]{1,0:T(1,128)}', space=vmem, size = 0x200, scoped, tag = 'scratch operand']
  %s0 = inlined_call_operand.vmem [shape: bf16[4,128,128], index: 0, kind: input, shape index: {}]
  %s1 = inlined_call_operand.vmem [shape: bf16[4,128,16], index: 1, kind: input, shape index: {}]
  %s2 = inlined_call_operand.hbm [shape: f32[1,16], index: 2, kind: input, shape index: {}]
  %s3 = inlined_call_operand.hbm [shape: f32[1,16], index: 3, kind: input, shape index: {}]
  %s4 = inlined_call_operand.vmem [shape: bf16[4,128,16], index: 4, kind: output, shape index: {}]
  %s5 = sld [smem:[#allocation0]]
  $region65: #{generator_forward.7} parent=0
    _
  %s7 = ssub.s32 1, %s5
  %s8 = scalar_select 0, %s7, %s5
  $region1: #{generator_forward.7} parent=0
    #allocation5 [shape = 'u8[512]{0}', space=vmem, size = 0x400, scoped, tag = 'input window, operand 2, single buffered']
    #allocation6 [shape = 's32[2]{0}', space=sflag, size = 0x8, scoped, tag = 'scoped memory for generator_forward.7']
    #allocation7 [shape = 'u8[512]{0}', space=vmem, size = 0x400, scoped, tag = 'input window, operand 3, single buffered']
    #allocation8 [shape = 's32[1]{0}', space=sflag, size = 0x4, scoped, tag = 'scoped memory for generator_forward.7']
    %9 = vsyncpa [#allocation6], 0
    %10 = vsyncpa [#allocation8], 0
    loop: start=0, step=1, limit=6
    $region2: #{generator_forward.7} parent=1 // loop_pre_header
      _
    $region3: #{generator_forward.7} parent=1 // loop_header
      %s12 = sphi 0, %s16
      %p13 = scmp.ge.s32.totalorder %s12, 6
      %s22 = sphi 0, %s24
      %s25 = sphi 0, %s22
      %s26 = sphi 0, %s25
      %s42 = sphi 0, %s26
      %s48 = sphi 0, %s50
      %s51 = sphi 0, %s48
      %s52 = sphi 0, %s51
      %s68 = sphi 0, %s52
      %s72 = sphi 0, %s72
      %s74 = sphi 0, %s72
      %s75 = sphi 0, %s74
      %s89 = sphi 0, %s75
      %s93 = sphi 0, %s93
      %s95 = sphi 0, %s93
      %s96 = sphi 0, %s95
      %s110 = sphi 0, %s96
      %s114 = sphi 0, %s114
      %s116 = sphi 0, %s114
      %s117 = sphi 0, %s116
      %s131 = sphi 0, %s117
    $region4: #{generator_forward.7} parent=1 // loop_header_branch
      %15 = sbr.rel (%p13) target = $region8
    $region5: #{generator_forward.7} parent=1 // loop_body
      %s17 = ssub.s32 %s12, 1
      %s18 = ssub.s32 %s12, 2
      %s19 = sadd.s32 %s12, 1
      %s20 = ssub.s32 %s12, %s19
      %p21 = scmp.eq.s32.totalorder %s20, 0
      %s23 = sadd.s32 %s22, 1
      %s24 = scalar_select %p21, %s22, %s23
      %p27 = pneg %p21
      %p28 = scmp.eq.s32.totalorder %s12, 3
      %p29 = por %p27, %p28
      %p30 = scmp.ne.s32.totalorder %s22, %s25
      %p31 = scmp.eq.s32.totalorder %s12, 0
      %p32 = por %p30, %p31
      %p33 = scmp.ne.s32.totalorder %s22, %s25
      %p34 = scmp.eq.s32.totalorder %s17, 3
      %p35 = por %p33, %p34
      %p36 = scmp.ne.s32.totalorder %s25, %s26
      %p37 = scmp.eq.s32.totalorder %s17, 0
      %p38 = por %p36, %p37
      %p39 = scmp.ne.s32.totalorder %s25, %s26
      %p40 = scmp.eq.s32.totalorder %s18, 3
      %p41 = por %p39, %p40
      %p43 = scmp.ne.s32.totalorder %s26, %s42
      %p44 = scmp.eq.s32.totalorder %s18, 0
      %p45 = por %p43, %p44
      %s46 = ssub.s32 %s12, %s19
      %p47 = scmp.eq.s32.totalorder %s46, 0
      %s49 = sadd.s32 %s48, 1
      %s50 = scalar_select %p47, %s48, %s49
      %p53 = pneg %p47
      %p54 = scmp.eq.s32.totalorder %s12, 3
      %p55 = por %p53, %p54
      %p56 = scmp.ne.s32.totalorder %s48, %s51
      %p57 = scmp.eq.s32.totalorder %s12, 0
      %p58 = por %p56, %p57
      %p59 = scmp.ne.s32.totalorder %s48, %s51
      %p60 = scmp.eq.s32.totalorder %s17, 3
      %p61 = por %p59, %p60
      %p62 = scmp.ne.s32.totalorder %s51, %s52
      %p63 = scmp.eq.s32.totalorder %s17, 0
      %p64 = por %p62, %p63
      %p65 = scmp.ne.s32.totalorder %s51, %s52
      %p66 = scmp.eq.s32.totalorder %s18, 3
      %p67 = por %p65, %p66
      %p69 = scmp.ne.s32.totalorder %s52, %s68
      %p70 = scmp.eq.s32.totalorder %s18, 0
      %p71 = por %p69, %p70
      %s73 = sadd.s32 %s72, 1
      %p76 = scmp.eq.s32.totalorder %s12, 3
      %p77 = scmp.ne.s32.totalorder %s72, %s74
      %p78 = scmp.eq.s32.totalorder %s12, 0
      %p79 = por %p77, %p78
      %p80 = scmp.ne.s32.totalorder %s72, %s74
      %p81 = scmp.eq.s32.totalorder %s17, 3
      %p82 = por %p80, %p81
      %p83 = scmp.ne.s32.totalorder %s74, %s75
      %p84 = scmp.eq.s32.totalorder %s17, 0
      %p85 = por %p83, %p84
      %p86 = scmp.ne.s32.totalorder %s74, %s75
      %p87 = scmp.eq.s32.totalorder %s18, 3
      %p88 = por %p86, %p87
      %p90 = scmp.ne.s32.totalorder %s75, %s89
      %p91 = scmp.eq.s32.totalorder %s18, 0
      %p92 = por %p90, %p91
      %s94 = sadd.s32 %s93, 1
      %p97 = scmp.eq.s32.totalorder %s12, 3
      %p98 = scmp.ne.s32.totalorder %s93, %s95
      %p99 = scmp.eq.s32.totalorder %s12, 0
      %p100 = por %p98, %p99
      %p101 = scmp.ne.s32.totalorder %s93, %s95
      %p102 = scmp.eq.s32.totalorder %s17, 3
      %p103 = por %p101, %p102
      %p104 = scmp.ne.s32.totalorder %s95, %s96
      %p105 = scmp.eq.s32.totalorder %s17, 0
      %p106 = por %p104, %p105
      %p107 = scmp.ne.s32.totalorder %s95, %s96
      %p108 = scmp.eq.s32.totalorder %s18, 3
      %p109 = por %p107, %p108
      %p111 = scmp.ne.s32.totalorder %s96, %s110
      %p112 = scmp.eq.s32.totalorder %s18, 0
      %p113 = por %p111, %p112
      %s115 = sadd.s32 %s114, 1
      %p118 = scmp.eq.s32.totalorder %s12, 3
      %p119 = scmp.ne.s32.totalorder %s114, %s116
      %p120 = scmp.eq.s32.totalorder %s12, 0
      %p121 = por %p119, %p120
      %p122 = scmp.ne.s32.totalorder %s114, %s116
      %p123 = scmp.eq.s32.totalorder %s17, 3
      %p124 = por %p122, %p123
      %p125 = scmp.ne.s32.totalorder %s116, %s117
      %p126 = scmp.eq.s32.totalorder %s17, 0
      %p127 = por %p125, %p126
      %p128 = scmp.ne.s32.totalorder %s116, %s117
      %p129 = scmp.eq.s32.totalorder %s18, 3
      %p130 = por %p128, %p129
      %p132 = scmp.ne.s32.totalorder %s117, %s131
      %p133 = scmp.eq.s32.totalorder %s18, 0
      %p134 = por %p132, %p133
      %p135 = scmp.le.s32.totalorder 1, %s12
      %p136 = scmp.lt.s32.totalorder %s12, 5
      %p137 = pnand %p135, %p136
      %p138 = pneg %p137
      // Predicated region
      $region9: #{generator_forward.7} parent=5 // pred_check
        _
      $region10: #{generator_forward.7} parent=5 // pred_check_branch
        %140 = sbr.rel (%p137) target = $region12
      $region11: #{generator_forward.7} parent=5 // pred_region
        %s141 = ssub.s32 %s12, 1
        // Predicated region
        $region13: #{generator_forward.7} parent=11 // pred_check
          %p142 = pneg %p85
        $region14: #{generator_forward.7} parent=11 // pred_check_branch
          %144 = sbr.rel (%p142) target = $region16
        $region15: #{generator_forward.7} parent=11 // pred_region
          %s146 = ssub.s32 16, 16
          %147 = vsyncadd [#allocation6], %s146
          %s149 = sshll.u32 [#allocation5], 4
          %s150 = int_to_ptr.vmem [resolvable:$true] %s149
          %152 = dma.hbm_to_vmem [thread:$0]  %s2, 16, %s150, [#allocation6]
        $region16: #{generator_forward.7} parent=11 // pred_fallthru
          _
        // Predicated region
        $region17: #{generator_forward.7} parent=11 // pred_check
          %p153 = pneg %p106
        $region18: #{generator_forward.7} parent=11 // pred_check_branch
          %155 = sbr.rel (%p153) target = $region20
        $region19: #{generator_forward.7} parent=11 // pred_region
          %s157 = ssub.s32 16, 16
          %158 = vsyncadd [#allocation8], %s157
          %s160 = sshll.u32 [#allocation7], 4
          %s161 = int_to_ptr.vmem [resolvable:$true] %s160
          %163 = dma.hbm_to_vmem [thread:$0]  %s3, 16, %s161, [#allocation8]
        $region20: #{generator_forward.7} parent=11 // pred_fallthru
          _
      $region12: #{generator_forward.7} parent=5 // pred_fallthru
        _
      %p164 = scmp.lt.s32.totalorder %s12, 4
      // Predicated region
      $region21: #{generator_forward.7} parent=5 // pred_check
        %p165 = pneg %p164
      $region22: #{generator_forward.7} parent=5 // pred_check_branch
        %167 = sbr.rel (%p165) target = $region24
      $region23: #{generator_forward.7} parent=5 // pred_region
        // Predicated region
        $region25: #{generator_forward.7} parent=23 // pred_check
          %p168 = pneg %p32
        $region26: #{generator_forward.7} parent=23 // pred_check_branch
          %170 = sbr.rel (%p168) target = $region28
        $region27: #{generator_forward.7} parent=23 // pred_region
          %p171 = scmp.lt.s32.totalorder %s12, 3
          %s172 = scalar_select %p171, %s12, 3
          %s173 = smul.addr %s172, 16
          %s174 = smul.addr %s173, 4
          %s175 = scalar_lea.vmem %s0, %s174
        $region28: #{generator_forward.7} parent=23 // pred_fallthru
          _
        // Predicated region
        $region29: #{generator_forward.7} parent=23 // pred_check
          %p176 = pneg %p58
        $region30: #{generator_forward.7} parent=23 // pred_check_branch
          %178 = sbr.rel (%p176) target = $region32
        $region31: #{generator_forward.7} parent=23 // pred_region
          %p179 = scmp.lt.s32.totalorder %s12, 3
          %s180 = scalar_select %p179, %s12, 3
          %s181 = smul.addr %s180, 16
          %s182 = smul.addr %s181, 4
          %s183 = scalar_lea.vmem %s1, %s182
        $region32: #{generator_forward.7} parent=23 // pred_fallthru
          _
      $region24: #{generator_forward.7} parent=5 // pred_fallthru
        _
      %p184 = scmp.le.s32.totalorder 1, %s12
      %p185 = scmp.lt.s32.totalorder %s12, 5
      %p186 = pnand %p184, %p185
      %p187 = pneg %p186
      // Predicated region
      $region33: #{generator_forward.7} parent=5 // pred_check
        _
      $region34: #{generator_forward.7} parent=5 // pred_check_branch
        %189 = sbr.rel (%p186) target = $region36
      $region35: #{generator_forward.7} parent=5 // pred_region
        %s190 = ssub.s32 %s12, 1
        // Predicated region
        $region37: #{generator_forward.7} parent=35 // pred_check
          %p191 = pneg %p85
        $region38: #{generator_forward.7} parent=35 // pred_check_branch
          %193 = sbr.rel (%p191) target = $region40
        $region39: #{generator_forward.7} parent=35 // pred_region
          %194 = dma.done [#allocation6], 16
        $region40: #{generator_forward.7} parent=35 // pred_fallthru
          _
        // Predicated region
        $region41: #{generator_forward.7} parent=35 // pred_check
          %p195 = pneg %p106
        $region42: #{generator_forward.7} parent=35 // pred_check_branch
          %197 = sbr.rel (%p195) target = $region44
        $region43: #{generator_forward.7} parent=35 // pred_region
          %198 = dma.done [#allocation8], 16
        $region44: #{generator_forward.7} parent=35 // pred_fallthru
          _
        %p199 = scmp.lt.s32.totalorder %s17, 3
        %s200 = scalar_select %p199, %s17, 3
        %s201 = smul.addr %s200, 16
        %s202 = smul.addr %s201, 4
        %s203 = scalar_lea.vmem %s0, %s202
        %p204 = pneg %p38
        %p205 = pneg %p35
        %p206 = scmp.lt.s32.totalorder %s17, 3
        %s207 = scalar_select %p206, %s17, 3
        %s208 = smul.addr %s207, 16
        %s209 = smul.addr %s208, 4
        %s210 = scalar_lea.vmem %s1, %s209
        %p211 = pneg %p64
        %p212 = pneg %p61
        %p213 = pneg %p85
        %p214 = pneg %p82
        %p215 = pneg %p106
        %p216 = pneg %p103
        %p217 = pneg %p127
        %p218 = pneg %p124
        %p219 = scmp.lt.s32.totalorder %s17, 3
        %s220 = scalar_select %p219, %s17, 3
        %s221 = smul.addr %s220, 16
        %s222 = smul.addr %s221, 4
        %s223 = scalar_lea.vmem %s0, %s222
        %p224 = scmp.lt.s32.totalorder %s17, 3
        %s225 = scalar_select %p224, %s17, 3
        %s226 = smul.addr %s225, 16
        %s227 = smul.addr %s226, 4
        %s228 = scalar_lea.vmem %s1, %s227
        %p230 = scmp.eq.s32.totalorder %s17, 0
        // Predicated region
        $region45: #{generator_forward.7} parent=35 // pred_check
          %p231 = pneg %p230
        $region46: #{generator_forward.7} parent=35 // pred_check_branch
          %233 = sbr.rel (%p231) target = $region48
        $region47: #{generator_forward.7} parent=35 // pred_region
          %vm234 = vcmask 122880
          %235 = vst.msk [vmem:[#allocation3] sm:$0x1] %vm234, 0.0
          %236 = vst.msk [vmem:[#allocation4] sm:$0x1] %vm234, 0.0
        $region48: #{generator_forward.7} parent=35 // pred_fallthru
          _
        %v237 = vld [vmem:[%s223] sm:$0xf]
        %v238 = vld [vmem:[%s223 + $0x4] sm:$0xf]
        %v239 = vld [vmem:[%s223 + $0x8] sm:$0xf]
        %v240 = vld [vmem:[%s223 + $0xc] sm:$0xf]
        %v241 = vld [vmem:[%s223 + $0x10] sm:$0xf]
        %v242 = vld [vmem:[%s223 + $0x14] sm:$0xf]
        %v243 = vld [vmem:[%s223 + $0x18] sm:$0xf]
        %v244 = vld [vmem:[%s223 + $0x1c] sm:$0xf]
        %v245 = vld [vmem:[%s223 + $0x20] sm:$0xf]
        %v246 = vld [vmem:[%s223 + $0x24] sm:$0xf]
        %v247 = vld [vmem:[%s223 + $0x28] sm:$0xf]
        %v248 = vld [vmem:[%s223 + $0x2c] sm:$0xf]
        %v249 = vld [vmem:[%s223 + $0x30] sm:$0xf]
        %v250 = vld [vmem:[%s223 + $0x34] sm:$0xf]
        %v251 = vld [vmem:[%s223 + $0x38] sm:$0xf]
        %v252 = vld [vmem:[%s223 + $0x3c] sm:$0xf]
        %v253 = vld [vmem:[%s228] sm:$0xf]
        %v254 = vld [vmem:[%s228 + $0x4] sm:$0xf]
        %v255 = vld [vmem:[%s228 + $0x8] sm:$0xf]
        %v256 = vld [vmem:[%s228 + $0xc] sm:$0xf]
        %v257 = vld [vmem:[%s228 + $0x10] sm:$0xf]
        %v258 = vld [vmem:[%s228 + $0x14] sm:$0xf]
        %v259 = vld [vmem:[%s228 + $0x18] sm:$0xf]
        %v260 = vld [vmem:[%s228 + $0x1c] sm:$0xf]
        %v261 = vld [vmem:[%s228 + $0x20] sm:$0xf]
        %v262 = vld [vmem:[%s228 + $0x24] sm:$0xf]
        %v263 = vld [vmem:[%s228 + $0x28] sm:$0xf]
        %v264 = vld [vmem:[%s228 + $0x2c] sm:$0xf]
        %v265 = vld [vmem:[%s228 + $0x30] sm:$0xf]
        %v266 = vld [vmem:[%s228 + $0x34] sm:$0xf]
        %v267 = vld [vmem:[%s228 + $0x38] sm:$0xf]
        %v268 = vld [vmem:[%s228 + $0x3c] sm:$0xf]
        %v285 = vunpack.c.l.b16 %v237
        %v286 = vunpack.c.l.b16 %v238
        %v287 = vunpack.c.l.b16 %v239
        %v288 = vunpack.c.l.b16 %v240
        %v289 = vunpack.c.l.b16 %v241
        %v290 = vunpack.c.l.b16 %v242
        %v291 = vunpack.c.l.b16 %v243
        %v292 = vunpack.c.l.b16 %v244
        %v293 = vunpack.c.l.b16 %v245
        %v294 = vunpack.c.l.b16 %v246
        %v295 = vunpack.c.l.b16 %v247
        %v296 = vunpack.c.l.b16 %v248
        %v297 = vunpack.c.l.b16 %v249
        %v298 = vunpack.c.l.b16 %v250
        %v299 = vunpack.c.l.b16 %v251
        %v300 = vunpack.c.l.b16 %v252
        %v301 = vpack.c.b16 %v286, %v285
        %v302 = vpack.c.b16 %v288, %v287
        %v303 = vpack.c.b16 %v290, %v289
        %v304 = vpack.c.b16 %v292, %v291
        %v305 = vpack.c.b16 %v294, %v293
        %v306 = vpack.c.b16 %v296, %v295
        %v307 = vpack.c.b16 %v298, %v297
        %v308 = vpack.c.b16 %v300, %v299
        %v333 = vunpack.c.l.b16 %v253
        %v334 = vunpack.c.l.b16 %v254
        %v335 = vunpack.c.l.b16 %v255
        %v336 = vunpack.c.l.b16 %v256
        %v337 = vunpack.c.l.b16 %v257
        %v338 = vunpack.c.l.b16 %v258
        %v339 = vunpack.c.l.b16 %v259
        %v340 = vunpack.c.l.b16 %v260
        %v341 = vunpack.c.l.b16 %v261
        %v342 = vunpack.c.l.b16 %v262
        %v343 = vunpack.c.l.b16 %v263
        %v344 = vunpack.c.l.b16 %v264
        %v345 = vunpack.c.l.b16 %v265
        %v346 = vunpack.c.l.b16 %v266
        %v347 = vunpack.c.l.b16 %v267
        %v348 = vunpack.c.l.b16 %v268
        %v349 = vpack.c.b16 %v334, %v333
        %v350 = vpack.c.b16 %v336, %v335
        %v351 = vpack.c.b16 %v338, %v337
        %v352 = vpack.c.b16 %v340, %v339
        %v353 = vpack.c.b16 %v342, %v341
        %v354 = vpack.c.b16 %v344, %v343
        %v355 = vpack.c.b16 %v346, %v345
        %v356 = vpack.c.b16 %v348, %v347
        %365 = vmatprep.subr.bf16.mxu0 0
        %366 = vmatpush1.bf16.msra.mxu0 %v349
        %367 = vmatprep.subr.bf16.mxu0 0
        %368 = vmatpush1.bf16.msra.mxu0 %v350
        %369 = vmatprep.subr.bf16.mxu0 0
        %370 = vmatpush1.bf16.msra.mxu0 %v351
        %371 = vmatprep.subr.bf16.mxu0 0
        %372 = vmatpush1.bf16.msra.mxu0 %v352
        %373 = vmatprep.subr.bf16.mxu0 0
        %374 = vmatpush1.bf16.msra.mxu0 %v353
        %375 = vmatprep.subr.bf16.mxu0 0
        %376 = vmatpush1.bf16.msra.mxu0 %v354
        %377 = vmatprep.subr.bf16.mxu0 0
        %378 = vmatpush1.bf16.msra.mxu0 %v355
        %379 = vmatprep.subr.bf16.mxu0 0
        %380 = vmatpush1.bf16.msra.mxu0 %v356
        %381 = vmatprep.subr.bf16.mxu0 0
        %382 = vmatpush1.bf16.msra.mxu0 0
        %383 = vmatprep.subr.bf16.mxu0 0
        %384 = vmatpush1.bf16.msra.mxu0 0
        %385 = vmatprep.subr.bf16.mxu0 0
        %386 = vmatpush1.bf16.msra.mxu0 0
        %387 = vmatprep.subr.bf16.mxu0 0
        %388 = vmatpush1.bf16.msra.mxu0 0
        %389 = vmatprep.subr.bf16.mxu0 0
        %390 = vmatpush1.bf16.msra.mxu0 0
        %391 = vmatprep.subr.bf16.mxu0 0
        %392 = vmatpush1.bf16.msra.mxu0 0
        %393 = vmatprep.subr.bf16.mxu0 0
        %394 = vmatpush1.bf16.msra.mxu0 0
        %395 = vmatprep.subr.bf16.mxu0 0
        %396 = vmatpush1.bf16.msra.mxu0 0
        %397 = vmatprep.mubr.bf16.mxu0 0
        %398 = vmatmul.mubr.bf16.gmra.mrb[0].mxu0 %v301
        %v399 = vpop.f32.mrb[0].mxu0
        %v400 = vadd.f32 0.0, %v399
        %v401 = vpop.f32.mrb[0].mxu0
        %v402 = vpop.f32.mrb[0].mxu0
        %v403 = vadd.f32 0.0, %v402
        %v404 = vpop.f32.mrb[0].mxu0
        %405 = vmatprep.mubr.bf16.mxu0 0
        %406 = vmatmul.mubr.bf16.gmra.mrb[0].mxu0 %v302
        %v407 = vpop.f32.mrb[0].mxu0
        %v408 = vadd.f32 0.0, %v407
        %v409 = vpop.f32.mrb[0].mxu0
        %v410 = vpop.f32.mrb[0].mxu0
        %v411 = vadd.f32 0.0, %v410
        %v412 = vpop.f32.mrb[0].mxu0
        %413 = vmatprep.mubr.bf16.mxu0 0
        %414 = vmatmul.mubr.bf16.gmra.mrb[0].mxu0 %v303
        %v415 = vpop.f32.mrb[0].mxu0
        %v416 = vadd.f32 0.0, %v415
        %v417 = vpop.f32.mrb[0].mxu0
        %v418 = vpop.f32.mrb[0].mxu0
        %v419 = vadd.f32 0.0, %v418
        %v420 = vpop.f32.mrb[0].mxu0
        %421 = vmatprep.mubr.bf16.mxu0 0
        %422 = vmatmul.mubr.bf16.gmra.mrb[0].mxu0 %v304
        %v423 = vpop.f32.mrb[0].mxu0
        %v424 = vadd.f32 0.0, %v423
        %v425 = vpop.f32.mrb[0].mxu0
        %v426 = vpop.f32.mrb[0].mxu0
        %v427 = vadd.f32 0.0, %v426
        %v428 = vpop.f32.mrb[0].mxu0
        %429 = vmatprep.mubr.bf16.mxu0 0
        %430 = vmatmul.mubr.bf16.gmra.mrb[0].mxu0 %v305
        %v431 = vpop.f32.mrb[0].mxu0
        %v432 = vadd.f32 0.0, %v431
        %v433 = vpop.f32.mrb[0].mxu0
        %v434 = vpop.f32.mrb[0].mxu0
        %v435 = vadd.f32 0.0, %v434
        %v436 = vpop.f32.mrb[0].mxu0
        %437 = vmatprep.mubr.bf16.mxu0 0
        %438 = vmatmul.mubr.bf16.gmra.mrb[0].mxu0 %v306
        %v439 = vpop.f32.mrb[0].mxu0
        %v440 = vadd.f32 0.0, %v439
        %v441 = vpop.f32.mrb[0].mxu0
        %v442 = vpop.f32.mrb[0].mxu0
        %v443 = vadd.f32 0.0, %v442
        %v444 = vpop.f32.mrb[0].mxu0
        %445 = vmatprep.mubr.bf16.mxu0 0
        %446 = vmatmul.mubr.bf16.gmra.mrb[0].mxu0 %v307
        %v447 = vpop.f32.mrb[0].mxu0
        %v448 = vadd.f32 0.0, %v447
        %v449 = vpop.f32.mrb[0].mxu0
        %v450 = vpop.f32.mrb[0].mxu0
        %v451 = vadd.f32 0.0, %v450
        %v452 = vpop.f32.mrb[0].mxu0
        %453 = vmatprep.mubr.bf16.mxu0 0
        %454 = vmatmul.mubr.bf16.gmra.mrb[0].mxu0 %v308
        %v455 = vpop.f32.mrb[0].mxu0
        %v456 = vadd.f32 0.0, %v455
        %v457 = vpop.f32.mrb[0].mxu0
        %v458 = vpop.f32.mrb[0].mxu0
        %v459 = vadd.f32 0.0, %v458
        %v460 = vpop.f32.mrb[0].mxu0
        %461 = vdwg.mxu0
        %s462 = smul.u32 %s17, 128
        %s463 = scalar_lea.vmem [#allocation2], %s462
        %vm464 = vcmask 130048
        %465 = vst.msk [vmem:[%s463] sm:$0xff] %vm464, %v400
        %466 = vst.msk [vmem:[%s463 + $0x8] sm:$0xff] %vm464, %v403
        %467 = vst.msk [vmem:[%s463 + $0x10] sm:$0xff] %vm464, %v408
        %468 = vst.msk [vmem:[%s463 + $0x18] sm:$0xff] %vm464, %v411
        %469 = vst.msk [vmem:[%s463 + $0x20] sm:$0xff] %vm464, %v416
        %470 = vst.msk [vmem:[%s463 + $0x28] sm:$0xff] %vm464, %v419
        %471 = vst.msk [vmem:[%s463 + $0x30] sm:$0xff] %vm464, %v424
        %472 = vst.msk [vmem:[%s463 + $0x38] sm:$0xff] %vm464, %v427
        %473 = vst.msk [vmem:[%s463 + $0x40] sm:$0xff] %vm464, %v432
        %474 = vst.msk [vmem:[%s463 + $0x48] sm:$0xff] %vm464, %v435
        %475 = vst.msk [vmem:[%s463 + $0x50] sm:$0xff] %vm464, %v440
        %476 = vst.msk [vmem:[%s463 + $0x58] sm:$0xff] %vm464, %v443
        %477 = vst.msk [vmem:[%s463 + $0x60] sm:$0xff] %vm464, %v448
        %478 = vst.msk [vmem:[%s463 + $0x68] sm:$0xff] %vm464, %v451
        %479 = vst.msk [vmem:[%s463 + $0x70] sm:$0xff] %vm464, %v456
        %480 = vst.msk [vmem:[%s463 + $0x78] sm:$0xff] %vm464, %v459
        %v481 = vld [vmem:[#allocation3] sm:$0x1]
        %v482 = vsel %vm464, %v400, 0.0
        %v483 = vsel %vm464, %v403, 0.0
        %v484 = vadd.f32 %v482, %v483
        %v485 = vsel %vm464, %v408, 0.0
        %v486 = vadd.f32 %v484, %v485
        %v487 = vsel %vm464, %v411, 0.0
        %v488 = vadd.f32 %v486, %v487
        %v489 = vsel %vm464, %v416, 0.0
        %v490 = vadd.f32 %v488, %v489
        %v491 = vsel %vm464, %v419, 0.0
        %v492 = vadd.f32 %v490, %v491
        %v493 = vsel %vm464, %v424, 0.0
        %v494 = vadd.f32 %v492, %v493
        %v495 = vsel %vm464, %v427, 0.0
        %v496 = vadd.f32 %v494, %v495
        %v497 = vsel %vm464, %v432, 0.0
        %v498 = vadd.f32 %v496, %v497
        %v499 = vsel %vm464, %v435, 0.0
        %v500 = vadd.f32 %v498, %v499
        %v501 = vsel %vm464, %v440, 0.0
        %v502 = vadd.f32 %v500, %v501
        %v503 = vsel %vm464, %v443, 0.0
        %v504 = vadd.f32 %v502, %v503
        %v505 = vsel %vm464, %v448, 0.0
        %v506 = vadd.f32 %v504, %v505
        %v507 = vsel %vm464, %v451, 0.0
        %v508 = vadd.f32 %v506, %v507
        %v509 = vsel %vm464, %v456, 0.0
        %v510 = vadd.f32 %v508, %v509
        %v511 = vsel %vm464, %v459, 0.0
        %v512 = vadd.f32 %v510, %v511
        %v513 = vrot.slane %v512, 4
        %v514 = vadd.f32 %v512, %v513
        %v515 = vrot.slane %v514, 2
        %v516 = vadd.f32 %v514, %v515
        %v517 = vrot.slane %v516, 1
        %v518 = vadd.f32 %v516, %v517
        %v519 = vadd.f32 %v481, %v518
        %vm520 = vcmask 122880
        %521 = vst.msk [vmem:[#allocation3] sm:$0x1] %vm520, %v519
        %v522 = vld [vmem:[#allocation4] sm:$0x1]
        %v523 = vmul.f32 %v400, %v400
        %v524 = vmul.f32 %v403, %v403
        %v525 = vmul.f32 %v408, %v408
        %v526 = vmul.f32 %v411, %v411
        %v527 = vmul.f32 %v416, %v416
        %v528 = vmul.f32 %v419, %v419
        %v529 = vmul.f32 %v424, %v424
        %v530 = vmul.f32 %v427, %v427
        %v531 = vmul.f32 %v432, %v432
        %v532 = vmul.f32 %v435, %v435
        %v533 = vmul.f32 %v440, %v440
        %v534 = vmul.f32 %v443, %v443
        %v535 = vmul.f32 %v448, %v448
        %v536 = vmul.f32 %v451, %v451
        %v537 = vmul.f32 %v456, %v456
        %v538 = vmul.f32 %v459, %v459
        %v539 = vsel %vm464, %v523, 0.0
        %v540 = vsel %vm464, %v524, 0.0
        %v541 = vadd.f32 %v539, %v540
        %v542 = vsel %vm464, %v525, 0.0
        %v543 = vadd.f32 %v541, %v542
        %v544 = vsel %vm464, %v526, 0.0
        %v545 = vadd.f32 %v543, %v544
        %v546 = vsel %vm464, %v527, 0.0
        %v547 = vadd.f32 %v545, %v546
        %v548 = vsel %vm464, %v528, 0.0
        %v549 = vadd.f32 %v547, %v548
        %v550 = vsel %vm464, %v529, 0.0
        %v551 = vadd.f32 %v549, %v550
        %v552 = vsel %vm464, %v530, 0.0
        %v553 = vadd.f32 %v551, %v552
        %v554 = vsel %vm464, %v531, 0.0
        %v555 = vadd.f32 %v553, %v554
        %v556 = vsel %vm464, %v532, 0.0
        %v557 = vadd.f32 %v555, %v556
        %v558 = vsel %vm464, %v533, 0.0
        %v559 = vadd.f32 %v557, %v558
        %v560 = vsel %vm464, %v534, 0.0
        %v561 = vadd.f32 %v559, %v560
        %v562 = vsel %vm464, %v535, 0.0
        %v563 = vadd.f32 %v561, %v562
        %v564 = vsel %vm464, %v536, 0.0
        %v565 = vadd.f32 %v563, %v564
        %v566 = vsel %vm464, %v537, 0.0
        %v567 = vadd.f32 %v565, %v566
        %v568 = vsel %vm464, %v538, 0.0
        %v569 = vadd.f32 %v567, %v568
        %v570 = vrot.slane %v569, 4
        %v571 = vadd.f32 %v569, %v570
        %v572 = vrot.slane %v571, 2
        %v573 = vadd.f32 %v571, %v572
        %v574 = vrot.slane %v573, 1
        %v575 = vadd.f32 %v573, %v574
        %v576 = vadd.f32 %v522, %v575
        %577 = vst.msk [vmem:[#allocation4] sm:$0x1] %vm520, %v576
        %p578 = scmp.eq.s32.totalorder %s17, 3
        // Predicated region
        $region49: #{generator_forward.7} parent=35 // pred_check
          %p579 = pneg %p578
        $region50: #{generator_forward.7} parent=35 // pred_check_branch
          %581 = sbr.rel (%p579) target = $region52
        $region51: #{generator_forward.7} parent=35 // pred_region
          %v582 = vld [vmem:[#allocation3] sm:$0x1]
          %v583 = vmul.f32 %v582, 0.001953125
          %v584 = vld [vmem:[#allocation4] sm:$0x1]
          %v585 = vmul.f32 %v584, 0.001953125
          %v586 = vmul.f32 %v583, %v583
          %v587 = vsub.f32 %v585, %v586
          %v588 = vmax.f32 %v587, 0.0
          %v589 = vld [vmem:[#allocation5] sm:$0x1]
          %v590 = vadd.f32 %v588, 1e-05
          %v591 = vrsqrt.pop %v590
          %v592 = vmul.f32 %v589, %v591
          %v593 = vld [vmem:[#allocation7] sm:$0x1]
          %v594 = vmul.f32 %v583, %v592
          %v595 = vsub.f32 %v593, %v594
          %v596 = vld [vmem:[#allocation2] sm:$0xff]
          %v597 = vld [vmem:[#allocation2 + $0x8] sm:$0xff]
          %v598 = vld [vmem:[#allocation2 + $0x10] sm:$0xff]
          %v599 = vld [vmem:[#allocation2 + $0x18] sm:$0xff]
          %v600 = vld [vmem:[#allocation2 + $0x20] sm:$0xff]
          %v601 = vld [vmem:[#allocation2 + $0x28] sm:$0xff]
          %v602 = vld [vmem:[#allocation2 + $0x30] sm:$0xff]
          %v603 = vld [vmem:[#allocation2 + $0x38] sm:$0xff]
          %v604 = vld [vmem:[#allocation2 + $0x40] sm:$0xff]
          %v605 = vld [vmem:[#allocation2 + $0x48] sm:$0xff]
          %v606 = vld [vmem:[#allocation2 + $0x50] sm:$0xff]
          %v607 = vld [vmem:[#allocation2 + $0x58] sm:$0xff]
          %v608 = vld [vmem:[#allocation2 + $0x60] sm:$0xff]
          %v609 = vld [vmem:[#allocation2 + $0x68] sm:$0xff]
          %v610 = vld [vmem:[#allocation2 + $0x70] sm:$0xff]
          %v611 = vld [vmem:[#allocation2 + $0x78] sm:$0xff]
          %v612 = vld [vmem:[#allocation2 + $0x80] sm:$0xff]
          %v613 = vld [vmem:[#allocation2 + $0x88] sm:$0xff]
          %v614 = vld [vmem:[#allocation2 + $0x90] sm:$0xff]
          %v615 = vld [vmem:[#allocation2 + $0x98] sm:$0xff]
          %v616 = vld [vmem:[#allocation2 + $0xa0] sm:$0xff]
          %v617 = vld [vmem:[#allocation2 + $0xa8] sm:$0xff]
          %v618 = vld [vmem:[#allocation2 + $0xb0] sm:$0xff]
          %v619 = vld [vmem:[#allocation2 + $0xb8] sm:$0xff]
          %v620 = vld [vmem:[#allocation2 + $0xc0] sm:$0xff]
          %v621 = vld [vmem:[#allocation2 + $0xc8] sm:$0xff]
          %v622 = vld [vmem:[#allocation2 + $0xd0] sm:$0xff]
          %v623 = vld [vmem:[#allocation2 + $0xd8] sm:$0xff]
          %v624 = vld [vmem:[#allocation2 + $0xe0] sm:$0xff]
          %v625 = vld [vmem:[#allocation2 + $0xe8] sm:$0xff]
          %v626 = vld [vmem:[#allocation2 + $0xf0] sm:$0xff]
          %v627 = vld [vmem:[#allocation2 + $0xf8] sm:$0xff]
          %v628 = vld [vmem:[#allocation2 + $0x100] sm:$0xff]
          %v629 = vld [vmem:[#allocation2 + $0x108] sm:$0xff]
          %v630 = vld [vmem:[#allocation2 + $0x110] sm:$0xff]
          %v631 = vld [vmem:[#allocation2 + $0x118] sm:$0xff]
          %v632 = vld [vmem:[#allocation2 + $0x120] sm:$0xff]
          %v633 = vld [vmem:[#allocation2 + $0x128] sm:$0xff]
          %v634 = vld [vmem:[#allocation2 + $0x130] sm:$0xff]
          %v635 = vld [vmem:[#allocation2 + $0x138] sm:$0xff]
          %v636 = vld [vmem:[#allocation2 + $0x140] sm:$0xff]
          %v637 = vld [vmem:[#allocation2 + $0x148] sm:$0xff]
          %v638 = vld [vmem:[#allocation2 + $0x150] sm:$0xff]
          %v639 = vld [vmem:[#allocation2 + $0x158] sm:$0xff]
          %v640 = vld [vmem:[#allocation2 + $0x160] sm:$0xff]
          %v641 = vld [vmem:[#allocation2 + $0x168] sm:$0xff]
          %v642 = vld [vmem:[#allocation2 + $0x170] sm:$0xff]
          %v643 = vld [vmem:[#allocation2 + $0x178] sm:$0xff]
          %v644 = vld [vmem:[#allocation2 + $0x180] sm:$0xff]
          %v645 = vld [vmem:[#allocation2 + $0x188] sm:$0xff]
          %v646 = vld [vmem:[#allocation2 + $0x190] sm:$0xff]
          %v647 = vld [vmem:[#allocation2 + $0x198] sm:$0xff]
          %v648 = vld [vmem:[#allocation2 + $0x1a0] sm:$0xff]
          %v649 = vld [vmem:[#allocation2 + $0x1a8] sm:$0xff]
          %v650 = vld [vmem:[#allocation2 + $0x1b0] sm:$0xff]
          %v651 = vld [vmem:[#allocation2 + $0x1b8] sm:$0xff]
          %v652 = vld [vmem:[#allocation2 + $0x1c0] sm:$0xff]
          %v653 = vld [vmem:[#allocation2 + $0x1c8] sm:$0xff]
          %v654 = vld [vmem:[#allocation2 + $0x1d0] sm:$0xff]
          %v655 = vld [vmem:[#allocation2 + $0x1d8] sm:$0xff]
          %v656 = vld [vmem:[#allocation2 + $0x1e0] sm:$0xff]
          %v657 = vld [vmem:[#allocation2 + $0x1e8] sm:$0xff]
          %v658 = vld [vmem:[#allocation2 + $0x1f0] sm:$0xff]
          %v659 = vld [vmem:[#allocation2 + $0x1f8] sm:$0xff]
          %v661 = vlaneseq
          %v662 = vshrl.u32 %v661, 7
          %v663 = vsub.s32 0, %v662
          %v664 = vrot.slane %v592, %v663
          %v666 = vmul.f32 %v596, %v664
          %v667 = vmul.f32 %v597, %v664
          %v668 = vmul.f32 %v598, %v664
          %v669 = vmul.f32 %v599, %v664
          %v670 = vmul.f32 %v600, %v664
          %v671 = vmul.f32 %v601, %v664
          %v672 = vmul.f32 %v602, %v664
          %v673 = vmul.f32 %v603, %v664
          %v674 = vmul.f32 %v604, %v664
          %v675 = vmul.f32 %v605, %v664
          %v676 = vmul.f32 %v606, %v664
          %v677 = vmul.f32 %v607, %v664
          %v678 = vmul.f32 %v608, %v664
          %v679 = vmul.f32 %v609, %v664
          %v680 = vmul.f32 %v610, %v664
          %v681 = vmul.f32 %v611, %v664
          %v682 = vmul.f32 %v612, %v664
          %v683 = vmul.f32 %v613, %v664
          %v684 = vmul.f32 %v614, %v664
          %v685 = vmul.f32 %v615, %v664
          %v686 = vmul.f32 %v616, %v664
          %v687 = vmul.f32 %v617, %v664
          %v688 = vmul.f32 %v618, %v664
          %v689 = vmul.f32 %v619, %v664
          %v690 = vmul.f32 %v620, %v664
          %v691 = vmul.f32 %v621, %v664
          %v692 = vmul.f32 %v622, %v664
          %v693 = vmul.f32 %v623, %v664
          %v694 = vmul.f32 %v624, %v664
          %v695 = vmul.f32 %v625, %v664
          %v696 = vmul.f32 %v626, %v664
          %v697 = vmul.f32 %v627, %v664
          %v698 = vmul.f32 %v628, %v664
          %v699 = vmul.f32 %v629, %v664
          %v700 = vmul.f32 %v630, %v664
          %v701 = vmul.f32 %v631, %v664
          %v702 = vmul.f32 %v632, %v664
          %v703 = vmul.f32 %v633, %v664
          %v704 = vmul.f32 %v634, %v664
          %v705 = vmul.f32 %v635, %v664
          %v706 = vmul.f32 %v636, %v664
          %v707 = vmul.f32 %v637, %v664
          %v708 = vmul.f32 %v638, %v664
          %v709 = vmul.f32 %v639, %v664
          %v710 = vmul.f32 %v640, %v664
          %v711 = vmul.f32 %v641, %v664
          %v712 = vmul.f32 %v642, %v664
          %v713 = vmul.f32 %v643, %v664
          %v714 = vmul.f32 %v644, %v664
          %v715 = vmul.f32 %v645, %v664
          %v716 = vmul.f32 %v646, %v664
          %v717 = vmul.f32 %v647, %v664
          %v718 = vmul.f32 %v648, %v664
          %v719 = vmul.f32 %v649, %v664
          %v720 = vmul.f32 %v650, %v664
          %v721 = vmul.f32 %v651, %v664
          %v722 = vmul.f32 %v652, %v664
          %v723 = vmul.f32 %v653, %v664
          %v724 = vmul.f32 %v654, %v664
          %v725 = vmul.f32 %v655, %v664
          %v726 = vmul.f32 %v656, %v664
          %v727 = vmul.f32 %v657, %v664
          %v728 = vmul.f32 %v658, %v664
          %v729 = vmul.f32 %v659, %v664
          %v731 = vlaneseq
          %v732 = vshrl.u32 %v731, 7
          %v733 = vsub.s32 0, %v732
          %v734 = vrot.slane %v595, %v733
          %v736 = vadd.f32 %v666, %v734
          %v737 = vadd.f32 %v667, %v734
          %v738 = vadd.f32 %v668, %v734
          %v739 = vadd.f32 %v669, %v734
          %v740 = vadd.f32 %v670, %v734
          %v741 = vadd.f32 %v671, %v734
          %v742 = vadd.f32 %v672, %v734
          %v743 = vadd.f32 %v673, %v734
          %v744 = vadd.f32 %v674, %v734
          %v745 = vadd.f32 %v675, %v734
          %v746 = vadd.f32 %v676, %v734
          %v747 = vadd.f32 %v677, %v734
          %v748 = vadd.f32 %v678, %v734
          %v749 = vadd.f32 %v679, %v734
          %v750 = vadd.f32 %v680, %v734
          %v751 = vadd.f32 %v681, %v734
          %v752 = vadd.f32 %v682, %v734
          %v753 = vadd.f32 %v683, %v734
          %v754 = vadd.f32 %v684, %v734
          %v755 = vadd.f32 %v685, %v734
          %v756 = vadd.f32 %v686, %v734
          %v757 = vadd.f32 %v687, %v734
          %v758 = vadd.f32 %v688, %v734
          %v759 = vadd.f32 %v689, %v734
          %v760 = vadd.f32 %v690, %v734
          %v761 = vadd.f32 %v691, %v734
          %v762 = vadd.f32 %v692, %v734
          %v763 = vadd.f32 %v693, %v734
          %v764 = vadd.f32 %v694, %v734
          %v765 = vadd.f32 %v695, %v734
          %v766 = vadd.f32 %v696, %v734
          %v767 = vadd.f32 %v697, %v734
          %v768 = vadd.f32 %v698, %v734
          %v769 = vadd.f32 %v699, %v734
          %v770 = vadd.f32 %v700, %v734
          %v771 = vadd.f32 %v701, %v734
          %v772 = vadd.f32 %v702, %v734
          %v773 = vadd.f32 %v703, %v734
          %v774 = vadd.f32 %v704, %v734
          %v775 = vadd.f32 %v705, %v734
          %v776 = vadd.f32 %v706, %v734
          %v777 = vadd.f32 %v707, %v734
          %v778 = vadd.f32 %v708, %v734
          %v779 = vadd.f32 %v709, %v734
          %v780 = vadd.f32 %v710, %v734
          %v781 = vadd.f32 %v711, %v734
          %v782 = vadd.f32 %v712, %v734
          %v783 = vadd.f32 %v713, %v734
          %v784 = vadd.f32 %v714, %v734
          %v785 = vadd.f32 %v715, %v734
          %v786 = vadd.f32 %v716, %v734
          %v787 = vadd.f32 %v717, %v734
          %v788 = vadd.f32 %v718, %v734
          %v789 = vadd.f32 %v719, %v734
          %v790 = vadd.f32 %v720, %v734
          %v791 = vadd.f32 %v721, %v734
          %v792 = vadd.f32 %v722, %v734
          %v793 = vadd.f32 %v723, %v734
          %v794 = vadd.f32 %v724, %v734
          %v795 = vadd.f32 %v725, %v734
          %v796 = vadd.f32 %v726, %v734
          %v797 = vadd.f32 %v727, %v734
          %v798 = vadd.f32 %v728, %v734
          %v799 = vadd.f32 %v729, %v734
          %v800 = vmax.f32 %v736, 0.0
          %v801 = vmax.f32 %v737, 0.0
          %v802 = vmax.f32 %v738, 0.0
          %v803 = vmax.f32 %v739, 0.0
          %v804 = vmax.f32 %v740, 0.0
          %v805 = vmax.f32 %v741, 0.0
          %v806 = vmax.f32 %v742, 0.0
          %v807 = vmax.f32 %v743, 0.0
          %v808 = vmax.f32 %v744, 0.0
          %v809 = vmax.f32 %v745, 0.0
          %v810 = vmax.f32 %v746, 0.0
          %v811 = vmax.f32 %v747, 0.0
          %v812 = vmax.f32 %v748, 0.0
          %v813 = vmax.f32 %v749, 0.0
          %v814 = vmax.f32 %v750, 0.0
          %v815 = vmax.f32 %v751, 0.0
          %v816 = vmax.f32 %v752, 0.0
          %v817 = vmax.f32 %v753, 0.0
          %v818 = vmax.f32 %v754, 0.0
          %v819 = vmax.f32 %v755, 0.0
          %v820 = vmax.f32 %v756, 0.0
          %v821 = vmax.f32 %v757, 0.0
          %v822 = vmax.f32 %v758, 0.0
          %v823 = vmax.f32 %v759, 0.0
          %v824 = vmax.f32 %v760, 0.0
          %v825 = vmax.f32 %v761, 0.0
          %v826 = vmax.f32 %v762, 0.0
          %v827 = vmax.f32 %v763, 0.0
          %v828 = vmax.f32 %v764, 0.0
          %v829 = vmax.f32 %v765, 0.0
          %v830 = vmax.f32 %v766, 0.0
          %v831 = vmax.f32 %v767, 0.0
          %v832 = vmax.f32 %v768, 0.0
          %v833 = vmax.f32 %v769, 0.0
          %v834 = vmax.f32 %v770, 0.0
          %v835 = vmax.f32 %v771, 0.0
          %v836 = vmax.f32 %v772, 0.0
          %v837 = vmax.f32 %v773, 0.0
          %v838 = vmax.f32 %v774, 0.0
          %v839 = vmax.f32 %v775, 0.0
          %v840 = vmax.f32 %v776, 0.0
          %v841 = vmax.f32 %v777, 0.0
          %v842 = vmax.f32 %v778, 0.0
          %v843 = vmax.f32 %v779, 0.0
          %v844 = vmax.f32 %v780, 0.0
          %v845 = vmax.f32 %v781, 0.0
          %v846 = vmax.f32 %v782, 0.0
          %v847 = vmax.f32 %v783, 0.0
          %v848 = vmax.f32 %v784, 0.0
          %v849 = vmax.f32 %v785, 0.0
          %v850 = vmax.f32 %v786, 0.0
          %v851 = vmax.f32 %v787, 0.0
          %v852 = vmax.f32 %v788, 0.0
          %v853 = vmax.f32 %v789, 0.0
          %v854 = vmax.f32 %v790, 0.0
          %v855 = vmax.f32 %v791, 0.0
          %v856 = vmax.f32 %v792, 0.0
          %v857 = vmax.f32 %v793, 0.0
          %v858 = vmax.f32 %v794, 0.0
          %v859 = vmax.f32 %v795, 0.0
          %v860 = vmax.f32 %v796, 0.0
          %v861 = vmax.f32 %v797, 0.0
          %v862 = vmax.f32 %v798, 0.0
          %v863 = vmax.f32 %v799, 0.0
          %v864 = vpack.c.bf16 %v801, %v800
          %v865 = vpack.c.bf16 %v803, %v802
          %v866 = vpack.c.bf16 %v805, %v804
          %v867 = vpack.c.bf16 %v807, %v806
          %v868 = vpack.c.bf16 %v809, %v808
          %v869 = vpack.c.bf16 %v811, %v810
          %v870 = vpack.c.bf16 %v813, %v812
          %v871 = vpack.c.bf16 %v815, %v814
          %v872 = vpack.c.bf16 %v817, %v816
          %v873 = vpack.c.bf16 %v819, %v818
          %v874 = vpack.c.bf16 %v821, %v820
          %v875 = vpack.c.bf16 %v823, %v822
          %v876 = vpack.c.bf16 %v825, %v824
          %v877 = vpack.c.bf16 %v827, %v826
          %v878 = vpack.c.bf16 %v829, %v828
          %v879 = vpack.c.bf16 %v831, %v830
          %v880 = vpack.c.bf16 %v833, %v832
          %v881 = vpack.c.bf16 %v835, %v834
          %v882 = vpack.c.bf16 %v837, %v836
          %v883 = vpack.c.bf16 %v839, %v838
          %v884 = vpack.c.bf16 %v841, %v840
          %v885 = vpack.c.bf16 %v843, %v842
          %v886 = vpack.c.bf16 %v845, %v844
          %v887 = vpack.c.bf16 %v847, %v846
          %v888 = vpack.c.bf16 %v849, %v848
          %v889 = vpack.c.bf16 %v851, %v850
          %v890 = vpack.c.bf16 %v853, %v852
          %v891 = vpack.c.bf16 %v855, %v854
          %v892 = vpack.c.bf16 %v857, %v856
          %v893 = vpack.c.bf16 %v859, %v858
          %v894 = vpack.c.bf16 %v861, %v860
          %v895 = vpack.c.bf16 %v863, %v862
          %v928 = vunpack.c.l.b16 %v864
          %v929 = vunpack.c.h.b16 %v864
          %v930 = vunpack.c.l.b16 %v865
          %v931 = vunpack.c.h.b16 %v865
          %v932 = vunpack.c.l.b16 %v866
          %v933 = vunpack.c.h.b16 %v866
          %v934 = vunpack.c.l.b16 %v867
          %v935 = vunpack.c.h.b16 %v867
          %v936 = vunpack.c.l.b16 %v868
          %v937 = vunpack.c.h.b16 %v868
          %v938 = vunpack.c.l.b16 %v869
          %v939 = vunpack.c.h.b16 %v869
          %v940 = vunpack.c.l.b16 %v870
          %v941 = vunpack.c.h.b16 %v870
          %v942 = vunpack.c.l.b16 %v871
          %v943 = vunpack.c.h.b16 %v871
          %v944 = vunpack.c.l.b16 %v872
          %v945 = vunpack.c.h.b16 %v872
          %v946 = vunpack.c.l.b16 %v873
          %v947 = vunpack.c.h.b16 %v873
          %v948 = vunpack.c.l.b16 %v874
          %v949 = vunpack.c.h.b16 %v874
          %v950 = vunpack.c.l.b16 %v875
          %v951 = vunpack.c.h.b16 %v875
          %v952 = vunpack.c.l.b16 %v876
          %v953 = vunpack.c.h.b16 %v876
          %v954 = vunpack.c.l.b16 %v877
          %v955 = vunpack.c.h.b16 %v877
          %v956 = vunpack.c.l.b16 %v878
          %v957 = vunpack.c.h.b16 %v878
          %v958 = vunpack.c.l.b16 %v879
          %v959 = vunpack.c.h.b16 %v879
          %v960 = vunpack.c.l.b16 %v880
          %v961 = vunpack.c.h.b16 %v880
          %v962 = vunpack.c.l.b16 %v881
          %v963 = vunpack.c.h.b16 %v881
          %v964 = vunpack.c.l.b16 %v882
          %v965 = vunpack.c.h.b16 %v882
          %v966 = vunpack.c.l.b16 %v883
          %v967 = vunpack.c.h.b16 %v883
          %v968 = vunpack.c.l.b16 %v884
          %v969 = vunpack.c.h.b16 %v884
          %v970 = vunpack.c.l.b16 %v885
          %v971 = vunpack.c.h.b16 %v885
          %v972 = vunpack.c.l.b16 %v886
          %v973 = vunpack.c.h.b16 %v886
          %v974 = vunpack.c.l.b16 %v887
          %v975 = vunpack.c.h.b16 %v887
          %v976 = vunpack.c.l.b16 %v888
          %v977 = vunpack.c.h.b16 %v888
          %v978 = vunpack.c.l.b16 %v889
          %v979 = vunpack.c.h.b16 %v889
          %v980 = vunpack.c.l.b16 %v890
          %v981 = vunpack.c.h.b16 %v890
          %v982 = vunpack.c.l.b16 %v891
          %v983 = vunpack.c.h.b16 %v891
          %v984 = vunpack.c.l.b16 %v892
          %v985 = vunpack.c.h.b16 %v892
          %v986 = vunpack.c.l.b16 %v893
          %v987 = vunpack.c.h.b16 %v893
          %v988 = vunpack.c.l.b16 %v894
          %v989 = vunpack.c.h.b16 %v894
          %v990 = vunpack.c.l.b16 %v895
          %v991 = vunpack.c.h.b16 %v895
          %v992 = vpack.c.b16 %v928, %v928
          %v993 = vpack.c.b16 %v929, %v929
          %v994 = vpack.c.b16 %v930, %v930
          %v995 = vpack.c.b16 %v931, %v931
          %v996 = vpack.c.b16 %v932, %v932
          %v997 = vpack.c.b16 %v933, %v933
          %v998 = vpack.c.b16 %v934, %v934
          %v999 = vpack.c.b16 %v935, %v935
          %v1000 = vpack.c.b16 %v936, %v936
          %v1001 = vpack.c.b16 %v937, %v937
          %v1002 = vpack.c.b16 %v938, %v938
          %v1003 = vpack.c.b16 %v939, %v939
          %v1004 = vpack.c.b16 %v940, %v940
          %v1005 = vpack.c.b16 %v941, %v941
          %v1006 = vpack.c.b16 %v942, %v942
          %v1007 = vpack.c.b16 %v943, %v943
          %v1008 = vpack.c.b16 %v944, %v944
          %v1009 = vpack.c.b16 %v945, %v945
          %v1010 = vpack.c.b16 %v946, %v946
          %v1011 = vpack.c.b16 %v947, %v947
          %v1012 = vpack.c.b16 %v948, %v948
          %v1013 = vpack.c.b16 %v949, %v949
          %v1014 = vpack.c.b16 %v950, %v950
          %v1015 = vpack.c.b16 %v951, %v951
          %v1016 = vpack.c.b16 %v952, %v952
          %v1017 = vpack.c.b16 %v953, %v953
          %v1018 = vpack.c.b16 %v954, %v954
          %v1019 = vpack.c.b16 %v955, %v955
          %v1020 = vpack.c.b16 %v956, %v956
          %v1021 = vpack.c.b16 %v957, %v957
          %v1022 = vpack.c.b16 %v958, %v958
          %v1023 = vpack.c.b16 %v959, %v959
          %v1024 = vpack.c.b16 %v960, %v960
          %v1025 = vpack.c.b16 %v961, %v961
          %v1026 = vpack.c.b16 %v962, %v962
          %v1027 = vpack.c.b16 %v963, %v963
          %v1028 = vpack.c.b16 %v964, %v964
          %v1029 = vpack.c.b16 %v965, %v965
          %v1030 = vpack.c.b16 %v966, %v966
          %v1031 = vpack.c.b16 %v967, %v967
          %v1032 = vpack.c.b16 %v968, %v968
          %v1033 = vpack.c.b16 %v969, %v969
          %v1034 = vpack.c.b16 %v970, %v970
          %v1035 = vpack.c.b16 %v971, %v971
          %v1036 = vpack.c.b16 %v972, %v972
          %v1037 = vpack.c.b16 %v973, %v973
          %v1038 = vpack.c.b16 %v974, %v974
          %v1039 = vpack.c.b16 %v975, %v975
          %v1040 = vpack.c.b16 %v976, %v976
          %v1041 = vpack.c.b16 %v977, %v977
          %v1042 = vpack.c.b16 %v978, %v978
          %v1043 = vpack.c.b16 %v979, %v979
          %v1044 = vpack.c.b16 %v980, %v980
          %v1045 = vpack.c.b16 %v981, %v981
          %v1046 = vpack.c.b16 %v982, %v982
          %v1047 = vpack.c.b16 %v983, %v983
          %v1048 = vpack.c.b16 %v984, %v984
          %v1049 = vpack.c.b16 %v985, %v985
          %v1050 = vpack.c.b16 %v986, %v986
          %v1051 = vpack.c.b16 %v987, %v987
          %v1052 = vpack.c.b16 %v988, %v988
          %v1053 = vpack.c.b16 %v989, %v989
          %v1054 = vpack.c.b16 %v990, %v990
          %v1055 = vpack.c.b16 %v991, %v991
          %vm1120 = vcmask 125952
          %1121 = vst.msk [vmem:[%s4] sm:$0xf] %vm1120, %v992
          %1122 = vst.msk [vmem:[%s4 + $0x4] sm:$0xf] %vm1120, %v993
          %1123 = vst.msk [vmem:[%s4 + $0x8] sm:$0xf] %vm1120, %v994
          %1124 = vst.msk [vmem:[%s4 + $0xc] sm:$0xf] %vm1120, %v995
          %1125 = vst.msk [vmem:[%s4 + $0x10] sm:$0xf] %vm1120, %v996
          %1126 = vst.msk [vmem:[%s4 + $0x14] sm:$0xf] %vm1120, %v997
          %1127 = vst.msk [vmem:[%s4 + $0x18] sm:$0xf] %vm1120, %v998
          %1128 = vst.msk [vmem:[%s4 + $0x1c] sm:$0xf] %vm1120, %v999
          %1129 = vst.msk [vmem:[%s4 + $0x20] sm:$0xf] %vm1120, %v1000
          %1130 = vst.msk [vmem:[%s4 + $0x24] sm:$0xf] %vm1120, %v1001
          %1131 = vst.msk [vmem:[%s4 + $0x28] sm:$0xf] %vm1120, %v1002
          %1132 = vst.msk [vmem:[%s4 + $0x2c] sm:$0xf] %vm1120, %v1003
          %1133 = vst.msk [vmem:[%s4 + $0x30] sm:$0xf] %vm1120, %v1004
          %1134 = vst.msk [vmem:[%s4 + $0x34] sm:$0xf] %vm1120, %v1005
          %1135 = vst.msk [vmem:[%s4 + $0x38] sm:$0xf] %vm1120, %v1006
          %1136 = vst.msk [vmem:[%s4 + $0x3c] sm:$0xf] %vm1120, %v1007
          %1137 = vst.msk [vmem:[%s4 + $0x40] sm:$0xf] %vm1120, %v1008
          %1138 = vst.msk [vmem:[%s4 + $0x44] sm:$0xf] %vm1120, %v1009
          %1139 = vst.msk [vmem:[%s4 + $0x48] sm:$0xf] %vm1120, %v1010
          %1140 = vst.msk [vmem:[%s4 + $0x4c] sm:$0xf] %vm1120, %v1011
          %1141 = vst.msk [vmem:[%s4 + $0x50] sm:$0xf] %vm1120, %v1012
          %1142 = vst.msk [vmem:[%s4 + $0x54] sm:$0xf] %vm1120, %v1013
          %1143 = vst.msk [vmem:[%s4 + $0x58] sm:$0xf] %vm1120, %v1014
          %1144 = vst.msk [vmem:[%s4 + $0x5c] sm:$0xf] %vm1120, %v1015
          %1145 = vst.msk [vmem:[%s4 + $0x60] sm:$0xf] %vm1120, %v1016
          %1146 = vst.msk [vmem:[%s4 + $0x64] sm:$0xf] %vm1120, %v1017
          %1147 = vst.msk [vmem:[%s4 + $0x68] sm:$0xf] %vm1120, %v1018
          %1148 = vst.msk [vmem:[%s4 + $0x6c] sm:$0xf] %vm1120, %v1019
          %1149 = vst.msk [vmem:[%s4 + $0x70] sm:$0xf] %vm1120, %v1020
          %1150 = vst.msk [vmem:[%s4 + $0x74] sm:$0xf] %vm1120, %v1021
          %1151 = vst.msk [vmem:[%s4 + $0x78] sm:$0xf] %vm1120, %v1022
          %1152 = vst.msk [vmem:[%s4 + $0x7c] sm:$0xf] %vm1120, %v1023
          %1153 = vst.msk [vmem:[%s4 + $0x80] sm:$0xf] %vm1120, %v1024
          %1154 = vst.msk [vmem:[%s4 + $0x84] sm:$0xf] %vm1120, %v1025
          %1155 = vst.msk [vmem:[%s4 + $0x88] sm:$0xf] %vm1120, %v1026
          %1156 = vst.msk [vmem:[%s4 + $0x8c] sm:$0xf] %vm1120, %v1027
          %1157 = vst.msk [vmem:[%s4 + $0x90] sm:$0xf] %vm1120, %v1028
          %1158 = vst.msk [vmem:[%s4 + $0x94] sm:$0xf] %vm1120, %v1029
          %1159 = vst.msk [vmem:[%s4 + $0x98] sm:$0xf] %vm1120, %v1030
          %1160 = vst.msk [vmem:[%s4 + $0x9c] sm:$0xf] %vm1120, %v1031
          %1161 = vst.msk [vmem:[%s4 + $0xa0] sm:$0xf] %vm1120, %v1032
          %1162 = vst.msk [vmem:[%s4 + $0xa4] sm:$0xf] %vm1120, %v1033
          %1163 = vst.msk [vmem:[%s4 + $0xa8] sm:$0xf] %vm1120, %v1034
          %1164 = vst.msk [vmem:[%s4 + $0xac] sm:$0xf] %vm1120, %v1035
          %1165 = vst.msk [vmem:[%s4 + $0xb0] sm:$0xf] %vm1120, %v1036
          %1166 = vst.msk [vmem:[%s4 + $0xb4] sm:$0xf] %vm1120, %v1037
          %1167 = vst.msk [vmem:[%s4 + $0xb8] sm:$0xf] %vm1120, %v1038
          %1168 = vst.msk [vmem:[%s4 + $0xbc] sm:$0xf] %vm1120, %v1039
          %1169 = vst.msk [vmem:[%s4 + $0xc0] sm:$0xf] %vm1120, %v1040
          %1170 = vst.msk [vmem:[%s4 + $0xc4] sm:$0xf] %vm1120, %v1041
          %1171 = vst.msk [vmem:[%s4 + $0xc8] sm:$0xf] %vm1120, %v1042
          %1172 = vst.msk [vmem:[%s4 + $0xcc] sm:$0xf] %vm1120, %v1043
          %1173 = vst.msk [vmem:[%s4 + $0xd0] sm:$0xf] %vm1120, %v1044
          %1174 = vst.msk [vmem:[%s4 + $0xd4] sm:$0xf] %vm1120, %v1045
          %1175 = vst.msk [vmem:[%s4 + $0xd8] sm:$0xf] %vm1120, %v1046
          %1176 = vst.msk [vmem:[%s4 + $0xdc] sm:$0xf] %vm1120, %v1047
          %1177 = vst.msk [vmem:[%s4 + $0xe0] sm:$0xf] %vm1120, %v1048
          %1178 = vst.msk [vmem:[%s4 + $0xe4] sm:$0xf] %vm1120, %v1049
          %1179 = vst.msk [vmem:[%s4 + $0xe8] sm:$0xf] %vm1120, %v1050
          %1180 = vst.msk [vmem:[%s4 + $0xec] sm:$0xf] %vm1120, %v1051
          %1181 = vst.msk [vmem:[%s4 + $0xf0] sm:$0xf] %vm1120, %v1052
          %1182 = vst.msk [vmem:[%s4 + $0xf4] sm:$0xf] %vm1120, %v1053
          %1183 = vst.msk [vmem:[%s4 + $0xf8] sm:$0xf] %vm1120, %v1054
          %1184 = vst.msk [vmem:[%s4 + $0xfc] sm:$0xf] %vm1120, %v1055
        $region52: #{generator_forward.7} parent=35 // pred_fallthru
          _
        // Predicated region
        $region53: #{generator_forward.7} parent=35 // pred_check
          %p1185 = pneg %p124
        $region54: #{generator_forward.7} parent=35 // pred_check_branch
          %1187 = sbr.rel (%p1185) target = $region56
        $region55: #{generator_forward.7} parent=35 // pred_region
          _
        $region56: #{generator_forward.7} parent=35 // pred_fallthru
          _
        // Predicated region
        $region57: #{generator_forward.7} parent=35 // pred_check
          %p1188 = pneg %p124
        $region58: #{generator_forward.7} parent=35 // pred_check_branch
          %1190 = sbr.rel (%p1188) target = $region60
        $region59: #{generator_forward.7} parent=35 // pred_region
          _
        $region60: #{generator_forward.7} parent=35 // pred_fallthru
          _
      $region36: #{generator_forward.7} parent=5 // pred_fallthru
        _
      %p1191 = scmp.le.s32.totalorder 2, %s12
      // Predicated region
      $region61: #{generator_forward.7} parent=5 // pred_check
        %p1192 = pneg %p1191
      $region62: #{generator_forward.7} parent=5 // pred_check_branch
        %1194 = sbr.rel (%p1192) target = $region64
      $region63: #{generator_forward.7} parent=5 // pred_region
        %s1195 = ssub.s32 %s12, 2
      $region64: #{generator_forward.7} parent=5 // pred_fallthru
        _
    $region6: #{generator_forward.7} parent=1 // loop_footer
      %s16 = sadd.s32 1, %s12
    $region7: #{generator_forward.7} parent=1 // loop_footer_branch
      %11 = sbr.rel target = $region3
    $region8: #{generator_forward.7} parent=1 // loop_exit
      _
    %1196 = vsyncpa [#allocation6], 1
    %s1197 = scalar_lea.sflag [#allocation6], 1
    %1198 = vsyncpa %s1197, 1
    %1199 = vsyncpa [#allocation8], 1

// kernel: generator_forward.8
$region0: #{generator_forward.8}
  #allocation0 [shape = 'u32[]', space=smem, size = 0x4, offset = 0x4, fixed_abs, tag = 'smem constant byte address 0x4 - core index']
  #allocation1 [shape = 'u32[144,128]{1,0:T(1,128)}', space=vmem, size = 0x12000, scoped, tag = 'internal scratch']
  #allocation2 [shape = 'f32[4,512,8]{2,1,0:T(8,128)}', space=vmem, size = 0x100000, scoped, tag = 'scratch operand']
  #allocation3 [shape = 'f32[1,8]{1,0:T(1,128)}', space=vmem, size = 0x200, scoped, tag = 'scratch operand']
  #allocation4 [shape = 'f32[1,8]{1,0:T(1,128)}', space=vmem, size = 0x200, scoped, tag = 'scratch operand']
  %s0 = inlined_call_operand.vmem [shape: bf16[4,512,64], index: 0, kind: input, shape index: {}]
  %s1 = inlined_call_operand.vmem [shape: bf16[4,64,8], index: 1, kind: input, shape index: {}]
  %s2 = inlined_call_operand.vmem [shape: f32[1,8], index: 2, kind: input, shape index: {}]
  %s3 = inlined_call_operand.vmem [shape: f32[1,8], index: 3, kind: input, shape index: {}]
  %s4 = inlined_call_operand.vmem [shape: bf16[4,512,8], index: 4, kind: output, shape index: {}]
  %s5 = sld [smem:[#allocation0]]
  $region57: #{generator_forward.8} parent=0
    _
  %s7 = ssub.s32 1, %s5
  %s8 = scalar_select 0, %s7, %s5
  loop: start=0, step=1, limit=6
  $region2: #{generator_forward.8} parent=0 // loop_pre_header
    _
  $region3: #{generator_forward.8} parent=0 // loop_header
    %s10 = sphi 0, %s14
    %p11 = scmp.ge.s32.totalorder %s10, 6
    %s20 = sphi 0, %s22
    %s23 = sphi 0, %s20
    %s24 = sphi 0, %s23
    %s40 = sphi 0, %s24
    %s46 = sphi 0, %s48
    %s49 = sphi 0, %s46
    %s50 = sphi 0, %s49
    %s66 = sphi 0, %s50
    %s70 = sphi 0, %s70
    %s72 = sphi 0, %s70
    %s73 = sphi 0, %s72
    %s87 = sphi 0, %s73
    %s91 = sphi 0, %s91
    %s93 = sphi 0, %s91
    %s94 = sphi 0, %s93
    %s108 = sphi 0, %s94
    %s112 = sphi 0, %s112
    %s114 = sphi 0, %s112
    %s115 = sphi 0, %s114
    %s129 = sphi 0, %s115
  $region4: #{generator_forward.8} parent=0 // loop_header_branch
    %13 = sbr.rel (%p11) target = $region8
  $region5: #{generator_forward.8} parent=0 // loop_body
    %s15 = ssub.s32 %s10, 1
    %s16 = ssub.s32 %s10, 2
    %s17 = sadd.s32 %s10, 1
    %s18 = ssub.s32 %s10, %s17
    %p19 = scmp.eq.s32.totalorder %s18, 0
    %s21 = sadd.s32 %s20, 1
    %s22 = scalar_select %p19, %s20, %s21
    %p25 = pneg %p19
    %p26 = scmp.eq.s32.totalorder %s10, 3
    %p27 = por %p25, %p26
    %p28 = scmp.ne.s32.totalorder %s20, %s23
    %p29 = scmp.eq.s32.totalorder %s10, 0
    %p30 = por %p28, %p29
    %p31 = scmp.ne.s32.totalorder %s20, %s23
    %p32 = scmp.eq.s32.totalorder %s15, 3
    %p33 = por %p31, %p32
    %p34 = scmp.ne.s32.totalorder %s23, %s24
    %p35 = scmp.eq.s32.totalorder %s15, 0
    %p36 = por %p34, %p35
    %p37 = scmp.ne.s32.totalorder %s23, %s24
    %p38 = scmp.eq.s32.totalorder %s16, 3
    %p39 = por %p37, %p38
    %p41 = scmp.ne.s32.totalorder %s24, %s40
    %p42 = scmp.eq.s32.totalorder %s16, 0
    %p43 = por %p41, %p42
    %s44 = ssub.s32 %s10, %s17
    %p45 = scmp.eq.s32.totalorder %s44, 0
    %s47 = sadd.s32 %s46, 1
    %s48 = scalar_select %p45, %s46, %s47
    %p51 = pneg %p45
    %p52 = scmp.eq.s32.totalorder %s10, 3
    %p53 = por %p51, %p52
    %p54 = scmp.ne.s32.totalorder %s46, %s49
    %p55 = scmp.eq.s32.totalorder %s10, 0
    %p56 = por %p54, %p55
    %p57 = scmp.ne.s32.totalorder %s46, %s49
    %p58 = scmp.eq.s32.totalorder %s15, 3
    %p59 = por %p57, %p58
    %p60 = scmp.ne.s32.totalorder %s49, %s50
    %p61 = scmp.eq.s32.totalorder %s15, 0
    %p62 = por %p60, %p61
    %p63 = scmp.ne.s32.totalorder %s49, %s50
    %p64 = scmp.eq.s32.totalorder %s16, 3
    %p65 = por %p63, %p64
    %p67 = scmp.ne.s32.totalorder %s50, %s66
    %p68 = scmp.eq.s32.totalorder %s16, 0
    %p69 = por %p67, %p68
    %s71 = sadd.s32 %s70, 1
    %p74 = scmp.eq.s32.totalorder %s10, 3
    %p75 = scmp.ne.s32.totalorder %s70, %s72
    %p76 = scmp.eq.s32.totalorder %s10, 0
    %p77 = por %p75, %p76
    %p78 = scmp.ne.s32.totalorder %s70, %s72
    %p79 = scmp.eq.s32.totalorder %s15, 3
    %p80 = por %p78, %p79
    %p81 = scmp.ne.s32.totalorder %s72, %s73
    %p82 = scmp.eq.s32.totalorder %s15, 0
    %p83 = por %p81, %p82
    %p84 = scmp.ne.s32.totalorder %s72, %s73
    %p85 = scmp.eq.s32.totalorder %s16, 3
    %p86 = por %p84, %p85
    %p88 = scmp.ne.s32.totalorder %s73, %s87
    %p89 = scmp.eq.s32.totalorder %s16, 0
    %p90 = por %p88, %p89
    %s92 = sadd.s32 %s91, 1
    %p95 = scmp.eq.s32.totalorder %s10, 3
    %p96 = scmp.ne.s32.totalorder %s91, %s93
    %p97 = scmp.eq.s32.totalorder %s10, 0
    %p98 = por %p96, %p97
    %p99 = scmp.ne.s32.totalorder %s91, %s93
    %p100 = scmp.eq.s32.totalorder %s15, 3
    %p101 = por %p99, %p100
    %p102 = scmp.ne.s32.totalorder %s93, %s94
    %p103 = scmp.eq.s32.totalorder %s15, 0
    %p104 = por %p102, %p103
    %p105 = scmp.ne.s32.totalorder %s93, %s94
    %p106 = scmp.eq.s32.totalorder %s16, 3
    %p107 = por %p105, %p106
    %p109 = scmp.ne.s32.totalorder %s94, %s108
    %p110 = scmp.eq.s32.totalorder %s16, 0
    %p111 = por %p109, %p110
    %s113 = sadd.s32 %s112, 1
    %p116 = scmp.eq.s32.totalorder %s10, 3
    %p117 = scmp.ne.s32.totalorder %s112, %s114
    %p118 = scmp.eq.s32.totalorder %s10, 0
    %p119 = por %p117, %p118
    %p120 = scmp.ne.s32.totalorder %s112, %s114
    %p121 = scmp.eq.s32.totalorder %s15, 3
    %p122 = por %p120, %p121
    %p123 = scmp.ne.s32.totalorder %s114, %s115
    %p124 = scmp.eq.s32.totalorder %s15, 0
    %p125 = por %p123, %p124
    %p126 = scmp.ne.s32.totalorder %s114, %s115
    %p127 = scmp.eq.s32.totalorder %s16, 3
    %p128 = por %p126, %p127
    %p130 = scmp.ne.s32.totalorder %s115, %s129
    %p131 = scmp.eq.s32.totalorder %s16, 0
    %p132 = por %p130, %p131
    %p133 = scmp.le.s32.totalorder 1, %s10
    %p134 = scmp.lt.s32.totalorder %s10, 5
    %p135 = pnand %p133, %p134
    %p136 = pneg %p135
    // Predicated region
    $region9: #{generator_forward.8} parent=5 // pred_check
      _
    $region10: #{generator_forward.8} parent=5 // pred_check_branch
      %138 = sbr.rel (%p135) target = $region12
    $region11: #{generator_forward.8} parent=5 // pred_region
      %s139 = ssub.s32 %s10, 1
      // Predicated region
      $region13: #{generator_forward.8} parent=11 // pred_check
        %p140 = pneg %p83
      $region14: #{generator_forward.8} parent=11 // pred_check_branch
        %142 = sbr.rel (%p140) target = $region16
      $region15: #{generator_forward.8} parent=11 // pred_region
        _
      $region16: #{generator_forward.8} parent=11 // pred_fallthru
        _
      // Predicated region
      $region17: #{generator_forward.8} parent=11 // pred_check
        %p143 = pneg %p104
      $region18: #{generator_forward.8} parent=11 // pred_check_branch
        %145 = sbr.rel (%p143) target = $region20
      $region19: #{generator_forward.8} parent=11 // pred_region
        _
      $region20: #{generator_forward.8} parent=11 // pred_fallthru
        _
    $region12: #{generator_forward.8} parent=5 // pred_fallthru
      _
    %p146 = scmp.lt.s32.totalorder %s10, 4
    // Predicated region
    $region21: #{generator_forward.8} parent=5 // pred_check
      %p147 = pneg %p146
    $region22: #{generator_forward.8} parent=5 // pred_check_branch
      %149 = sbr.rel (%p147) target = $region24
    $region23: #{generator_forward.8} parent=5 // pred_region
      // Predicated region
      $region25: #{generator_forward.8} parent=23 // pred_check
        %p150 = pneg %p30
      $region26: #{generator_forward.8} parent=23 // pred_check_branch
        %152 = sbr.rel (%p150) target = $region28
      $region27: #{generator_forward.8} parent=23 // pred_region
        %p153 = scmp.lt.s32.totalorder %s10, 3
        %s154 = scalar_select %p153, %s10, 3
        %s155 = smul.addr %s154, 64
        %s156 = smul.addr %s155, 4
        %s157 = scalar_lea.vmem %s0, %s156
      $region28: #{generator_forward.8} parent=23 // pred_fallthru
        _
      // Predicated region
      $region29: #{generator_forward.8} parent=23 // pred_check
        %p158 = pneg %p56
      $region30: #{generator_forward.8} parent=23 // pred_check_branch
        %160 = sbr.rel (%p158) target = $region32
      $region31: #{generator_forward.8} parent=23 // pred_region
        %p161 = scmp.lt.s32.totalorder %s10, 3
        %s162 = scalar_select %p161, %s10, 3
        %s163 = smul.addr %s162, 8
        %s164 = smul.addr %s163, 4
        %s165 = scalar_lea.vmem %s1, %s164
      $region32: #{generator_forward.8} parent=23 // pred_fallthru
        _
    $region24: #{generator_forward.8} parent=5 // pred_fallthru
      _
    %p166 = scmp.le.s32.totalorder 1, %s10
    %p167 = scmp.lt.s32.totalorder %s10, 5
    %p168 = pnand %p166, %p167
    %p169 = pneg %p168
    // Predicated region
    $region33: #{generator_forward.8} parent=5 // pred_check
      _
    $region34: #{generator_forward.8} parent=5 // pred_check_branch
      %171 = sbr.rel (%p168) target = $region36
    $region35: #{generator_forward.8} parent=5 // pred_region
      %s172 = ssub.s32 %s10, 1
      %p173 = scmp.lt.s32.totalorder %s15, 3
      %s174 = scalar_select %p173, %s15, 3
      %s175 = smul.addr %s174, 64
      %s176 = smul.addr %s175, 4
      %s177 = scalar_lea.vmem %s0, %s176
      %p178 = pneg %p36
      %p179 = pneg %p33
      %p180 = scmp.lt.s32.totalorder %s15, 3
      %s181 = scalar_select %p180, %s15, 3
      %s182 = smul.addr %s181, 8
      %s183 = smul.addr %s182, 4
      %s184 = scalar_lea.vmem %s1, %s183
      %p185 = pneg %p62
      %p186 = pneg %p59
      %p187 = pneg %p83
      %p188 = pneg %p80
      %p189 = pneg %p104
      %p190 = pneg %p101
      %p191 = pneg %p125
      %p192 = pneg %p122
      %p193 = scmp.lt.s32.totalorder %s15, 3
      %s194 = scalar_select %p193, %s15, 3
      %s195 = smul.addr %s194, 64
      %s196 = smul.addr %s195, 4
      %s197 = scalar_lea.vmem %s0, %s196
      %p198 = scmp.lt.s32.totalorder %s15, 3
      %s199 = scalar_select %p198, %s15, 3
      %s200 = smul.addr %s199, 8
      %s201 = smul.addr %s200, 4
      %s202 = scalar_lea.vmem %s1, %s201
      %p204 = scmp.eq.s32.totalorder %s15, 0
      // Predicated region
      $region37: #{generator_forward.8} parent=35 // pred_check
        %p205 = pneg %p204
      $region38: #{generator_forward.8} parent=35 // pred_check_branch
        %207 = sbr.rel (%p205) target = $region40
      $region39: #{generator_forward.8} parent=35 // pred_region
        %vm208 = vcmask 57344
        %209 = vst.msk [vmem:[#allocation3] sm:$0x1] %vm208, 0.0
        %210 = vst.msk [vmem:[#allocation4] sm:$0x1] %vm208, 0.0
      $region40: #{generator_forward.8} parent=35 // pred_fallthru
        _
      %v211 = vld [vmem:[%s197] sm:$0xf]
      %v212 = vld [vmem:[%s197 + $0x4] sm:$0xf]
      %v213 = vld [vmem:[%s197 + $0x8] sm:$0xf]
      %v214 = vld [vmem:[%s197 + $0xc] sm:$0xf]
      %v215 = vld [vmem:[%s197 + $0x10] sm:$0xf]
      %v216 = vld [vmem:[%s197 + $0x14] sm:$0xf]
      %v217 = vld [vmem:[%s197 + $0x18] sm:$0xf]
      %v218 = vld [vmem:[%s197 + $0x1c] sm:$0xf]
      %v219 = vld [vmem:[%s197 + $0x20] sm:$0xf]
      %v220 = vld [vmem:[%s197 + $0x24] sm:$0xf]
      %v221 = vld [vmem:[%s197 + $0x28] sm:$0xf]
      %v222 = vld [vmem:[%s197 + $0x2c] sm:$0xf]
      %v223 = vld [vmem:[%s197 + $0x30] sm:$0xf]
      %v224 = vld [vmem:[%s197 + $0x34] sm:$0xf]
      %v225 = vld [vmem:[%s197 + $0x38] sm:$0xf]
      %v226 = vld [vmem:[%s197 + $0x3c] sm:$0xf]
      %v227 = vld [vmem:[%s197 + $0x40] sm:$0xf]
      %v228 = vld [vmem:[%s197 + $0x44] sm:$0xf]
      %v229 = vld [vmem:[%s197 + $0x48] sm:$0xf]
      %v230 = vld [vmem:[%s197 + $0x4c] sm:$0xf]
      %v231 = vld [vmem:[%s197 + $0x50] sm:$0xf]
      %v232 = vld [vmem:[%s197 + $0x54] sm:$0xf]
      %v233 = vld [vmem:[%s197 + $0x58] sm:$0xf]
      %v234 = vld [vmem:[%s197 + $0x5c] sm:$0xf]
      %v235 = vld [vmem:[%s197 + $0x60] sm:$0xf]
      %v236 = vld [vmem:[%s197 + $0x64] sm:$0xf]
      %v237 = vld [vmem:[%s197 + $0x68] sm:$0xf]
      %v238 = vld [vmem:[%s197 + $0x6c] sm:$0xf]
      %v239 = vld [vmem:[%s197 + $0x70] sm:$0xf]
      %v240 = vld [vmem:[%s197 + $0x74] sm:$0xf]
      %v241 = vld [vmem:[%s197 + $0x78] sm:$0xf]
      %v242 = vld [vmem:[%s197 + $0x7c] sm:$0xf]
      %v243 = vld [vmem:[%s197 + $0x80] sm:$0xf]
      %v244 = vld [vmem:[%s197 + $0x84] sm:$0xf]
      %v245 = vld [vmem:[%s197 + $0x88] sm:$0xf]
      %v246 = vld [vmem:[%s197 + $0x8c] sm:$0xf]
      %v247 = vld [vmem:[%s197 + $0x90] sm:$0xf]
      %v248 = vld [vmem:[%s197 + $0x94] sm:$0xf]
      %v249 = vld [vmem:[%s197 + $0x98] sm:$0xf]
      %v250 = vld [vmem:[%s197 + $0x9c] sm:$0xf]
      %v251 = vld [vmem:[%s197 + $0xa0] sm:$0xf]
      %v252 = vld [vmem:[%s197 + $0xa4] sm:$0xf]
      %v253 = vld [vmem:[%s197 + $0xa8] sm:$0xf]
      %v254 = vld [vmem:[%s197 + $0xac] sm:$0xf]
      %v255 = vld [vmem:[%s197 + $0xb0] sm:$0xf]
      %v256 = vld [vmem:[%s197 + $0xb4] sm:$0xf]
      %v257 = vld [vmem:[%s197 + $0xb8] sm:$0xf]
      %v258 = vld [vmem:[%s197 + $0xbc] sm:$0xf]
      %v259 = vld [vmem:[%s197 + $0xc0] sm:$0xf]
      %v260 = vld [vmem:[%s197 + $0xc4] sm:$0xf]
      %v261 = vld [vmem:[%s197 + $0xc8] sm:$0xf]
      %v262 = vld [vmem:[%s197 + $0xcc] sm:$0xf]
      %v263 = vld [vmem:[%s197 + $0xd0] sm:$0xf]
      %v264 = vld [vmem:[%s197 + $0xd4] sm:$0xf]
      %v265 = vld [vmem:[%s197 + $0xd8] sm:$0xf]
      %v266 = vld [vmem:[%s197 + $0xdc] sm:$0xf]
      %v267 = vld [vmem:[%s197 + $0xe0] sm:$0xf]
      %v268 = vld [vmem:[%s197 + $0xe4] sm:$0xf]
      %v269 = vld [vmem:[%s197 + $0xe8] sm:$0xf]
      %v270 = vld [vmem:[%s197 + $0xec] sm:$0xf]
      %v271 = vld [vmem:[%s197 + $0xf0] sm:$0xf]
      %v272 = vld [vmem:[%s197 + $0xf4] sm:$0xf]
      %v273 = vld [vmem:[%s197 + $0xf8] sm:$0xf]
      %v274 = vld [vmem:[%s197 + $0xfc] sm:$0xf]
      %v275 = vld [vmem:[%s202] sm:$0xf]
      %v276 = vld [vmem:[%s202 + $0x4] sm:$0xf]
      %v277 = vld [vmem:[%s202 + $0x8] sm:$0xf]
      %v278 = vld [vmem:[%s202 + $0xc] sm:$0xf]
      %v279 = vld [vmem:[%s202 + $0x10] sm:$0xf]
      %v280 = vld [vmem:[%s202 + $0x14] sm:$0xf]
      %v281 = vld [vmem:[%s202 + $0x18] sm:$0xf]
      %v282 = vld [vmem:[%s202 + $0x1c] sm:$0xf]
      %v347 = vunpack.c.l.b16 %v211
      %v348 = vunpack.c.l.b16 %v212
      %v349 = vunpack.c.l.b16 %v213
      %v350 = vunpack.c.l.b16 %v214
      %v351 = vunpack.c.l.b16 %v215
      %v352 = vunpack.c.l.b16 %v216
      %v353 = vunpack.c.l.b16 %v217
      %v354 = vunpack.c.l.b16 %v218
      %v355 = vunpack.c.l.b16 %v219
      %v356 = vunpack.c.l.b16 %v220
      %v357 = vunpack.c.l.b16 %v221
      %v358 = vunpack.c.l.b16 %v222
      %v359 = vunpack.c.l.b16 %v223
      %v360 = vunpack.c.l.b16 %v224
      %v361 = vunpack.c.l.b16 %v225
      %v362 = vunpack.c.l.b16 %v226
      %v363 = vunpack.c.l.b16 %v227
      %v364 = vunpack.c.l.b16 %v228
      %v365 = vunpack.c.l.b16 %v229
      %v366 = vunpack.c.l.b16 %v230
      %v367 = vunpack.c.l.b16 %v231
      %v368 = vunpack.c.l.b16 %v232
      %v369 = vunpack.c.l.b16 %v233
      %v370 = vunpack.c.l.b16 %v234
      %v371 = vunpack.c.l.b16 %v235
      %v372 = vunpack.c.l.b16 %v236
      %v373 = vunpack.c.l.b16 %v237
      %v374 = vunpack.c.l.b16 %v238
      %v375 = vunpack.c.l.b16 %v239
      %v376 = vunpack.c.l.b16 %v240
      %v377 = vunpack.c.l.b16 %v241
      %v378 = vunpack.c.l.b16 %v242
      %v379 = vunpack.c.l.b16 %v243
      %v380 = vunpack.c.l.b16 %v244
      %v381 = vunpack.c.l.b16 %v245
      %v382 = vunpack.c.l.b16 %v246
      %v383 = vunpack.c.l.b16 %v247
      %v384 = vunpack.c.l.b16 %v248
      %v385 = vunpack.c.l.b16 %v249
      %v386 = vunpack.c.l.b16 %v250
      %v387 = vunpack.c.l.b16 %v251
      %v388 = vunpack.c.l.b16 %v252
      %v389 = vunpack.c.l.b16 %v253
      %v390 = vunpack.c.l.b16 %v254
      %v391 = vunpack.c.l.b16 %v255
      %v392 = vunpack.c.l.b16 %v256
      %v393 = vunpack.c.l.b16 %v257
      %v394 = vunpack.c.l.b16 %v258
      %v395 = vunpack.c.l.b16 %v259
      %v396 = vunpack.c.l.b16 %v260
      %v397 = vunpack.c.l.b16 %v261
      %v398 = vunpack.c.l.b16 %v262
      %v399 = vunpack.c.l.b16 %v263
      %v400 = vunpack.c.l.b16 %v264
      %v401 = vunpack.c.l.b16 %v265
      %v402 = vunpack.c.l.b16 %v266
      %v403 = vunpack.c.l.b16 %v267
      %v404 = vunpack.c.l.b16 %v268
      %v405 = vunpack.c.l.b16 %v269
      %v406 = vunpack.c.l.b16 %v270
      %v407 = vunpack.c.l.b16 %v271
      %v408 = vunpack.c.l.b16 %v272
      %v409 = vunpack.c.l.b16 %v273
      %v410 = vunpack.c.l.b16 %v274
      %v411 = vpack.c.b16 %v348, %v347
      %v412 = vpack.c.b16 %v350, %v349
      %v413 = vpack.c.b16 %v352, %v351
      %v414 = vpack.c.b16 %v354, %v353
      %v415 = vpack.c.b16 %v356, %v355
      %v416 = vpack.c.b16 %v358, %v357
      %v417 = vpack.c.b16 %v360, %v359
      %v418 = vpack.c.b16 %v362, %v361
      %v419 = vpack.c.b16 %v364, %v363
      %v420 = vpack.c.b16 %v366, %v365
      %v421 = vpack.c.b16 %v368, %v367
      %v422 = vpack.c.b16 %v370, %v369
      %v423 = vpack.c.b16 %v372, %v371
      %v424 = vpack.c.b16 %v374, %v373
      %v425 = vpack.c.b16 %v376, %v375
      %v426 = vpack.c.b16 %v378, %v377
      %v427 = vpack.c.b16 %v380, %v379
      %v428 = vpack.c.b16 %v382, %v381
      %v429 = vpack.c.b16 %v384, %v383
      %v430 = vpack.c.b16 %v386, %v385
      %v431 = vpack.c.b16 %v388, %v387
      %v432 = vpack.c.b16 %v390, %v389
      %v433 = vpack.c.b16 %v392, %v391
      %v434 = vpack.c.b16 %v394, %v393
      %v435 = vpack.c.b16 %v396, %v395
      %v436 = vpack.c.b16 %v398, %v397
      %v437 = vpack.c.b16 %v400, %v399
      %v438 = vpack.c.b16 %v402, %v401
      %v439 = vpack.c.b16 %v404, %v403
      %v440 = vpack.c.b16 %v406, %v405
      %v441 = vpack.c.b16 %v408, %v407
      %v442 = vpack.c.b16 %v410, %v409
      %v451 = vunpack.c.l.b16 %v275
      %v452 = vunpack.c.l.b16 %v276
      %v453 = vunpack.c.l.b16 %v277
      %v454 = vunpack.c.l.b16 %v278
      %v455 = vunpack.c.l.b16 %v279
      %v456 = vunpack.c.l.b16 %v280
      %v457 = vunpack.c.l.b16 %v281
      %v458 = vunpack.c.l.b16 %v282
      %v459 = vpack.c.b16 %v452, %v451
      %v460 = vpack.c.b16 %v454, %v453
      %v461 = vpack.c.b16 %v456, %v455
      %v462 = vpack.c.b16 %v458, %v457
      %vm467 = vcmask 523264
      %v469 = vsel %vm467, %v411, 0
      %v472 = vsel %vm467, %v412, 0
      %v475 = vsel %vm467, %v413, 0
      %v478 = vsel %vm467, %v414, 0
      %v481 = vsel %vm467, %v415, 0
      %v484 = vsel %vm467, %v416, 0
      %v487 = vsel %vm467, %v417, 0
      %v490 = vsel %vm467, %v418, 0
      %v493 = vsel %vm467, %v419, 0
      %v496 = vsel %vm467, %v420, 0
      %v499 = vsel %vm467, %v421, 0
      %v502 = vsel %vm467, %v422, 0
      %v505 = vsel %vm467, %v423, 0
      %v508 = vsel %vm467, %v424, 0
      %v511 = vsel %vm467, %v425, 0
      %v514 = vsel %vm467, %v426, 0
      %v517 = vsel %vm467, %v427, 0
      %v520 = vsel %vm467, %v428, 0
      %v523 = vsel %vm467, %v429, 0
      %v526 = vsel %vm467, %v430, 0
      %v529 = vsel %vm467, %v431, 0
      %v532 = vsel %vm467, %v432, 0
      %v535 = vsel %vm467, %v433, 0
      %v538 = vsel %vm467, %v434, 0
      %v541 = vsel %vm467, %v435, 0
      %v544 = vsel %vm467, %v436, 0
      %v547 = vsel %vm467, %v437, 0
      %v550 = vsel %vm467, %v438, 0
      %v553 = vsel %vm467, %v439, 0
      %v556 = vsel %vm467, %v440, 0
      %v559 = vsel %vm467, %v441, 0
      %v562 = vsel %vm467, %v442, 0
      %564 = vmatprep.subr.bf16.mxu0 0
      %565 = vmatpush1.bf16.msra.mxu0 %v459
      %566 = vmatprep.subr.bf16.mxu0 0
      %567 = vmatpush1.bf16.msra.mxu0 %v460
      %568 = vmatprep.subr.bf16.mxu0 0
      %569 = vmatpush1.bf16.msra.mxu0 %v461
      %570 = vmatprep.subr.bf16.mxu0 0
      %571 = vmatpush1.bf16.msra.mxu0 %v462
      %572 = vmatprep.subr.bf16.mxu0 0
      %573 = vmatpush1.bf16.msra.mxu0 0
      %574 = vmatprep.subr.bf16.mxu0 0
      %575 = vmatpush1.bf16.msra.mxu0 0
      %576 = vmatprep.subr.bf16.mxu0 0
      %577 = vmatpush1.bf16.msra.mxu0 0
      %578 = vmatprep.subr.bf16.mxu0 0
      %579 = vmatpush1.bf16.msra.mxu0 0
      %580 = vmatprep.subr.bf16.mxu0 0
      %581 = vmatpush1.bf16.msra.mxu0 0
      %582 = vmatprep.subr.bf16.mxu0 0
      %583 = vmatpush1.bf16.msra.mxu0 0
      %584 = vmatprep.subr.bf16.mxu0 0
      %585 = vmatpush1.bf16.msra.mxu0 0
      %586 = vmatprep.subr.bf16.mxu0 0
      %587 = vmatpush1.bf16.msra.mxu0 0
      %588 = vmatprep.subr.bf16.mxu0 0
      %589 = vmatpush1.bf16.msra.mxu0 0
      %590 = vmatprep.subr.bf16.mxu0 0
      %591 = vmatpush1.bf16.msra.mxu0 0
      %592 = vmatprep.subr.bf16.mxu0 0
      %593 = vmatpush1.bf16.msra.mxu0 0
      %594 = vmatprep.subr.bf16.mxu0 0
      %595 = vmatpush1.bf16.msra.mxu0 0
      %596 = vmatprep.mubr.bf16.mxu0 0
      %597 = vmatmul.mubr.bf16.gmra.mrb[0].mxu0 %v469
      %v598 = vpop.f32.mrb[0].mxu0
      %v599 = vadd.f32 0.0, %v598
      %v600 = vpop.f32.mrb[0].mxu0
      %v601 = vpop.f32.mrb[0].mxu0
      %v602 = vadd.f32 0.0, %v601
      %v603 = vpop.f32.mrb[0].mxu0
      %604 = vmatprep.mubr.bf16.mxu0 0
      %605 = vmatmul.mubr.bf16.gmra.mrb[0].mxu0 %v472
      %v606 = vpop.f32.mrb[0].mxu0
      %v607 = vadd.f32 0.0, %v606
      %v608 = vpop.f32.mrb[0].mxu0
      %v609 = vpop.f32.mrb[0].mxu0
      %v610 = vadd.f32 0.0, %v609
      %v611 = vpop.f32.mrb[0].mxu0
      %612 = vmatprep.mubr.bf16.mxu0 0
      %613 = vmatmul.mubr.bf16.gmra.mrb[0].mxu0 %v475
      %v614 = vpop.f32.mrb[0].mxu0
      %v615 = vadd.f32 0.0, %v614
      %v616 = vpop.f32.mrb[0].mxu0
      %v617 = vpop.f32.mrb[0].mxu0
      %v618 = vadd.f32 0.0, %v617
      %v619 = vpop.f32.mrb[0].mxu0
      %620 = vmatprep.mubr.bf16.mxu0 0
      %621 = vmatmul.mubr.bf16.gmra.mrb[0].mxu0 %v478
      %v622 = vpop.f32.mrb[0].mxu0
      %v623 = vadd.f32 0.0, %v622
      %v624 = vpop.f32.mrb[0].mxu0
      %v625 = vpop.f32.mrb[0].mxu0
      %v626 = vadd.f32 0.0, %v625
      %v627 = vpop.f32.mrb[0].mxu0
      %628 = vmatprep.mubr.bf16.mxu0 0
      %629 = vmatmul.mubr.bf16.gmra.mrb[0].mxu0 %v481
      %v630 = vpop.f32.mrb[0].mxu0
      %v631 = vadd.f32 0.0, %v630
      %v632 = vpop.f32.mrb[0].mxu0
      %v633 = vpop.f32.mrb[0].mxu0
      %v634 = vadd.f32 0.0, %v633
      %v635 = vpop.f32.mrb[0].mxu0
      %636 = vmatprep.mubr.bf16.mxu0 0
      %637 = vmatmul.mubr.bf16.gmra.mrb[0].mxu0 %v484
      %v638 = vpop.f32.mrb[0].mxu0
      %v639 = vadd.f32 0.0, %v638
      %v640 = vpop.f32.mrb[0].mxu0
      %v641 = vpop.f32.mrb[0].mxu0
      %v642 = vadd.f32 0.0, %v641
      %v643 = vpop.f32.mrb[0].mxu0
      %644 = vmatprep.mubr.bf16.mxu0 0
      %645 = vmatmul.mubr.bf16.gmra.mrb[0].mxu0 %v487
      %v646 = vpop.f32.mrb[0].mxu0
      %v647 = vadd.f32 0.0, %v646
      %v648 = vpop.f32.mrb[0].mxu0
      %v649 = vpop.f32.mrb[0].mxu0
      %v650 = vadd.f32 0.0, %v649
      %v651 = vpop.f32.mrb[0].mxu0
      %652 = vmatprep.mubr.bf16.mxu0 0
      %653 = vmatmul.mubr.bf16.gmra.mrb[0].mxu0 %v490
      %v654 = vpop.f32.mrb[0].mxu0
      %v655 = vadd.f32 0.0, %v654
      %v656 = vpop.f32.mrb[0].mxu0
      %v657 = vpop.f32.mrb[0].mxu0
      %v658 = vadd.f32 0.0, %v657
      %v659 = vpop.f32.mrb[0].mxu0
      %660 = vmatprep.mubr.bf16.mxu0 0
      %661 = vmatmul.mubr.bf16.gmra.mrb[0].mxu0 %v493
      %v662 = vpop.f32.mrb[0].mxu0
      %v663 = vadd.f32 0.0, %v662
      %v664 = vpop.f32.mrb[0].mxu0
      %v665 = vpop.f32.mrb[0].mxu0
      %v666 = vadd.f32 0.0, %v665
      %v667 = vpop.f32.mrb[0].mxu0
      %668 = vmatprep.mubr.bf16.mxu0 0
      %669 = vmatmul.mubr.bf16.gmra.mrb[0].mxu0 %v496
      %v670 = vpop.f32.mrb[0].mxu0
      %v671 = vadd.f32 0.0, %v670
      %v672 = vpop.f32.mrb[0].mxu0
      %v673 = vpop.f32.mrb[0].mxu0
      %v674 = vadd.f32 0.0, %v673
      %v675 = vpop.f32.mrb[0].mxu0
      %676 = vmatprep.mubr.bf16.mxu0 0
      %677 = vmatmul.mubr.bf16.gmra.mrb[0].mxu0 %v499
      %v678 = vpop.f32.mrb[0].mxu0
      %v679 = vadd.f32 0.0, %v678
      %v680 = vpop.f32.mrb[0].mxu0
      %v681 = vpop.f32.mrb[0].mxu0
      %v682 = vadd.f32 0.0, %v681
      %v683 = vpop.f32.mrb[0].mxu0
      %684 = vmatprep.mubr.bf16.mxu0 0
      %685 = vmatmul.mubr.bf16.gmra.mrb[0].mxu0 %v502
      %v686 = vpop.f32.mrb[0].mxu0
      %v687 = vadd.f32 0.0, %v686
      %v688 = vpop.f32.mrb[0].mxu0
      %v689 = vpop.f32.mrb[0].mxu0
      %v690 = vadd.f32 0.0, %v689
      %v691 = vpop.f32.mrb[0].mxu0
      %692 = vmatprep.mubr.bf16.mxu0 0
      %693 = vmatmul.mubr.bf16.gmra.mrb[0].mxu0 %v505
      %v694 = vpop.f32.mrb[0].mxu0
      %v695 = vadd.f32 0.0, %v694
      %v696 = vpop.f32.mrb[0].mxu0
      %v697 = vpop.f32.mrb[0].mxu0
      %v698 = vadd.f32 0.0, %v697
      %v699 = vpop.f32.mrb[0].mxu0
      %700 = vmatprep.mubr.bf16.mxu0 0
      %701 = vmatmul.mubr.bf16.gmra.mrb[0].mxu0 %v508
      %v702 = vpop.f32.mrb[0].mxu0
      %v703 = vadd.f32 0.0, %v702
      %v704 = vpop.f32.mrb[0].mxu0
      %v705 = vpop.f32.mrb[0].mxu0
      %v706 = vadd.f32 0.0, %v705
      %v707 = vpop.f32.mrb[0].mxu0
      %708 = vmatprep.mubr.bf16.mxu0 0
      %709 = vmatmul.mubr.bf16.gmra.mrb[0].mxu0 %v511
      %v710 = vpop.f32.mrb[0].mxu0
      %v711 = vadd.f32 0.0, %v710
      %v712 = vpop.f32.mrb[0].mxu0
      %v713 = vpop.f32.mrb[0].mxu0
      %v714 = vadd.f32 0.0, %v713
      %v715 = vpop.f32.mrb[0].mxu0
      %716 = vmatprep.mubr.bf16.mxu0 0
      %717 = vmatmul.mubr.bf16.gmra.mrb[0].mxu0 %v514
      %v718 = vpop.f32.mrb[0].mxu0
      %v719 = vadd.f32 0.0, %v718
      %v720 = vpop.f32.mrb[0].mxu0
      %v721 = vpop.f32.mrb[0].mxu0
      %v722 = vadd.f32 0.0, %v721
      %v723 = vpop.f32.mrb[0].mxu0
      %724 = vmatprep.mubr.bf16.mxu0 0
      %725 = vmatmul.mubr.bf16.gmra.mrb[0].mxu0 %v517
      %v726 = vpop.f32.mrb[0].mxu0
      %v727 = vadd.f32 0.0, %v726
      %v728 = vpop.f32.mrb[0].mxu0
      %v729 = vpop.f32.mrb[0].mxu0
      %v730 = vadd.f32 0.0, %v729
      %v731 = vpop.f32.mrb[0].mxu0
      %732 = vmatprep.mubr.bf16.mxu0 0
      %733 = vmatmul.mubr.bf16.gmra.mrb[0].mxu0 %v520
      %v734 = vpop.f32.mrb[0].mxu0
      %v735 = vadd.f32 0.0, %v734
      %v736 = vpop.f32.mrb[0].mxu0
      %v737 = vpop.f32.mrb[0].mxu0
      %v738 = vadd.f32 0.0, %v737
      %v739 = vpop.f32.mrb[0].mxu0
      %740 = vmatprep.mubr.bf16.mxu0 0
      %741 = vmatmul.mubr.bf16.gmra.mrb[0].mxu0 %v523
      %v742 = vpop.f32.mrb[0].mxu0
      %v743 = vadd.f32 0.0, %v742
      %v744 = vpop.f32.mrb[0].mxu0
      %v745 = vpop.f32.mrb[0].mxu0
      %v746 = vadd.f32 0.0, %v745
      %v747 = vpop.f32.mrb[0].mxu0
      %748 = vmatprep.mubr.bf16.mxu0 0
      %749 = vmatmul.mubr.bf16.gmra.mrb[0].mxu0 %v526
      %v750 = vpop.f32.mrb[0].mxu0
      %v751 = vadd.f32 0.0, %v750
      %v752 = vpop.f32.mrb[0].mxu0
      %v753 = vpop.f32.mrb[0].mxu0
      %v754 = vadd.f32 0.0, %v753
      %v755 = vpop.f32.mrb[0].mxu0
      %756 = vmatprep.mubr.bf16.mxu0 0
      %757 = vmatmul.mubr.bf16.gmra.mrb[0].mxu0 %v529
      %v758 = vpop.f32.mrb[0].mxu0
      %v759 = vadd.f32 0.0, %v758
      %v760 = vpop.f32.mrb[0].mxu0
      %v761 = vpop.f32.mrb[0].mxu0
      %v762 = vadd.f32 0.0, %v761
      %v763 = vpop.f32.mrb[0].mxu0
      %764 = vmatprep.mubr.bf16.mxu0 0
      %765 = vmatmul.mubr.bf16.gmra.mrb[0].mxu0 %v532
      %v766 = vpop.f32.mrb[0].mxu0
      %v767 = vadd.f32 0.0, %v766
      %v768 = vpop.f32.mrb[0].mxu0
      %v769 = vpop.f32.mrb[0].mxu0
      %v770 = vadd.f32 0.0, %v769
      %v771 = vpop.f32.mrb[0].mxu0
      %772 = vmatprep.mubr.bf16.mxu0 0
      %773 = vmatmul.mubr.bf16.gmra.mrb[0].mxu0 %v535
      %v774 = vpop.f32.mrb[0].mxu0
      %v775 = vadd.f32 0.0, %v774
      %v776 = vpop.f32.mrb[0].mxu0
      %v777 = vpop.f32.mrb[0].mxu0
      %v778 = vadd.f32 0.0, %v777
      %v779 = vpop.f32.mrb[0].mxu0
      %780 = vmatprep.mubr.bf16.mxu0 0
      %781 = vmatmul.mubr.bf16.gmra.mrb[0].mxu0 %v538
      %v782 = vpop.f32.mrb[0].mxu0
      %v783 = vadd.f32 0.0, %v782
      %v784 = vpop.f32.mrb[0].mxu0
      %v785 = vpop.f32.mrb[0].mxu0
      %v786 = vadd.f32 0.0, %v785
      %v787 = vpop.f32.mrb[0].mxu0
      %788 = vmatprep.mubr.bf16.mxu0 0
      %789 = vmatmul.mubr.bf16.gmra.mrb[0].mxu0 %v541
      %v790 = vpop.f32.mrb[0].mxu0
      %v791 = vadd.f32 0.0, %v790
      %v792 = vpop.f32.mrb[0].mxu0
      %v793 = vpop.f32.mrb[0].mxu0
      %v794 = vadd.f32 0.0, %v793
      %v795 = vpop.f32.mrb[0].mxu0
      %796 = vmatprep.mubr.bf16.mxu0 0
      %797 = vmatmul.mubr.bf16.gmra.mrb[0].mxu0 %v544
      %v798 = vpop.f32.mrb[0].mxu0
      %v799 = vadd.f32 0.0, %v798
      %v800 = vpop.f32.mrb[0].mxu0
      %v801 = vpop.f32.mrb[0].mxu0
      %v802 = vadd.f32 0.0, %v801
      %v803 = vpop.f32.mrb[0].mxu0
      %804 = vmatprep.mubr.bf16.mxu0 0
      %805 = vmatmul.mubr.bf16.gmra.mrb[0].mxu0 %v547
      %v806 = vpop.f32.mrb[0].mxu0
      %v807 = vadd.f32 0.0, %v806
      %v808 = vpop.f32.mrb[0].mxu0
      %v809 = vpop.f32.mrb[0].mxu0
      %v810 = vadd.f32 0.0, %v809
      %v811 = vpop.f32.mrb[0].mxu0
      %812 = vmatprep.mubr.bf16.mxu0 0
      %813 = vmatmul.mubr.bf16.gmra.mrb[0].mxu0 %v550
      %v814 = vpop.f32.mrb[0].mxu0
      %v815 = vadd.f32 0.0, %v814
      %v816 = vpop.f32.mrb[0].mxu0
      %v817 = vpop.f32.mrb[0].mxu0
      %v818 = vadd.f32 0.0, %v817
      %v819 = vpop.f32.mrb[0].mxu0
      %820 = vmatprep.mubr.bf16.mxu0 0
      %821 = vmatmul.mubr.bf16.gmra.mrb[0].mxu0 %v553
      %v822 = vpop.f32.mrb[0].mxu0
      %v823 = vadd.f32 0.0, %v822
      %v824 = vpop.f32.mrb[0].mxu0
      %v825 = vpop.f32.mrb[0].mxu0
      %v826 = vadd.f32 0.0, %v825
      %v827 = vpop.f32.mrb[0].mxu0
      %828 = vmatprep.mubr.bf16.mxu0 0
      %829 = vmatmul.mubr.bf16.gmra.mrb[0].mxu0 %v556
      %v830 = vpop.f32.mrb[0].mxu0
      %v831 = vadd.f32 0.0, %v830
      %v832 = vpop.f32.mrb[0].mxu0
      %v833 = vpop.f32.mrb[0].mxu0
      %v834 = vadd.f32 0.0, %v833
      %v835 = vpop.f32.mrb[0].mxu0
      %836 = vmatprep.mubr.bf16.mxu0 0
      %837 = vmatmul.mubr.bf16.gmra.mrb[0].mxu0 %v559
      %v838 = vpop.f32.mrb[0].mxu0
      %v839 = vadd.f32 0.0, %v838
      %v840 = vpop.f32.mrb[0].mxu0
      %v841 = vpop.f32.mrb[0].mxu0
      %v842 = vadd.f32 0.0, %v841
      %v843 = vpop.f32.mrb[0].mxu0
      %844 = vmatprep.mubr.bf16.mxu0 0
      %845 = vmatmul.mubr.bf16.gmra.mrb[0].mxu0 %v562
      %v846 = vpop.f32.mrb[0].mxu0
      %v847 = vadd.f32 0.0, %v846
      %v848 = vpop.f32.mrb[0].mxu0
      %v849 = vpop.f32.mrb[0].mxu0
      %v850 = vadd.f32 0.0, %v849
      %v851 = vpop.f32.mrb[0].mxu0
      %852 = vdwg.mxu0
      %s853 = smul.u32 %s15, 512
      %s854 = scalar_lea.vmem [#allocation2], %s853
      %vm855 = vcmask 64512
      %856 = vst.msk [vmem:[%s854] sm:$0xff] %vm855, %v599
      %857 = vst.msk [vmem:[%s854 + $0x8] sm:$0xff] %vm855, %v602
      %858 = vst.msk [vmem:[%s854 + $0x10] sm:$0xff] %vm855, %v607
      %859 = vst.msk [vmem:[%s854 + $0x18] sm:$0xff] %vm855, %v610
      %860 = vst.msk [vmem:[%s854 + $0x20] sm:$0xff] %vm855, %v615
      %861 = vst.msk [vmem:[%s854 + $0x28] sm:$0xff] %vm855, %v618
      %862 = vst.msk [vmem:[%s854 + $0x30] sm:$0xff] %vm855, %v623
      %863 = vst.msk [vmem:[%s854 + $0x38] sm:$0xff] %vm855, %v626
      %864 = vst.msk [vmem:[%s854 + $0x40] sm:$0xff] %vm855, %v631
      %865 = vst.msk [vmem:[%s854 + $0x48] sm:$0xff] %vm855, %v634
      %866 = vst.msk [vmem:[%s854 + $0x50] sm:$0xff] %vm855, %v639
      %867 = vst.msk [vmem:[%s854 + $0x58] sm:$0xff] %vm855, %v642
      %868 = vst.msk [vmem:[%s854 + $0x60] sm:$0xff] %vm855, %v647
      %869 = vst.msk [vmem:[%s854 + $0x68] sm:$0xff] %vm855, %v650
      %870 = vst.msk [vmem:[%s854 + $0x70] sm:$0xff] %vm855, %v655
      %871 = vst.msk [vmem:[%s854 + $0x78] sm:$0xff] %vm855, %v658
      %872 = vst.msk [vmem:[%s854 + $0x80] sm:$0xff] %vm855, %v663
      %873 = vst.msk [vmem:[%s854 + $0x88] sm:$0xff] %vm855, %v666
      %874 = vst.msk [vmem:[%s854 + $0x90] sm:$0xff] %vm855, %v671
      %875 = vst.msk [vmem:[%s854 + $0x98] sm:$0xff] %vm855, %v674
      %876 = vst.msk [vmem:[%s854 + $0xa0] sm:$0xff] %vm855, %v679
      %877 = vst.msk [vmem:[%s854 + $0xa8] sm:$0xff] %vm855, %v682
      %878 = vst.msk [vmem:[%s854 + $0xb0] sm:$0xff] %vm855, %v687
      %879 = vst.msk [vmem:[%s854 + $0xb8] sm:$0xff] %vm855, %v690
      %880 = vst.msk [vmem:[%s854 + $0xc0] sm:$0xff] %vm855, %v695
      %881 = vst.msk [vmem:[%s854 + $0xc8] sm:$0xff] %vm855, %v698
      %882 = vst.msk [vmem:[%s854 + $0xd0] sm:$0xff] %vm855, %v703
      %883 = vst.msk [vmem:[%s854 + $0xd8] sm:$0xff] %vm855, %v706
      %884 = vst.msk [vmem:[%s854 + $0xe0] sm:$0xff] %vm855, %v711
      %885 = vst.msk [vmem:[%s854 + $0xe8] sm:$0xff] %vm855, %v714
      %886 = vst.msk [vmem:[%s854 + $0xf0] sm:$0xff] %vm855, %v719
      %887 = vst.msk [vmem:[%s854 + $0xf8] sm:$0xff] %vm855, %v722
      %888 = vst.msk [vmem:[%s854 + $0x100] sm:$0xff] %vm855, %v727
      %889 = vst.msk [vmem:[%s854 + $0x108] sm:$0xff] %vm855, %v730
      %890 = vst.msk [vmem:[%s854 + $0x110] sm:$0xff] %vm855, %v735
      %891 = vst.msk [vmem:[%s854 + $0x118] sm:$0xff] %vm855, %v738
      %892 = vst.msk [vmem:[%s854 + $0x120] sm:$0xff] %vm855, %v743
      %893 = vst.msk [vmem:[%s854 + $0x128] sm:$0xff] %vm855, %v746
      %894 = vst.msk [vmem:[%s854 + $0x130] sm:$0xff] %vm855, %v751
      %895 = vst.msk [vmem:[%s854 + $0x138] sm:$0xff] %vm855, %v754
      %896 = vst.msk [vmem:[%s854 + $0x140] sm:$0xff] %vm855, %v759
      %897 = vst.msk [vmem:[%s854 + $0x148] sm:$0xff] %vm855, %v762
      %898 = vst.msk [vmem:[%s854 + $0x150] sm:$0xff] %vm855, %v767
      %899 = vst.msk [vmem:[%s854 + $0x158] sm:$0xff] %vm855, %v770
      %900 = vst.msk [vmem:[%s854 + $0x160] sm:$0xff] %vm855, %v775
      %901 = vst.msk [vmem:[%s854 + $0x168] sm:$0xff] %vm855, %v778
      %902 = vst.msk [vmem:[%s854 + $0x170] sm:$0xff] %vm855, %v783
      %903 = vst.msk [vmem:[%s854 + $0x178] sm:$0xff] %vm855, %v786
      %904 = vst.msk [vmem:[%s854 + $0x180] sm:$0xff] %vm855, %v791
      %905 = vst.msk [vmem:[%s854 + $0x188] sm:$0xff] %vm855, %v794
      %906 = vst.msk [vmem:[%s854 + $0x190] sm:$0xff] %vm855, %v799
      %907 = vst.msk [vmem:[%s854 + $0x198] sm:$0xff] %vm855, %v802
      %908 = vst.msk [vmem:[%s854 + $0x1a0] sm:$0xff] %vm855, %v807
      %909 = vst.msk [vmem:[%s854 + $0x1a8] sm:$0xff] %vm855, %v810
      %910 = vst.msk [vmem:[%s854 + $0x1b0] sm:$0xff] %vm855, %v815
      %911 = vst.msk [vmem:[%s854 + $0x1b8] sm:$0xff] %vm855, %v818
      %912 = vst.msk [vmem:[%s854 + $0x1c0] sm:$0xff] %vm855, %v823
      %913 = vst.msk [vmem:[%s854 + $0x1c8] sm:$0xff] %vm855, %v826
      %914 = vst.msk [vmem:[%s854 + $0x1d0] sm:$0xff] %vm855, %v831
      %915 = vst.msk [vmem:[%s854 + $0x1d8] sm:$0xff] %vm855, %v834
      %916 = vst.msk [vmem:[%s854 + $0x1e0] sm:$0xff] %vm855, %v839
      %917 = vst.msk [vmem:[%s854 + $0x1e8] sm:$0xff] %vm855, %v842
      %918 = vst.msk [vmem:[%s854 + $0x1f0] sm:$0xff] %vm855, %v847
      %919 = vst.msk [vmem:[%s854 + $0x1f8] sm:$0xff] %vm855, %v850
      %v920 = vld [vmem:[#allocation3] sm:$0x1]
      %v921 = vsel %vm855, %v599, 0.0
      %v922 = vsel %vm855, %v602, 0.0
      %v923 = vadd.f32 %v921, %v922
      %v924 = vsel %vm855, %v607, 0.0
      %v925 = vadd.f32 %v923, %v924
      %v926 = vsel %vm855, %v610, 0.0
      %v927 = vadd.f32 %v925, %v926
      %v928 = vsel %vm855, %v615, 0.0
      %v929 = vadd.f32 %v927, %v928
      %v930 = vsel %vm855, %v618, 0.0
      %v931 = vadd.f32 %v929, %v930
      %v932 = vsel %vm855, %v623, 0.0
      %v933 = vadd.f32 %v931, %v932
      %v934 = vsel %vm855, %v626, 0.0
      %v935 = vadd.f32 %v933, %v934
      %v936 = vsel %vm855, %v631, 0.0
      %v937 = vadd.f32 %v935, %v936
      %v938 = vsel %vm855, %v634, 0.0
      %v939 = vadd.f32 %v937, %v938
      %v940 = vsel %vm855, %v639, 0.0
      %v941 = vadd.f32 %v939, %v940
      %v942 = vsel %vm855, %v642, 0.0
      %v943 = vadd.f32 %v941, %v942
      %v944 = vsel %vm855, %v647, 0.0
      %v945 = vadd.f32 %v943, %v944
      %v946 = vsel %vm855, %v650, 0.0
      %v947 = vadd.f32 %v945, %v946
      %v948 = vsel %vm855, %v655, 0.0
      %v949 = vadd.f32 %v947, %v948
      %v950 = vsel %vm855, %v658, 0.0
      %v951 = vadd.f32 %v949, %v950
      %v952 = vsel %vm855, %v663, 0.0
      %v953 = vadd.f32 %v951, %v952
      %v954 = vsel %vm855, %v666, 0.0
      %v955 = vadd.f32 %v953, %v954
      %v956 = vsel %vm855, %v671, 0.0
      %v957 = vadd.f32 %v955, %v956
      %v958 = vsel %vm855, %v674, 0.0
      %v959 = vadd.f32 %v957, %v958
      %v960 = vsel %vm855, %v679, 0.0
      %v961 = vadd.f32 %v959, %v960
      %v962 = vsel %vm855, %v682, 0.0
      %v963 = vadd.f32 %v961, %v962
      %v964 = vsel %vm855, %v687, 0.0
      %v965 = vadd.f32 %v963, %v964
      %v966 = vsel %vm855, %v690, 0.0
      %v967 = vadd.f32 %v965, %v966
      %v968 = vsel %vm855, %v695, 0.0
      %v969 = vadd.f32 %v967, %v968
      %v970 = vsel %vm855, %v698, 0.0
      %v971 = vadd.f32 %v969, %v970
      %v972 = vsel %vm855, %v703, 0.0
      %v973 = vadd.f32 %v971, %v972
      %v974 = vsel %vm855, %v706, 0.0
      %v975 = vadd.f32 %v973, %v974
      %v976 = vsel %vm855, %v711, 0.0
      %v977 = vadd.f32 %v975, %v976
      %v978 = vsel %vm855, %v714, 0.0
      %v979 = vadd.f32 %v977, %v978
      %v980 = vsel %vm855, %v719, 0.0
      %v981 = vadd.f32 %v979, %v980
      %v982 = vsel %vm855, %v722, 0.0
      %v983 = vadd.f32 %v981, %v982
      %v984 = vsel %vm855, %v727, 0.0
      %v985 = vadd.f32 %v983, %v984
      %v986 = vsel %vm855, %v730, 0.0
      %v987 = vadd.f32 %v985, %v986
      %v988 = vsel %vm855, %v735, 0.0
      %v989 = vadd.f32 %v987, %v988
      %v990 = vsel %vm855, %v738, 0.0
      %v991 = vadd.f32 %v989, %v990
      %v992 = vsel %vm855, %v743, 0.0
      %v993 = vadd.f32 %v991, %v992
      %v994 = vsel %vm855, %v746, 0.0
      %v995 = vadd.f32 %v993, %v994
      %v996 = vsel %vm855, %v751, 0.0
      %v997 = vadd.f32 %v995, %v996
      %v998 = vsel %vm855, %v754, 0.0
      %v999 = vadd.f32 %v997, %v998
      %v1000 = vsel %vm855, %v759, 0.0
      %v1001 = vadd.f32 %v999, %v1000
      %v1002 = vsel %vm855, %v762, 0.0
      %v1003 = vadd.f32 %v1001, %v1002
      %v1004 = vsel %vm855, %v767, 0.0
      %v1005 = vadd.f32 %v1003, %v1004
      %v1006 = vsel %vm855, %v770, 0.0
      %v1007 = vadd.f32 %v1005, %v1006
      %v1008 = vsel %vm855, %v775, 0.0
      %v1009 = vadd.f32 %v1007, %v1008
      %v1010 = vsel %vm855, %v778, 0.0
      %v1011 = vadd.f32 %v1009, %v1010
      %v1012 = vsel %vm855, %v783, 0.0
      %v1013 = vadd.f32 %v1011, %v1012
      %v1014 = vsel %vm855, %v786, 0.0
      %v1015 = vadd.f32 %v1013, %v1014
      %v1016 = vsel %vm855, %v791, 0.0
      %v1017 = vadd.f32 %v1015, %v1016
      %v1018 = vsel %vm855, %v794, 0.0
      %v1019 = vadd.f32 %v1017, %v1018
      %v1020 = vsel %vm855, %v799, 0.0
      %v1021 = vadd.f32 %v1019, %v1020
      %v1022 = vsel %vm855, %v802, 0.0
      %v1023 = vadd.f32 %v1021, %v1022
      %v1024 = vsel %vm855, %v807, 0.0
      %v1025 = vadd.f32 %v1023, %v1024
      %v1026 = vsel %vm855, %v810, 0.0
      %v1027 = vadd.f32 %v1025, %v1026
      %v1028 = vsel %vm855, %v815, 0.0
      %v1029 = vadd.f32 %v1027, %v1028
      %v1030 = vsel %vm855, %v818, 0.0
      %v1031 = vadd.f32 %v1029, %v1030
      %v1032 = vsel %vm855, %v823, 0.0
      %v1033 = vadd.f32 %v1031, %v1032
      %v1034 = vsel %vm855, %v826, 0.0
      %v1035 = vadd.f32 %v1033, %v1034
      %v1036 = vsel %vm855, %v831, 0.0
      %v1037 = vadd.f32 %v1035, %v1036
      %v1038 = vsel %vm855, %v834, 0.0
      %v1039 = vadd.f32 %v1037, %v1038
      %v1040 = vsel %vm855, %v839, 0.0
      %v1041 = vadd.f32 %v1039, %v1040
      %v1042 = vsel %vm855, %v842, 0.0
      %v1043 = vadd.f32 %v1041, %v1042
      %v1044 = vsel %vm855, %v847, 0.0
      %v1045 = vadd.f32 %v1043, %v1044
      %v1046 = vsel %vm855, %v850, 0.0
      %v1047 = vadd.f32 %v1045, %v1046
      %v1048 = vrot.slane %v1047, 4
      %v1049 = vadd.f32 %v1047, %v1048
      %v1050 = vrot.slane %v1049, 2
      %v1051 = vadd.f32 %v1049, %v1050
      %v1052 = vrot.slane %v1051, 1
      %v1053 = vadd.f32 %v1051, %v1052
      %v1054 = vadd.f32 %v920, %v1053
      %vm1055 = vcmask 57344
      %1056 = vst.msk [vmem:[#allocation3] sm:$0x1] %vm1055, %v1054
      %v1057 = vld [vmem:[#allocation4] sm:$0x1]
      %v1058 = vmul.f32 %v599, %v599
      %v1059 = vmul.f32 %v602, %v602
      %v1060 = vmul.f32 %v607, %v607
      %v1061 = vmul.f32 %v610, %v610
      %v1062 = vmul.f32 %v615, %v615
      %v1063 = vmul.f32 %v618, %v618
      %v1064 = vmul.f32 %v623, %v623
      %v1065 = vmul.f32 %v626, %v626
      %v1066 = vmul.f32 %v631, %v631
      %v1067 = vmul.f32 %v634, %v634
      %v1068 = vmul.f32 %v639, %v639
      %v1069 = vmul.f32 %v642, %v642
      %v1070 = vmul.f32 %v647, %v647
      %v1071 = vmul.f32 %v650, %v650
      %v1072 = vmul.f32 %v655, %v655
      %v1073 = vmul.f32 %v658, %v658
      %v1074 = vmul.f32 %v663, %v663
      %v1075 = vmul.f32 %v666, %v666
      %v1076 = vmul.f32 %v671, %v671
      %v1077 = vmul.f32 %v674, %v674
      %v1078 = vmul.f32 %v679, %v679
      %v1079 = vmul.f32 %v682, %v682
      %v1080 = vmul.f32 %v687, %v687
      %v1081 = vmul.f32 %v690, %v690
      %v1082 = vmul.f32 %v695, %v695
      %v1083 = vmul.f32 %v698, %v698
      %v1084 = vmul.f32 %v703, %v703
      %v1085 = vmul.f32 %v706, %v706
      %v1086 = vmul.f32 %v711, %v711
      %v1087 = vmul.f32 %v714, %v714
      %v1088 = vmul.f32 %v719, %v719
      %v1089 = vmul.f32 %v722, %v722
      %v1090 = vmul.f32 %v727, %v727
      %v1091 = vmul.f32 %v730, %v730
      %v1092 = vmul.f32 %v735, %v735
      %v1093 = vmul.f32 %v738, %v738
      %v1094 = vmul.f32 %v743, %v743
      %v1095 = vmul.f32 %v746, %v746
      %v1096 = vmul.f32 %v751, %v751
      %v1097 = vmul.f32 %v754, %v754
      %v1098 = vmul.f32 %v759, %v759
      %v1099 = vmul.f32 %v762, %v762
      %v1100 = vmul.f32 %v767, %v767
      %v1101 = vmul.f32 %v770, %v770
      %v1102 = vmul.f32 %v775, %v775
      %v1103 = vmul.f32 %v778, %v778
      %v1104 = vmul.f32 %v783, %v783
      %v1105 = vmul.f32 %v786, %v786
      %v1106 = vmul.f32 %v791, %v791
      %v1107 = vmul.f32 %v794, %v794
      %v1108 = vmul.f32 %v799, %v799
      %v1109 = vmul.f32 %v802, %v802
      %v1110 = vmul.f32 %v807, %v807
      %v1111 = vmul.f32 %v810, %v810
      %v1112 = vmul.f32 %v815, %v815
      %v1113 = vmul.f32 %v818, %v818
      %v1114 = vmul.f32 %v823, %v823
      %v1115 = vmul.f32 %v826, %v826
      %v1116 = vmul.f32 %v831, %v831
      %v1117 = vmul.f32 %v834, %v834
      %v1118 = vmul.f32 %v839, %v839
      %v1119 = vmul.f32 %v842, %v842
      %v1120 = vmul.f32 %v847, %v847
      %v1121 = vmul.f32 %v850, %v850
      %v1122 = vsel %vm855, %v1058, 0.0
      %v1123 = vsel %vm855, %v1059, 0.0
      %v1124 = vadd.f32 %v1122, %v1123
      %v1125 = vsel %vm855, %v1060, 0.0
      %v1126 = vadd.f32 %v1124, %v1125
      %v1127 = vsel %vm855, %v1061, 0.0
      %v1128 = vadd.f32 %v1126, %v1127
      %v1129 = vsel %vm855, %v1062, 0.0
      %v1130 = vadd.f32 %v1128, %v1129
      %v1131 = vsel %vm855, %v1063, 0.0
      %v1132 = vadd.f32 %v1130, %v1131
      %v1133 = vsel %vm855, %v1064, 0.0
      %v1134 = vadd.f32 %v1132, %v1133
      %v1135 = vsel %vm855, %v1065, 0.0
      %v1136 = vadd.f32 %v1134, %v1135
      %v1137 = vsel %vm855, %v1066, 0.0
      %v1138 = vadd.f32 %v1136, %v1137
      %v1139 = vsel %vm855, %v1067, 0.0
      %v1140 = vadd.f32 %v1138, %v1139
      %v1141 = vsel %vm855, %v1068, 0.0
      %v1142 = vadd.f32 %v1140, %v1141
      %v1143 = vsel %vm855, %v1069, 0.0
      %v1144 = vadd.f32 %v1142, %v1143
      %v1145 = vsel %vm855, %v1070, 0.0
      %v1146 = vadd.f32 %v1144, %v1145
      %v1147 = vsel %vm855, %v1071, 0.0
      %v1148 = vadd.f32 %v1146, %v1147
      %v1149 = vsel %vm855, %v1072, 0.0
      %v1150 = vadd.f32 %v1148, %v1149
      %v1151 = vsel %vm855, %v1073, 0.0
      %v1152 = vadd.f32 %v1150, %v1151
      %v1153 = vsel %vm855, %v1074, 0.0
      %v1154 = vadd.f32 %v1152, %v1153
      %v1155 = vsel %vm855, %v1075, 0.0
      %v1156 = vadd.f32 %v1154, %v1155
      %v1157 = vsel %vm855, %v1076, 0.0
      %v1158 = vadd.f32 %v1156, %v1157
      %v1159 = vsel %vm855, %v1077, 0.0
      %v1160 = vadd.f32 %v1158, %v1159
      %v1161 = vsel %vm855, %v1078, 0.0
      %v1162 = vadd.f32 %v1160, %v1161
      %v1163 = vsel %vm855, %v1079, 0.0
      %v1164 = vadd.f32 %v1162, %v1163
      %v1165 = vsel %vm855, %v1080, 0.0
      %v1166 = vadd.f32 %v1164, %v1165
      %v1167 = vsel %vm855, %v1081, 0.0
      %v1168 = vadd.f32 %v1166, %v1167
      %v1169 = vsel %vm855, %v1082, 0.0
      %v1170 = vadd.f32 %v1168, %v1169
      %v1171 = vsel %vm855, %v1083, 0.0
      %v1172 = vadd.f32 %v1170, %v1171
      %v1173 = vsel %vm855, %v1084, 0.0
      %v1174 = vadd.f32 %v1172, %v1173
      %v1175 = vsel %vm855, %v1085, 0.0
      %v1176 = vadd.f32 %v1174, %v1175
      %v1177 = vsel %vm855, %v1086, 0.0
      %v1178 = vadd.f32 %v1176, %v1177
      %v1179 = vsel %vm855, %v1087, 0.0
      %v1180 = vadd.f32 %v1178, %v1179
      %v1181 = vsel %vm855, %v1088, 0.0
      %v1182 = vadd.f32 %v1180, %v1181
      %v1183 = vsel %vm855, %v1089, 0.0
      %v1184 = vadd.f32 %v1182, %v1183
      %v1185 = vsel %vm855, %v1090, 0.0
      %v1186 = vadd.f32 %v1184, %v1185
      %v1187 = vsel %vm855, %v1091, 0.0
      %v1188 = vadd.f32 %v1186, %v1187
      %v1189 = vsel %vm855, %v1092, 0.0
      %v1190 = vadd.f32 %v1188, %v1189
      %v1191 = vsel %vm855, %v1093, 0.0
      %v1192 = vadd.f32 %v1190, %v1191
      %v1193 = vsel %vm855, %v1094, 0.0
      %v1194 = vadd.f32 %v1192, %v1193
      %v1195 = vsel %vm855, %v1095, 0.0
      %v1196 = vadd.f32 %v1194, %v1195
      %v1197 = vsel %vm855, %v1096, 0.0
      %v1198 = vadd.f32 %v1196, %v1197
      %v1199 = vsel %vm855, %v1097, 0.0
      %v1200 = vadd.f32 %v1198, %v1199
      %v1201 = vsel %vm855, %v1098, 0.0
      %v1202 = vadd.f32 %v1200, %v1201
      %v1203 = vsel %vm855, %v1099, 0.0
      %v1204 = vadd.f32 %v1202, %v1203
      %v1205 = vsel %vm855, %v1100, 0.0
      %v1206 = vadd.f32 %v1204, %v1205
      %v1207 = vsel %vm855, %v1101, 0.0
      %v1208 = vadd.f32 %v1206, %v1207
      %v1209 = vsel %vm855, %v1102, 0.0
      %v1210 = vadd.f32 %v1208, %v1209
      %v1211 = vsel %vm855, %v1103, 0.0
      %v1212 = vadd.f32 %v1210, %v1211
      %v1213 = vsel %vm855, %v1104, 0.0
      %v1214 = vadd.f32 %v1212, %v1213
      %v1215 = vsel %vm855, %v1105, 0.0
      %v1216 = vadd.f32 %v1214, %v1215
      %v1217 = vsel %vm855, %v1106, 0.0
      %v1218 = vadd.f32 %v1216, %v1217
      %v1219 = vsel %vm855, %v1107, 0.0
      %v1220 = vadd.f32 %v1218, %v1219
      %v1221 = vsel %vm855, %v1108, 0.0
      %v1222 = vadd.f32 %v1220, %v1221
      %v1223 = vsel %vm855, %v1109, 0.0
      %v1224 = vadd.f32 %v1222, %v1223
      %v1225 = vsel %vm855, %v1110, 0.0
      %v1226 = vadd.f32 %v1224, %v1225
      %v1227 = vsel %vm855, %v1111, 0.0
      %v1228 = vadd.f32 %v1226, %v1227
      %v1229 = vsel %vm855, %v1112, 0.0
      %v1230 = vadd.f32 %v1228, %v1229
      %v1231 = vsel %vm855, %v1113, 0.0
      %v1232 = vadd.f32 %v1230, %v1231
      %v1233 = vsel %vm855, %v1114, 0.0
      %v1234 = vadd.f32 %v1232, %v1233
      %v1235 = vsel %vm855, %v1115, 0.0
      %v1236 = vadd.f32 %v1234, %v1235
      %v1237 = vsel %vm855, %v1116, 0.0
      %v1238 = vadd.f32 %v1236, %v1237
      %v1239 = vsel %vm855, %v1117, 0.0
      %v1240 = vadd.f32 %v1238, %v1239
      %v1241 = vsel %vm855, %v1118, 0.0
      %v1242 = vadd.f32 %v1240, %v1241
      %v1243 = vsel %vm855, %v1119, 0.0
      %v1244 = vadd.f32 %v1242, %v1243
      %v1245 = vsel %vm855, %v1120, 0.0
      %v1246 = vadd.f32 %v1244, %v1245
      %v1247 = vsel %vm855, %v1121, 0.0
      %v1248 = vadd.f32 %v1246, %v1247
      %v1249 = vrot.slane %v1248, 4
      %v1250 = vadd.f32 %v1248, %v1249
      %v1251 = vrot.slane %v1250, 2
      %v1252 = vadd.f32 %v1250, %v1251
      %v1253 = vrot.slane %v1252, 1
      %v1254 = vadd.f32 %v1252, %v1253
      %v1255 = vadd.f32 %v1057, %v1254
      %1256 = vst.msk [vmem:[#allocation4] sm:$0x1] %vm1055, %v1255
      %p1257 = scmp.eq.s32.totalorder %s15, 3
      // Predicated region
      $region41: #{generator_forward.8} parent=35 // pred_check
        %p1258 = pneg %p1257
      $region42: #{generator_forward.8} parent=35 // pred_check_branch
        %1260 = sbr.rel (%p1258) target = $region44
      $region43: #{generator_forward.8} parent=35 // pred_region
        %v1261 = vld [vmem:[#allocation3] sm:$0x1]
        %v1262 = vmul.f32 %v1261, 0.00048828125
        %v1263 = vld [vmem:[#allocation4] sm:$0x1]
        %v1264 = vmul.f32 %v1263, 0.00048828125
        %v1265 = vmul.f32 %v1262, %v1262
        %v1266 = vsub.f32 %v1264, %v1265
        %v1267 = vmax.f32 %v1266, 0.0
        %v1268 = vld [vmem:[%s2] sm:$0x1]
        %v1269 = vadd.f32 %v1267, 1e-05
        %v1270 = vrsqrt.pop %v1269
        %v1271 = vmul.f32 %v1268, %v1270
        %v1272 = vld [vmem:[%s3] sm:$0x1]
        %v1273 = vmul.f32 %v1262, %v1271
        %v1274 = vsub.f32 %v1272, %v1273
        %v1275 = vld [vmem:[#allocation2] sm:$0xff]
        %v1276 = vld [vmem:[#allocation2 + $0x8] sm:$0xff]
        %v1277 = vld [vmem:[#allocation2 + $0x10] sm:$0xff]
        %v1278 = vld [vmem:[#allocation2 + $0x18] sm:$0xff]
        %v1279 = vld [vmem:[#allocation2 + $0x20] sm:$0xff]
        %v1280 = vld [vmem:[#allocation2 + $0x28] sm:$0xff]
        %v1281 = vld [vmem:[#allocation2 + $0x30] sm:$0xff]
        %v1282 = vld [vmem:[#allocation2 + $0x38] sm:$0xff]
        %v1283 = vld [vmem:[#allocation2 + $0x40] sm:$0xff]
        %v1284 = vld [vmem:[#allocation2 + $0x48] sm:$0xff]
        %v1285 = vld [vmem:[#allocation2 + $0x50] sm:$0xff]
        %v1286 = vld [vmem:[#allocation2 + $0x58] sm:$0xff]
        %v1287 = vld [vmem:[#allocation2 + $0x60] sm:$0xff]
        %v1288 = vld [vmem:[#allocation2 + $0x68] sm:$0xff]
        %v1289 = vld [vmem:[#allocation2 + $0x70] sm:$0xff]
        %v1290 = vld [vmem:[#allocation2 + $0x78] sm:$0xff]
        %v1291 = vld [vmem:[#allocation2 + $0x80] sm:$0xff]
        %v1292 = vld [vmem:[#allocation2 + $0x88] sm:$0xff]
        %v1293 = vld [vmem:[#allocation2 + $0x90] sm:$0xff]
        %v1294 = vld [vmem:[#allocation2 + $0x98] sm:$0xff]
        %v1295 = vld [vmem:[#allocation2 + $0xa0] sm:$0xff]
        %v1296 = vld [vmem:[#allocation2 + $0xa8] sm:$0xff]
        %v1297 = vld [vmem:[#allocation2 + $0xb0] sm:$0xff]
        %v1298 = vld [vmem:[#allocation2 + $0xb8] sm:$0xff]
        %v1299 = vld [vmem:[#allocation2 + $0xc0] sm:$0xff]
        %v1300 = vld [vmem:[#allocation2 + $0xc8] sm:$0xff]
        %v1301 = vld [vmem:[#allocation2 + $0xd0] sm:$0xff]
        %v1302 = vld [vmem:[#allocation2 + $0xd8] sm:$0xff]
        %v1303 = vld [vmem:[#allocation2 + $0xe0] sm:$0xff]
        %v1304 = vld [vmem:[#allocation2 + $0xe8] sm:$0xff]
        %v1305 = vld [vmem:[#allocation2 + $0xf0] sm:$0xff]
        %v1306 = vld [vmem:[#allocation2 + $0xf8] sm:$0xff]
        %v1307 = vld [vmem:[#allocation2 + $0x100] sm:$0xff]
        %v1308 = vld [vmem:[#allocation2 + $0x108] sm:$0xff]
        %v1309 = vld [vmem:[#allocation2 + $0x110] sm:$0xff]
        %v1310 = vld [vmem:[#allocation2 + $0x118] sm:$0xff]
        %v1311 = vld [vmem:[#allocation2 + $0x120] sm:$0xff]
        %v1312 = vld [vmem:[#allocation2 + $0x128] sm:$0xff]
        %v1313 = vld [vmem:[#allocation2 + $0x130] sm:$0xff]
        %v1314 = vld [vmem:[#allocation2 + $0x138] sm:$0xff]
        %v1315 = vld [vmem:[#allocation2 + $0x140] sm:$0xff]
        %v1316 = vld [vmem:[#allocation2 + $0x148] sm:$0xff]
        %v1317 = vld [vmem:[#allocation2 + $0x150] sm:$0xff]
        %v1318 = vld [vmem:[#allocation2 + $0x158] sm:$0xff]
        %v1319 = vld [vmem:[#allocation2 + $0x160] sm:$0xff]
        %v1320 = vld [vmem:[#allocation2 + $0x168] sm:$0xff]
        %v1321 = vld [vmem:[#allocation2 + $0x170] sm:$0xff]
        %v1322 = vld [vmem:[#allocation2 + $0x178] sm:$0xff]
        %v1323 = vld [vmem:[#allocation2 + $0x180] sm:$0xff]
        %v1324 = vld [vmem:[#allocation2 + $0x188] sm:$0xff]
        %v1325 = vld [vmem:[#allocation2 + $0x190] sm:$0xff]
        %v1326 = vld [vmem:[#allocation2 + $0x198] sm:$0xff]
        %v1327 = vld [vmem:[#allocation2 + $0x1a0] sm:$0xff]
        %v1328 = vld [vmem:[#allocation2 + $0x1a8] sm:$0xff]
        %v1329 = vld [vmem:[#allocation2 + $0x1b0] sm:$0xff]
        %v1330 = vld [vmem:[#allocation2 + $0x1b8] sm:$0xff]
        %v1331 = vld [vmem:[#allocation2 + $0x1c0] sm:$0xff]
        %v1332 = vld [vmem:[#allocation2 + $0x1c8] sm:$0xff]
        %v1333 = vld [vmem:[#allocation2 + $0x1d0] sm:$0xff]
        %v1334 = vld [vmem:[#allocation2 + $0x1d8] sm:$0xff]
        %v1335 = vld [vmem:[#allocation2 + $0x1e0] sm:$0xff]
        %v1336 = vld [vmem:[#allocation2 + $0x1e8] sm:$0xff]
        %v1337 = vld [vmem:[#allocation2 + $0x1f0] sm:$0xff]
        %v1338 = vld [vmem:[#allocation2 + $0x1f8] sm:$0xff]
        %v1339 = vld [vmem:[#allocation2 + $0x200] sm:$0xff]
        %v1340 = vld [vmem:[#allocation2 + $0x208] sm:$0xff]
        %v1341 = vld [vmem:[#allocation2 + $0x210] sm:$0xff]
        %v1342 = vld [vmem:[#allocation2 + $0x218] sm:$0xff]
        %v1343 = vld [vmem:[#allocation2 + $0x220] sm:$0xff]
        %v1344 = vld [vmem:[#allocation2 + $0x228] sm:$0xff]
        %v1345 = vld [vmem:[#allocation2 + $0x230] sm:$0xff]
        %v1346 = vld [vmem:[#allocation2 + $0x238] sm:$0xff]
        %v1347 = vld [vmem:[#allocation2 + $0x240] sm:$0xff]
        %v1348 = vld [vmem:[#allocation2 + $0x248] sm:$0xff]
        %v1349 = vld [vmem:[#allocation2 + $0x250] sm:$0xff]
        %v1350 = vld [vmem:[#allocation2 + $0x258] sm:$0xff]
        %v1351 = vld [vmem:[#allocation2 + $0x260] sm:$0xff]
        %v1352 = vld [vmem:[#allocation2 + $0x268] sm:$0xff]
        %v1353 = vld [vmem:[#allocation2 + $0x270] sm:$0xff]
        %v1354 = vld [vmem:[#allocation2 + $0x278] sm:$0xff]
        %v1355 = vld [vmem:[#allocation2 + $0x280] sm:$0xff]
        %v1356 = vld [vmem:[#allocation2 + $0x288] sm:$0xff]
        %v1357 = vld [vmem:[#allocation2 + $0x290] sm:$0xff]
        %v1358 = vld [vmem:[#allocation2 + $0x298] sm:$0xff]
        %v1359 = vld [vmem:[#allocation2 + $0x2a0] sm:$0xff]
        %v1360 = vld [vmem:[#allocation2 + $0x2a8] sm:$0xff]
        %v1361 = vld [vmem:[#allocation2 + $0x2b0] sm:$0xff]
        %v1362 = vld [vmem:[#allocation2 + $0x2b8] sm:$0xff]
        %v1363 = vld [vmem:[#allocation2 + $0x2c0] sm:$0xff]
        %v1364 = vld [vmem:[#allocation2 + $0x2c8] sm:$0xff]
        %v1365 = vld [vmem:[#allocation2 + $0x2d0] sm:$0xff]
        %v1366 = vld [vmem:[#allocation2 + $0x2d8] sm:$0xff]
        %v1367 = vld [vmem:[#allocation2 + $0x2e0] sm:$0xff]
        %v1368 = vld [vmem:[#allocation2 + $0x2e8] sm:$0xff]
        %v1369 = vld [vmem:[#allocation2 + $0x2f0] sm:$0xff]
        %v1370 = vld [vmem:[#allocation2 + $0x2f8] sm:$0xff]
        %v1371 = vld [vmem:[#allocation2 + $0x300] sm:$0xff]
        %v1372 = vld [vmem:[#allocation2 + $0x308] sm:$0xff]
        %v1373 = vld [vmem:[#allocation2 + $0x310] sm:$0xff]
        %v1374 = vld [vmem:[#allocation2 + $0x318] sm:$0xff]
        %v1375 = vld [vmem:[#allocation2 + $0x320] sm:$0xff]
        %v1376 = vld [vmem:[#allocation2 + $0x328] sm:$0xff]
        %v1377 = vld [vmem:[#allocation2 + $0x330] sm:$0xff]
        %v1378 = vld [vmem:[#allocation2 + $0x338] sm:$0xff]
        %v1379 = vld [vmem:[#allocation2 + $0x340] sm:$0xff]
        %v1380 = vld [vmem:[#allocation2 + $0x348] sm:$0xff]
        %v1381 = vld [vmem:[#allocation2 + $0x350] sm:$0xff]
        %v1382 = vld [vmem:[#allocation2 + $0x358] sm:$0xff]
        %v1383 = vld [vmem:[#allocation2 + $0x360] sm:$0xff]
        %v1384 = vld [vmem:[#allocation2 + $0x368] sm:$0xff]
        %v1385 = vld [vmem:[#allocation2 + $0x370] sm:$0xff]
        %v1386 = vld [vmem:[#allocation2 + $0x378] sm:$0xff]
        %v1387 = vld [vmem:[#allocation2 + $0x380] sm:$0xff]
        %v1388 = vld [vmem:[#allocation2 + $0x388] sm:$0xff]
        %v1389 = vld [vmem:[#allocation2 + $0x390] sm:$0xff]
        %v1390 = vld [vmem:[#allocation2 + $0x398] sm:$0xff]
        %v1391 = vld [vmem:[#allocation2 + $0x3a0] sm:$0xff]
        %v1392 = vld [vmem:[#allocation2 + $0x3a8] sm:$0xff]
        %v1393 = vld [vmem:[#allocation2 + $0x3b0] sm:$0xff]
        %v1394 = vld [vmem:[#allocation2 + $0x3b8] sm:$0xff]
        %v1395 = vld [vmem:[#allocation2 + $0x3c0] sm:$0xff]
        %v1396 = vld [vmem:[#allocation2 + $0x3c8] sm:$0xff]
        %v1397 = vld [vmem:[#allocation2 + $0x3d0] sm:$0xff]
        %v1398 = vld [vmem:[#allocation2 + $0x3d8] sm:$0xff]
        %v1399 = vld [vmem:[#allocation2 + $0x3e0] sm:$0xff]
        %v1400 = vld [vmem:[#allocation2 + $0x3e8] sm:$0xff]
        %v1401 = vld [vmem:[#allocation2 + $0x3f0] sm:$0xff]
        %v1402 = vld [vmem:[#allocation2 + $0x3f8] sm:$0xff]
        %v1403 = vld [vmem:[#allocation2 + $0x400] sm:$0xff]
        %v1404 = vld [vmem:[#allocation2 + $0x408] sm:$0xff]
        %v1405 = vld [vmem:[#allocation2 + $0x410] sm:$0xff]
        %v1406 = vld [vmem:[#allocation2 + $0x418] sm:$0xff]
        %v1407 = vld [vmem:[#allocation2 + $0x420] sm:$0xff]
        %v1408 = vld [vmem:[#allocation2 + $0x428] sm:$0xff]
        %v1409 = vld [vmem:[#allocation2 + $0x430] sm:$0xff]
        %v1410 = vld [vmem:[#allocation2 + $0x438] sm:$0xff]
        %v1411 = vld [vmem:[#allocation2 + $0x440] sm:$0xff]
        %v1412 = vld [vmem:[#allocation2 + $0x448] sm:$0xff]
        %v1413 = vld [vmem:[#allocation2 + $0x450] sm:$0xff]
        %v1414 = vld [vmem:[#allocation2 + $0x458] sm:$0xff]
        %v1415 = vld [vmem:[#allocation2 + $0x460] sm:$0xff]
        %v1416 = vld [vmem:[#allocation2 + $0x468] sm:$0xff]
        %v1417 = vld [vmem:[#allocation2 + $0x470] sm:$0xff]
        %v1418 = vld [vmem:[#allocation2 + $0x478] sm:$0xff]
        %v1419 = vld [vmem:[#allocation2 + $0x480] sm:$0xff]
        %v1420 = vld [vmem:[#allocation2 + $0x488] sm:$0xff]
        %v1421 = vld [vmem:[#allocation2 + $0x490] sm:$0xff]
        %v1422 = vld [vmem:[#allocation2 + $0x498] sm:$0xff]
        %v1423 = vld [vmem:[#allocation2 + $0x4a0] sm:$0xff]
        %v1424 = vld [vmem:[#allocation2 + $0x4a8] sm:$0xff]
        %v1425 = vld [vmem:[#allocation2 + $0x4b0] sm:$0xff]
        %v1426 = vld [vmem:[#allocation2 + $0x4b8] sm:$0xff]
        %v1427 = vld [vmem:[#allocation2 + $0x4c0] sm:$0xff]
        %v1428 = vld [vmem:[#allocation2 + $0x4c8] sm:$0xff]
        %v1429 = vld [vmem:[#allocation2 + $0x4d0] sm:$0xff]
        %v1430 = vld [vmem:[#allocation2 + $0x4d8] sm:$0xff]
        %v1431 = vld [vmem:[#allocation2 + $0x4e0] sm:$0xff]
        %v1432 = vld [vmem:[#allocation2 + $0x4e8] sm:$0xff]
        %v1433 = vld [vmem:[#allocation2 + $0x4f0] sm:$0xff]
        %v1434 = vld [vmem:[#allocation2 + $0x4f8] sm:$0xff]
        %v1435 = vld [vmem:[#allocation2 + $0x500] sm:$0xff]
        %v1436 = vld [vmem:[#allocation2 + $0x508] sm:$0xff]
        %v1437 = vld [vmem:[#allocation2 + $0x510] sm:$0xff]
        %v1438 = vld [vmem:[#allocation2 + $0x518] sm:$0xff]
        %v1439 = vld [vmem:[#allocation2 + $0x520] sm:$0xff]
        %v1440 = vld [vmem:[#allocation2 + $0x528] sm:$0xff]
        %v1441 = vld [vmem:[#allocation2 + $0x530] sm:$0xff]
        %v1442 = vld [vmem:[#allocation2 + $0x538] sm:$0xff]
        %v1443 = vld [vmem:[#allocation2 + $0x540] sm:$0xff]
        %v1444 = vld [vmem:[#allocation2 + $0x548] sm:$0xff]
        %v1445 = vld [vmem:[#allocation2 + $0x550] sm:$0xff]
        %v1446 = vld [vmem:[#allocation2 + $0x558] sm:$0xff]
        %v1447 = vld [vmem:[#allocation2 + $0x560] sm:$0xff]
        %v1448 = vld [vmem:[#allocation2 + $0x568] sm:$0xff]
        %v1449 = vld [vmem:[#allocation2 + $0x570] sm:$0xff]
        %v1450 = vld [vmem:[#allocation2 + $0x578] sm:$0xff]
        %v1451 = vld [vmem:[#allocation2 + $0x580] sm:$0xff]
        %v1452 = vld [vmem:[#allocation2 + $0x588] sm:$0xff]
        %v1453 = vld [vmem:[#allocation2 + $0x590] sm:$0xff]
        %v1454 = vld [vmem:[#allocation2 + $0x598] sm:$0xff]
        %v1455 = vld [vmem:[#allocation2 + $0x5a0] sm:$0xff]
        %v1456 = vld [vmem:[#allocation2 + $0x5a8] sm:$0xff]
        %v1457 = vld [vmem:[#allocation2 + $0x5b0] sm:$0xff]
        %v1458 = vld [vmem:[#allocation2 + $0x5b8] sm:$0xff]
        %v1459 = vld [vmem:[#allocation2 + $0x5c0] sm:$0xff]
        %v1460 = vld [vmem:[#allocation2 + $0x5c8] sm:$0xff]
        %v1461 = vld [vmem:[#allocation2 + $0x5d0] sm:$0xff]
        %v1462 = vld [vmem:[#allocation2 + $0x5d8] sm:$0xff]
        %v1463 = vld [vmem:[#allocation2 + $0x5e0] sm:$0xff]
        %v1464 = vld [vmem:[#allocation2 + $0x5e8] sm:$0xff]
        %v1465 = vld [vmem:[#allocation2 + $0x5f0] sm:$0xff]
        %v1466 = vld [vmem:[#allocation2 + $0x5f8] sm:$0xff]
        %v1467 = vld [vmem:[#allocation2 + $0x600] sm:$0xff]
        %v1468 = vld [vmem:[#allocation2 + $0x608] sm:$0xff]
        %v1469 = vld [vmem:[#allocation2 + $0x610] sm:$0xff]
        %v1470 = vld [vmem:[#allocation2 + $0x618] sm:$0xff]
        %v1471 = vld [vmem:[#allocation2 + $0x620] sm:$0xff]
        %v1472 = vld [vmem:[#allocation2 + $0x628] sm:$0xff]
        %v1473 = vld [vmem:[#allocation2 + $0x630] sm:$0xff]
        %v1474 = vld [vmem:[#allocation2 + $0x638] sm:$0xff]
        %v1475 = vld [vmem:[#allocation2 + $0x640] sm:$0xff]
        %v1476 = vld [vmem:[#allocation2 + $0x648] sm:$0xff]
        %v1477 = vld [vmem:[#allocation2 + $0x650] sm:$0xff]
        %v1478 = vld [vmem:[#allocation2 + $0x658] sm:$0xff]
        %v1479 = vld [vmem:[#allocation2 + $0x660] sm:$0xff]
        %v1480 = vld [vmem:[#allocation2 + $0x668] sm:$0xff]
        %v1481 = vld [vmem:[#allocation2 + $0x670] sm:$0xff]
        %v1482 = vld [vmem:[#allocation2 + $0x678] sm:$0xff]
        %v1483 = vld [vmem:[#allocation2 + $0x680] sm:$0xff]
        %v1484 = vld [vmem:[#allocation2 + $0x688] sm:$0xff]
        %v1485 = vld [vmem:[#allocation2 + $0x690] sm:$0xff]
        %v1486 = vld [vmem:[#allocation2 + $0x698] sm:$0xff]
        %v1487 = vld [vmem:[#allocation2 + $0x6a0] sm:$0xff]
        %v1488 = vld [vmem:[#allocation2 + $0x6a8] sm:$0xff]
        %v1489 = vld [vmem:[#allocation2 + $0x6b0] sm:$0xff]
        %v1490 = vld [vmem:[#allocation2 + $0x6b8] sm:$0xff]
        %v1491 = vld [vmem:[#allocation2 + $0x6c0] sm:$0xff]
        %v1492 = vld [vmem:[#allocation2 + $0x6c8] sm:$0xff]
        %v1493 = vld [vmem:[#allocation2 + $0x6d0] sm:$0xff]
        %v1494 = vld [vmem:[#allocation2 + $0x6d8] sm:$0xff]
        %v1495 = vld [vmem:[#allocation2 + $0x6e0] sm:$0xff]
        %v1496 = vld [vmem:[#allocation2 + $0x6e8] sm:$0xff]
        %v1497 = vld [vmem:[#allocation2 + $0x6f0] sm:$0xff]
        %v1498 = vld [vmem:[#allocation2 + $0x6f8] sm:$0xff]
        %v1499 = vld [vmem:[#allocation2 + $0x700] sm:$0xff]
        %v1500 = vld [vmem:[#allocation2 + $0x708] sm:$0xff]
        %v1501 = vld [vmem:[#allocation2 + $0x710] sm:$0xff]
        %v1502 = vld [vmem:[#allocation2 + $0x718] sm:$0xff]
        %v1503 = vld [vmem:[#allocation2 + $0x720] sm:$0xff]
        %v1504 = vld [vmem:[#allocation2 + $0x728] sm:$0xff]
        %v1505 = vld [vmem:[#allocation2 + $0x730] sm:$0xff]
        %v1506 = vld [vmem:[#allocation2 + $0x738] sm:$0xff]
        %v1507 = vld [vmem:[#allocation2 + $0x740] sm:$0xff]
        %v1508 = vld [vmem:[#allocation2 + $0x748] sm:$0xff]
        %v1509 = vld [vmem:[#allocation2 + $0x750] sm:$0xff]
        %v1510 = vld [vmem:[#allocation2 + $0x758] sm:$0xff]
        %v1511 = vld [vmem:[#allocation2 + $0x760] sm:$0xff]
        %v1512 = vld [vmem:[#allocation2 + $0x768] sm:$0xff]
        %v1513 = vld [vmem:[#allocation2 + $0x770] sm:$0xff]
        %v1514 = vld [vmem:[#allocation2 + $0x778] sm:$0xff]
        %v1515 = vld [vmem:[#allocation2 + $0x780] sm:$0xff]
        %v1516 = vld [vmem:[#allocation2 + $0x788] sm:$0xff]
        %v1517 = vld [vmem:[#allocation2 + $0x790] sm:$0xff]
        %v1518 = vld [vmem:[#allocation2 + $0x798] sm:$0xff]
        %v1519 = vld [vmem:[#allocation2 + $0x7a0] sm:$0xff]
        %v1520 = vld [vmem:[#allocation2 + $0x7a8] sm:$0xff]
        %v1521 = vld [vmem:[#allocation2 + $0x7b0] sm:$0xff]
        %v1522 = vld [vmem:[#allocation2 + $0x7b8] sm:$0xff]
        %v1523 = vld [vmem:[#allocation2 + $0x7c0] sm:$0xff]
        %v1524 = vld [vmem:[#allocation2 + $0x7c8] sm:$0xff]
        %v1525 = vld [vmem:[#allocation2 + $0x7d0] sm:$0xff]
        %v1526 = vld [vmem:[#allocation2 + $0x7d8] sm:$0xff]
        %v1527 = vld [vmem:[#allocation2 + $0x7e0] sm:$0xff]
        %v1528 = vld [vmem:[#allocation2 + $0x7e8] sm:$0xff]
        %v1529 = vld [vmem:[#allocation2 + $0x7f0] sm:$0xff]
        %v1530 = vld [vmem:[#allocation2 + $0x7f8] sm:$0xff]
        %v1532 = vlaneseq
        %v1533 = vshrl.u32 %v1532, 7
        %v1534 = vsub.s32 0, %v1533
        %v1535 = vrot.slane %v1271, %v1534
        %v1537 = vmul.f32 %v1275, %v1535
        %v1538 = vmul.f32 %v1276, %v1535
        %v1539 = vmul.f32 %v1277, %v1535
        %v1540 = vmul.f32 %v1278, %v1535
        %v1541 = vmul.f32 %v1279, %v1535
        %v1542 = vmul.f32 %v1280, %v1535
        %v1543 = vmul.f32 %v1281, %v1535
        %v1544 = vmul.f32 %v1282, %v1535
        %v1545 = vmul.f32 %v1283, %v1535
        %v1546 = vmul.f32 %v1284, %v1535
        %v1547 = vmul.f32 %v1285, %v1535
        %v1548 = vmul.f32 %v1286, %v1535
        %v1549 = vmul.f32 %v1287, %v1535
        %v1550 = vmul.f32 %v1288, %v1535
        %v1551 = vmul.f32 %v1289, %v1535
        %v1552 = vmul.f32 %v1290, %v1535
        %v1553 = vmul.f32 %v1291, %v1535
        %v1554 = vmul.f32 %v1292, %v1535
        %v1555 = vmul.f32 %v1293, %v1535
        %v1556 = vmul.f32 %v1294, %v1535
        %v1557 = vmul.f32 %v1295, %v1535
        %v1558 = vmul.f32 %v1296, %v1535
        %v1559 = vmul.f32 %v1297, %v1535
        %v1560 = vmul.f32 %v1298, %v1535
        %v1561 = vmul.f32 %v1299, %v1535
        %v1562 = vmul.f32 %v1300, %v1535
        %v1563 = vmul.f32 %v1301, %v1535
        %v1564 = vmul.f32 %v1302, %v1535
        %v1565 = vmul.f32 %v1303, %v1535
        %v1566 = vmul.f32 %v1304, %v1535
        %v1567 = vmul.f32 %v1305, %v1535
        %v1568 = vmul.f32 %v1306, %v1535
        %v1569 = vmul.f32 %v1307, %v1535
        %v1570 = vmul.f32 %v1308, %v1535
        %v1571 = vmul.f32 %v1309, %v1535
        %v1572 = vmul.f32 %v1310, %v1535
        %v1573 = vmul.f32 %v1311, %v1535
        %v1574 = vmul.f32 %v1312, %v1535
        %v1575 = vmul.f32 %v1313, %v1535
        %v1576 = vmul.f32 %v1314, %v1535
        %v1577 = vmul.f32 %v1315, %v1535
        %v1578 = vmul.f32 %v1316, %v1535
        %v1579 = vmul.f32 %v1317, %v1535
        %v1580 = vmul.f32 %v1318, %v1535
        %v1581 = vmul.f32 %v1319, %v1535
        %v1582 = vmul.f32 %v1320, %v1535
        %v1583 = vmul.f32 %v1321, %v1535
        %v1584 = vmul.f32 %v1322, %v1535
        %v1585 = vmul.f32 %v1323, %v1535
        %v1586 = vmul.f32 %v1324, %v1535
        %v1587 = vmul.f32 %v1325, %v1535
        %v1588 = vmul.f32 %v1326, %v1535
        %v1589 = vmul.f32 %v1327, %v1535
        %v1590 = vmul.f32 %v1328, %v1535
        %v1591 = vmul.f32 %v1329, %v1535
        %v1592 = vmul.f32 %v1330, %v1535
        %v1593 = vmul.f32 %v1331, %v1535
        %v1594 = vmul.f32 %v1332, %v1535
        %v1595 = vmul.f32 %v1333, %v1535
        %v1596 = vmul.f32 %v1334, %v1535
        %v1597 = vmul.f32 %v1335, %v1535
        %v1598 = vmul.f32 %v1336, %v1535
        %v1599 = vmul.f32 %v1337, %v1535
        %v1600 = vmul.f32 %v1338, %v1535
        %v1601 = vmul.f32 %v1339, %v1535
        %v1602 = vmul.f32 %v1340, %v1535
        %v1603 = vmul.f32 %v1341, %v1535
        %v1604 = vmul.f32 %v1342, %v1535
        %v1605 = vmul.f32 %v1343, %v1535
        %v1606 = vmul.f32 %v1344, %v1535
        %v1607 = vmul.f32 %v1345, %v1535
        %v1608 = vmul.f32 %v1346, %v1535
        %v1609 = vmul.f32 %v1347, %v1535
        %v1610 = vmul.f32 %v1348, %v1535
        %v1611 = vmul.f32 %v1349, %v1535
        %v1612 = vmul.f32 %v1350, %v1535
        %v1613 = vmul.f32 %v1351, %v1535
        %v1614 = vmul.f32 %v1352, %v1535
        %v1615 = vmul.f32 %v1353, %v1535
        %v1616 = vmul.f32 %v1354, %v1535
        %v1617 = vmul.f32 %v1355, %v1535
        %v1618 = vmul.f32 %v1356, %v1535
        %v1619 = vmul.f32 %v1357, %v1535
        %v1620 = vmul.f32 %v1358, %v1535
        %v1621 = vmul.f32 %v1359, %v1535
        %v1622 = vmul.f32 %v1360, %v1535
        %v1623 = vmul.f32 %v1361, %v1535
        %v1624 = vmul.f32 %v1362, %v1535
        %v1625 = vmul.f32 %v1363, %v1535
        %v1626 = vmul.f32 %v1364, %v1535
        %v1627 = vmul.f32 %v1365, %v1535
        %v1628 = vmul.f32 %v1366, %v1535
        %v1629 = vmul.f32 %v1367, %v1535
        %v1630 = vmul.f32 %v1368, %v1535
        %v1631 = vmul.f32 %v1369, %v1535
        %v1632 = vmul.f32 %v1370, %v1535
        %v1633 = vmul.f32 %v1371, %v1535
        %v1634 = vmul.f32 %v1372, %v1535
        %v1635 = vmul.f32 %v1373, %v1535
        %v1636 = vmul.f32 %v1374, %v1535
        %v1637 = vmul.f32 %v1375, %v1535
        %v1638 = vmul.f32 %v1376, %v1535
        %v1639 = vmul.f32 %v1377, %v1535
        %v1640 = vmul.f32 %v1378, %v1535
        %v1641 = vmul.f32 %v1379, %v1535
        %v1642 = vmul.f32 %v1380, %v1535
        %v1643 = vmul.f32 %v1381, %v1535
        %v1644 = vmul.f32 %v1382, %v1535
        %v1645 = vmul.f32 %v1383, %v1535
        %v1646 = vmul.f32 %v1384, %v1535
        %v1647 = vmul.f32 %v1385, %v1535
        %v1648 = vmul.f32 %v1386, %v1535
        %v1649 = vmul.f32 %v1387, %v1535
        %v1650 = vmul.f32 %v1388, %v1535
        %v1651 = vmul.f32 %v1389, %v1535
        %v1652 = vmul.f32 %v1390, %v1535
        %v1653 = vmul.f32 %v1391, %v1535
        %v1654 = vmul.f32 %v1392, %v1535
        %v1655 = vmul.f32 %v1393, %v1535
        %v1656 = vmul.f32 %v1394, %v1535
        %v1657 = vmul.f32 %v1395, %v1535
        %v1658 = vmul.f32 %v1396, %v1535
        %v1659 = vmul.f32 %v1397, %v1535
        %v1660 = vmul.f32 %v1398, %v1535
        %v1661 = vmul.f32 %v1399, %v1535
        %v1662 = vmul.f32 %v1400, %v1535
        %v1663 = vmul.f32 %v1401, %v1535
        %v1664 = vmul.f32 %v1402, %v1535
        %v1665 = vmul.f32 %v1403, %v1535
        %v1666 = vmul.f32 %v1404, %v1535
        %v1667 = vmul.f32 %v1405, %v1535
        %v1668 = vmul.f32 %v1406, %v1535
        %v1669 = vmul.f32 %v1407, %v1535
        %v1670 = vmul.f32 %v1408, %v1535
        %v1671 = vmul.f32 %v1409, %v1535
        %v1672 = vmul.f32 %v1410, %v1535
        %v1673 = vmul.f32 %v1411, %v1535
        %v1674 = vmul.f32 %v1412, %v1535
        %v1675 = vmul.f32 %v1413, %v1535
        %v1676 = vmul.f32 %v1414, %v1535
        %v1677 = vmul.f32 %v1415, %v1535
        %v1678 = vmul.f32 %v1416, %v1535
        %v1679 = vmul.f32 %v1417, %v1535
        %v1680 = vmul.f32 %v1418, %v1535
        %v1681 = vmul.f32 %v1419, %v1535
        %v1682 = vmul.f32 %v1420, %v1535
        %v1683 = vmul.f32 %v1421, %v1535
        %v1684 = vmul.f32 %v1422, %v1535
        %v1685 = vmul.f32 %v1423, %v1535
        %v1686 = vmul.f32 %v1424, %v1535
        %v1687 = vmul.f32 %v1425, %v1535
        %v1688 = vmul.f32 %v1426, %v1535
        %v1689 = vmul.f32 %v1427, %v1535
        %v1690 = vmul.f32 %v1428, %v1535
        %v1691 = vmul.f32 %v1429, %v1535
        %v1692 = vmul.f32 %v1430, %v1535
        %v1693 = vmul.f32 %v1431, %v1535
        %v1694 = vmul.f32 %v1432, %v1535
        %v1695 = vmul.f32 %v1433, %v1535
        %v1696 = vmul.f32 %v1434, %v1535
        %v1697 = vmul.f32 %v1435, %v1535
        %v1698 = vmul.f32 %v1436, %v1535
        %v1699 = vmul.f32 %v1437, %v1535
        %v1700 = vmul.f32 %v1438, %v1535
        %v1701 = vmul.f32 %v1439, %v1535
        %v1702 = vmul.f32 %v1440, %v1535
        %v1703 = vmul.f32 %v1441, %v1535
        %v1704 = vmul.f32 %v1442, %v1535
        %v1705 = vmul.f32 %v1443, %v1535
        %v1706 = vmul.f32 %v1444, %v1535
        %v1707 = vmul.f32 %v1445, %v1535
        %v1708 = vmul.f32 %v1446, %v1535
        %v1709 = vmul.f32 %v1447, %v1535
        %v1710 = vmul.f32 %v1448, %v1535
        %v1711 = vmul.f32 %v1449, %v1535
        %v1712 = vmul.f32 %v1450, %v1535
        %v1713 = vmul.f32 %v1451, %v1535
        %v1714 = vmul.f32 %v1452, %v1535
        %v1715 = vmul.f32 %v1453, %v1535
        %v1716 = vmul.f32 %v1454, %v1535
        %v1717 = vmul.f32 %v1455, %v1535
        %v1718 = vmul.f32 %v1456, %v1535
        %v1719 = vmul.f32 %v1457, %v1535
        %v1720 = vmul.f32 %v1458, %v1535
        %v1721 = vmul.f32 %v1459, %v1535
        %v1722 = vmul.f32 %v1460, %v1535
        %v1723 = vmul.f32 %v1461, %v1535
        %v1724 = vmul.f32 %v1462, %v1535
        %v1725 = vmul.f32 %v1463, %v1535
        %v1726 = vmul.f32 %v1464, %v1535
        %v1727 = vmul.f32 %v1465, %v1535
        %v1728 = vmul.f32 %v1466, %v1535
        %v1729 = vmul.f32 %v1467, %v1535
        %v1730 = vmul.f32 %v1468, %v1535
        %v1731 = vmul.f32 %v1469, %v1535
        %v1732 = vmul.f32 %v1470, %v1535
        %v1733 = vmul.f32 %v1471, %v1535
        %v1734 = vmul.f32 %v1472, %v1535
        %v1735 = vmul.f32 %v1473, %v1535
        %v1736 = vmul.f32 %v1474, %v1535
        %v1737 = vmul.f32 %v1475, %v1535
        %v1738 = vmul.f32 %v1476, %v1535
        %v1739 = vmul.f32 %v1477, %v1535
        %v1740 = vmul.f32 %v1478, %v1535
        %v1741 = vmul.f32 %v1479, %v1535
        %v1742 = vmul.f32 %v1480, %v1535
        %v1743 = vmul.f32 %v1481, %v1535
        %v1744 = vmul.f32 %v1482, %v1535
        %v1745 = vmul.f32 %v1483, %v1535
        %v1746 = vmul.f32 %v1484, %v1535
        %v1747 = vmul.f32 %v1485, %v1535
        %v1748 = vmul.f32 %v1486, %v1535
        %v1749 = vmul.f32 %v1487, %v1535
        %v1750 = vmul.f32 %v1488, %v1535
        %v1751 = vmul.f32 %v1489, %v1535
        %v1752 = vmul.f32 %v1490, %v1535
        %v1753 = vmul.f32 %v1491, %v1535
        %v1754 = vmul.f32 %v1492, %v1535
        %v1755 = vmul.f32 %v1493, %v1535
        %v1756 = vmul.f32 %v1494, %v1535
        %v1757 = vmul.f32 %v1495, %v1535
        %v1758 = vmul.f32 %v1496, %v1535
        %v1759 = vmul.f32 %v1497, %v1535
        %v1760 = vmul.f32 %v1498, %v1535
        %v1761 = vmul.f32 %v1499, %v1535
        %v1762 = vmul.f32 %v1500, %v1535
        %v1763 = vmul.f32 %v1501, %v1535
        %v1764 = vmul.f32 %v1502, %v1535
        %v1765 = vmul.f32 %v1503, %v1535
        %v1766 = vmul.f32 %v1504, %v1535
        %v1767 = vmul.f32 %v1505, %v1535
        %v1768 = vmul.f32 %v1506, %v1535
        %v1769 = vmul.f32 %v1507, %v1535
        %v1770 = vmul.f32 %v1508, %v1535
        %v1771 = vmul.f32 %v1509, %v1535
        %v1772 = vmul.f32 %v1510, %v1535
        %v1773 = vmul.f32 %v1511, %v1535
        %v1774 = vmul.f32 %v1512, %v1535
        %v1775 = vmul.f32 %v1513, %v1535
        %v1776 = vmul.f32 %v1514, %v1535
        %v1777 = vmul.f32 %v1515, %v1535
        %v1778 = vmul.f32 %v1516, %v1535
        %v1779 = vmul.f32 %v1517, %v1535
        %v1780 = vmul.f32 %v1518, %v1535
        %v1781 = vmul.f32 %v1519, %v1535
        %v1782 = vmul.f32 %v1520, %v1535
        %v1783 = vmul.f32 %v1521, %v1535
        %v1784 = vmul.f32 %v1522, %v1535
        %v1785 = vmul.f32 %v1523, %v1535
        %v1786 = vmul.f32 %v1524, %v1535
        %v1787 = vmul.f32 %v1525, %v1535
        %v1788 = vmul.f32 %v1526, %v1535
        %v1789 = vmul.f32 %v1527, %v1535
        %v1790 = vmul.f32 %v1528, %v1535
        %v1791 = vmul.f32 %v1529, %v1535
        %v1792 = vmul.f32 %v1530, %v1535
        %v1794 = vlaneseq
        %v1795 = vshrl.u32 %v1794, 7
        %v1796 = vsub.s32 0, %v1795
        %v1797 = vrot.slane %v1274, %v1796
        %v1799 = vadd.f32 %v1537, %v1797
        %v1800 = vadd.f32 %v1538, %v1797
        %v1801 = vadd.f32 %v1539, %v1797
        %v1802 = vadd.f32 %v1540, %v1797
        %v1803 = vadd.f32 %v1541, %v1797
        %v1804 = vadd.f32 %v1542, %v1797
        %v1805 = vadd.f32 %v1543, %v1797
        %v1806 = vadd.f32 %v1544, %v1797
        %v1807 = vadd.f32 %v1545, %v1797
        %v1808 = vadd.f32 %v1546, %v1797
        %v1809 = vadd.f32 %v1547, %v1797
        %v1810 = vadd.f32 %v1548, %v1797
        %v1811 = vadd.f32 %v1549, %v1797
        %v1812 = vadd.f32 %v1550, %v1797
        %v1813 = vadd.f32 %v1551, %v1797
        %v1814 = vadd.f32 %v1552, %v1797
        %v1815 = vadd.f32 %v1553, %v1797
        %v1816 = vadd.f32 %v1554, %v1797
        %v1817 = vadd.f32 %v1555, %v1797
        %v1818 = vadd.f32 %v1556, %v1797
        %v1819 = vadd.f32 %v1557, %v1797
        %v1820 = vadd.f32 %v1558, %v1797
        %v1821 = vadd.f32 %v1559, %v1797
        %v1822 = vadd.f32 %v1560, %v1797
        %v1823 = vadd.f32 %v1561, %v1797
        %v1824 = vadd.f32 %v1562, %v1797
        %v1825 = vadd.f32 %v1563, %v1797
        %v1826 = vadd.f32 %v1564, %v1797
        %v1827 = vadd.f32 %v1565, %v1797
        %v1828 = vadd.f32 %v1566, %v1797
        %v1829 = vadd.f32 %v1567, %v1797
        %v1830 = vadd.f32 %v1568, %v1797
        %v1831 = vadd.f32 %v1569, %v1797
        %v1832 = vadd.f32 %v1570, %v1797
        %v1833 = vadd.f32 %v1571, %v1797
        %v1834 = vadd.f32 %v1572, %v1797
        %v1835 = vadd.f32 %v1573, %v1797
        %v1836 = vadd.f32 %v1574, %v1797
        %v1837 = vadd.f32 %v1575, %v1797
        %v1838 = vadd.f32 %v1576, %v1797
        %v1839 = vadd.f32 %v1577, %v1797
        %v1840 = vadd.f32 %v1578, %v1797
        %v1841 = vadd.f32 %v1579, %v1797
        %v1842 = vadd.f32 %v1580, %v1797
        %v1843 = vadd.f32 %v1581, %v1797
        %v1844 = vadd.f32 %v1582, %v1797
        %v1845 = vadd.f32 %v1583, %v1797
        %v1846 = vadd.f32 %v1584, %v1797
        %v1847 = vadd.f32 %v1585, %v1797
        %v1848 = vadd.f32 %v1586, %v1797
        %v1849 = vadd.f32 %v1587, %v1797
        %v1850 = vadd.f32 %v1588, %v1797
        %v1851 = vadd.f32 %v1589, %v1797
        %v1852 = vadd.f32 %v1590, %v1797
        %v1853 = vadd.f32 %v1591, %v1797
        %v1854 = vadd.f32 %v1592, %v1797
        %v1855 = vadd.f32 %v1593, %v1797
        %v1856 = vadd.f32 %v1594, %v1797
        %v1857 = vadd.f32 %v1595, %v1797
        %v1858 = vadd.f32 %v1596, %v1797
        %v1859 = vadd.f32 %v1597, %v1797
        %v1860 = vadd.f32 %v1598, %v1797
        %v1861 = vadd.f32 %v1599, %v1797
        %v1862 = vadd.f32 %v1600, %v1797
        %v1863 = vadd.f32 %v1601, %v1797
        %v1864 = vadd.f32 %v1602, %v1797
        %v1865 = vadd.f32 %v1603, %v1797
        %v1866 = vadd.f32 %v1604, %v1797
        %v1867 = vadd.f32 %v1605, %v1797
        %v1868 = vadd.f32 %v1606, %v1797
        %v1869 = vadd.f32 %v1607, %v1797
        %v1870 = vadd.f32 %v1608, %v1797
        %v1871 = vadd.f32 %v1609, %v1797
        %v1872 = vadd.f32 %v1610, %v1797
        %v1873 = vadd.f32 %v1611, %v1797
        %v1874 = vadd.f32 %v1612, %v1797
        %v1875 = vadd.f32 %v1613, %v1797
        %v1876 = vadd.f32 %v1614, %v1797
        %v1877 = vadd.f32 %v1615, %v1797
        %v1878 = vadd.f32 %v1616, %v1797
        %v1879 = vadd.f32 %v1617, %v1797
        %v1880 = vadd.f32 %v1618, %v1797
        %v1881 = vadd.f32 %v1619, %v1797
        %v1882 = vadd.f32 %v1620, %v1797
        %v1883 = vadd.f32 %v1621, %v1797
        %v1884 = vadd.f32 %v1622, %v1797
        %v1885 = vadd.f32 %v1623, %v1797
        %v1886 = vadd.f32 %v1624, %v1797
        %v1887 = vadd.f32 %v1625, %v1797
        %v1888 = vadd.f32 %v1626, %v1797
        %v1889 = vadd.f32 %v1627, %v1797
        %v1890 = vadd.f32 %v1628, %v1797
        %v1891 = vadd.f32 %v1629, %v1797
        %v1892 = vadd.f32 %v1630, %v1797
        %v1893 = vadd.f32 %v1631, %v1797
        %v1894 = vadd.f32 %v1632, %v1797
        %v1895 = vadd.f32 %v1633, %v1797
        %v1896 = vadd.f32 %v1634, %v1797
        %v1897 = vadd.f32 %v1635, %v1797
        %v1898 = vadd.f32 %v1636, %v1797
        %v1899 = vadd.f32 %v1637, %v1797
        %v1900 = vadd.f32 %v1638, %v1797
        %v1901 = vadd.f32 %v1639, %v1797
        %v1902 = vadd.f32 %v1640, %v1797
        %v1903 = vadd.f32 %v1641, %v1797
        %v1904 = vadd.f32 %v1642, %v1797
        %v1905 = vadd.f32 %v1643, %v1797
        %v1906 = vadd.f32 %v1644, %v1797
        %v1907 = vadd.f32 %v1645, %v1797
        %v1908 = vadd.f32 %v1646, %v1797
        %v1909 = vadd.f32 %v1647, %v1797
        %v1910 = vadd.f32 %v1648, %v1797
        %v1911 = vadd.f32 %v1649, %v1797
        %v1912 = vadd.f32 %v1650, %v1797
        %v1913 = vadd.f32 %v1651, %v1797
        %v1914 = vadd.f32 %v1652, %v1797
        %v1915 = vadd.f32 %v1653, %v1797
        %v1916 = vadd.f32 %v1654, %v1797
        %v1917 = vadd.f32 %v1655, %v1797
        %v1918 = vadd.f32 %v1656, %v1797
        %v1919 = vadd.f32 %v1657, %v1797
        %v1920 = vadd.f32 %v1658, %v1797
        %v1921 = vadd.f32 %v1659, %v1797
        %v1922 = vadd.f32 %v1660, %v1797
        %v1923 = vadd.f32 %v1661, %v1797
        %v1924 = vadd.f32 %v1662, %v1797
        %v1925 = vadd.f32 %v1663, %v1797
        %v1926 = vadd.f32 %v1664, %v1797
        %v1927 = vadd.f32 %v1665, %v1797
        %v1928 = vadd.f32 %v1666, %v1797
        %v1929 = vadd.f32 %v1667, %v1797
        %v1930 = vadd.f32 %v1668, %v1797
        %v1931 = vadd.f32 %v1669, %v1797
        %v1932 = vadd.f32 %v1670, %v1797
        %v1933 = vadd.f32 %v1671, %v1797
        %v1934 = vadd.f32 %v1672, %v1797
        %v1935 = vadd.f32 %v1673, %v1797
        %v1936 = vadd.f32 %v1674, %v1797
        %v1937 = vadd.f32 %v1675, %v1797
        %v1938 = vadd.f32 %v1676, %v1797
        %v1939 = vadd.f32 %v1677, %v1797
        %v1940 = vadd.f32 %v1678, %v1797
        %v1941 = vadd.f32 %v1679, %v1797
        %v1942 = vadd.f32 %v1680, %v1797
        %v1943 = vadd.f32 %v1681, %v1797
        %v1944 = vadd.f32 %v1682, %v1797
        %v1945 = vadd.f32 %v1683, %v1797
        %v1946 = vadd.f32 %v1684, %v1797
        %v1947 = vadd.f32 %v1685, %v1797
        %v1948 = vadd.f32 %v1686, %v1797
        %v1949 = vadd.f32 %v1687, %v1797
        %v1950 = vadd.f32 %v1688, %v1797
        %v1951 = vadd.f32 %v1689, %v1797
        %v1952 = vadd.f32 %v1690, %v1797
        %v1953 = vadd.f32 %v1691, %v1797
        %v1954 = vadd.f32 %v1692, %v1797
        %v1955 = vadd.f32 %v1693, %v1797
        %v1956 = vadd.f32 %v1694, %v1797
        %v1957 = vadd.f32 %v1695, %v1797
        %v1958 = vadd.f32 %v1696, %v1797
        %v1959 = vadd.f32 %v1697, %v1797
        %v1960 = vadd.f32 %v1698, %v1797
        %v1961 = vadd.f32 %v1699, %v1797
        %v1962 = vadd.f32 %v1700, %v1797
        %v1963 = vadd.f32 %v1701, %v1797
        %v1964 = vadd.f32 %v1702, %v1797
        %v1965 = vadd.f32 %v1703, %v1797
        %v1966 = vadd.f32 %v1704, %v1797
        %v1967 = vadd.f32 %v1705, %v1797
        %v1968 = vadd.f32 %v1706, %v1797
        %v1969 = vadd.f32 %v1707, %v1797
        %v1970 = vadd.f32 %v1708, %v1797
        %v1971 = vadd.f32 %v1709, %v1797
        %v1972 = vadd.f32 %v1710, %v1797
        %v1973 = vadd.f32 %v1711, %v1797
        %v1974 = vadd.f32 %v1712, %v1797
        %v1975 = vadd.f32 %v1713, %v1797
        %v1976 = vadd.f32 %v1714, %v1797
        %v1977 = vadd.f32 %v1715, %v1797
        %v1978 = vadd.f32 %v1716, %v1797
        %v1979 = vadd.f32 %v1717, %v1797
        %v1980 = vadd.f32 %v1718, %v1797
        %v1981 = vadd.f32 %v1719, %v1797
        %v1982 = vadd.f32 %v1720, %v1797
        %v1983 = vadd.f32 %v1721, %v1797
        %v1984 = vadd.f32 %v1722, %v1797
        %v1985 = vadd.f32 %v1723, %v1797
        %v1986 = vadd.f32 %v1724, %v1797
        %v1987 = vadd.f32 %v1725, %v1797
        %v1988 = vadd.f32 %v1726, %v1797
        %v1989 = vadd.f32 %v1727, %v1797
        %v1990 = vadd.f32 %v1728, %v1797
        %v1991 = vadd.f32 %v1729, %v1797
        %v1992 = vadd.f32 %v1730, %v1797
        %v1993 = vadd.f32 %v1731, %v1797
        %v1994 = vadd.f32 %v1732, %v1797
        %v1995 = vadd.f32 %v1733, %v1797
        %v1996 = vadd.f32 %v1734, %v1797
        %v1997 = vadd.f32 %v1735, %v1797
        %v1998 = vadd.f32 %v1736, %v1797
        %v1999 = vadd.f32 %v1737, %v1797
        %v2000 = vadd.f32 %v1738, %v1797
        %v2001 = vadd.f32 %v1739, %v1797
        %v2002 = vadd.f32 %v1740, %v1797
        %v2003 = vadd.f32 %v1741, %v1797
        %v2004 = vadd.f32 %v1742, %v1797
        %v2005 = vadd.f32 %v1743, %v1797
        %v2006 = vadd.f32 %v1744, %v1797
        %v2007 = vadd.f32 %v1745, %v1797
        %v2008 = vadd.f32 %v1746, %v1797
        %v2009 = vadd.f32 %v1747, %v1797
        %v2010 = vadd.f32 %v1748, %v1797
        %v2011 = vadd.f32 %v1749, %v1797
        %v2012 = vadd.f32 %v1750, %v1797
        %v2013 = vadd.f32 %v1751, %v1797
        %v2014 = vadd.f32 %v1752, %v1797
        %v2015 = vadd.f32 %v1753, %v1797
        %v2016 = vadd.f32 %v1754, %v1797
        %v2017 = vadd.f32 %v1755, %v1797
        %v2018 = vadd.f32 %v1756, %v1797
        %v2019 = vadd.f32 %v1757, %v1797
        %v2020 = vadd.f32 %v1758, %v1797
        %v2021 = vadd.f32 %v1759, %v1797
        %v2022 = vadd.f32 %v1760, %v1797
        %v2023 = vadd.f32 %v1761, %v1797
        %v2024 = vadd.f32 %v1762, %v1797
        %v2025 = vadd.f32 %v1763, %v1797
        %v2026 = vadd.f32 %v1764, %v1797
        %v2027 = vadd.f32 %v1765, %v1797
        %v2028 = vadd.f32 %v1766, %v1797
        %v2029 = vadd.f32 %v1767, %v1797
        %v2030 = vadd.f32 %v1768, %v1797
        %v2031 = vadd.f32 %v1769, %v1797
        %v2032 = vadd.f32 %v1770, %v1797
        %v2033 = vadd.f32 %v1771, %v1797
        %v2034 = vadd.f32 %v1772, %v1797
        %v2035 = vadd.f32 %v1773, %v1797
        %v2036 = vadd.f32 %v1774, %v1797
        %v2037 = vadd.f32 %v1775, %v1797
        %v2038 = vadd.f32 %v1776, %v1797
        %v2039 = vadd.f32 %v1777, %v1797
        %v2040 = vadd.f32 %v1778, %v1797
        %v2041 = vadd.f32 %v1779, %v1797
        %v2042 = vadd.f32 %v1780, %v1797
        %v2043 = vadd.f32 %v1781, %v1797
        %v2044 = vadd.f32 %v1782, %v1797
        %v2045 = vadd.f32 %v1783, %v1797
        %v2046 = vadd.f32 %v1784, %v1797
        %v2047 = vadd.f32 %v1785, %v1797
        %v2048 = vadd.f32 %v1786, %v1797
        %v2049 = vadd.f32 %v1787, %v1797
        %v2050 = vadd.f32 %v1788, %v1797
        %v2051 = vadd.f32 %v1789, %v1797
        %v2052 = vadd.f32 %v1790, %v1797
        %v2053 = vadd.f32 %v1791, %v1797
        %v2054 = vadd.f32 %v1792, %v1797
        %v2055 = vmax.f32 %v1799, 0.0
        %v2056 = vmax.f32 %v1800, 0.0
        %v2057 = vmax.f32 %v1801, 0.0
        %v2058 = vmax.f32 %v1802, 0.0
        %v2059 = vmax.f32 %v1803, 0.0
        %v2060 = vmax.f32 %v1804, 0.0
        %v2061 = vmax.f32 %v1805, 0.0
        %v2062 = vmax.f32 %v1806, 0.0
        %v2063 = vmax.f32 %v1807, 0.0
        %v2064 = vmax.f32 %v1808, 0.0
        %v2065 = vmax.f32 %v1809, 0.0
        %v2066 = vmax.f32 %v1810, 0.0
        %v2067 = vmax.f32 %v1811, 0.0
        %v2068 = vmax.f32 %v1812, 0.0
        %v2069 = vmax.f32 %v1813, 0.0
        %v2070 = vmax.f32 %v1814, 0.0
        %v2071 = vmax.f32 %v1815, 0.0
        %v2072 = vmax.f32 %v1816, 0.0
        %v2073 = vmax.f32 %v1817, 0.0
        %v2074 = vmax.f32 %v1818, 0.0
        %v2075 = vmax.f32 %v1819, 0.0
        %v2076 = vmax.f32 %v1820, 0.0
        %v2077 = vmax.f32 %v1821, 0.0
        %v2078 = vmax.f32 %v1822, 0.0
        %v2079 = vmax.f32 %v1823, 0.0
        %v2080 = vmax.f32 %v1824, 0.0
        %v2081 = vmax.f32 %v1825, 0.0
        %v2082 = vmax.f32 %v1826, 0.0
        %v2083 = vmax.f32 %v1827, 0.0
        %v2084 = vmax.f32 %v1828, 0.0
        %v2085 = vmax.f32 %v1829, 0.0
        %v2086 = vmax.f32 %v1830, 0.0
        %v2087 = vmax.f32 %v1831, 0.0
        %v2088 = vmax.f32 %v1832, 0.0
        %v2089 = vmax.f32 %v1833, 0.0
        %v2090 = vmax.f32 %v1834, 0.0
        %v2091 = vmax.f32 %v1835, 0.0
        %v2092 = vmax.f32 %v1836, 0.0
        %v2093 = vmax.f32 %v1837, 0.0
        %v2094 = vmax.f32 %v1838, 0.0
        %v2095 = vmax.f32 %v1839, 0.0
        %v2096 = vmax.f32 %v1840, 0.0
        %v2097 = vmax.f32 %v1841, 0.0
        %v2098 = vmax.f32 %v1842, 0.0
        %v2099 = vmax.f32 %v1843, 0.0
        %v2100 = vmax.f32 %v1844, 0.0
        %v2101 = vmax.f32 %v1845, 0.0
        %v2102 = vmax.f32 %v1846, 0.0
        %v2103 = vmax.f32 %v1847, 0.0
        %v2104 = vmax.f32 %v1848, 0.0
        %v2105 = vmax.f32 %v1849, 0.0
        %v2106 = vmax.f32 %v1850, 0.0
        %v2107 = vmax.f32 %v1851, 0.0
        %v2108 = vmax.f32 %v1852, 0.0
        %v2109 = vmax.f32 %v1853, 0.0
        %v2110 = vmax.f32 %v1854, 0.0
        %v2111 = vmax.f32 %v1855, 0.0
        %v2112 = vmax.f32 %v1856, 0.0
        %v2113 = vmax.f32 %v1857, 0.0
        %v2114 = vmax.f32 %v1858, 0.0
        %v2115 = vmax.f32 %v1859, 0.0
        %v2116 = vmax.f32 %v1860, 0.0
        %v2117 = vmax.f32 %v1861, 0.0
        %v2118 = vmax.f32 %v1862, 0.0
        %v2119 = vmax.f32 %v1863, 0.0
        %v2120 = vmax.f32 %v1864, 0.0
        %v2121 = vmax.f32 %v1865, 0.0
        %v2122 = vmax.f32 %v1866, 0.0
        %v2123 = vmax.f32 %v1867, 0.0
        %v2124 = vmax.f32 %v1868, 0.0
        %v2125 = vmax.f32 %v1869, 0.0
        %v2126 = vmax.f32 %v1870, 0.0
        %v2127 = vmax.f32 %v1871, 0.0
        %v2128 = vmax.f32 %v1872, 0.0
        %v2129 = vmax.f32 %v1873, 0.0
        %v2130 = vmax.f32 %v1874, 0.0
        %v2131 = vmax.f32 %v1875, 0.0
        %v2132 = vmax.f32 %v1876, 0.0
        %v2133 = vmax.f32 %v1877, 0.0
        %v2134 = vmax.f32 %v1878, 0.0
        %v2135 = vmax.f32 %v1879, 0.0
        %v2136 = vmax.f32 %v1880, 0.0
        %v2137 = vmax.f32 %v1881, 0.0
        %v2138 = vmax.f32 %v1882, 0.0
        %v2139 = vmax.f32 %v1883, 0.0
        %v2140 = vmax.f32 %v1884, 0.0
        %v2141 = vmax.f32 %v1885, 0.0
        %v2142 = vmax.f32 %v1886, 0.0
        %v2143 = vmax.f32 %v1887, 0.0
        %v2144 = vmax.f32 %v1888, 0.0
        %v2145 = vmax.f32 %v1889, 0.0
        %v2146 = vmax.f32 %v1890, 0.0
        %v2147 = vmax.f32 %v1891, 0.0
        %v2148 = vmax.f32 %v1892, 0.0
        %v2149 = vmax.f32 %v1893, 0.0
        %v2150 = vmax.f32 %v1894, 0.0
        %v2151 = vmax.f32 %v1895, 0.0
        %v2152 = vmax.f32 %v1896, 0.0
        %v2153 = vmax.f32 %v1897, 0.0
        %v2154 = vmax.f32 %v1898, 0.0
        %v2155 = vmax.f32 %v1899, 0.0
        %v2156 = vmax.f32 %v1900, 0.0
        %v2157 = vmax.f32 %v1901, 0.0
        %v2158 = vmax.f32 %v1902, 0.0
        %v2159 = vmax.f32 %v1903, 0.0
        %v2160 = vmax.f32 %v1904, 0.0
        %v2161 = vmax.f32 %v1905, 0.0
        %v2162 = vmax.f32 %v1906, 0.0
        %v2163 = vmax.f32 %v1907, 0.0
        %v2164 = vmax.f32 %v1908, 0.0
        %v2165 = vmax.f32 %v1909, 0.0
        %v2166 = vmax.f32 %v1910, 0.0
        %v2167 = vmax.f32 %v1911, 0.0
        %v2168 = vmax.f32 %v1912, 0.0
        %v2169 = vmax.f32 %v1913, 0.0
        %v2170 = vmax.f32 %v1914, 0.0
        %v2171 = vmax.f32 %v1915, 0.0
        %v2172 = vmax.f32 %v1916, 0.0
        %v2173 = vmax.f32 %v1917, 0.0
        %v2174 = vmax.f32 %v1918, 0.0
        %v2175 = vmax.f32 %v1919, 0.0
        %v2176 = vmax.f32 %v1920, 0.0
        %v2177 = vmax.f32 %v1921, 0.0
        %v2178 = vmax.f32 %v1922, 0.0
        %v2179 = vmax.f32 %v1923, 0.0
        %v2180 = vmax.f32 %v1924, 0.0
        %v2181 = vmax.f32 %v1925, 0.0
        %v2182 = vmax.f32 %v1926, 0.0
        %v2183 = vmax.f32 %v1927, 0.0
        %v2184 = vmax.f32 %v1928, 0.0
        %v2185 = vmax.f32 %v1929, 0.0
        %v2186 = vmax.f32 %v1930, 0.0
        %v2187 = vmax.f32 %v1931, 0.0
        %v2188 = vmax.f32 %v1932, 0.0
        %v2189 = vmax.f32 %v1933, 0.0
        %v2190 = vmax.f32 %v1934, 0.0
        %v2191 = vmax.f32 %v1935, 0.0
        %v2192 = vmax.f32 %v1936, 0.0
        %v2193 = vmax.f32 %v1937, 0.0
        %v2194 = vmax.f32 %v1938, 0.0
        %v2195 = vmax.f32 %v1939, 0.0
        %v2196 = vmax.f32 %v1940, 0.0
        %v2197 = vmax.f32 %v1941, 0.0
        %v2198 = vmax.f32 %v1942, 0.0
        %v2199 = vmax.f32 %v1943, 0.0
        %v2200 = vmax.f32 %v1944, 0.0
        %v2201 = vmax.f32 %v1945, 0.0
        %v2202 = vmax.f32 %v1946, 0.0
        %v2203 = vmax.f32 %v1947, 0.0
        %v2204 = vmax.f32 %v1948, 0.0
        %v2205 = vmax.f32 %v1949, 0.0
        %v2206 = vmax.f32 %v1950, 0.0
        %v2207 = vmax.f32 %v1951, 0.0
        %v2208 = vmax.f32 %v1952, 0.0
        %v2209 = vmax.f32 %v1953, 0.0
        %v2210 = vmax.f32 %v1954, 0.0
        %v2211 = vmax.f32 %v1955, 0.0
        %v2212 = vmax.f32 %v1956, 0.0
        %v2213 = vmax.f32 %v1957, 0.0
        %v2214 = vmax.f32 %v1958, 0.0
        %v2215 = vmax.f32 %v1959, 0.0
        %v2216 = vmax.f32 %v1960, 0.0
        %v2217 = vmax.f32 %v1961, 0.0
        %v2218 = vmax.f32 %v1962, 0.0
        %v2219 = vmax.f32 %v1963, 0.0
        %v2220 = vmax.f32 %v1964, 0.0
        %v2221 = vmax.f32 %v1965, 0.0
        %v2222 = vmax.f32 %v1966, 0.0
        %v2223 = vmax.f32 %v1967, 0.0
        %v2224 = vmax.f32 %v1968, 0.0
        %v2225 = vmax.f32 %v1969, 0.0
        %v2226 = vmax.f32 %v1970, 0.0
        %v2227 = vmax.f32 %v1971, 0.0
        %v2228 = vmax.f32 %v1972, 0.0
        %v2229 = vmax.f32 %v1973, 0.0
        %v2230 = vmax.f32 %v1974, 0.0
        %v2231 = vmax.f32 %v1975, 0.0
        %v2232 = vmax.f32 %v1976, 0.0
        %v2233 = vmax.f32 %v1977, 0.0
        %v2234 = vmax.f32 %v1978, 0.0
        %v2235 = vmax.f32 %v1979, 0.0
        %v2236 = vmax.f32 %v1980, 0.0
        %v2237 = vmax.f32 %v1981, 0.0
        %v2238 = vmax.f32 %v1982, 0.0
        %v2239 = vmax.f32 %v1983, 0.0
        %v2240 = vmax.f32 %v1984, 0.0
        %v2241 = vmax.f32 %v1985, 0.0
        %v2242 = vmax.f32 %v1986, 0.0
        %v2243 = vmax.f32 %v1987, 0.0
        %v2244 = vmax.f32 %v1988, 0.0
        %v2245 = vmax.f32 %v1989, 0.0
        %v2246 = vmax.f32 %v1990, 0.0
        %v2247 = vmax.f32 %v1991, 0.0
        %v2248 = vmax.f32 %v1992, 0.0
        %v2249 = vmax.f32 %v1993, 0.0
        %v2250 = vmax.f32 %v1994, 0.0
        %v2251 = vmax.f32 %v1995, 0.0
        %v2252 = vmax.f32 %v1996, 0.0
        %v2253 = vmax.f32 %v1997, 0.0
        %v2254 = vmax.f32 %v1998, 0.0
        %v2255 = vmax.f32 %v1999, 0.0
        %v2256 = vmax.f32 %v2000, 0.0
        %v2257 = vmax.f32 %v2001, 0.0
        %v2258 = vmax.f32 %v2002, 0.0
        %v2259 = vmax.f32 %v2003, 0.0
        %v2260 = vmax.f32 %v2004, 0.0
        %v2261 = vmax.f32 %v2005, 0.0
        %v2262 = vmax.f32 %v2006, 0.0
        %v2263 = vmax.f32 %v2007, 0.0
        %v2264 = vmax.f32 %v2008, 0.0
        %v2265 = vmax.f32 %v2009, 0.0
        %v2266 = vmax.f32 %v2010, 0.0
        %v2267 = vmax.f32 %v2011, 0.0
        %v2268 = vmax.f32 %v2012, 0.0
        %v2269 = vmax.f32 %v2013, 0.0
        %v2270 = vmax.f32 %v2014, 0.0
        %v2271 = vmax.f32 %v2015, 0.0
        %v2272 = vmax.f32 %v2016, 0.0
        %v2273 = vmax.f32 %v2017, 0.0
        %v2274 = vmax.f32 %v2018, 0.0
        %v2275 = vmax.f32 %v2019, 0.0
        %v2276 = vmax.f32 %v2020, 0.0
        %v2277 = vmax.f32 %v2021, 0.0
        %v2278 = vmax.f32 %v2022, 0.0
        %v2279 = vmax.f32 %v2023, 0.0
        %v2280 = vmax.f32 %v2024, 0.0
        %v2281 = vmax.f32 %v2025, 0.0
        %v2282 = vmax.f32 %v2026, 0.0
        %v2283 = vmax.f32 %v2027, 0.0
        %v2284 = vmax.f32 %v2028, 0.0
        %v2285 = vmax.f32 %v2029, 0.0
        %v2286 = vmax.f32 %v2030, 0.0
        %v2287 = vmax.f32 %v2031, 0.0
        %v2288 = vmax.f32 %v2032, 0.0
        %v2289 = vmax.f32 %v2033, 0.0
        %v2290 = vmax.f32 %v2034, 0.0
        %v2291 = vmax.f32 %v2035, 0.0
        %v2292 = vmax.f32 %v2036, 0.0
        %v2293 = vmax.f32 %v2037, 0.0
        %v2294 = vmax.f32 %v2038, 0.0
        %v2295 = vmax.f32 %v2039, 0.0
        %v2296 = vmax.f32 %v2040, 0.0
        %v2297 = vmax.f32 %v2041, 0.0
        %v2298 = vmax.f32 %v2042, 0.0
        %v2299 = vmax.f32 %v2043, 0.0
        %v2300 = vmax.f32 %v2044, 0.0
        %v2301 = vmax.f32 %v2045, 0.0
        %v2302 = vmax.f32 %v2046, 0.0
        %v2303 = vmax.f32 %v2047, 0.0
        %v2304 = vmax.f32 %v2048, 0.0
        %v2305 = vmax.f32 %v2049, 0.0
        %v2306 = vmax.f32 %v2050, 0.0
        %v2307 = vmax.f32 %v2051, 0.0
        %v2308 = vmax.f32 %v2052, 0.0
        %v2309 = vmax.f32 %v2053, 0.0
        %v2310 = vmax.f32 %v2054, 0.0
        %v2311 = vpack.c.bf16 %v2056, %v2055
        %v2312 = vpack.c.bf16 %v2058, %v2057
        %v2313 = vpack.c.bf16 %v2060, %v2059
        %v2314 = vpack.c.bf16 %v2062, %v2061
        %v2315 = vpack.c.bf16 %v2064, %v2063
        %v2316 = vpack.c.bf16 %v2066, %v2065
        %v2317 = vpack.c.bf16 %v2068, %v2067
        %v2318 = vpack.c.bf16 %v2070, %v2069
        %v2319 = vpack.c.bf16 %v2072, %v2071
        %v2320 = vpack.c.bf16 %v2074, %v2073
        %v2321 = vpack.c.bf16 %v2076, %v2075
        %v2322 = vpack.c.bf16 %v2078, %v2077
        %v2323 = vpack.c.bf16 %v2080, %v2079
        %v2324 = vpack.c.bf16 %v2082, %v2081
        %v2325 = vpack.c.bf16 %v2084, %v2083
        %v2326 = vpack.c.bf16 %v2086, %v2085
        %v2327 = vpack.c.bf16 %v2088, %v2087
        %v2328 = vpack.c.bf16 %v2090, %v2089
        %v2329 = vpack.c.bf16 %v2092, %v2091
        %v2330 = vpack.c.bf16 %v2094, %v2093
        %v2331 = vpack.c.bf16 %v2096, %v2095
        %v2332 = vpack.c.bf16 %v2098, %v2097
        %v2333 = vpack.c.bf16 %v2100, %v2099
        %v2334 = vpack.c.bf16 %v2102, %v2101
        %v2335 = vpack.c.bf16 %v2104, %v2103
        %v2336 = vpack.c.bf16 %v2106, %v2105
        %v2337 = vpack.c.bf16 %v2108, %v2107
        %v2338 = vpack.c.bf16 %v2110, %v2109
        %v2339 = vpack.c.bf16 %v2112, %v2111
        %v2340 = vpack.c.bf16 %v2114, %v2113
        %v2341 = vpack.c.bf16 %v2116, %v2115
        %v2342 = vpack.c.bf16 %v2118, %v2117
        %v2343 = vpack.c.bf16 %v2120, %v2119
        %v2344 = vpack.c.bf16 %v2122, %v2121
        %v2345 = vpack.c.bf16 %v2124, %v2123
        %v2346 = vpack.c.bf16 %v2126, %v2125
        %v2347 = vpack.c.bf16 %v2128, %v2127
        %v2348 = vpack.c.bf16 %v2130, %v2129
        %v2349 = vpack.c.bf16 %v2132, %v2131
        %v2350 = vpack.c.bf16 %v2134, %v2133
        %v2351 = vpack.c.bf16 %v2136, %v2135
        %v2352 = vpack.c.bf16 %v2138, %v2137
        %v2353 = vpack.c.bf16 %v2140, %v2139
        %v2354 = vpack.c.bf16 %v2142, %v2141
        %v2355 = vpack.c.bf16 %v2144, %v2143
        %v2356 = vpack.c.bf16 %v2146, %v2145
        %v2357 = vpack.c.bf16 %v2148, %v2147
        %v2358 = vpack.c.bf16 %v2150, %v2149
        %v2359 = vpack.c.bf16 %v2152, %v2151
        %v2360 = vpack.c.bf16 %v2154, %v2153
        %v2361 = vpack.c.bf16 %v2156, %v2155
        %v2362 = vpack.c.bf16 %v2158, %v2157
        %v2363 = vpack.c.bf16 %v2160, %v2159
        %v2364 = vpack.c.bf16 %v2162, %v2161
        %v2365 = vpack.c.bf16 %v2164, %v2163
        %v2366 = vpack.c.bf16 %v2166, %v2165
        %v2367 = vpack.c.bf16 %v2168, %v2167
        %v2368 = vpack.c.bf16 %v2170, %v2169
        %v2369 = vpack.c.bf16 %v2172, %v2171
        %v2370 = vpack.c.bf16 %v2174, %v2173
        %v2371 = vpack.c.bf16 %v2176, %v2175
        %v2372 = vpack.c.bf16 %v2178, %v2177
        %v2373 = vpack.c.bf16 %v2180, %v2179
        %v2374 = vpack.c.bf16 %v2182, %v2181
        %v2375 = vpack.c.bf16 %v2184, %v2183
        %v2376 = vpack.c.bf16 %v2186, %v2185
        %v2377 = vpack.c.bf16 %v2188, %v2187
        %v2378 = vpack.c.bf16 %v2190, %v2189
        %v2379 = vpack.c.bf16 %v2192, %v2191
        %v2380 = vpack.c.bf16 %v2194, %v2193
        %v2381 = vpack.c.bf16 %v2196, %v2195
        %v2382 = vpack.c.bf16 %v2198, %v2197
        %v2383 = vpack.c.bf16 %v2200, %v2199
        %v2384 = vpack.c.bf16 %v2202, %v2201
        %v2385 = vpack.c.bf16 %v2204, %v2203
        %v2386 = vpack.c.bf16 %v2206, %v2205
        %v2387 = vpack.c.bf16 %v2208, %v2207
        %v2388 = vpack.c.bf16 %v2210, %v2209
        %v2389 = vpack.c.bf16 %v2212, %v2211
        %v2390 = vpack.c.bf16 %v2214, %v2213
        %v2391 = vpack.c.bf16 %v2216, %v2215
        %v2392 = vpack.c.bf16 %v2218, %v2217
        %v2393 = vpack.c.bf16 %v2220, %v2219
        %v2394 = vpack.c.bf16 %v2222, %v2221
        %v2395 = vpack.c.bf16 %v2224, %v2223
        %v2396 = vpack.c.bf16 %v2226, %v2225
        %v2397 = vpack.c.bf16 %v2228, %v2227
        %v2398 = vpack.c.bf16 %v2230, %v2229
        %v2399 = vpack.c.bf16 %v2232, %v2231
        %v2400 = vpack.c.bf16 %v2234, %v2233
        %v2401 = vpack.c.bf16 %v2236, %v2235
        %v2402 = vpack.c.bf16 %v2238, %v2237
        %v2403 = vpack.c.bf16 %v2240, %v2239
        %v2404 = vpack.c.bf16 %v2242, %v2241
        %v2405 = vpack.c.bf16 %v2244, %v2243
        %v2406 = vpack.c.bf16 %v2246, %v2245
        %v2407 = vpack.c.bf16 %v2248, %v2247
        %v2408 = vpack.c.bf16 %v2250, %v2249
        %v2409 = vpack.c.bf16 %v2252, %v2251
        %v2410 = vpack.c.bf16 %v2254, %v2253
        %v2411 = vpack.c.bf16 %v2256, %v2255
        %v2412 = vpack.c.bf16 %v2258, %v2257
        %v2413 = vpack.c.bf16 %v2260, %v2259
        %v2414 = vpack.c.bf16 %v2262, %v2261
        %v2415 = vpack.c.bf16 %v2264, %v2263
        %v2416 = vpack.c.bf16 %v2266, %v2265
        %v2417 = vpack.c.bf16 %v2268, %v2267
        %v2418 = vpack.c.bf16 %v2270, %v2269
        %v2419 = vpack.c.bf16 %v2272, %v2271
        %v2420 = vpack.c.bf16 %v2274, %v2273
        %v2421 = vpack.c.bf16 %v2276, %v2275
        %v2422 = vpack.c.bf16 %v2278, %v2277
        %v2423 = vpack.c.bf16 %v2280, %v2279
        %v2424 = vpack.c.bf16 %v2282, %v2281
        %v2425 = vpack.c.bf16 %v2284, %v2283
        %v2426 = vpack.c.bf16 %v2286, %v2285
        %v2427 = vpack.c.bf16 %v2288, %v2287
        %v2428 = vpack.c.bf16 %v2290, %v2289
        %v2429 = vpack.c.bf16 %v2292, %v2291
        %v2430 = vpack.c.bf16 %v2294, %v2293
        %v2431 = vpack.c.bf16 %v2296, %v2295
        %v2432 = vpack.c.bf16 %v2298, %v2297
        %v2433 = vpack.c.bf16 %v2300, %v2299
        %v2434 = vpack.c.bf16 %v2302, %v2301
        %v2435 = vpack.c.bf16 %v2304, %v2303
        %v2436 = vpack.c.bf16 %v2306, %v2305
        %v2437 = vpack.c.bf16 %v2308, %v2307
        %v2438 = vpack.c.bf16 %v2310, %v2309
        %v2567 = vunpack.c.l.b16 %v2311
        %v2568 = vunpack.c.h.b16 %v2311
        %v2569 = vunpack.c.l.b16 %v2312
        %v2570 = vunpack.c.h.b16 %v2312
        %v2571 = vunpack.c.l.b16 %v2313
        %v2572 = vunpack.c.h.b16 %v2313
        %v2573 = vunpack.c.l.b16 %v2314
        %v2574 = vunpack.c.h.b16 %v2314
        %v2575 = vunpack.c.l.b16 %v2315
        %v2576 = vunpack.c.h.b16 %v2315
        %v2577 = vunpack.c.l.b16 %v2316
        %v2578 = vunpack.c.h.b16 %v2316
        %v2579 = vunpack.c.l.b16 %v2317
        %v2580 = vunpack.c.h.b16 %v2317
        %v2581 = vunpack.c.l.b16 %v2318
        %v2582 = vunpack.c.h.b16 %v2318
        %v2583 = vunpack.c.l.b16 %v2319
        %v2584 = vunpack.c.h.b16 %v2319
        %v2585 = vunpack.c.l.b16 %v2320
        %v2586 = vunpack.c.h.b16 %v2320
        %v2587 = vunpack.c.l.b16 %v2321
        %v2588 = vunpack.c.h.b16 %v2321
        %v2589 = vunpack.c.l.b16 %v2322
        %v2590 = vunpack.c.h.b16 %v2322
        %v2591 = vunpack.c.l.b16 %v2323
        %v2592 = vunpack.c.h.b16 %v2323
        %v2593 = vunpack.c.l.b16 %v2324
        %v2594 = vunpack.c.h.b16 %v2324
        %v2595 = vunpack.c.l.b16 %v2325
        %v2596 = vunpack.c.h.b16 %v2325
        %v2597 = vunpack.c.l.b16 %v2326
        %v2598 = vunpack.c.h.b16 %v2326
        %v2599 = vunpack.c.l.b16 %v2327
        %v2600 = vunpack.c.h.b16 %v2327
        %v2601 = vunpack.c.l.b16 %v2328
        %v2602 = vunpack.c.h.b16 %v2328
        %v2603 = vunpack.c.l.b16 %v2329
        %v2604 = vunpack.c.h.b16 %v2329
        %v2605 = vunpack.c.l.b16 %v2330
        %v2606 = vunpack.c.h.b16 %v2330
        %v2607 = vunpack.c.l.b16 %v2331
        %v2608 = vunpack.c.h.b16 %v2331
        %v2609 = vunpack.c.l.b16 %v2332
        %v2610 = vunpack.c.h.b16 %v2332
        %v2611 = vunpack.c.l.b16 %v2333
        %v2612 = vunpack.c.h.b16 %v2333
        %v2613 = vunpack.c.l.b16 %v2334
        %v2614 = vunpack.c.h.b16 %v2334
        %v2615 = vunpack.c.l.b16 %v2335
        %v2616 = vunpack.c.h.b16 %v2335
        %v2617 = vunpack.c.l.b16 %v2336
        %v2618 = vunpack.c.h.b16 %v2336
        %v2619 = vunpack.c.l.b16 %v2337
        %v2620 = vunpack.c.h.b16 %v2337
        %v2621 = vunpack.c.l.b16 %v2338
        %v2622 = vunpack.c.h.b16 %v2338
        %v2623 = vunpack.c.l.b16 %v2339
        %v2624 = vunpack.c.h.b16 %v2339
        %v2625 = vunpack.c.l.b16 %v2340
        %v2626 = vunpack.c.h.b16 %v2340
        %v2627 = vunpack.c.l.b16 %v2341
        %v2628 = vunpack.c.h.b16 %v2341
        %v2629 = vunpack.c.l.b16 %v2342
        %v2630 = vunpack.c.h.b16 %v2342
        %v2631 = vunpack.c.l.b16 %v2343
        %v2632 = vunpack.c.h.b16 %v2343
        %v2633 = vunpack.c.l.b16 %v2344
        %v2634 = vunpack.c.h.b16 %v2344
        %v2635 = vunpack.c.l.b16 %v2345
        %v2636 = vunpack.c.h.b16 %v2345
        %v2637 = vunpack.c.l.b16 %v2346
        %v2638 = vunpack.c.h.b16 %v2346
        %v2639 = vunpack.c.l.b16 %v2347
        %v2640 = vunpack.c.h.b16 %v2347
        %v2641 = vunpack.c.l.b16 %v2348
        %v2642 = vunpack.c.h.b16 %v2348
        %v2643 = vunpack.c.l.b16 %v2349
        %v2644 = vunpack.c.h.b16 %v2349
        %v2645 = vunpack.c.l.b16 %v2350
        %v2646 = vunpack.c.h.b16 %v2350
        %v2647 = vunpack.c.l.b16 %v2351
        %v2648 = vunpack.c.h.b16 %v2351
        %v2649 = vunpack.c.l.b16 %v2352
        %v2650 = vunpack.c.h.b16 %v2352
        %v2651 = vunpack.c.l.b16 %v2353
        %v2652 = vunpack.c.h.b16 %v2353
        %v2653 = vunpack.c.l.b16 %v2354
        %v2654 = vunpack.c.h.b16 %v2354
        %v2655 = vunpack.c.l.b16 %v2355
        %v2656 = vunpack.c.h.b16 %v2355
        %v2657 = vunpack.c.l.b16 %v2356
        %v2658 = vunpack.c.h.b16 %v2356
        %v2659 = vunpack.c.l.b16 %v2357
        %v2660 = vunpack.c.h.b16 %v2357
        %v2661 = vunpack.c.l.b16 %v2358
        %v2662 = vunpack.c.h.b16 %v2358
        %v2663 = vunpack.c.l.b16 %v2359
        %v2664 = vunpack.c.h.b16 %v2359
        %v2665 = vunpack.c.l.b16 %v2360
        %v2666 = vunpack.c.h.b16 %v2360
        %v2667 = vunpack.c.l.b16 %v2361
        %v2668 = vunpack.c.h.b16 %v2361
        %v2669 = vunpack.c.l.b16 %v2362
        %v2670 = vunpack.c.h.b16 %v2362
        %v2671 = vunpack.c.l.b16 %v2363
        %v2672 = vunpack.c.h.b16 %v2363
        %v2673 = vunpack.c.l.b16 %v2364
        %v2674 = vunpack.c.h.b16 %v2364
        %v2675 = vunpack.c.l.b16 %v2365
        %v2676 = vunpack.c.h.b16 %v2365
        %v2677 = vunpack.c.l.b16 %v2366
        %v2678 = vunpack.c.h.b16 %v2366
        %v2679 = vunpack.c.l.b16 %v2367
        %v2680 = vunpack.c.h.b16 %v2367
        %v2681 = vunpack.c.l.b16 %v2368
        %v2682 = vunpack.c.h.b16 %v2368
        %v2683 = vunpack.c.l.b16 %v2369
        %v2684 = vunpack.c.h.b16 %v2369
        %v2685 = vunpack.c.l.b16 %v2370
        %v2686 = vunpack.c.h.b16 %v2370
        %v2687 = vunpack.c.l.b16 %v2371
        %v2688 = vunpack.c.h.b16 %v2371
        %v2689 = vunpack.c.l.b16 %v2372
        %v2690 = vunpack.c.h.b16 %v2372
        %v2691 = vunpack.c.l.b16 %v2373
        %v2692 = vunpack.c.h.b16 %v2373
        %v2693 = vunpack.c.l.b16 %v2374
        %v2694 = vunpack.c.h.b16 %v2374
        %v2695 = vunpack.c.l.b16 %v2375
        %v2696 = vunpack.c.h.b16 %v2375
        %v2697 = vunpack.c.l.b16 %v2376
        %v2698 = vunpack.c.h.b16 %v2376
        %v2699 = vunpack.c.l.b16 %v2377
        %v2700 = vunpack.c.h.b16 %v2377
        %v2701 = vunpack.c.l.b16 %v2378
        %v2702 = vunpack.c.h.b16 %v2378
        %v2703 = vunpack.c.l.b16 %v2379
        %v2704 = vunpack.c.h.b16 %v2379
        %v2705 = vunpack.c.l.b16 %v2380
        %v2706 = vunpack.c.h.b16 %v2380
        %v2707 = vunpack.c.l.b16 %v2381
        %v2708 = vunpack.c.h.b16 %v2381
        %v2709 = vunpack.c.l.b16 %v2382
        %v2710 = vunpack.c.h.b16 %v2382
        %v2711 = vunpack.c.l.b16 %v2383
        %v2712 = vunpack.c.h.b16 %v2383
        %v2713 = vunpack.c.l.b16 %v2384
        %v2714 = vunpack.c.h.b16 %v2384
        %v2715 = vunpack.c.l.b16 %v2385
        %v2716 = vunpack.c.h.b16 %v2385
        %v2717 = vunpack.c.l.b16 %v2386
        %v2718 = vunpack.c.h.b16 %v2386
        %v2719 = vunpack.c.l.b16 %v2387
        %v2720 = vunpack.c.h.b16 %v2387
        %v2721 = vunpack.c.l.b16 %v2388
        %v2722 = vunpack.c.h.b16 %v2388
        %v2723 = vunpack.c.l.b16 %v2389
        %v2724 = vunpack.c.h.b16 %v2389
        %v2725 = vunpack.c.l.b16 %v2390
        %v2726 = vunpack.c.h.b16 %v2390
        %v2727 = vunpack.c.l.b16 %v2391
        %v2728 = vunpack.c.h.b16 %v2391
        %v2729 = vunpack.c.l.b16 %v2392
        %v2730 = vunpack.c.h.b16 %v2392
        %v2731 = vunpack.c.l.b16 %v2393
        %v2732 = vunpack.c.h.b16 %v2393
        %v2733 = vunpack.c.l.b16 %v2394
        %v2734 = vunpack.c.h.b16 %v2394
        %v2735 = vunpack.c.l.b16 %v2395
        %v2736 = vunpack.c.h.b16 %v2395
        %v2737 = vunpack.c.l.b16 %v2396
        %v2738 = vunpack.c.h.b16 %v2396
        %v2739 = vunpack.c.l.b16 %v2397
        %v2740 = vunpack.c.h.b16 %v2397
        %v2741 = vunpack.c.l.b16 %v2398
        %v2742 = vunpack.c.h.b16 %v2398
        %v2743 = vunpack.c.l.b16 %v2399
        %v2744 = vunpack.c.h.b16 %v2399
        %v2745 = vunpack.c.l.b16 %v2400
        %v2746 = vunpack.c.h.b16 %v2400
        %v2747 = vunpack.c.l.b16 %v2401
        %v2748 = vunpack.c.h.b16 %v2401
        %v2749 = vunpack.c.l.b16 %v2402
        %v2750 = vunpack.c.h.b16 %v2402
        %v2751 = vunpack.c.l.b16 %v2403
        %v2752 = vunpack.c.h.b16 %v2403
        %v2753 = vunpack.c.l.b16 %v2404
        %v2754 = vunpack.c.h.b16 %v2404
        %v2755 = vunpack.c.l.b16 %v2405
        %v2756 = vunpack.c.h.b16 %v2405
        %v2757 = vunpack.c.l.b16 %v2406
        %v2758 = vunpack.c.h.b16 %v2406
        %v2759 = vunpack.c.l.b16 %v2407
        %v2760 = vunpack.c.h.b16 %v2407
        %v2761 = vunpack.c.l.b16 %v2408
        %v2762 = vunpack.c.h.b16 %v2408
        %v2763 = vunpack.c.l.b16 %v2409
        %v2764 = vunpack.c.h.b16 %v2409
        %v2765 = vunpack.c.l.b16 %v2410
        %v2766 = vunpack.c.h.b16 %v2410
        %v2767 = vunpack.c.l.b16 %v2411
        %v2768 = vunpack.c.h.b16 %v2411
        %v2769 = vunpack.c.l.b16 %v2412
        %v2770 = vunpack.c.h.b16 %v2412
        %v2771 = vunpack.c.l.b16 %v2413
        %v2772 = vunpack.c.h.b16 %v2413
        %v2773 = vunpack.c.l.b16 %v2414
        %v2774 = vunpack.c.h.b16 %v2414
        %v2775 = vunpack.c.l.b16 %v2415
        %v2776 = vunpack.c.h.b16 %v2415
        %v2777 = vunpack.c.l.b16 %v2416
        %v2778 = vunpack.c.h.b16 %v2416
        %v2779 = vunpack.c.l.b16 %v2417
        %v2780 = vunpack.c.h.b16 %v2417
        %v2781 = vunpack.c.l.b16 %v2418
        %v2782 = vunpack.c.h.b16 %v2418
        %v2783 = vunpack.c.l.b16 %v2419
        %v2784 = vunpack.c.h.b16 %v2419
        %v2785 = vunpack.c.l.b16 %v2420
        %v2786 = vunpack.c.h.b16 %v2420
        %v2787 = vunpack.c.l.b16 %v2421
        %v2788 = vunpack.c.h.b16 %v2421
        %v2789 = vunpack.c.l.b16 %v2422
        %v2790 = vunpack.c.h.b16 %v2422
        %v2791 = vunpack.c.l.b16 %v2423
        %v2792 = vunpack.c.h.b16 %v2423
        %v2793 = vunpack.c.l.b16 %v2424
        %v2794 = vunpack.c.h.b16 %v2424
        %v2795 = vunpack.c.l.b16 %v2425
        %v2796 = vunpack.c.h.b16 %v2425
        %v2797 = vunpack.c.l.b16 %v2426
        %v2798 = vunpack.c.h.b16 %v2426
        %v2799 = vunpack.c.l.b16 %v2427
        %v2800 = vunpack.c.h.b16 %v2427
        %v2801 = vunpack.c.l.b16 %v2428
        %v2802 = vunpack.c.h.b16 %v2428
        %v2803 = vunpack.c.l.b16 %v2429
        %v2804 = vunpack.c.h.b16 %v2429
        %v2805 = vunpack.c.l.b16 %v2430
        %v2806 = vunpack.c.h.b16 %v2430
        %v2807 = vunpack.c.l.b16 %v2431
        %v2808 = vunpack.c.h.b16 %v2431
        %v2809 = vunpack.c.l.b16 %v2432
        %v2810 = vunpack.c.h.b16 %v2432
        %v2811 = vunpack.c.l.b16 %v2433
        %v2812 = vunpack.c.h.b16 %v2433
        %v2813 = vunpack.c.l.b16 %v2434
        %v2814 = vunpack.c.h.b16 %v2434
        %v2815 = vunpack.c.l.b16 %v2435
        %v2816 = vunpack.c.h.b16 %v2435
        %v2817 = vunpack.c.l.b16 %v2436
        %v2818 = vunpack.c.h.b16 %v2436
        %v2819 = vunpack.c.l.b16 %v2437
        %v2820 = vunpack.c.h.b16 %v2437
        %v2821 = vunpack.c.l.b16 %v2438
        %v2822 = vunpack.c.h.b16 %v2438
        %v2823 = vpack.c.b16 %v2567, %v2567
        %v2824 = vpack.c.b16 %v2568, %v2568
        %v2825 = vpack.c.b16 %v2569, %v2569
        %v2826 = vpack.c.b16 %v2570, %v2570
        %v2827 = vpack.c.b16 %v2571, %v2571
        %v2828 = vpack.c.b16 %v2572, %v2572
        %v2829 = vpack.c.b16 %v2573, %v2573
        %v2830 = vpack.c.b16 %v2574, %v2574
        %v2831 = vpack.c.b16 %v2575, %v2575
        %v2832 = vpack.c.b16 %v2576, %v2576
        %v2833 = vpack.c.b16 %v2577, %v2577
        %v2834 = vpack.c.b16 %v2578, %v2578
        %v2835 = vpack.c.b16 %v2579, %v2579
        %v2836 = vpack.c.b16 %v2580, %v2580
        %v2837 = vpack.c.b16 %v2581, %v2581
        %v2838 = vpack.c.b16 %v2582, %v2582
        %v2839 = vpack.c.b16 %v2583, %v2583
        %v2840 = vpack.c.b16 %v2584, %v2584
        %v2841 = vpack.c.b16 %v2585, %v2585
        %v2842 = vpack.c.b16 %v2586, %v2586
        %v2843 = vpack.c.b16 %v2587, %v2587
        %v2844 = vpack.c.b16 %v2588, %v2588
        %v2845 = vpack.c.b16 %v2589, %v2589
        %v2846 = vpack.c.b16 %v2590, %v2590
        %v2847 = vpack.c.b16 %v2591, %v2591
        %v2848 = vpack.c.b16 %v2592, %v2592
        %v2849 = vpack.c.b16 %v2593, %v2593
        %v2850 = vpack.c.b16 %v2594, %v2594
        %v2851 = vpack.c.b16 %v2595, %v2595
        %v2852 = vpack.c.b16 %v2596, %v2596
        %v2853 = vpack.c.b16 %v2597, %v2597
        %v2854 = vpack.c.b16 %v2598, %v2598
        %v2855 = vpack.c.b16 %v2599, %v2599
        %v2856 = vpack.c.b16 %v2600, %v2600
        %v2857 = vpack.c.b16 %v2601, %v2601
        %v2858 = vpack.c.b16 %v2602, %v2602
        %v2859 = vpack.c.b16 %v2603, %v2603
        %v2860 = vpack.c.b16 %v2604, %v2604
        %v2861 = vpack.c.b16 %v2605, %v2605
        %v2862 = vpack.c.b16 %v2606, %v2606
        %v2863 = vpack.c.b16 %v2607, %v2607
        %v2864 = vpack.c.b16 %v2608, %v2608
        %v2865 = vpack.c.b16 %v2609, %v2609
        %v2866 = vpack.c.b16 %v2610, %v2610
        %v2867 = vpack.c.b16 %v2611, %v2611
        %v2868 = vpack.c.b16 %v2612, %v2612
        %v2869 = vpack.c.b16 %v2613, %v2613
        %v2870 = vpack.c.b16 %v2614, %v2614
        %v2871 = vpack.c.b16 %v2615, %v2615
        %v2872 = vpack.c.b16 %v2616, %v2616
        %v2873 = vpack.c.b16 %v2617, %v2617
        %v2874 = vpack.c.b16 %v2618, %v2618
        %v2875 = vpack.c.b16 %v2619, %v2619
        %v2876 = vpack.c.b16 %v2620, %v2620
        %v2877 = vpack.c.b16 %v2621, %v2621
        %v2878 = vpack.c.b16 %v2622, %v2622
        %v2879 = vpack.c.b16 %v2623, %v2623
        %v2880 = vpack.c.b16 %v2624, %v2624
        %v2881 = vpack.c.b16 %v2625, %v2625
        %v2882 = vpack.c.b16 %v2626, %v2626
        %v2883 = vpack.c.b16 %v2627, %v2627
        %v2884 = vpack.c.b16 %v2628, %v2628
        %v2885 = vpack.c.b16 %v2629, %v2629
        %v2886 = vpack.c.b16 %v2630, %v2630
        %v2887 = vpack.c.b16 %v2631, %v2631
        %v2888 = vpack.c.b16 %v2632, %v2632
        %v2889 = vpack.c.b16 %v2633, %v2633
        %v2890 = vpack.c.b16 %v2634, %v2634
        %v2891 = vpack.c.b16 %v2635, %v2635
        %v2892 = vpack.c.b16 %v2636, %v2636
        %v2893 = vpack.c.b16 %v2637, %v2637
        %v2894 = vpack.c.b16 %v2638, %v2638
        %v2895 = vpack.c.b16 %v2639, %v2639
        %v2896 = vpack.c.b16 %v2640, %v2640
        %v2897 = vpack.c.b16 %v2641, %v2641
        %v2898 = vpack.c.b16 %v2642, %v2642
        %v2899 = vpack.c.b16 %v2643, %v2643
        %v2900 = vpack.c.b16 %v2644, %v2644
        %v2901 = vpack.c.b16 %v2645, %v2645
        %v2902 = vpack.c.b16 %v2646, %v2646
        %v2903 = vpack.c.b16 %v2647, %v2647
        %v2904 = vpack.c.b16 %v2648, %v2648
        %v2905 = vpack.c.b16 %v2649, %v2649
        %v2906 = vpack.c.b16 %v2650, %v2650
        %v2907 = vpack.c.b16 %v2651, %v2651
        %v2908 = vpack.c.b16 %v2652, %v2652
        %v2909 = vpack.c.b16 %v2653, %v2653
        %v2910 = vpack.c.b16 %v2654, %v2654
        %v2911 = vpack.c.b16 %v2655, %v2655
        %v2912 = vpack.c.b16 %v2656, %v2656
        %v2913 = vpack.c.b16 %v2657, %v2657
        %v2914 = vpack.c.b16 %v2658, %v2658
        %v2915 = vpack.c.b16 %v2659, %v2659
        %v2916 = vpack.c.b16 %v2660, %v2660
        %v2917 = vpack.c.b16 %v2661, %v2661
        %v2918 = vpack.c.b16 %v2662, %v2662
        %v2919 = vpack.c.b16 %v2663, %v2663
        %v2920 = vpack.c.b16 %v2664, %v2664
        %v2921 = vpack.c.b16 %v2665, %v2665
        %v2922 = vpack.c.b16 %v2666, %v2666
        %v2923 = vpack.c.b16 %v2667, %v2667
        %v2924 = vpack.c.b16 %v2668, %v2668
        %v2925 = vpack.c.b16 %v2669, %v2669
        %v2926 = vpack.c.b16 %v2670, %v2670
        %v2927 = vpack.c.b16 %v2671, %v2671
        %v2928 = vpack.c.b16 %v2672, %v2672
        %v2929 = vpack.c.b16 %v2673, %v2673
        %v2930 = vpack.c.b16 %v2674, %v2674
        %v2931 = vpack.c.b16 %v2675, %v2675
        %v2932 = vpack.c.b16 %v2676, %v2676
        %v2933 = vpack.c.b16 %v2677, %v2677
        %v2934 = vpack.c.b16 %v2678, %v2678
        %v2935 = vpack.c.b16 %v2679, %v2679
        %v2936 = vpack.c.b16 %v2680, %v2680
        %v2937 = vpack.c.b16 %v2681, %v2681
        %v2938 = vpack.c.b16 %v2682, %v2682
        %v2939 = vpack.c.b16 %v2683, %v2683
        %v2940 = vpack.c.b16 %v2684, %v2684
        %v2941 = vpack.c.b16 %v2685, %v2685
        %v2942 = vpack.c.b16 %v2686, %v2686
        %v2943 = vpack.c.b16 %v2687, %v2687
        %v2944 = vpack.c.b16 %v2688, %v2688
        %v2945 = vpack.c.b16 %v2689, %v2689
        %v2946 = vpack.c.b16 %v2690, %v2690
        %v2947 = vpack.c.b16 %v2691, %v2691
        %v2948 = vpack.c.b16 %v2692, %v2692
        %v2949 = vpack.c.b16 %v2693, %v2693
        %v2950 = vpack.c.b16 %v2694, %v2694
        %v2951 = vpack.c.b16 %v2695, %v2695
        %v2952 = vpack.c.b16 %v2696, %v2696
        %v2953 = vpack.c.b16 %v2697, %v2697
        %v2954 = vpack.c.b16 %v2698, %v2698
        %v2955 = vpack.c.b16 %v2699, %v2699
        %v2956 = vpack.c.b16 %v2700, %v2700
        %v2957 = vpack.c.b16 %v2701, %v2701
        %v2958 = vpack.c.b16 %v2702, %v2702
        %v2959 = vpack.c.b16 %v2703, %v2703
        %v2960 = vpack.c.b16 %v2704, %v2704
        %v2961 = vpack.c.b16 %v2705, %v2705
        %v2962 = vpack.c.b16 %v2706, %v2706
        %v2963 = vpack.c.b16 %v2707, %v2707
        %v2964 = vpack.c.b16 %v2708, %v2708
        %v2965 = vpack.c.b16 %v2709, %v2709
        %v2966 = vpack.c.b16 %v2710, %v2710
        %v2967 = vpack.c.b16 %v2711, %v2711
        %v2968 = vpack.c.b16 %v2712, %v2712
        %v2969 = vpack.c.b16 %v2713, %v2713
        %v2970 = vpack.c.b16 %v2714, %v2714
        %v2971 = vpack.c.b16 %v2715, %v2715
        %v2972 = vpack.c.b16 %v2716, %v2716
        %v2973 = vpack.c.b16 %v2717, %v2717
        %v2974 = vpack.c.b16 %v2718, %v2718
        %v2975 = vpack.c.b16 %v2719, %v2719
        %v2976 = vpack.c.b16 %v2720, %v2720
        %v2977 = vpack.c.b16 %v2721, %v2721
        %v2978 = vpack.c.b16 %v2722, %v2722
        %v2979 = vpack.c.b16 %v2723, %v2723
        %v2980 = vpack.c.b16 %v2724, %v2724
        %v2981 = vpack.c.b16 %v2725, %v2725
        %v2982 = vpack.c.b16 %v2726, %v2726
        %v2983 = vpack.c.b16 %v2727, %v2727
        %v2984 = vpack.c.b16 %v2728, %v2728
        %v2985 = vpack.c.b16 %v2729, %v2729
        %v2986 = vpack.c.b16 %v2730, %v2730
        %v2987 = vpack.c.b16 %v2731, %v2731
        %v2988 = vpack.c.b16 %v2732, %v2732
        %v2989 = vpack.c.b16 %v2733, %v2733
        %v2990 = vpack.c.b16 %v2734, %v2734
        %v2991 = vpack.c.b16 %v2735, %v2735
        %v2992 = vpack.c.b16 %v2736, %v2736
        %v2993 = vpack.c.b16 %v2737, %v2737
        %v2994 = vpack.c.b16 %v2738, %v2738
        %v2995 = vpack.c.b16 %v2739, %v2739
        %v2996 = vpack.c.b16 %v2740, %v2740
        %v2997 = vpack.c.b16 %v2741, %v2741
        %v2998 = vpack.c.b16 %v2742, %v2742
        %v2999 = vpack.c.b16 %v2743, %v2743
        %v3000 = vpack.c.b16 %v2744, %v2744
        %v3001 = vpack.c.b16 %v2745, %v2745
        %v3002 = vpack.c.b16 %v2746, %v2746
        %v3003 = vpack.c.b16 %v2747, %v2747
        %v3004 = vpack.c.b16 %v2748, %v2748
        %v3005 = vpack.c.b16 %v2749, %v2749
        %v3006 = vpack.c.b16 %v2750, %v2750
        %v3007 = vpack.c.b16 %v2751, %v2751
        %v3008 = vpack.c.b16 %v2752, %v2752
        %v3009 = vpack.c.b16 %v2753, %v2753
        %v3010 = vpack.c.b16 %v2754, %v2754
        %v3011 = vpack.c.b16 %v2755, %v2755
        %v3012 = vpack.c.b16 %v2756, %v2756
        %v3013 = vpack.c.b16 %v2757, %v2757
        %v3014 = vpack.c.b16 %v2758, %v2758
        %v3015 = vpack.c.b16 %v2759, %v2759
        %v3016 = vpack.c.b16 %v2760, %v2760
        %v3017 = vpack.c.b16 %v2761, %v2761
        %v3018 = vpack.c.b16 %v2762, %v2762
        %v3019 = vpack.c.b16 %v2763, %v2763
        %v3020 = vpack.c.b16 %v2764, %v2764
        %v3021 = vpack.c.b16 %v2765, %v2765
        %v3022 = vpack.c.b16 %v2766, %v2766
        %v3023 = vpack.c.b16 %v2767, %v2767
        %v3024 = vpack.c.b16 %v2768, %v2768
        %v3025 = vpack.c.b16 %v2769, %v2769
        %v3026 = vpack.c.b16 %v2770, %v2770
        %v3027 = vpack.c.b16 %v2771, %v2771
        %v3028 = vpack.c.b16 %v2772, %v2772
        %v3029 = vpack.c.b16 %v2773, %v2773
        %v3030 = vpack.c.b16 %v2774, %v2774
        %v3031 = vpack.c.b16 %v2775, %v2775
        %v3032 = vpack.c.b16 %v2776, %v2776
        %v3033 = vpack.c.b16 %v2777, %v2777
        %v3034 = vpack.c.b16 %v2778, %v2778
        %v3035 = vpack.c.b16 %v2779, %v2779
        %v3036 = vpack.c.b16 %v2780, %v2780
        %v3037 = vpack.c.b16 %v2781, %v2781
        %v3038 = vpack.c.b16 %v2782, %v2782
        %v3039 = vpack.c.b16 %v2783, %v2783
        %v3040 = vpack.c.b16 %v2784, %v2784
        %v3041 = vpack.c.b16 %v2785, %v2785
        %v3042 = vpack.c.b16 %v2786, %v2786
        %v3043 = vpack.c.b16 %v2787, %v2787
        %v3044 = vpack.c.b16 %v2788, %v2788
        %v3045 = vpack.c.b16 %v2789, %v2789
        %v3046 = vpack.c.b16 %v2790, %v2790
        %v3047 = vpack.c.b16 %v2791, %v2791
        %v3048 = vpack.c.b16 %v2792, %v2792
        %v3049 = vpack.c.b16 %v2793, %v2793
        %v3050 = vpack.c.b16 %v2794, %v2794
        %v3051 = vpack.c.b16 %v2795, %v2795
        %v3052 = vpack.c.b16 %v2796, %v2796
        %v3053 = vpack.c.b16 %v2797, %v2797
        %v3054 = vpack.c.b16 %v2798, %v2798
        %v3055 = vpack.c.b16 %v2799, %v2799
        %v3056 = vpack.c.b16 %v2800, %v2800
        %v3057 = vpack.c.b16 %v2801, %v2801
        %v3058 = vpack.c.b16 %v2802, %v2802
        %v3059 = vpack.c.b16 %v2803, %v2803
        %v3060 = vpack.c.b16 %v2804, %v2804
        %v3061 = vpack.c.b16 %v2805, %v2805
        %v3062 = vpack.c.b16 %v2806, %v2806
        %v3063 = vpack.c.b16 %v2807, %v2807
        %v3064 = vpack.c.b16 %v2808, %v2808
        %v3065 = vpack.c.b16 %v2809, %v2809
        %v3066 = vpack.c.b16 %v2810, %v2810
        %v3067 = vpack.c.b16 %v2811, %v2811
        %v3068 = vpack.c.b16 %v2812, %v2812
        %v3069 = vpack.c.b16 %v2813, %v2813
        %v3070 = vpack.c.b16 %v2814, %v2814
        %v3071 = vpack.c.b16 %v2815, %v2815
        %v3072 = vpack.c.b16 %v2816, %v2816
        %v3073 = vpack.c.b16 %v2817, %v2817
        %v3074 = vpack.c.b16 %v2818, %v2818
        %v3075 = vpack.c.b16 %v2819, %v2819
        %v3076 = vpack.c.b16 %v2820, %v2820
        %v3077 = vpack.c.b16 %v2821, %v2821
        %v3078 = vpack.c.b16 %v2822, %v2822
        %vm3335 = vcmask 60416
        %3336 = vst.msk [vmem:[%s4] sm:$0xf] %vm3335, %v2823
        %3337 = vst.msk [vmem:[%s4 + $0x4] sm:$0xf] %vm3335, %v2824
        %3338 = vst.msk [vmem:[%s4 + $0x8] sm:$0xf] %vm3335, %v2825
        %3339 = vst.msk [vmem:[%s4 + $0xc] sm:$0xf] %vm3335, %v2826
        %3340 = vst.msk [vmem:[%s4 + $0x10] sm:$0xf] %vm3335, %v2827
        %3341 = vst.msk [vmem:[%s4 + $0x14] sm:$0xf] %vm3335, %v2828
        %3342 = vst.msk [vmem:[%s4 + $0x18] sm:$0xf] %vm3335, %v2829
        %3343 = vst.msk [vmem:[%s4 + $0x1c] sm:$0xf] %vm3335, %v2830
        %3344 = vst.msk [vmem:[%s4 + $0x20] sm:$0xf] %vm3335, %v2831
        %3345 = vst.msk [vmem:[%s4 + $0x24] sm:$0xf] %vm3335, %v2832
        %3346 = vst.msk [vmem:[%s4 + $0x28] sm:$0xf] %vm3335, %v2833
        %3347 = vst.msk [vmem:[%s4 + $0x2c] sm:$0xf] %vm3335, %v2834
        %3348 = vst.msk [vmem:[%s4 + $0x30] sm:$0xf] %vm3335, %v2835
        %3349 = vst.msk [vmem:[%s4 + $0x34] sm:$0xf] %vm3335, %v2836
        %3350 = vst.msk [vmem:[%s4 + $0x38] sm:$0xf] %vm3335, %v2837
        %3351 = vst.msk [vmem:[%s4 + $0x3c] sm:$0xf] %vm3335, %v2838
        %3352 = vst.msk [vmem:[%s4 + $0x40] sm:$0xf] %vm3335, %v2839
        %3353 = vst.msk [vmem:[%s4 + $0x44] sm:$0xf] %vm3335, %v2840
        %3354 = vst.msk [vmem:[%s4 + $0x48] sm:$0xf] %vm3335, %v2841
        %3355 = vst.msk [vmem:[%s4 + $0x4c] sm:$0xf] %vm3335, %v2842
        %3356 = vst.msk [vmem:[%s4 + $0x50] sm:$0xf] %vm3335, %v2843
        %3357 = vst.msk [vmem:[%s4 + $0x54] sm:$0xf] %vm3335, %v2844
        %3358 = vst.msk [vmem:[%s4 + $0x58] sm:$0xf] %vm3335, %v2845
        %3359 = vst.msk [vmem:[%s4 + $0x5c] sm:$0xf] %vm3335, %v2846
        %3360 = vst.msk [vmem:[%s4 + $0x60] sm:$0xf] %vm3335, %v2847
        %3361 = vst.msk [vmem:[%s4 + $0x64] sm:$0xf] %vm3335, %v2848
        %3362 = vst.msk [vmem:[%s4 + $0x68] sm:$0xf] %vm3335, %v2849
        %3363 = vst.msk [vmem:[%s4 + $0x6c] sm:$0xf] %vm3335, %v2850
        %3364 = vst.msk [vmem:[%s4 + $0x70] sm:$0xf] %vm3335, %v2851
        %3365 = vst.msk [vmem:[%s4 + $0x74] sm:$0xf] %vm3335, %v2852
        %3366 = vst.msk [vmem:[%s4 + $0x78] sm:$0xf] %vm3335, %v2853
        %3367 = vst.msk [vmem:[%s4 + $0x7c] sm:$0xf] %vm3335, %v2854
        %3368 = vst.msk [vmem:[%s4 + $0x80] sm:$0xf] %vm3335, %v2855
        %3369 = vst.msk [vmem:[%s4 + $0x84] sm:$0xf] %vm3335, %v2856
        %3370 = vst.msk [vmem:[%s4 + $0x88] sm:$0xf] %vm3335, %v2857
        %3371 = vst.msk [vmem:[%s4 + $0x8c] sm:$0xf] %vm3335, %v2858
        %3372 = vst.msk [vmem:[%s4 + $0x90] sm:$0xf] %vm3335, %v2859
        %3373 = vst.msk [vmem:[%s4 + $0x94] sm:$0xf] %vm3335, %v2860
        %3374 = vst.msk [vmem:[%s4 + $0x98] sm:$0xf] %vm3335, %v2861
        %3375 = vst.msk [vmem:[%s4 + $0x9c] sm:$0xf] %vm3335, %v2862
        %3376 = vst.msk [vmem:[%s4 + $0xa0] sm:$0xf] %vm3335, %v2863
        %3377 = vst.msk [vmem:[%s4 + $0xa4] sm:$0xf] %vm3335, %v2864
        %3378 = vst.msk [vmem:[%s4 + $0xa8] sm:$0xf] %vm3335, %v2865
        %3379 = vst.msk [vmem:[%s4 + $0xac] sm:$0xf] %vm3335, %v2866
        %3380 = vst.msk [vmem:[%s4 + $0xb0] sm:$0xf] %vm3335, %v2867
        %3381 = vst.msk [vmem:[%s4 + $0xb4] sm:$0xf] %vm3335, %v2868
        %3382 = vst.msk [vmem:[%s4 + $0xb8] sm:$0xf] %vm3335, %v2869
        %3383 = vst.msk [vmem:[%s4 + $0xbc] sm:$0xf] %vm3335, %v2870
        %3384 = vst.msk [vmem:[%s4 + $0xc0] sm:$0xf] %vm3335, %v2871
        %3385 = vst.msk [vmem:[%s4 + $0xc4] sm:$0xf] %vm3335, %v2872
        %3386 = vst.msk [vmem:[%s4 + $0xc8] sm:$0xf] %vm3335, %v2873
        %3387 = vst.msk [vmem:[%s4 + $0xcc] sm:$0xf] %vm3335, %v2874
        %3388 = vst.msk [vmem:[%s4 + $0xd0] sm:$0xf] %vm3335, %v2875
        %3389 = vst.msk [vmem:[%s4 + $0xd4] sm:$0xf] %vm3335, %v2876
        %3390 = vst.msk [vmem:[%s4 + $0xd8] sm:$0xf] %vm3335, %v2877
        %3391 = vst.msk [vmem:[%s4 + $0xdc] sm:$0xf] %vm3335, %v2878
        %3392 = vst.msk [vmem:[%s4 + $0xe0] sm:$0xf] %vm3335, %v2879
        %3393 = vst.msk [vmem:[%s4 + $0xe4] sm:$0xf] %vm3335, %v2880
        %3394 = vst.msk [vmem:[%s4 + $0xe8] sm:$0xf] %vm3335, %v2881
        %3395 = vst.msk [vmem:[%s4 + $0xec] sm:$0xf] %vm3335, %v2882
        %3396 = vst.msk [vmem:[%s4 + $0xf0] sm:$0xf] %vm3335, %v2883
        %3397 = vst.msk [vmem:[%s4 + $0xf4] sm:$0xf] %vm3335, %v2884
        %3398 = vst.msk [vmem:[%s4 + $0xf8] sm:$0xf] %vm3335, %v2885
        %3399 = vst.msk [vmem:[%s4 + $0xfc] sm:$0xf] %vm3335, %v2886
        %3400 = vst.msk [vmem:[%s4 + $0x100] sm:$0xf] %vm3335, %v2887
        %3401 = vst.msk [vmem:[%s4 + $0x104] sm:$0xf] %vm3335, %v2888
        %3402 = vst.msk [vmem:[%s4 + $0x108] sm:$0xf] %vm3335, %v2889
        %3403 = vst.msk [vmem:[%s4 + $0x10c] sm:$0xf] %vm3335, %v2890
        %3404 = vst.msk [vmem:[%s4 + $0x110] sm:$0xf] %vm3335, %v2891
        %3405 = vst.msk [vmem:[%s4 + $0x114] sm:$0xf] %vm3335, %v2892
        %3406 = vst.msk [vmem:[%s4 + $0x118] sm:$0xf] %vm3335, %v2893
        %3407 = vst.msk [vmem:[%s4 + $0x11c] sm:$0xf] %vm3335, %v2894
        %3408 = vst.msk [vmem:[%s4 + $0x120] sm:$0xf] %vm3335, %v2895
        %3409 = vst.msk [vmem:[%s4 + $0x124] sm:$0xf] %vm3335, %v2896
        %3410 = vst.msk [vmem:[%s4 + $0x128] sm:$0xf] %vm3335, %v2897
        %3411 = vst.msk [vmem:[%s4 + $0x12c] sm:$0xf] %vm3335, %v2898
        %3412 = vst.msk [vmem:[%s4 + $0x130] sm:$0xf] %vm3335, %v2899
        %3413 = vst.msk [vmem:[%s4 + $0x134] sm:$0xf] %vm3335, %v2900
        %3414 = vst.msk [vmem:[%s4 + $0x138] sm:$0xf] %vm3335, %v2901
        %3415 = vst.msk [vmem:[%s4 + $0x13c] sm:$0xf] %vm3335, %v2902
        %3416 = vst.msk [vmem:[%s4 + $0x140] sm:$0xf] %vm3335, %v2903
        %3417 = vst.msk [vmem:[%s4 + $0x144] sm:$0xf] %vm3335, %v2904
        %3418 = vst.msk [vmem:[%s4 + $0x148] sm:$0xf] %vm3335, %v2905
        %3419 = vst.msk [vmem:[%s4 + $0x14c] sm:$0xf] %vm3335, %v2906
        %3420 = vst.msk [vmem:[%s4 + $0x150] sm:$0xf] %vm3335, %v2907
        %3421 = vst.msk [vmem:[%s4 + $0x154] sm:$0xf] %vm3335, %v2908
        %3422 = vst.msk [vmem:[%s4 + $0x158] sm:$0xf] %vm3335, %v2909
        %3423 = vst.msk [vmem:[%s4 + $0x15c] sm:$0xf] %vm3335, %v2910
        %3424 = vst.msk [vmem:[%s4 + $0x160] sm:$0xf] %vm3335, %v2911
        %3425 = vst.msk [vmem:[%s4 + $0x164] sm:$0xf] %vm3335, %v2912
        %3426 = vst.msk [vmem:[%s4 + $0x168] sm:$0xf] %vm3335, %v2913
        %3427 = vst.msk [vmem:[%s4 + $0x16c] sm:$0xf] %vm3335, %v2914
        %3428 = vst.msk [vmem:[%s4 + $0x170] sm:$0xf] %vm3335, %v2915
        %3429 = vst.msk [vmem:[%s4 + $0x174] sm:$0xf] %vm3335, %v2916
        %3430 = vst.msk [vmem:[%s4 + $0x178] sm:$0xf] %vm3335, %v2917
        %3431 = vst.msk [vmem:[%s4 + $0x17c] sm:$0xf] %vm3335, %v2918
        %3432 = vst.msk [vmem:[%s4 + $0x180] sm:$0xf] %vm3335, %v2919
        %3433 = vst.msk [vmem:[%s4 + $0x184] sm:$0xf] %vm3335, %v2920
        %3434 = vst.msk [vmem:[%s4 + $0x188] sm:$0xf] %vm3335, %v2921
        %3435 = vst.msk [vmem:[%s4 + $0x18c] sm:$0xf] %vm3335, %v2922
        %3436 = vst.msk [vmem:[%s4 + $0x190] sm:$0xf] %vm3335, %v2923
        %3437 = vst.msk [vmem:[%s4 + $0x194] sm:$0xf] %vm3335, %v2924
        %3438 = vst.msk [vmem:[%s4 + $0x198] sm:$0xf] %vm3335, %v2925
        %3439 = vst.msk [vmem:[%s4 + $0x19c] sm:$0xf] %vm3335, %v2926
        %3440 = vst.msk [vmem:[%s4 + $0x1a0] sm:$0xf] %vm3335, %v2927
        %3441 = vst.msk [vmem:[%s4 + $0x1a4] sm:$0xf] %vm3335, %v2928
        %3442 = vst.msk [vmem:[%s4 + $0x1a8] sm:$0xf] %vm3335, %v2929
        %3443 = vst.msk [vmem:[%s4 + $0x1ac] sm:$0xf] %vm3335, %v2930
        %3444 = vst.msk [vmem:[%s4 + $0x1b0] sm:$0xf] %vm3335, %v2931
        %3445 = vst.msk [vmem:[%s4 + $0x1b4] sm:$0xf] %vm3335, %v2932
        %3446 = vst.msk [vmem:[%s4 + $0x1b8] sm:$0xf] %vm3335, %v2933
        %3447 = vst.msk [vmem:[%s4 + $0x1bc] sm:$0xf] %vm3335, %v2934
        %3448 = vst.msk [vmem:[%s4 + $0x1c0] sm:$0xf] %vm3335, %v2935
        %3449 = vst.msk [vmem:[%s4 + $0x1c4] sm:$0xf] %vm3335, %v2936
        %3450 = vst.msk [vmem:[%s4 + $0x1c8] sm:$0xf] %vm3335, %v2937
        %3451 = vst.msk [vmem:[%s4 + $0x1cc] sm:$0xf] %vm3335, %v2938
        %3452 = vst.msk [vmem:[%s4 + $0x1d0] sm:$0xf] %vm3335, %v2939
        %3453 = vst.msk [vmem:[%s4 + $0x1d4] sm:$0xf] %vm3335, %v2940
        %3454 = vst.msk [vmem:[%s4 + $0x1d8] sm:$0xf] %vm3335, %v2941
        %3455 = vst.msk [vmem:[%s4 + $0x1dc] sm:$0xf] %vm3335, %v2942
        %3456 = vst.msk [vmem:[%s4 + $0x1e0] sm:$0xf] %vm3335, %v2943
        %3457 = vst.msk [vmem:[%s4 + $0x1e4] sm:$0xf] %vm3335, %v2944
        %3458 = vst.msk [vmem:[%s4 + $0x1e8] sm:$0xf] %vm3335, %v2945
        %3459 = vst.msk [vmem:[%s4 + $0x1ec] sm:$0xf] %vm3335, %v2946
        %3460 = vst.msk [vmem:[%s4 + $0x1f0] sm:$0xf] %vm3335, %v2947
        %3461 = vst.msk [vmem:[%s4 + $0x1f4] sm:$0xf] %vm3335, %v2948
        %3462 = vst.msk [vmem:[%s4 + $0x1f8] sm:$0xf] %vm3335, %v2949
        %3463 = vst.msk [vmem:[%s4 + $0x1fc] sm:$0xf] %vm3335, %v2950
        %3464 = vst.msk [vmem:[%s4 + $0x200] sm:$0xf] %vm3335, %v2951
        %3465 = vst.msk [vmem:[%s4 + $0x204] sm:$0xf] %vm3335, %v2952
        %3466 = vst.msk [vmem:[%s4 + $0x208] sm:$0xf] %vm3335, %v2953
        %3467 = vst.msk [vmem:[%s4 + $0x20c] sm:$0xf] %vm3335, %v2954
        %3468 = vst.msk [vmem:[%s4 + $0x210] sm:$0xf] %vm3335, %v2955
        %3469 = vst.msk [vmem:[%s4 + $0x214] sm:$0xf] %vm3335, %v2956
        %3470 = vst.msk [vmem:[%s4 + $0x218] sm:$0xf] %vm3335, %v2957
        %3471 = vst.msk [vmem:[%s4 + $0x21c] sm:$0xf] %vm3335, %v2958
        %3472 = vst.msk [vmem:[%s4 + $0x220] sm:$0xf] %vm3335, %v2959
        %3473 = vst.msk [vmem:[%s4 + $0x224] sm:$0xf] %vm3335, %v2960
        %3474 = vst.msk [vmem:[%s4 + $0x228] sm:$0xf] %vm3335, %v2961
        %3475 = vst.msk [vmem:[%s4 + $0x22c] sm:$0xf] %vm3335, %v2962
        %3476 = vst.msk [vmem:[%s4 + $0x230] sm:$0xf] %vm3335, %v2963
        %3477 = vst.msk [vmem:[%s4 + $0x234] sm:$0xf] %vm3335, %v2964
        %3478 = vst.msk [vmem:[%s4 + $0x238] sm:$0xf] %vm3335, %v2965
        %3479 = vst.msk [vmem:[%s4 + $0x23c] sm:$0xf] %vm3335, %v2966
        %3480 = vst.msk [vmem:[%s4 + $0x240] sm:$0xf] %vm3335, %v2967
        %3481 = vst.msk [vmem:[%s4 + $0x244] sm:$0xf] %vm3335, %v2968
        %3482 = vst.msk [vmem:[%s4 + $0x248] sm:$0xf] %vm3335, %v2969
        %3483 = vst.msk [vmem:[%s4 + $0x24c] sm:$0xf] %vm3335, %v2970
        %3484 = vst.msk [vmem:[%s4 + $0x250] sm:$0xf] %vm3335, %v2971
        %3485 = vst.msk [vmem:[%s4 + $0x254] sm:$0xf] %vm3335, %v2972
        %3486 = vst.msk [vmem:[%s4 + $0x258] sm:$0xf] %vm3335, %v2973
        %3487 = vst.msk [vmem:[%s4 + $0x25c] sm:$0xf] %vm3335, %v2974
        %3488 = vst.msk [vmem:[%s4 + $0x260] sm:$0xf] %vm3335, %v2975
        %3489 = vst.msk [vmem:[%s4 + $0x264] sm:$0xf] %vm3335, %v2976
        %3490 = vst.msk [vmem:[%s4 + $0x268] sm:$0xf] %vm3335, %v2977
        %3491 = vst.msk [vmem:[%s4 + $0x26c] sm:$0xf] %vm3335, %v2978
        %3492 = vst.msk [vmem:[%s4 + $0x270] sm:$0xf] %vm3335, %v2979
        %3493 = vst.msk [vmem:[%s4 + $0x274] sm:$0xf] %vm3335, %v2980
        %3494 = vst.msk [vmem:[%s4 + $0x278] sm:$0xf] %vm3335, %v2981
        %3495 = vst.msk [vmem:[%s4 + $0x27c] sm:$0xf] %vm3335, %v2982
        %3496 = vst.msk [vmem:[%s4 + $0x280] sm:$0xf] %vm3335, %v2983
        %3497 = vst.msk [vmem:[%s4 + $0x284] sm:$0xf] %vm3335, %v2984
        %3498 = vst.msk [vmem:[%s4 + $0x288] sm:$0xf] %vm3335, %v2985
        %3499 = vst.msk [vmem:[%s4 + $0x28c] sm:$0xf] %vm3335, %v2986
        %3500 = vst.msk [vmem:[%s4 + $0x290] sm:$0xf] %vm3335, %v2987
        %3501 = vst.msk [vmem:[%s4 + $0x294] sm:$0xf] %vm3335, %v2988
        %3502 = vst.msk [vmem:[%s4 + $0x298] sm:$0xf] %vm3335, %v2989
        %3503 = vst.msk [vmem:[%s4 + $0x29c] sm:$0xf] %vm3335, %v2990
        %3504 = vst.msk [vmem:[%s4 + $0x2a0] sm:$0xf] %vm3335, %v2991
        %3505 = vst.msk [vmem:[%s4 + $0x2a4] sm:$0xf] %vm3335, %v2992
        %3506 = vst.msk [vmem:[%s4 + $0x2a8] sm:$0xf] %vm3335, %v2993
        %3507 = vst.msk [vmem:[%s4 + $0x2ac] sm:$0xf] %vm3335, %v2994
        %3508 = vst.msk [vmem:[%s4 + $0x2b0] sm:$0xf] %vm3335, %v2995
        %3509 = vst.msk [vmem:[%s4 + $0x2b4] sm:$0xf] %vm3335, %v2996
        %3510 = vst.msk [vmem:[%s4 + $0x2b8] sm:$0xf] %vm3335, %v2997
        %3511 = vst.msk [vmem:[%s4 + $0x2bc] sm:$0xf] %vm3335, %v2998
        %3512 = vst.msk [vmem:[%s4 + $0x2c0] sm:$0xf] %vm3335, %v2999
        %3513 = vst.msk [vmem:[%s4 + $0x2c4] sm:$0xf] %vm3335, %v3000
        %3514 = vst.msk [vmem:[%s4 + $0x2c8] sm:$0xf] %vm3335, %v3001
        %3515 = vst.msk [vmem:[%s4 + $0x2cc] sm:$0xf] %vm3335, %v3002
        %3516 = vst.msk [vmem:[%s4 + $0x2d0] sm:$0xf] %vm3335, %v3003
        %3517 = vst.msk [vmem:[%s4 + $0x2d4] sm:$0xf] %vm3335, %v3004
        %3518 = vst.msk [vmem:[%s4 + $0x2d8] sm:$0xf] %vm3335, %v3005
        %3519 = vst.msk [vmem:[%s4 + $0x2dc] sm:$0xf] %vm3335, %v3006
        %3520 = vst.msk [vmem:[%s4 + $0x2e0] sm:$0xf] %vm3335, %v3007
        %3521 = vst.msk [vmem:[%s4 + $0x2e4] sm:$0xf] %vm3335, %v3008
        %3522 = vst.msk [vmem:[%s4 + $0x2e8] sm:$0xf] %vm3335, %v3009
        %3523 = vst.msk [vmem:[%s4 + $0x2ec] sm:$0xf] %vm3335, %v3010
        %3524 = vst.msk [vmem:[%s4 + $0x2f0] sm:$0xf] %vm3335, %v3011
        %3525 = vst.msk [vmem:[%s4 + $0x2f4] sm:$0xf] %vm3335, %v3012
        %3526 = vst.msk [vmem:[%s4 + $0x2f8] sm:$0xf] %vm3335, %v3013
        %3527 = vst.msk [vmem:[%s4 + $0x2fc] sm:$0xf] %vm3335, %v3014
        %3528 = vst.msk [vmem:[%s4 + $0x300] sm:$0xf] %vm3335, %v3015
        %3529 = vst.msk [vmem:[%s4 + $0x304] sm:$0xf] %vm3335, %v3016
        %3530 = vst.msk [vmem:[%s4 + $0x308] sm:$0xf] %vm3335, %v3017
        %3531 = vst.msk [vmem:[%s4 + $0x30c] sm:$0xf] %vm3335, %v3018
        %3532 = vst.msk [vmem:[%s4 + $0x310] sm:$0xf] %vm3335, %v3019
        %3533 = vst.msk [vmem:[%s4 + $0x314] sm:$0xf] %vm3335, %v3020
        %3534 = vst.msk [vmem:[%s4 + $0x318] sm:$0xf] %vm3335, %v3021
        %3535 = vst.msk [vmem:[%s4 + $0x31c] sm:$0xf] %vm3335, %v3022
        %3536 = vst.msk [vmem:[%s4 + $0x320] sm:$0xf] %vm3335, %v3023
        %3537 = vst.msk [vmem:[%s4 + $0x324] sm:$0xf] %vm3335, %v3024
        %3538 = vst.msk [vmem:[%s4 + $0x328] sm:$0xf] %vm3335, %v3025
        %3539 = vst.msk [vmem:[%s4 + $0x32c] sm:$0xf] %vm3335, %v3026
        %3540 = vst.msk [vmem:[%s4 + $0x330] sm:$0xf] %vm3335, %v3027
        %3541 = vst.msk [vmem:[%s4 + $0x334] sm:$0xf] %vm3335, %v3028
        %3542 = vst.msk [vmem:[%s4 + $0x338] sm:$0xf] %vm3335, %v3029
        %3543 = vst.msk [vmem:[%s4 + $0x33c] sm:$0xf] %vm3335, %v3030
        %3544 = vst.msk [vmem:[%s4 + $0x340] sm:$0xf] %vm3335, %v3031
        %3545 = vst.msk [vmem:[%s4 + $0x344] sm:$0xf] %vm3335, %v3032
        %3546 = vst.msk [vmem:[%s4 + $0x348] sm:$0xf] %vm3335, %v3033
        %3547 = vst.msk [vmem:[%s4 + $0x34c] sm:$0xf] %vm3335, %v3034
        %3548 = vst.msk [vmem:[%s4 + $0x350] sm:$0xf] %vm3335, %v3035
        %3549 = vst.msk [vmem:[%s4 + $0x354] sm:$0xf] %vm3335, %v3036
        %3550 = vst.msk [vmem:[%s4 + $0x358] sm:$0xf] %vm3335, %v3037
        %3551 = vst.msk [vmem:[%s4 + $0x35c] sm:$0xf] %vm3335, %v3038
        %3552 = vst.msk [vmem:[%s4 + $0x360] sm:$0xf] %vm3335, %v3039
        %3553 = vst.msk [vmem:[%s4 + $0x364] sm:$0xf] %vm3335, %v3040
        %3554 = vst.msk [vmem:[%s4 + $0x368] sm:$0xf] %vm3335, %v3041
        %3555 = vst.msk [vmem:[%s4 + $0x36c] sm:$0xf] %vm3335, %v3042
        %3556 = vst.msk [vmem:[%s4 + $0x370] sm:$0xf] %vm3335, %v3043
        %3557 = vst.msk [vmem:[%s4 + $0x374] sm:$0xf] %vm3335, %v3044
        %3558 = vst.msk [vmem:[%s4 + $0x378] sm:$0xf] %vm3335, %v3045
        %3559 = vst.msk [vmem:[%s4 + $0x37c] sm:$0xf] %vm3335, %v3046
        %3560 = vst.msk [vmem:[%s4 + $0x380] sm:$0xf] %vm3335, %v3047
        %3561 = vst.msk [vmem:[%s4 + $0x384] sm:$0xf] %vm3335, %v3048
        %3562 = vst.msk [vmem:[%s4 + $0x388] sm:$0xf] %vm3335, %v3049
        %3563 = vst.msk [vmem:[%s4 + $0x38c] sm:$0xf] %vm3335, %v3050
        %3564 = vst.msk [vmem:[%s4 + $0x390] sm:$0xf] %vm3335, %v3051
        %3565 = vst.msk [vmem:[%s4 + $0x394] sm:$0xf] %vm3335, %v3052
        %3566 = vst.msk [vmem:[%s4 + $0x398] sm:$0xf] %vm3335, %v3053
        %3567 = vst.msk [vmem:[%s4 + $0x39c] sm:$0xf] %vm3335, %v3054
        %3568 = vst.msk [vmem:[%s4 + $0x3a0] sm:$0xf] %vm3335, %v3055
        %3569 = vst.msk [vmem:[%s4 + $0x3a4] sm:$0xf] %vm3335, %v3056
        %3570 = vst.msk [vmem:[%s4 + $0x3a8] sm:$0xf] %vm3335, %v3057
        %3571 = vst.msk [vmem:[%s4 + $0x3ac] sm:$0xf] %vm3335, %v3058
        %3572 = vst.msk [vmem:[%s4 + $0x3b0] sm:$0xf] %vm3335, %v3059
        %3573 = vst.msk [vmem:[%s4 + $0x3b4] sm:$0xf] %vm3335, %v3060
        %3574 = vst.msk [vmem:[%s4 + $0x3b8] sm:$0xf] %vm3335, %v3061
        %3575 = vst.msk [vmem:[%s4 + $0x3bc] sm:$0xf] %vm3335, %v3062
        %3576 = vst.msk [vmem:[%s4 + $0x3c0] sm:$0xf] %vm3335, %v3063
        %3577 = vst.msk [vmem:[%s4 + $0x3c4] sm:$0xf] %vm3335, %v3064
        %3578 = vst.msk [vmem:[%s4 + $0x3c8] sm:$0xf] %vm3335, %v3065
        %3579 = vst.msk [vmem:[%s4 + $0x3cc] sm:$0xf] %vm3335, %v3066
        %3580 = vst.msk [vmem:[%s4 + $0x3d0] sm:$0xf] %vm3335, %v3067
        %3581 = vst.msk [vmem:[%s4 + $0x3d4] sm:$0xf] %vm3335, %v3068
        %3582 = vst.msk [vmem:[%s4 + $0x3d8] sm:$0xf] %vm3335, %v3069
        %3583 = vst.msk [vmem:[%s4 + $0x3dc] sm:$0xf] %vm3335, %v3070
        %3584 = vst.msk [vmem:[%s4 + $0x3e0] sm:$0xf] %vm3335, %v3071
        %3585 = vst.msk [vmem:[%s4 + $0x3e4] sm:$0xf] %vm3335, %v3072
        %3586 = vst.msk [vmem:[%s4 + $0x3e8] sm:$0xf] %vm3335, %v3073
        %3587 = vst.msk [vmem:[%s4 + $0x3ec] sm:$0xf] %vm3335, %v3074
        %3588 = vst.msk [vmem:[%s4 + $0x3f0] sm:$0xf] %vm3335, %v3075
        %3589 = vst.msk [vmem:[%s4 + $0x3f4] sm:$0xf] %vm3335, %v3076
        %3590 = vst.msk [vmem:[%s4 + $0x3f8] sm:$0xf] %vm3335, %v3077
        %3591 = vst.msk [vmem:[%s4 + $0x3fc] sm:$0xf] %vm3335, %v3078
      $region44: #{generator_forward.8} parent=35 // pred_fallthru
        _
      // Predicated region
      $region45: #{generator_forward.8} parent=35 // pred_check
        %p3592 = pneg %p122
      $region46: #{generator_forward.8} parent=35 // pred_check_branch
        %3594 = sbr.rel (%p3592) target = $region48
      $region47: #{generator_forward.8} parent=35 // pred_region
        _
      $region48: #{generator_forward.8} parent=35 // pred_fallthru
        _
      // Predicated region
      $region49: #{generator_forward.8} parent=35 // pred_check
        %p3595 = pneg %p122
      $region50: #{generator_forward.8} parent=35 // pred_check_branch
        %3597 = sbr.rel (%p3595) target = $region52
      $region51: #{generator_forward.8} parent=35 // pred_region
        _
      $region52: #{generator_forward.8} parent=35 // pred_fallthru
        _
    $region36: #{generator_forward.8} parent=5 // pred_fallthru
      _
    %p3598 = scmp.le.s32.totalorder 2, %s10
    // Predicated region
    $region53: #{generator_forward.8} parent=5 // pred_check
      %p3599 = pneg %p3598
    $region54: #{generator_forward.8} parent=5 // pred_check_branch
      %3601 = sbr.rel (%p3599) target = $region56
    $region55: #{generator_forward.8} parent=5 // pred_region
      %s3602 = ssub.s32 %s10, 2
    $region56: #{generator_forward.8} parent=5 // pred_fallthru
      _
  $region6: #{generator_forward.8} parent=0 // loop_footer
    %s14 = sadd.s32 1, %s10
  $region7: #{generator_forward.8} parent=0 // loop_footer_branch
    %9 = sbr.rel target = $region3
  $region8: #{generator_forward.8} parent=0 // loop_exit
    _

// kernel: generator_forward.9
$region0: #{generator_forward.9}
  #allocation0 [shape = 'u32[]', space=smem, size = 0x4, offset = 0x4, fixed_abs, tag = 'smem constant byte address 0x4 - core index']
  #allocation1 [shape = 'u32[144,128]{1,0:T(1,128)}', space=vmem, size = 0x12000, scoped, tag = 'internal scratch']
  %s0 = inlined_call_operand.vmem [shape: bf16[4,32,2048], index: 0, kind: input, shape index: {}]
  %s1 = inlined_call_operand.vmem [shape: bf16[4,3,32], index: 1, kind: input, shape index: {}]
  %s2 = inlined_call_operand.vmem [shape: f32[4,3,2048], index: 2, kind: output, shape index: {}]
  %s3 = sld [smem:[#allocation0]]
  $region41: #{generator_forward.9} parent=0
    _
  %s5 = ssub.s32 1, %s3
  %s6 = scalar_select 0, %s5, %s3
  loop: start=0, step=1, limit=6
  $region2: #{generator_forward.9} parent=0 // loop_pre_header
    _
  $region3: #{generator_forward.9} parent=0 // loop_header
    %s8 = sphi 0, %s12
    %p9 = scmp.ge.s32.totalorder %s8, 6
    %s18 = sphi 0, %s20
    %s21 = sphi 0, %s18
    %s22 = sphi 0, %s21
    %s38 = sphi 0, %s22
    %s44 = sphi 0, %s46
    %s47 = sphi 0, %s44
    %s48 = sphi 0, %s47
    %s64 = sphi 0, %s48
    %s70 = sphi 0, %s72
    %s73 = sphi 0, %s70
    %s74 = sphi 0, %s73
    %s90 = sphi 0, %s74
  $region4: #{generator_forward.9} parent=0 // loop_header_branch
    %11 = sbr.rel (%p9) target = $region8
  $region5: #{generator_forward.9} parent=0 // loop_body
    %s13 = ssub.s32 %s8, 1
    %s14 = ssub.s32 %s8, 2
    %s15 = sadd.s32 %s8, 1
    %s16 = ssub.s32 %s8, %s15
    %p17 = scmp.eq.s32.totalorder %s16, 0
    %s19 = sadd.s32 %s18, 1
    %s20 = scalar_select %p17, %s18, %s19
    %p23 = pneg %p17
    %p24 = scmp.eq.s32.totalorder %s8, 3
    %p25 = por %p23, %p24
    %p26 = scmp.ne.s32.totalorder %s18, %s21
    %p27 = scmp.eq.s32.totalorder %s8, 0
    %p28 = por %p26, %p27
    %p29 = scmp.ne.s32.totalorder %s18, %s21
    %p30 = scmp.eq.s32.totalorder %s13, 3
    %p31 = por %p29, %p30
    %p32 = scmp.ne.s32.totalorder %s21, %s22
    %p33 = scmp.eq.s32.totalorder %s13, 0
    %p34 = por %p32, %p33
    %p35 = scmp.ne.s32.totalorder %s21, %s22
    %p36 = scmp.eq.s32.totalorder %s14, 3
    %p37 = por %p35, %p36
    %p39 = scmp.ne.s32.totalorder %s22, %s38
    %p40 = scmp.eq.s32.totalorder %s14, 0
    %p41 = por %p39, %p40
    %s42 = ssub.s32 %s8, %s15
    %p43 = scmp.eq.s32.totalorder %s42, 0
    %s45 = sadd.s32 %s44, 1
    %s46 = scalar_select %p43, %s44, %s45
    %p49 = pneg %p43
    %p50 = scmp.eq.s32.totalorder %s8, 3
    %p51 = por %p49, %p50
    %p52 = scmp.ne.s32.totalorder %s44, %s47
    %p53 = scmp.eq.s32.totalorder %s8, 0
    %p54 = por %p52, %p53
    %p55 = scmp.ne.s32.totalorder %s44, %s47
    %p56 = scmp.eq.s32.totalorder %s13, 3
    %p57 = por %p55, %p56
    %p58 = scmp.ne.s32.totalorder %s47, %s48
    %p59 = scmp.eq.s32.totalorder %s13, 0
    %p60 = por %p58, %p59
    %p61 = scmp.ne.s32.totalorder %s47, %s48
    %p62 = scmp.eq.s32.totalorder %s14, 3
    %p63 = por %p61, %p62
    %p65 = scmp.ne.s32.totalorder %s48, %s64
    %p66 = scmp.eq.s32.totalorder %s14, 0
    %p67 = por %p65, %p66
    %s68 = ssub.s32 %s8, %s15
    %p69 = scmp.eq.s32.totalorder %s68, 0
    %s71 = sadd.s32 %s70, 1
    %s72 = scalar_select %p69, %s70, %s71
    %p75 = pneg %p69
    %p76 = scmp.eq.s32.totalorder %s8, 3
    %p77 = por %p75, %p76
    %p78 = scmp.ne.s32.totalorder %s70, %s73
    %p79 = scmp.eq.s32.totalorder %s8, 0
    %p80 = por %p78, %p79
    %p81 = scmp.ne.s32.totalorder %s70, %s73
    %p82 = scmp.eq.s32.totalorder %s13, 3
    %p83 = por %p81, %p82
    %p84 = scmp.ne.s32.totalorder %s73, %s74
    %p85 = scmp.eq.s32.totalorder %s13, 0
    %p86 = por %p84, %p85
    %p87 = scmp.ne.s32.totalorder %s73, %s74
    %p88 = scmp.eq.s32.totalorder %s14, 3
    %p89 = por %p87, %p88
    %p91 = scmp.ne.s32.totalorder %s74, %s90
    %p92 = scmp.eq.s32.totalorder %s14, 0
    %p93 = por %p91, %p92
    %p94 = scmp.le.s32.totalorder 1, %s8
    %p95 = scmp.lt.s32.totalorder %s8, 5
    %p96 = pnand %p94, %p95
    %p97 = pneg %p96
    // Predicated region
    $region9: #{generator_forward.9} parent=5 // pred_check
      _
    $region10: #{generator_forward.9} parent=5 // pred_check_branch
      %99 = sbr.rel (%p96) target = $region12
    $region11: #{generator_forward.9} parent=5 // pred_region
      %s100 = ssub.s32 %s8, 1
    $region12: #{generator_forward.9} parent=5 // pred_fallthru
      _
    %p101 = scmp.lt.s32.totalorder %s8, 4
    // Predicated region
    $region13: #{generator_forward.9} parent=5 // pred_check
      %p102 = pneg %p101
    $region14: #{generator_forward.9} parent=5 // pred_check_branch
      %104 = sbr.rel (%p102) target = $region16
    $region15: #{generator_forward.9} parent=5 // pred_region
      // Predicated region
      $region17: #{generator_forward.9} parent=15 // pred_check
        %p105 = pneg %p28
      $region18: #{generator_forward.9} parent=15 // pred_check_branch
        %107 = sbr.rel (%p105) target = $region20
      $region19: #{generator_forward.9} parent=15 // pred_region
        %p108 = scmp.lt.s32.totalorder %s8, 3
        %s109 = scalar_select %p108, %s8, 3
        %s110 = smul.addr %s109, 64
        %s111 = smul.addr %s110, 4
        %s112 = scalar_lea.vmem %s0, %s111
      $region20: #{generator_forward.9} parent=15 // pred_fallthru
        _
      // Predicated region
      $region21: #{generator_forward.9} parent=15 // pred_check
        %p113 = pneg %p54
      $region22: #{generator_forward.9} parent=15 // pred_check_branch
        %115 = sbr.rel (%p113) target = $region24
      $region23: #{generator_forward.9} parent=15 // pred_region
        %p116 = scmp.lt.s32.totalorder %s8, 3
        %s117 = scalar_select %p116, %s8, 3
        %s118 = smul.addr %s117, 2
        %s119 = scalar_lea.vmem %s1, %s118
      $region24: #{generator_forward.9} parent=15 // pred_fallthru
        _
    $region16: #{generator_forward.9} parent=5 // pred_fallthru
      _
    %p120 = scmp.le.s32.totalorder 1, %s8
    %p121 = scmp.lt.s32.totalorder %s8, 5
    %p122 = pnand %p120, %p121
    %p123 = pneg %p122
    // Predicated region
    $region25: #{generator_forward.9} parent=5 // pred_check
      _
    $region26: #{generator_forward.9} parent=5 // pred_check_branch
      %125 = sbr.rel (%p122) target = $region28
    $region27: #{generator_forward.9} parent=5 // pred_region
      %s126 = ssub.s32 %s8, 1
      %p127 = scmp.lt.s32.totalorder %s13, 3
      %s128 = scalar_select %p127, %s13, 3
      %s129 = smul.addr %s128, 64
      %s130 = smul.addr %s129, 4
      %s131 = scalar_lea.vmem %s0, %s130
      %p132 = pneg %p34
      %p133 = pneg %p31
      %p134 = scmp.lt.s32.totalorder %s13, 3
      %s135 = scalar_select %p134, %s13, 3
      %s136 = smul.addr %s135, 2
      %s137 = scalar_lea.vmem %s1, %s136
      %p138 = pneg %p60
      %p139 = pneg %p57
      %p140 = pneg %p86
      %p141 = pneg %p83
      %p142 = scmp.lt.s32.totalorder %s13, 3
      %s143 = scalar_select %p142, %s13, 3
      %s144 = smul.addr %s143, 16
      %s145 = smul.addr %s144, 4
      %s146 = scalar_lea.vmem %s2, %s145
      %p147 = scmp.lt.s32.totalorder %s13, 3
      %s148 = scalar_select %p147, %s13, 3
      %s149 = smul.addr %s148, 64
      %s150 = smul.addr %s149, 4
      %s151 = scalar_lea.vmem %s0, %s150
      %p152 = scmp.lt.s32.totalorder %s13, 3
      %s153 = scalar_select %p152, %s13, 3
      %s154 = smul.addr %s153, 2
      %s155 = scalar_lea.vmem %s1, %s154
      %p156 = scmp.lt.s32.totalorder %s13, 3
      %s157 = scalar_select %p156, %s13, 3
      %s158 = smul.addr %s157, 16
      %s159 = smul.addr %s158, 4
      %s160 = scalar_lea.vmem %s2, %s159
      %v162 = vld [vmem:[%s155] sm:$0x3]
      %v163 = vld [vmem:[%s151] sm:$0xff]
      %v164 = vld [vmem:[%s151 + $0x8] sm:$0xff]
      %v165 = vld [vmem:[%s151 + $0x10] sm:$0xff]
      %v166 = vld [vmem:[%s151 + $0x18] sm:$0xff]
      %v167 = vld [vmem:[%s151 + $0x20] sm:$0xff]
      %v168 = vld [vmem:[%s151 + $0x28] sm:$0xff]
      %v169 = vld [vmem:[%s151 + $0x30] sm:$0xff]
      %v170 = vld [vmem:[%s151 + $0x38] sm:$0xff]
      %v171 = vld [vmem:[%s151 + $0x40] sm:$0xff]
      %v172 = vld [vmem:[%s151 + $0x48] sm:$0xff]
      %v173 = vld [vmem:[%s151 + $0x50] sm:$0xff]
      %v174 = vld [vmem:[%s151 + $0x58] sm:$0xff]
      %v175 = vld [vmem:[%s151 + $0x60] sm:$0xff]
      %v176 = vld [vmem:[%s151 + $0x68] sm:$0xff]
      %v177 = vld [vmem:[%s151 + $0x70] sm:$0xff]
      %v178 = vld [vmem:[%s151 + $0x78] sm:$0xff]
      %v179 = vld [vmem:[%s151 + $0x80] sm:$0xff]
      %v180 = vld [vmem:[%s151 + $0x88] sm:$0xff]
      %v181 = vld [vmem:[%s151 + $0x90] sm:$0xff]
      %v182 = vld [vmem:[%s151 + $0x98] sm:$0xff]
      %v183 = vld [vmem:[%s151 + $0xa0] sm:$0xff]
      %v184 = vld [vmem:[%s151 + $0xa8] sm:$0xff]
      %v185 = vld [vmem:[%s151 + $0xb0] sm:$0xff]
      %v186 = vld [vmem:[%s151 + $0xb8] sm:$0xff]
      %v187 = vld [vmem:[%s151 + $0xc0] sm:$0xff]
      %v188 = vld [vmem:[%s151 + $0xc8] sm:$0xff]
      %v189 = vld [vmem:[%s151 + $0xd0] sm:$0xff]
      %v190 = vld [vmem:[%s151 + $0xd8] sm:$0xff]
      %v191 = vld [vmem:[%s151 + $0xe0] sm:$0xff]
      %v192 = vld [vmem:[%s151 + $0xe8] sm:$0xff]
      %v193 = vld [vmem:[%s151 + $0xf0] sm:$0xff]
      %v194 = vld [vmem:[%s151 + $0xf8] sm:$0xff]
      %v227 = vunpack.c.l.b16 %v163
      %v228 = vunpack.c.h.b16 %v163
      %v229 = vunpack.c.l.b16 %v164
      %v230 = vunpack.c.h.b16 %v164
      %v231 = vunpack.c.l.b16 %v165
      %v232 = vunpack.c.h.b16 %v165
      %v233 = vunpack.c.l.b16 %v166
      %v234 = vunpack.c.h.b16 %v166
      %v235 = vunpack.c.l.b16 %v167
      %v236 = vunpack.c.h.b16 %v167
      %v237 = vunpack.c.l.b16 %v168
      %v238 = vunpack.c.h.b16 %v168
      %v239 = vunpack.c.l.b16 %v169
      %v240 = vunpack.c.h.b16 %v169
      %v241 = vunpack.c.l.b16 %v170
      %v242 = vunpack.c.h.b16 %v170
      %v243 = vunpack.c.l.b16 %v171
      %v244 = vunpack.c.h.b16 %v171
      %v245 = vunpack.c.l.b16 %v172
      %v246 = vunpack.c.h.b16 %v172
      %v247 = vunpack.c.l.b16 %v173
      %v248 = vunpack.c.h.b16 %v173
      %v249 = vunpack.c.l.b16 %v174
      %v250 = vunpack.c.h.b16 %v174
      %v251 = vunpack.c.l.b16 %v175
      %v252 = vunpack.c.h.b16 %v175
      %v253 = vunpack.c.l.b16 %v176
      %v254 = vunpack.c.h.b16 %v176
      %v255 = vunpack.c.l.b16 %v177
      %v256 = vunpack.c.h.b16 %v177
      %v257 = vunpack.c.l.b16 %v178
      %v258 = vunpack.c.h.b16 %v178
      %v259 = vunpack.c.l.b16 %v179
      %v260 = vunpack.c.h.b16 %v179
      %v261 = vunpack.c.l.b16 %v180
      %v262 = vunpack.c.h.b16 %v180
      %v263 = vunpack.c.l.b16 %v181
      %v264 = vunpack.c.h.b16 %v181
      %v265 = vunpack.c.l.b16 %v182
      %v266 = vunpack.c.h.b16 %v182
      %v267 = vunpack.c.l.b16 %v183
      %v268 = vunpack.c.h.b16 %v183
      %v269 = vunpack.c.l.b16 %v184
      %v270 = vunpack.c.h.b16 %v184
      %v271 = vunpack.c.l.b16 %v185
      %v272 = vunpack.c.h.b16 %v185
      %v273 = vunpack.c.l.b16 %v186
      %v274 = vunpack.c.h.b16 %v186
      %v275 = vunpack.c.l.b16 %v187
      %v276 = vunpack.c.h.b16 %v187
      %v277 = vunpack.c.l.b16 %v188
      %v278 = vunpack.c.h.b16 %v188
      %v279 = vunpack.c.l.b16 %v189
      %v280 = vunpack.c.h.b16 %v189
      %v281 = vunpack.c.l.b16 %v190
      %v282 = vunpack.c.h.b16 %v190
      %v283 = vunpack.c.l.b16 %v191
      %v284 = vunpack.c.h.b16 %v191
      %v285 = vunpack.c.l.b16 %v192
      %v286 = vunpack.c.h.b16 %v192
      %v287 = vunpack.c.l.b16 %v193
      %v288 = vunpack.c.h.b16 %v193
      %v289 = vunpack.c.l.b16 %v194
      %v290 = vunpack.c.h.b16 %v194
      %v291 = vpack.c.b16 %v243, %v227
      %v292 = vpack.c.b16 %v244, %v228
      %v293 = vpack.c.b16 %v245, %v229
      %v294 = vpack.c.b16 %v246, %v230
      %v295 = vpack.c.b16 %v247, %v231
      %v296 = vpack.c.b16 %v248, %v232
      %v297 = vpack.c.b16 %v249, %v233
      %v298 = vpack.c.b16 %v250, %v234
      %v299 = vpack.c.b16 %v251, %v235
      %v300 = vpack.c.b16 %v252, %v236
      %v301 = vpack.c.b16 %v253, %v237
      %v302 = vpack.c.b16 %v254, %v238
      %v303 = vpack.c.b16 %v255, %v239
      %v304 = vpack.c.b16 %v256, %v240
      %v305 = vpack.c.b16 %v257, %v241
      %v306 = vpack.c.b16 %v258, %v242
      %v307 = vpack.c.b16 %v275, %v259
      %v308 = vpack.c.b16 %v276, %v260
      %v309 = vpack.c.b16 %v277, %v261
      %v310 = vpack.c.b16 %v278, %v262
      %v311 = vpack.c.b16 %v279, %v263
      %v312 = vpack.c.b16 %v280, %v264
      %v313 = vpack.c.b16 %v281, %v265
      %v314 = vpack.c.b16 %v282, %v266
      %v315 = vpack.c.b16 %v283, %v267
      %v316 = vpack.c.b16 %v284, %v268
      %v317 = vpack.c.b16 %v285, %v269
      %v318 = vpack.c.b16 %v286, %v270
      %v319 = vpack.c.b16 %v287, %v271
      %v320 = vpack.c.b16 %v288, %v272
      %v321 = vpack.c.b16 %v289, %v273
      %v322 = vpack.c.b16 %v290, %v274
      %vm355 = vcmask 261120
      %v357 = vsel %vm355, %v162, 0
      %359 = vmatprep.subr.bf16.mxu0 %v292
      %360 = vmatpush1.bf16.msra.mxu0 %v291
      %361 = vmatprep.subr.bf16.mxu0 %v308
      %362 = vmatpush1.bf16.msra.mxu0 %v307
      %363 = vmatprep.subr.bf16.mxu0 0
      %364 = vmatpush1.bf16.msra.mxu0 0
      %365 = vmatprep.subr.bf16.mxu0 0
      %366 = vmatpush1.bf16.msra.mxu0 0
      %367 = vmatprep.subr.bf16.mxu0 0
      %368 = vmatpush1.bf16.msra.mxu0 0
      %369 = vmatprep.subr.bf16.mxu0 0
      %370 = vmatpush1.bf16.msra.mxu0 0
      %371 = vmatprep.subr.bf16.mxu0 0
      %372 = vmatpush1.bf16.msra.mxu0 0
      %373 = vmatprep.subr.bf16.mxu0 0
      %374 = vmatpush1.bf16.msra.mxu0 0
      %375 = vmatprep.subr.bf16.mxu0 0
      %376 = vmatpush1.bf16.msra.mxu0 0
      %377 = vmatprep.subr.bf16.mxu0 0
      %378 = vmatpush1.bf16.msra.mxu0 0
      %379 = vmatprep.subr.bf16.mxu0 0
      %380 = vmatpush1.bf16.msra.mxu0 0
      %381 = vmatprep.subr.bf16.mxu0 0
      %382 = vmatpush1.bf16.msra.mxu0 0
      %383 = vmatprep.subr.bf16.mxu0 0
      %384 = vmatpush1.bf16.msra.mxu0 0
      %385 = vmatprep.subr.bf16.mxu0 0
      %386 = vmatpush1.bf16.msra.mxu0 0
      %387 = vmatprep.subr.bf16.mxu0 0
      %388 = vmatpush1.bf16.msra.mxu0 0
      %389 = vmatprep.subr.bf16.mxu0 0
      %390 = vmatpush1.bf16.msra.mxu0 0
      %391 = vmatprep.mubr.bf16.mxu0 0
      %392 = vmatmul.mubr.bf16.gmra.mrb[0].mxu0 %v357
      %v393 = vpop.f32.mrb[0].mxu0
      %v394 = vadd.f32 0.0, %v393
      %v395 = vpop.f32.mrb[0].mxu0
      %v396 = vadd.f32 0.0, %v395
      %v397 = vpop.f32.mrb[0].mxu0
      %v398 = vpop.f32.mrb[0].mxu0
      %399 = vdwg.mxu0
      %400 = vmatprep.subr.bf16.mxu0 %v294
      %401 = vmatpush1.bf16.msra.mxu0 %v293
      %402 = vmatprep.subr.bf16.mxu0 %v310
      %403 = vmatpush1.bf16.msra.mxu0 %v309
      %404 = vmatprep.subr.bf16.mxu0 0
      %405 = vmatpush1.bf16.msra.mxu0 0
      %406 = vmatprep.subr.bf16.mxu0 0
      %407 = vmatpush1.bf16.msra.mxu0 0
      %408 = vmatprep.subr.bf16.mxu0 0
      %409 = vmatpush1.bf16.msra.mxu0 0
      %410 = vmatprep.subr.bf16.mxu0 0
      %411 = vmatpush1.bf16.msra.mxu0 0
      %412 = vmatprep.subr.bf16.mxu0 0
      %413 = vmatpush1.bf16.msra.mxu0 0
      %414 = vmatprep.subr.bf16.mxu0 0
      %415 = vmatpush1.bf16.msra.mxu0 0
      %416 = vmatprep.subr.bf16.mxu0 0
      %417 = vmatpush1.bf16.msra.mxu0 0
      %418 = vmatprep.subr.bf16.mxu0 0
      %419 = vmatpush1.bf16.msra.mxu0 0
      %420 = vmatprep.subr.bf16.mxu0 0
      %421 = vmatpush1.bf16.msra.mxu0 0
      %422 = vmatprep.subr.bf16.mxu0 0
      %423 = vmatpush1.bf16.msra.mxu0 0
      %424 = vmatprep.subr.bf16.mxu0 0
      %425 = vmatpush1.bf16.msra.mxu0 0
      %426 = vmatprep.subr.bf16.mxu0 0
      %427 = vmatpush1.bf16.msra.mxu0 0
      %428 = vmatprep.subr.bf16.mxu0 0
      %429 = vmatpush1.bf16.msra.mxu0 0
      %430 = vmatprep.subr.bf16.mxu0 0
      %431 = vmatpush1.bf16.msra.mxu0 0
      %432 = vmatprep.mubr.bf16.mxu0 0
      %433 = vmatmul.mubr.bf16.gmra.mrb[0].mxu0 %v357
      %v434 = vpop.f32.mrb[0].mxu0
      %v435 = vadd.f32 0.0, %v434
      %v436 = vpop.f32.mrb[0].mxu0
      %v437 = vadd.f32 0.0, %v436
      %v438 = vpop.f32.mrb[0].mxu0
      %v439 = vpop.f32.mrb[0].mxu0
      %440 = vdwg.mxu0
      %441 = vmatprep.subr.bf16.mxu0 %v296
      %442 = vmatpush1.bf16.msra.mxu0 %v295
      %443 = vmatprep.subr.bf16.mxu0 %v312
      %444 = vmatpush1.bf16.msra.mxu0 %v311
      %445 = vmatprep.subr.bf16.mxu0 0
      %446 = vmatpush1.bf16.msra.mxu0 0
      %447 = vmatprep.subr.bf16.mxu0 0
      %448 = vmatpush1.bf16.msra.mxu0 0
      %449 = vmatprep.subr.bf16.mxu0 0
      %450 = vmatpush1.bf16.msra.mxu0 0
      %451 = vmatprep.subr.bf16.mxu0 0
      %452 = vmatpush1.bf16.msra.mxu0 0
      %453 = vmatprep.subr.bf16.mxu0 0
      %454 = vmatpush1.bf16.msra.mxu0 0
      %455 = vmatprep.subr.bf16.mxu0 0
      %456 = vmatpush1.bf16.msra.mxu0 0
      %457 = vmatprep.subr.bf16.mxu0 0
      %458 = vmatpush1.bf16.msra.mxu0 0
      %459 = vmatprep.subr.bf16.mxu0 0
      %460 = vmatpush1.bf16.msra.mxu0 0
      %461 = vmatprep.subr.bf16.mxu0 0
      %462 = vmatpush1.bf16.msra.mxu0 0
      %463 = vmatprep.subr.bf16.mxu0 0
      %464 = vmatpush1.bf16.msra.mxu0 0
      %465 = vmatprep.subr.bf16.mxu0 0
      %466 = vmatpush1.bf16.msra.mxu0 0
      %467 = vmatprep.subr.bf16.mxu0 0
      %468 = vmatpush1.bf16.msra.mxu0 0
      %469 = vmatprep.subr.bf16.mxu0 0
      %470 = vmatpush1.bf16.msra.mxu0 0
      %471 = vmatprep.subr.bf16.mxu0 0
      %472 = vmatpush1.bf16.msra.mxu0 0
      %473 = vmatprep.mubr.bf16.mxu0 0
      %474 = vmatmul.mubr.bf16.gmra.mrb[0].mxu0 %v357
      %v475 = vpop.f32.mrb[0].mxu0
      %v476 = vadd.f32 0.0, %v475
      %v477 = vpop.f32.mrb[0].mxu0
      %v478 = vadd.f32 0.0, %v477
      %v479 = vpop.f32.mrb[0].mxu0
      %v480 = vpop.f32.mrb[0].mxu0
      %481 = vdwg.mxu0
      %482 = vmatprep.subr.bf16.mxu0 %v298
      %483 = vmatpush1.bf16.msra.mxu0 %v297
      %484 = vmatprep.subr.bf16.mxu0 %v314
      %485 = vmatpush1.bf16.msra.mxu0 %v313
      %486 = vmatprep.subr.bf16.mxu0 0
      %487 = vmatpush1.bf16.msra.mxu0 0
      %488 = vmatprep.subr.bf16.mxu0 0
      %489 = vmatpush1.bf16.msra.mxu0 0
      %490 = vmatprep.subr.bf16.mxu0 0
      %491 = vmatpush1.bf16.msra.mxu0 0
      %492 = vmatprep.subr.bf16.mxu0 0
      %493 = vmatpush1.bf16.msra.mxu0 0
      %494 = vmatprep.subr.bf16.mxu0 0
      %495 = vmatpush1.bf16.msra.mxu0 0
      %496 = vmatprep.subr.bf16.mxu0 0
      %497 = vmatpush1.bf16.msra.mxu0 0
      %498 = vmatprep.subr.bf16.mxu0 0
      %499 = vmatpush1.bf16.msra.mxu0 0
      %500 = vmatprep.subr.bf16.mxu0 0
      %501 = vmatpush1.bf16.msra.mxu0 0
      %502 = vmatprep.subr.bf16.mxu0 0
      %503 = vmatpush1.bf16.msra.mxu0 0
      %504 = vmatprep.subr.bf16.mxu0 0
      %505 = vmatpush1.bf16.msra.mxu0 0
      %506 = vmatprep.subr.bf16.mxu0 0
      %507 = vmatpush1.bf16.msra.mxu0 0
      %508 = vmatprep.subr.bf16.mxu0 0
      %509 = vmatpush1.bf16.msra.mxu0 0
      %510 = vmatprep.subr.bf16.mxu0 0
      %511 = vmatpush1.bf16.msra.mxu0 0
      %512 = vmatprep.subr.bf16.mxu0 0
      %513 = vmatpush1.bf16.msra.mxu0 0
      %514 = vmatprep.mubr.bf16.mxu0 0
      %515 = vmatmul.mubr.bf16.gmra.mrb[0].mxu0 %v357
      %v516 = vpop.f32.mrb[0].mxu0
      %v517 = vadd.f32 0.0, %v516
      %v518 = vpop.f32.mrb[0].mxu0
      %v519 = vadd.f32 0.0, %v518
      %v520 = vpop.f32.mrb[0].mxu0
      %v521 = vpop.f32.mrb[0].mxu0
      %522 = vdwg.mxu0
      %523 = vmatprep.subr.bf16.mxu0 %v300
      %524 = vmatpush1.bf16.msra.mxu0 %v299
      %525 = vmatprep.subr.bf16.mxu0 %v316
      %526 = vmatpush1.bf16.msra.mxu0 %v315
      %527 = vmatprep.subr.bf16.mxu0 0
      %528 = vmatpush1.bf16.msra.mxu0 0
      %529 = vmatprep.subr.bf16.mxu0 0
      %530 = vmatpush1.bf16.msra.mxu0 0
      %531 = vmatprep.subr.bf16.mxu0 0
      %532 = vmatpush1.bf16.msra.mxu0 0
      %533 = vmatprep.subr.bf16.mxu0 0
      %534 = vmatpush1.bf16.msra.mxu0 0
      %535 = vmatprep.subr.bf16.mxu0 0
      %536 = vmatpush1.bf16.msra.mxu0 0
      %537 = vmatprep.subr.bf16.mxu0 0
      %538 = vmatpush1.bf16.msra.mxu0 0
      %539 = vmatprep.subr.bf16.mxu0 0
      %540 = vmatpush1.bf16.msra.mxu0 0
      %541 = vmatprep.subr.bf16.mxu0 0
      %542 = vmatpush1.bf16.msra.mxu0 0
      %543 = vmatprep.subr.bf16.mxu0 0
      %544 = vmatpush1.bf16.msra.mxu0 0
      %545 = vmatprep.subr.bf16.mxu0 0
      %546 = vmatpush1.bf16.msra.mxu0 0
      %547 = vmatprep.subr.bf16.mxu0 0
      %548 = vmatpush1.bf16.msra.mxu0 0
      %549 = vmatprep.subr.bf16.mxu0 0
      %550 = vmatpush1.bf16.msra.mxu0 0
      %551 = vmatprep.subr.bf16.mxu0 0
      %552 = vmatpush1.bf16.msra.mxu0 0
      %553 = vmatprep.subr.bf16.mxu0 0
      %554 = vmatpush1.bf16.msra.mxu0 0
      %555 = vmatprep.mubr.bf16.mxu0 0
      %556 = vmatmul.mubr.bf16.gmra.mrb[0].mxu0 %v357
      %v557 = vpop.f32.mrb[0].mxu0
      %v558 = vadd.f32 0.0, %v557
      %v559 = vpop.f32.mrb[0].mxu0
      %v560 = vadd.f32 0.0, %v559
      %v561 = vpop.f32.mrb[0].mxu0
      %v562 = vpop.f32.mrb[0].mxu0
      %563 = vdwg.mxu0
      %564 = vmatprep.subr.bf16.mxu0 %v302
      %565 = vmatpush1.bf16.msra.mxu0 %v301
      %566 = vmatprep.subr.bf16.mxu0 %v318
      %567 = vmatpush1.bf16.msra.mxu0 %v317
      %568 = vmatprep.subr.bf16.mxu0 0
      %569 = vmatpush1.bf16.msra.mxu0 0
      %570 = vmatprep.subr.bf16.mxu0 0
      %571 = vmatpush1.bf16.msra.mxu0 0
      %572 = vmatprep.subr.bf16.mxu0 0
      %573 = vmatpush1.bf16.msra.mxu0 0
      %574 = vmatprep.subr.bf16.mxu0 0
      %575 = vmatpush1.bf16.msra.mxu0 0
      %576 = vmatprep.subr.bf16.mxu0 0
      %577 = vmatpush1.bf16.msra.mxu0 0
      %578 = vmatprep.subr.bf16.mxu0 0
      %579 = vmatpush1.bf16.msra.mxu0 0
      %580 = vmatprep.subr.bf16.mxu0 0
      %581 = vmatpush1.bf16.msra.mxu0 0
      %582 = vmatprep.subr.bf16.mxu0 0
      %583 = vmatpush1.bf16.msra.mxu0 0
      %584 = vmatprep.subr.bf16.mxu0 0
      %585 = vmatpush1.bf16.msra.mxu0 0
      %586 = vmatprep.subr.bf16.mxu0 0
      %587 = vmatpush1.bf16.msra.mxu0 0
      %588 = vmatprep.subr.bf16.mxu0 0
      %589 = vmatpush1.bf16.msra.mxu0 0
      %590 = vmatprep.subr.bf16.mxu0 0
      %591 = vmatpush1.bf16.msra.mxu0 0
      %592 = vmatprep.subr.bf16.mxu0 0
      %593 = vmatpush1.bf16.msra.mxu0 0
      %594 = vmatprep.subr.bf16.mxu0 0
      %595 = vmatpush1.bf16.msra.mxu0 0
      %596 = vmatprep.mubr.bf16.mxu0 0
      %597 = vmatmul.mubr.bf16.gmra.mrb[0].mxu0 %v357
      %v598 = vpop.f32.mrb[0].mxu0
      %v599 = vadd.f32 0.0, %v598
      %v600 = vpop.f32.mrb[0].mxu0
      %v601 = vadd.f32 0.0, %v600
      %v602 = vpop.f32.mrb[0].mxu0
      %v603 = vpop.f32.mrb[0].mxu0
      %604 = vdwg.mxu0
      %605 = vmatprep.subr.bf16.mxu0 %v304
      %606 = vmatpush1.bf16.msra.mxu0 %v303
      %607 = vmatprep.subr.bf16.mxu0 %v320
      %608 = vmatpush1.bf16.msra.mxu0 %v319
      %609 = vmatprep.subr.bf16.mxu0 0
      %610 = vmatpush1.bf16.msra.mxu0 0
      %611 = vmatprep.subr.bf16.mxu0 0
      %612 = vmatpush1.bf16.msra.mxu0 0
      %613 = vmatprep.subr.bf16.mxu0 0
      %614 = vmatpush1.bf16.msra.mxu0 0
      %615 = vmatprep.subr.bf16.mxu0 0
      %616 = vmatpush1.bf16.msra.mxu0 0
      %617 = vmatprep.subr.bf16.mxu0 0
      %618 = vmatpush1.bf16.msra.mxu0 0
      %619 = vmatprep.subr.bf16.mxu0 0
      %620 = vmatpush1.bf16.msra.mxu0 0
      %621 = vmatprep.subr.bf16.mxu0 0
      %622 = vmatpush1.bf16.msra.mxu0 0
      %623 = vmatprep.subr.bf16.mxu0 0
      %624 = vmatpush1.bf16.msra.mxu0 0
      %625 = vmatprep.subr.bf16.mxu0 0
      %626 = vmatpush1.bf16.msra.mxu0 0
      %627 = vmatprep.subr.bf16.mxu0 0
      %628 = vmatpush1.bf16.msra.mxu0 0
      %629 = vmatprep.subr.bf16.mxu0 0
      %630 = vmatpush1.bf16.msra.mxu0 0
      %631 = vmatprep.subr.bf16.mxu0 0
      %632 = vmatpush1.bf16.msra.mxu0 0
      %633 = vmatprep.subr.bf16.mxu0 0
      %634 = vmatpush1.bf16.msra.mxu0 0
      %635 = vmatprep.subr.bf16.mxu0 0
      %636 = vmatpush1.bf16.msra.mxu0 0
      %637 = vmatprep.mubr.bf16.mxu0 0
      %638 = vmatmul.mubr.bf16.gmra.mrb[0].mxu0 %v357
      %v639 = vpop.f32.mrb[0].mxu0
      %v640 = vadd.f32 0.0, %v639
      %v641 = vpop.f32.mrb[0].mxu0
      %v642 = vadd.f32 0.0, %v641
      %v643 = vpop.f32.mrb[0].mxu0
      %v644 = vpop.f32.mrb[0].mxu0
      %645 = vdwg.mxu0
      %646 = vmatprep.subr.bf16.mxu0 %v306
      %647 = vmatpush1.bf16.msra.mxu0 %v305
      %648 = vmatprep.subr.bf16.mxu0 %v322
      %649 = vmatpush1.bf16.msra.mxu0 %v321
      %650 = vmatprep.subr.bf16.mxu0 0
      %651 = vmatpush1.bf16.msra.mxu0 0
      %652 = vmatprep.subr.bf16.mxu0 0
      %653 = vmatpush1.bf16.msra.mxu0 0
      %654 = vmatprep.subr.bf16.mxu0 0
      %655 = vmatpush1.bf16.msra.mxu0 0
      %656 = vmatprep.subr.bf16.mxu0 0
      %657 = vmatpush1.bf16.msra.mxu0 0
      %658 = vmatprep.subr.bf16.mxu0 0
      %659 = vmatpush1.bf16.msra.mxu0 0
      %660 = vmatprep.subr.bf16.mxu0 0
      %661 = vmatpush1.bf16.msra.mxu0 0
      %662 = vmatprep.subr.bf16.mxu0 0
      %663 = vmatpush1.bf16.msra.mxu0 0
      %664 = vmatprep.subr.bf16.mxu0 0
      %665 = vmatpush1.bf16.msra.mxu0 0
      %666 = vmatprep.subr.bf16.mxu0 0
      %667 = vmatpush1.bf16.msra.mxu0 0
      %668 = vmatprep.subr.bf16.mxu0 0
      %669 = vmatpush1.bf16.msra.mxu0 0
      %670 = vmatprep.subr.bf16.mxu0 0
      %671 = vmatpush1.bf16.msra.mxu0 0
      %672 = vmatprep.subr.bf16.mxu0 0
      %673 = vmatpush1.bf16.msra.mxu0 0
      %674 = vmatprep.subr.bf16.mxu0 0
      %675 = vmatpush1.bf16.msra.mxu0 0
      %676 = vmatprep.subr.bf16.mxu0 0
      %677 = vmatpush1.bf16.msra.mxu0 0
      %678 = vmatprep.mubr.bf16.mxu0 0
      %679 = vmatmul.mubr.bf16.gmra.mrb[0].mxu0 %v357
      %v680 = vpop.f32.mrb[0].mxu0
      %v681 = vadd.f32 0.0, %v680
      %v682 = vpop.f32.mrb[0].mxu0
      %v683 = vadd.f32 0.0, %v682
      %v684 = vpop.f32.mrb[0].mxu0
      %v685 = vpop.f32.mrb[0].mxu0
      %686 = vdwg.mxu0
      %v687 = vtanh.pop %v394
      %v688 = vtanh.pop %v396
      %v689 = vtanh.pop %v435
      %v690 = vtanh.pop %v437
      %v691 = vtanh.pop %v476
      %v692 = vtanh.pop %v478
      %v693 = vtanh.pop %v517
      %v694 = vtanh.pop %v519
      %v695 = vtanh.pop %v558
      %v696 = vtanh.pop %v560
      %v697 = vtanh.pop %v599
      %v698 = vtanh.pop %v601
      %v699 = vtanh.pop %v640
      %v700 = vtanh.pop %v642
      %v701 = vtanh.pop %v681
      %v702 = vtanh.pop %v683
      %v719 = vcombine.low %v687, %v688
      %v720 = vcombine.low %v689, %v690
      %v721 = vcombine.low %v691, %v692
      %v722 = vcombine.low %v693, %v694
      %v723 = vcombine.low %v695, %v696
      %v724 = vcombine.low %v697, %v698
      %v725 = vcombine.low %v699, %v700
      %v726 = vcombine.low %v701, %v702
      %735 = vst [vmem:[%s160] sm:$0x77] %v719
      %736 = vst [vmem:[%s160 + $0x8] sm:$0x77] %v720
      %737 = vst [vmem:[%s160 + $0x10] sm:$0x77] %v721
      %738 = vst [vmem:[%s160 + $0x18] sm:$0x77] %v722
      %739 = vst [vmem:[%s160 + $0x20] sm:$0x77] %v723
      %740 = vst [vmem:[%s160 + $0x28] sm:$0x77] %v724
      %741 = vst [vmem:[%s160 + $0x30] sm:$0x77] %v725
      %742 = vst [vmem:[%s160 + $0x38] sm:$0x77] %v726
      %p743 = scmp.lt.s32.totalorder %s13, 3
      %s744 = scalar_select %p743, %s13, 3
      %s745 = smul.addr %s744, 16
      %s746 = smul.addr %s745, 4
      %s747 = scalar_lea.vmem %s2, %s746
      // Predicated region
      $region29: #{generator_forward.9} parent=27 // pred_check
        %p748 = pneg %p83
      $region30: #{generator_forward.9} parent=27 // pred_check_branch
        %750 = sbr.rel (%p748) target = $region32
      $region31: #{generator_forward.9} parent=27 // pred_region
        _
      $region32: #{generator_forward.9} parent=27 // pred_fallthru
        _
    $region28: #{generator_forward.9} parent=5 // pred_fallthru
      _
    %p751 = scmp.le.s32.totalorder 2, %s8
    // Predicated region
    $region33: #{generator_forward.9} parent=5 // pred_check
      %p752 = pneg %p751
    $region34: #{generator_forward.9} parent=5 // pred_check_branch
      %754 = sbr.rel (%p752) target = $region36
    $region35: #{generator_forward.9} parent=5 // pred_region
      %s755 = ssub.s32 %s8, 2
      // Predicated region
      $region37: #{generator_forward.9} parent=35 // pred_check
        %p756 = pneg %p89
      $region38: #{generator_forward.9} parent=35 // pred_check_branch
        %758 = sbr.rel (%p756) target = $region40
      $region39: #{generator_forward.9} parent=35 // pred_region
        %p759 = scmp.lt.s32.totalorder %s14, 3
        %s760 = scalar_select %p759, %s14, 3
        %s761 = smul.addr %s760, 16
        %s762 = smul.addr %s761, 4
        %s763 = scalar_lea.vmem %s2, %s762
      $region40: #{generator_forward.9} parent=35 // pred_fallthru
        _
    $region36: #{generator_forward.9} parent=5 // pred_fallthru
      _
  $region6: #{generator_forward.9} parent=0 // loop_footer
    %s12 = sadd.s32 1, %s8
  $region7: #{generator_forward.9} parent=0 // loop_footer_branch
    %7 = sbr.rel target = $region3
  $region8: #{generator_forward.9} parent=0 // loop_exit
    _

</llo_original>
